<compile_context>
chip_gen: v7x
topology: tpu7x:2x2x1
jax: 0.10.0
libtpu: 0.0.40
codegen_flags: <defaults>
</compile_context>

<pallas_src>
import functools

import jax
import jax.numpy as jnp
from jax.experimental import pallas as pl
from jax.experimental.pallas import tpu as pltpu


def _softmax_lastdim(s):
    m = jnp.max(s, axis=-1, keepdims=True)
    p = jnp.exp(s - m)
    # approx reciprocal -> EUP slot, effectively free.
    return p * pl.reciprocal(jnp.sum(p, axis=-1, keepdims=True), approx=True)


def _mediator_attn_kernel(x_ref, med_ref, mask_ref, wq_ref, wkv_ref, wout_ref,
                          bout_ref, o_ref, *, dim, nheads, nmediators, seq_len,
                          block_b):
    H, M, L, D = nheads, nmediators, seq_len, dim
    bf16 = jnp.bfloat16
    f32 = jnp.float32

    # ---- fused q / kv projections over the whole (block_b * L, D) slab ------
    x = x_ref[...].reshape(block_b * L, D).astype(bf16)
    q = jnp.dot(x, wq_ref[...], preferred_element_type=f32).astype(bf16)     # [N, D]
    kv = jnp.dot(x, wkv_ref[...], preferred_element_type=f32).astype(bf16)   # [N, 2D]
    k = kv[:, :D]
    v = kv[:, D:]

    # ---- head-masked, pre-scaled mediator tokens: [H, M, D] -----------------
    # mask[h, f] = 1 iff feature f belongs to head h; med_ref is already scaled.
    mask = mask_ref[...]                                    # [H, D] bf16 (0/1)
    med_h = med_ref[...][None, :, :] * mask[:, None, :]     # [H, M, D] bf16

    outs = []
    for b in range(block_b):        # tiny static loop over batch rows in block
        qb = q[b * L:(b + 1) * L]                           # [L, D]
        kb = k[b * L:(b + 1) * L]
        vb = v[b * L:(b + 1) * L]
        q3 = jnp.broadcast_to(qb[None], (H, L, D))
        k3 = jnp.broadcast_to(kb[None], (H, L, D))
        v3 = jnp.broadcast_to(vb[None], (H, L, D))

        # stage 1: mediator -> key attention (softmax over sequence L)
        s1 = jnp.einsum('hmf,hlf->hml', med_h, k3, preferred_element_type=f32)
        a1 = _softmax_lastdim(s1).astype(bf16)              # [H, M, L]
        mkv = jnp.einsum('hml,hlf->hmf', a1, v3, preferred_element_type=f32)
        mkv = (mkv * mask[:, None, :]).astype(bf16)         # keep own-head cols only

        # stage 2: query -> mediator attention (softmax over mediators M)
        s2 = jnp.einsum('hlf,hmf->hlm', q3, med_h, preferred_element_type=f32)
        a2 = _softmax_lastdim(s2).astype(bf16)              # [H, L, M]
        o3 = jnp.einsum('hlm,hmf->hlf', a2, mkv, preferred_element_type=f32)

        # head merge: off-head columns of o3 are zero, so a sum over heads is
        # exactly 'b h l d -> b l (h d)' (no lane-wise concatenate needed).
        outs.append(jnp.sum(o3, axis=0))                    # [L, D]

    o_rows = outs[0] if block_b == 1 else jnp.concatenate(outs, axis=0)  # [N, D]

    # ---- output projection on the full slab (lane-dense store) --------------
    out = jnp.dot(o_rows.astype(bf16), wout_ref[...],
                  preferred_element_type=f32) + bout_ref[...]
    o_ref[...] = out.reshape(block_b, L, D).astype(o_ref.dtype)


def _pick_block_b(batch, seq_len, target_rows=256):
    """Largest batch block s.t. block*L <= target rows, keeping >=2 grid steps."""
    if seq_len % 8 != 0:
        return 1
    best = 1
    for cand in range(1, batch + 1):
        if batch % cand:
            continue
        if cand * seq_len > target_rows:
            continue
        if batch >= 2 and batch // cand < 2:
            continue        # keep >=2 grid steps so v7x can use both TensorCores
        best = cand
    return best


def mediator_attention(x, med, wq, wkv, wout, bout, *, nheads, block_b=None):
    # x: [B, L, D]; med: [M, D]; wq: [D, D]; wkv: [D, 2D]; wout: [D, D]; bout: [1, D]
    B, L, D = x.shape
    M = med.shape[0]
    dh = D // nheads
    scale = dh ** (-0.5)
    if block_b is None:
        block_b = _pick_block_b(B, L)
    assert B % block_b == 0

    bf16 = jnp.bfloat16
    # Pre-scale mediators once (replaces per-score scaling) and cast params to
    # bf16 so matmul inputs hit the MXU bf16 rate (f32 accumulation in-kernel).
    med_s = (med * scale).astype(bf16)
    head_ids = jnp.arange(D, dtype=jnp.int32) // dh
    mask = (head_ids[None, :] ==
            jnp.arange(nheads, dtype=jnp.int32)[:, None]).astype(bf16)   # [H, D]

    kernel = functools.partial(_mediator_attn_kernel, dim=D, nheads=nheads,
                               nmediators=M, seq_len=L, block_b=block_b)

    return pl.pallas_call(
        kernel,
        out_shape=jax.ShapeDtypeStruct((B, L, D), x.dtype),
        grid_spec=pltpu.PrefetchScalarGridSpec(
            num_scalar_prefetch=0,
            grid=(B // block_b,),
            in_specs=[
                pl.BlockSpec((block_b, L, D), lambda i: (i, 0, 0)),  # x
                pl.BlockSpec((M, D), lambda i: (0, 0)),              # scaled mediators
                pl.BlockSpec((nheads, D), lambda i: (0, 0)),         # head mask
                pl.BlockSpec((D, D), lambda i: (0, 0)),              # Wq
                pl.BlockSpec((D, 2 * D), lambda i: (0, 0)),          # Wkv
                pl.BlockSpec((D, D), lambda i: (0, 0)),              # Wout
                pl.BlockSpec((1, D), lambda i: (0, 0)),              # out bias
            ],
            out_specs=pl.BlockSpec((block_b, L, D), lambda i: (i, 0, 0)),
        ),
        compiler_params=pltpu.CompilerParams(
            dimension_semantics=("parallel",)),
    )(x, med_s, mask, wq.astype(bf16), wkv.astype(bf16), wout.astype(bf16), bout)


def mediator_attention_ref(x, med, wq, wkv, wout, bout, *, nheads):
    """Pure-JAX f32 reference mirroring the PyTorch forward."""
    B, L, D = x.shape
    M = med.shape[0]
    dh = D // nheads
    scale = dh ** (-0.5)

    q = x @ wq
    kv = x @ wkv
    k, v = kv[..., :D], kv[..., D:]

    def to_heads(t):  # [B, L, D] -> [B, H, L, dh]
        return t.reshape(t.shape[0], t.shape[1], nheads, dh).transpose(0, 2, 1, 3)

    qh, kh, vh = map(to_heads, (q, k, v))
    mh = med.reshape(M, nheads, dh).transpose(1, 0, 2)           # [H, M, dh]

    mk = jax.nn.softmax(jnp.einsum('hmd,bhld->bhml', mh, kh) * scale, axis=-1)
    mk_v = jnp.einsum('bhml,bhld->bhmd', mk, vh)                 # [B, H, M, dh]
    qm = jax.nn.softmax(jnp.einsum('bhld,hmd->bhlm', qh, mh) * scale, axis=-1)
    o = jnp.einsum('bhlm,bhmd->bhld', qm, mk_v)                  # [B, H, L, dh]
    o = o.transpose(0, 2, 1, 3).reshape(B, L, D)
    return o @ wout + bout[0]


if __name__ == "__main__":
    # Small shapes consistent with the module (dim divisible by nheads).
    B, L, D = 2, 16, 128
    NHEADS = 16
    NMEDIATORS = 64

    key = jax.random.PRNGKey(0)
    k_x, k_med, k_q, k_kv, k_o = jax.random.split(key, 5)

    x = jax.random.normal(k_x, (B, L, D), dtype=jnp.float32)

    # Deterministic synthetic parameters (shapes per __init__):
    #   mediator_token: [nmediators, dim]  (PyTorch [1, nmediators, dim], squeezed)
    #   to_q:  Linear(D, D, bias=False)   -> wq  [D, D]   (stored transposed)
    #   to_kv: Linear(D, 2D, bias=False)  -> wkv [D, 2D]
    #   out_proj: Linear(D, D, bias)      -> wout [D, D], bout [1, D]
    med = 0.02 * jax.random.truncated_normal(k_med, -2.0, 2.0, (NMEDIATORS, D),
                                             dtype=jnp.float32)
    xav = (6.0 / (D + D)) ** 0.5
    xav_kv = (6.0 / (D + 2 * D)) ** 0.5
    wq = jax.random.uniform(k_q, (D, D), minval=-xav, maxval=xav, dtype=jnp.float32)
    wkv = jax.random.uniform(k_kv, (D, 2 * D), minval=-xav_kv, maxval=xav_kv,
                             dtype=jnp.float32)
    wout = jax.random.uniform(k_o, (D, D), minval=-xav, maxval=xav, dtype=jnp.float32)
    bout = jnp.zeros((1, D), dtype=jnp.float32)

    # attn_drop = proj_drop = 0.0 -> dropout is identity; omitted.

    out = mediator_attention(x, med, wq, wkv, wout, bout, nheads=NHEADS)
    out = jax.block_until_ready(out)

    ref = mediator_attention_ref(x, med, wq, wkv, wout, bout, nheads=NHEADS)
    assert out.shape == (B, L, D)
    max_err = float(jnp.max(jnp.abs(out - ref)))
    # bf16 matmul inputs + approx reciprocal -> loosened tolerance (per review).
    assert jnp.allclose(out, ref, atol=3e-2, rtol=3e-2), (
        f"mismatch vs reference (max abs err {max_err})")

    print("KERNEL_OK")
</pallas_src>

<mosaic_0001>
module attributes {stable_mosaic.version = 11 : i64} {
  func.func @_mediator_attn_kernel(%arg0: i32, %arg1: memref<1x16x128xf32, #tpu.memory_space<vmem>>, %arg2: memref<64x128xbf16, #tpu.memory_space<vmem>>, %arg3: memref<16x128xbf16, #tpu.memory_space<vmem>>, %arg4: memref<128x128xbf16, #tpu.memory_space<vmem>>, %arg5: memref<128x256xbf16, #tpu.memory_space<vmem>>, %arg6: memref<128x128xbf16, #tpu.memory_space<vmem>>, %arg7: memref<1x128xf32, #tpu.memory_space<vmem>>, %arg8: memref<1x16x128xf32, #tpu.memory_space<vmem>>) attributes {dimension_semantics = [#tpu.dimension_semantics<parallel>], iteration_bounds = array<i64: 2>, scalar_prefetch = 0 : i64, scratch_operands = 0 : i64, tpu.core_type = #tpu.core_type<tc>, window_params = [{transform_indices = @transform_0, window_bounds = array<i64: 1, 16, 128>}, {pipeline_mode = #tpu.pipeline_mode<synchronous>, transform_indices = @transform_1, window_bounds = array<i64: 64, 128>}, {pipeline_mode = #tpu.pipeline_mode<synchronous>, transform_indices = @transform_2, window_bounds = array<i64: 16, 128>}, {pipeline_mode = #tpu.pipeline_mode<synchronous>, transform_indices = @transform_3, window_bounds = array<i64: 128, 128>}, {pipeline_mode = #tpu.pipeline_mode<synchronous>, transform_indices = @transform_4, window_bounds = array<i64: 128, 256>}, {pipeline_mode = #tpu.pipeline_mode<synchronous>, transform_indices = @transform_5, window_bounds = array<i64: 128, 128>}, {pipeline_mode = #tpu.pipeline_mode<synchronous>, transform_indices = @transform_6, window_bounds = array<i64: 1, 128>}, {transform_indices = @transform_7, window_bounds = array<i64: 1, 16, 128>}]} {
    %c0 = arith.constant 0 : index
    %c0_0 = arith.constant 0 : index
    %c0_1 = arith.constant 0 : index
    %0 = vector.load %arg1[%c0, %c0_0, %c0_1] : memref<1x16x128xf32, #tpu.memory_space<vmem>>, vector<1x16x128xf32>
    %1 = vector.shape_cast %0 : vector<1x16x128xf32> to vector<16x128xf32>
    %2 = arith.truncf %1 : vector<16x128xf32> to vector<16x128xbf16>
    %c0_2 = arith.constant 0 : index
    %c0_3 = arith.constant 0 : index
    %3 = vector.load %arg4[%c0_2, %c0_3] : memref<128x128xbf16, #tpu.memory_space<vmem>>, vector<128x128xbf16>
    %cst = arith.constant dense<0.000000e+00> : vector<16x128xf32>
    %4 = tpu.matmul %2, %3, %cst {dimension_numbers = #tpu.dot_dimension_numbers<[1], [0], [0], [1], [0, 0, 1, 1], [], []>} : vector<16x128xbf16>, vector<128x128xbf16>, vector<16x128xf32> -> vector<16x128xf32>
    %5 = arith.truncf %4 : vector<16x128xf32> to vector<16x128xbf16>
    %c0_4 = arith.constant 0 : index
    %c0_5 = arith.constant 0 : index
    %6 = vector.load %arg5[%c0_4, %c0_5] : memref<128x256xbf16, #tpu.memory_space<vmem>>, vector<128x256xbf16>
    %cst_6 = arith.constant dense<0.000000e+00> : vector<16x256xf32>
    %7 = tpu.matmul %2, %6, %cst_6 {dimension_numbers = #tpu.dot_dimension_numbers<[1], [0], [0], [1], [0, 0, 1, 1], [], []>} : vector<16x128xbf16>, vector<128x256xbf16>, vector<16x256xf32> -> vector<16x256xf32>
    %8 = arith.truncf %7 : vector<16x256xf32> to vector<16x256xbf16>
    %9 = vector.extract_strided_slice %8 {offsets = [0, 0], sizes = [16, 128], strides = [1, 1]} : vector<16x256xbf16> to vector<16x128xbf16>
    %10 = vector.extract_strided_slice %8 {offsets = [0, 128], sizes = [16, 128], strides = [1, 1]} : vector<16x256xbf16> to vector<16x128xbf16>
    %c0_7 = arith.constant 0 : index
    %c0_8 = arith.constant 0 : index
    %11 = vector.load %arg3[%c0_7, %c0_8] : memref<16x128xbf16, #tpu.memory_space<vmem>>, vector<16x128xbf16>
    %c0_9 = arith.constant 0 : index
    %c0_10 = arith.constant 0 : index
    %12 = vector.load %arg2[%c0_9, %c0_10] : memref<64x128xbf16, #tpu.memory_space<vmem>>, vector<64x128xbf16>
    %13 = vector.shape_cast %12 : vector<64x128xbf16> to vector<1x64x128xbf16>
    %14 = vector.shape_cast %11 : vector<16x128xbf16> to vector<16x1x128xbf16>
    %15 = vector.broadcast %13 : vector<1x64x128xbf16> to vector<16x64x128xbf16>
    %16 = vector.broadcast %14 : vector<16x1x128xbf16> to vector<16x64x128xbf16>
    %17 = arith.mulf %15, %16 : vector<16x64x128xbf16>
    %18 = vector.shape_cast %5 : vector<16x128xbf16> to vector<1x16x128xbf16>
    %19 = vector.shape_cast %18 : vector<1x16x128xbf16> to vector<1x16x128xbf16>
    %20 = vector.broadcast %19 : vector<1x16x128xbf16> to vector<16x16x128xbf16>
    %21 = vector.shape_cast %9 : vector<16x128xbf16> to vector<1x16x128xbf16>
    %22 = vector.shape_cast %21 : vector<1x16x128xbf16> to vector<1x16x128xbf16>
    %23 = vector.broadcast %22 : vector<1x16x128xbf16> to vector<16x16x128xbf16>
    %24 = vector.shape_cast %10 : vector<16x128xbf16> to vector<1x16x128xbf16>
    %25 = vector.shape_cast %24 : vector<1x16x128xbf16> to vector<1x16x128xbf16>
    %26 = vector.broadcast %25 : vector<1x16x128xbf16> to vector<16x16x128xbf16>
    "tpu.trace_start"() <{level = 10 : i32, message = "hmf,hlf->hml"}> : () -> ()
    %cst_11 = arith.constant dense<0.000000e+00> : vector<16x64x16xf32>
    %27 = tpu.matmul %17, %23, %cst_11 {dimension_numbers = #tpu.dot_dimension_numbers<[2], [2], [1], [1], [0, 0, 0, 1, 1, 1], [0], [0]>} : vector<16x64x128xbf16>, vector<16x16x128xbf16>, vector<16x64x16xf32> -> vector<16x64x16xf32>
    "tpu.trace_stop"() : () -> ()
    %cst_12 = arith.constant dense<0xFF800000> : vector<16x64xf32>
    %28 = vector.multi_reduction <maximumf>, %27, %cst_12 [2] : vector<16x64x16xf32> to vector<16x64xf32>
    %29 = vector.shape_cast %28 : vector<16x64xf32> to vector<16x64x1xf32>
    %30 = vector.broadcast %29 : vector<16x64x1xf32> to vector<16x64x16xf32>
    %31 = arith.subf %27, %30 : vector<16x64x16xf32>
    %32 = math.exp %31 : vector<16x64x16xf32>
    %cst_13 = arith.constant dense<0.000000e+00> : vector<16x64xf32>
    %33 = vector.multi_reduction <add>, %32, %cst_13 [2] : vector<16x64x16xf32> to vector<16x64xf32>
    %34 = vector.shape_cast %33 : vector<16x64xf32> to vector<16x64x1xf32>
    %35 = tpu.reciprocal %34 {approx = true} : vector<16x64x1xf32> -> vector<16x64x1xf32>
    %36 = vector.broadcast %35 : vector<16x64x1xf32> to vector<16x64x16xf32>
    %37 = arith.mulf %32, %36 : vector<16x64x16xf32>
    %38 = arith.truncf %37 : vector<16x64x16xf32> to vector<16x64x16xbf16>
    "tpu.trace_start"() <{level = 10 : i32, message = "hml,hlf->hmf"}> : () -> ()
    %cst_14 = arith.constant dense<0.000000e+00> : vector<16x64x128xf32>
    %39 = tpu.matmul %38, %26, %cst_14 {dimension_numbers = #tpu.dot_dimension_numbers<[2], [1], [1], [2], [0, 0, 0, 1, 1, 2], [0], [0]>} : vector<16x64x16xbf16>, vector<16x16x128xbf16>, vector<16x64x128xf32> -> vector<16x64x128xf32>
    "tpu.trace_stop"() : () -> ()
    %40 = vector.shape_cast %11 : vector<16x128xbf16> to vector<16x1x128xbf16>
    %41 = arith.extf %40 : vector<16x1x128xbf16> to vector<16x1x128xf32>
    %42 = vector.broadcast %41 : vector<16x1x128xf32> to vector<16x64x128xf32>
    %43 = arith.mulf %39, %42 : vector<16x64x128xf32>
    %44 = arith.truncf %43 : vector<16x64x128xf32> to vector<16x64x128xbf16>
    "tpu.trace_start"() <{level = 10 : i32, message = "hlf,hmf->hlm"}> : () -> ()
    %cst_15 = arith.constant dense<0.000000e+00> : vector<16x16x64xf32>
    %45 = tpu.matmul %20, %17, %cst_15 {dimension_numbers = #tpu.dot_dimension_numbers<[2], [2], [1], [1], [0, 0, 0, 1, 1, 1], [0], [0]>} : vector<16x16x128xbf16>, vector<16x64x128xbf16>, vector<16x16x64xf32> -> vector<16x16x64xf32>
    "tpu.trace_stop"() : () -> ()
    %cst_16 = arith.constant dense<0xFF800000> : vector<16x16xf32>
    %46 = vector.multi_reduction <maximumf>, %45, %cst_16 [2] : vector<16x16x64xf32> to vector<16x16xf32>
    %47 = vector.shape_cast %46 : vector<16x16xf32> to vector<16x16x1xf32>
    %48 = vector.broadcast %47 : vector<16x16x1xf32> to vector<16x16x64xf32>
    %49 = arith.subf %45, %48 : vector<16x16x64xf32>
    %50 = math.exp %49 : vector<16x16x64xf32>
    %cst_17 = arith.constant dense<0.000000e+00> : vector<16x16xf32>
    %51 = vector.multi_reduction <add>, %50, %cst_17 [2] : vector<16x16x64xf32> to vector<16x16xf32>
    %52 = vector.shape_cast %51 : vector<16x16xf32> to vector<16x16x1xf32>
    %53 = tpu.reciprocal %52 {approx = true} : vector<16x16x1xf32> -> vector<16x16x1xf32>
    %54 = vector.broadcast %53 : vector<16x16x1xf32> to vector<16x16x64xf32>
    %55 = arith.mulf %50, %54 : vector<16x16x64xf32>
    %56 = arith.truncf %55 : vector<16x16x64xf32> to vector<16x16x64xbf16>
    "tpu.trace_start"() <{level = 10 : i32, message = "hlm,hmf->hlf"}> : () -> ()
    %cst_18 = arith.constant dense<0.000000e+00> : vector<16x16x128xf32>
    %57 = tpu.matmul %56, %44, %cst_18 {dimension_numbers = #tpu.dot_dimension_numbers<[2], [1], [1], [2], [0, 0, 0, 1, 1, 2], [0], [0]>} : vector<16x16x64xbf16>, vector<16x64x128xbf16>, vector<16x16x128xf32> -> vector<16x16x128xf32>
    "tpu.trace_stop"() : () -> ()
    %cst_19 = arith.constant dense<0.000000e+00> : vector<16x128xf32>
    %58 = vector.multi_reduction <add>, %57, %cst_19 [0] : vector<16x16x128xf32> to vector<16x128xf32>
    %59 = arith.truncf %58 : vector<16x128xf32> to vector<16x128xbf16>
    %c0_20 = arith.constant 0 : index
    %c0_21 = arith.constant 0 : index
    %60 = vector.load %arg6[%c0_20, %c0_21] : memref<128x128xbf16, #tpu.memory_space<vmem>>, vector<128x128xbf16>
    %cst_22 = arith.constant dense<0.000000e+00> : vector<16x128xf32>
    %61 = tpu.matmul %59, %60, %cst_22 {dimension_numbers = #tpu.dot_dimension_numbers<[1], [0], [0], [1], [0, 0, 1, 1], [], []>} : vector<16x128xbf16>, vector<128x128xbf16>, vector<16x128xf32> -> vector<16x128xf32>
    %c0_23 = arith.constant 0 : index
    %c0_24 = arith.constant 0 : index
    %62 = vector.load %arg7[%c0_23, %c0_24] : memref<1x128xf32, #tpu.memory_space<vmem>>, vector<1x128xf32>
    %63 = vector.broadcast %62 : vector<1x128xf32> to vector<16x128xf32>
    %64 = arith.addf %61, %63 : vector<16x128xf32>
    %65 = vector.shape_cast %64 : vector<16x128xf32> to vector<1x16x128xf32>
    %c0_25 = arith.constant 0 : index
    %c0_26 = arith.constant 0 : index
    %c0_27 = arith.constant 0 : index
    %66 = vector.load %arg8[%c0_25, %c0_26, %c0_27] : memref<1x16x128xf32, #tpu.memory_space<vmem>>, vector<1x16x128xf32>
    tpu.vector_store %arg8[%c0_25, %c0_26, %c0_27], %65 {strides = array<i32>} : memref<1x16x128xf32, #tpu.memory_space<vmem>>, vector<1x16x128xf32>,
    return
  }
  func.func @transform_0(%arg0: i32) -> (i32, i32, i32) {
    %c0_i32 = arith.constant 0 : i32
    %c0_i32_0 = arith.constant 0 : i32
    %c0_i32_1 = arith.constant 0 : i32
    return %arg0, %c0_i32, %c0_i32_0 : i32, i32, i32
  }
  func.func @transform_1(%arg0: i32) -> (i32, i32) {
    %c0_i32 = arith.constant 0 : i32
    %c0_i32_0 = arith.constant 0 : i32
    %c0_i32_1 = arith.constant 0 : i32
    return %c0_i32, %c0_i32_0 : i32, i32
  }
  func.func @transform_2(%arg0: i32) -> (i32, i32) {
    %c0_i32 = arith.constant 0 : i32
    %c0_i32_0 = arith.constant 0 : i32
    %c0_i32_1 = arith.constant 0 : i32
    return %c0_i32, %c0_i32_0 : i32, i32
  }
  func.func @transform_3(%arg0: i32) -> (i32, i32) {
    %c0_i32 = arith.constant 0 : i32
    %c0_i32_0 = arith.constant 0 : i32
    %c0_i32_1 = arith.constant 0 : i32
    return %c0_i32, %c0_i32_0 : i32, i32
  }
  func.func @transform_4(%arg0: i32) -> (i32, i32) {
    %c0_i32 = arith.constant 0 : i32
    %c0_i32_0 = arith.constant 0 : i32
    %c0_i32_1 = arith.constant 0 : i32
    return %c0_i32, %c0_i32_0 : i32, i32
  }
  func.func @transform_5(%arg0: i32) -> (i32, i32) {
    %c0_i32 = arith.constant 0 : i32
    %c0_i32_0 = arith.constant 0 : i32
    %c0_i32_1 = arith.constant 0 : i32
    return %c0_i32, %c0_i32_0 : i32, i32
  }
  func.func @transform_6(%arg0: i32) -> (i32, i32) {
    %c0_i32 = arith.constant 0 : i32
    %c0_i32_0 = arith.constant 0 : i32
    %c0_i32_1 = arith.constant 0 : i32
    return %c0_i32, %c0_i32_0 : i32, i32
  }
  func.func @transform_7(%arg0: i32) -> (i32, i32, i32) {
    %c0_i32 = arith.constant 0 : i32
    %c0_i32_0 = arith.constant 0 : i32
    %c0_i32_1 = arith.constant 0 : i32
    return %arg0, %c0_i32, %c0_i32_0 : i32, i32, i32
  }
}

</mosaic_0001>

<llo_original>
// kernel: tpu_custom_call.1
$region0: #{tpu_custom_call.1}
  #allocation0 [shape = 'u32[]', space=smem, size = 0x4, offset = 0x4, fixed_abs, tag = 'smem constant byte address 0x4 - core index']
  #allocation1 [shape = 'u32[144,128]{1,0:T(1,128)}', space=vmem, size = 0x12000, scoped, tag = 'internal scratch']
  %s0 = inlined_call_operand.hbm [shape: f32[2,16,128], index: 0, kind: input, shape index: {}]
  %s1 = inlined_call_operand.hbm [shape: bf16[64,128], index: 1, kind: input, shape index: {}]
  %s2 = inlined_call_operand.hbm [shape: bf16[16,128], index: 2, kind: input, shape index: {}]
  %s3 = inlined_call_operand.hbm [shape: bf16[128,128], index: 3, kind: input, shape index: {}]
  %s4 = inlined_call_operand.hbm [shape: bf16[128,256], index: 4, kind: input, shape index: {}]
  %s5 = inlined_call_operand.hbm [shape: bf16[128,128], index: 5, kind: input, shape index: {}]
  %s6 = inlined_call_operand.vmem [shape: f32[1,128], index: 6, kind: input, shape index: {}]
  %s7 = inlined_call_operand.hbm [shape: f32[2,16,128], index: 7, kind: output, shape index: {}]
  %s8 = sld [smem:[#allocation0]]
  $region85: #{tpu_custom_call.1} parent=0
    _
  %s10 = ssub.s32 1, %s8
  %s11 = scalar_select 0, %s10, %s8
  $region1: #{tpu_custom_call.1} parent=0
    #allocation2 [shape = 'u8[16384]{0}', space=vmem, size = 0x4000, scoped, tag = 'input window, operand 0']
    #allocation3 [shape = 's32[2]{0}', space=sflag, size = 0x8, scoped, tag = 'scoped memory for tpu_custom_call.1']
    #allocation4 [shape = 's32[2]{0}', space=sflag, size = 0x8, scoped, tag = 'scoped memory for tpu_custom_call.1']
    #allocation5 [shape = 'u8[16384]{0}', space=vmem, size = 0x4000, scoped, tag = 'input window, operand 1, single buffered']
    #allocation6 [shape = 's32[1]{0}', space=sflag, size = 0x4, scoped, tag = 'scoped memory for tpu_custom_call.1']
    #allocation7 [shape = 'u8[4096]{0}', space=vmem, size = 0x1000, scoped, tag = 'input window, operand 2, single buffered']
    #allocation8 [shape = 'u8[32768]{0}', space=vmem, size = 0x8000, scoped, tag = 'input window, operand 3, single buffered']
    #allocation9 [shape = 's32[1]{0}', space=sflag, size = 0x4, scoped, tag = 'scoped memory for tpu_custom_call.1']
    #allocation10 [shape = 'u8[65536]{0}', space=vmem, size = 0x10000, scoped, tag = 'input window, operand 4, single buffered']
    #allocation11 [shape = 'u8[32768]{0}', space=vmem, size = 0x8000, scoped, tag = 'input window, operand 5, single buffered']
    #allocation12 [shape = 's32[1]{0}', space=sflag, size = 0x4, scoped, tag = 'scoped memory for tpu_custom_call.1']
    #allocation13 [shape = 'u8[16384]{0}', space=vmem, size = 0x4000, scoped, tag = 'output window, operand 0']
    %12 = vsyncpa [#allocation3], 0
    %s13 = scalar_lea.sflag [#allocation3], 1
    %14 = vsyncpa %s13, 0
    %15 = vsyncpa [#allocation6], 0
    %16 = vsyncpa [#allocation9], 0
    %17 = vsyncpa [#allocation12], 0
    %18 = vsyncpa [#allocation4], 0
    %s19 = scalar_lea.sflag [#allocation4], 1
    %20 = vsyncpa %s19, 0
    loop: start=0, step=1, limit=4
    $region2: #{tpu_custom_call.1} parent=1 // loop_pre_header
      _
    $region3: #{tpu_custom_call.1} parent=1 // loop_header
      %s22 = sphi 0, %s26
      %p23 = scmp.ge.s32.totalorder %s22, 4
      %s32 = sphi 0, %s34
      %s35 = sphi 0, %s32
      %s36 = sphi 0, %s35
      %s52 = sphi 0, %s36
      %s56 = sphi 0, %s56
      %s58 = sphi 0, %s56
      %s59 = sphi 0, %s58
      %s73 = sphi 0, %s59
      %s77 = sphi 0, %s77
      %s79 = sphi 0, %s77
      %s80 = sphi 0, %s79
      %s94 = sphi 0, %s80
      %s98 = sphi 0, %s98
      %s100 = sphi 0, %s98
      %s101 = sphi 0, %s100
      %s115 = sphi 0, %s101
      %s119 = sphi 0, %s119
      %s121 = sphi 0, %s119
      %s122 = sphi 0, %s121
      %s136 = sphi 0, %s122
      %s140 = sphi 0, %s140
      %s142 = sphi 0, %s140
      %s143 = sphi 0, %s142
      %s157 = sphi 0, %s143
      %s161 = sphi 0, %s161
      %s163 = sphi 0, %s161
      %s164 = sphi 0, %s163
      %s178 = sphi 0, %s164
      %s184 = sphi 0, %s186
      %s187 = sphi 0, %s184
      %s188 = sphi 0, %s187
      %s204 = sphi 0, %s188
    $region4: #{tpu_custom_call.1} parent=1 // loop_header_branch
      %25 = sbr.rel (%p23) target = $region8
    $region5: #{tpu_custom_call.1} parent=1 // loop_body
      %s27 = ssub.s32 %s22, 1
      %s28 = ssub.s32 %s22, 2
      %s29 = sadd.s32 %s22, 1
      %s30 = ssub.s32 %s22, %s29
      %p31 = scmp.eq.s32.totalorder %s30, 0
      %s33 = sadd.s32 %s32, 1
      %s34 = scalar_select %p31, %s32, %s33
      %p37 = pneg %p31
      %p38 = scmp.eq.s32.totalorder %s22, 1
      %p39 = por %p37, %p38
      %p40 = scmp.ne.s32.totalorder %s32, %s35
      %p41 = scmp.eq.s32.totalorder %s22, 0
      %p42 = por %p40, %p41
      %p43 = scmp.ne.s32.totalorder %s32, %s35
      %p44 = scmp.eq.s32.totalorder %s27, 1
      %p45 = por %p43, %p44
      %p46 = scmp.ne.s32.totalorder %s35, %s36
      %p47 = scmp.eq.s32.totalorder %s27, 0
      %p48 = por %p46, %p47
      %p49 = scmp.ne.s32.totalorder %s35, %s36
      %p50 = scmp.eq.s32.totalorder %s28, 1
      %p51 = por %p49, %p50
      %p53 = scmp.ne.s32.totalorder %s36, %s52
      %p54 = scmp.eq.s32.totalorder %s28, 0
      %p55 = por %p53, %p54
      %s57 = sadd.s32 %s56, 1
      %p60 = scmp.eq.s32.totalorder %s22, 1
      %p61 = scmp.ne.s32.totalorder %s56, %s58
      %p62 = scmp.eq.s32.totalorder %s22, 0
      %p63 = por %p61, %p62
      %p64 = scmp.ne.s32.totalorder %s56, %s58
      %p65 = scmp.eq.s32.totalorder %s27, 1
      %p66 = por %p64, %p65
      %p67 = scmp.ne.s32.totalorder %s58, %s59
      %p68 = scmp.eq.s32.totalorder %s27, 0
      %p69 = por %p67, %p68
      %p70 = scmp.ne.s32.totalorder %s58, %s59
      %p71 = scmp.eq.s32.totalorder %s28, 1
      %p72 = por %p70, %p71
      %p74 = scmp.ne.s32.totalorder %s59, %s73
      %p75 = scmp.eq.s32.totalorder %s28, 0
      %p76 = por %p74, %p75
      %s78 = sadd.s32 %s77, 1
      %p81 = scmp.eq.s32.totalorder %s22, 1
      %p82 = scmp.ne.s32.totalorder %s77, %s79
      %p83 = scmp.eq.s32.totalorder %s22, 0
      %p84 = por %p82, %p83
      %p85 = scmp.ne.s32.totalorder %s77, %s79
      %p86 = scmp.eq.s32.totalorder %s27, 1
      %p87 = por %p85, %p86
      %p88 = scmp.ne.s32.totalorder %s79, %s80
      %p89 = scmp.eq.s32.totalorder %s27, 0
      %p90 = por %p88, %p89
      %p91 = scmp.ne.s32.totalorder %s79, %s80
      %p92 = scmp.eq.s32.totalorder %s28, 1
      %p93 = por %p91, %p92
      %p95 = scmp.ne.s32.totalorder %s80, %s94
      %p96 = scmp.eq.s32.totalorder %s28, 0
      %p97 = por %p95, %p96
      %s99 = sadd.s32 %s98, 1
      %p102 = scmp.eq.s32.totalorder %s22, 1
      %p103 = scmp.ne.s32.totalorder %s98, %s100
      %p104 = scmp.eq.s32.totalorder %s22, 0
      %p105 = por %p103, %p104
      %p106 = scmp.ne.s32.totalorder %s98, %s100
      %p107 = scmp.eq.s32.totalorder %s27, 1
      %p108 = por %p106, %p107
      %p109 = scmp.ne.s32.totalorder %s100, %s101
      %p110 = scmp.eq.s32.totalorder %s27, 0
      %p111 = por %p109, %p110
      %p112 = scmp.ne.s32.totalorder %s100, %s101
      %p113 = scmp.eq.s32.totalorder %s28, 1
      %p114 = por %p112, %p113
      %p116 = scmp.ne.s32.totalorder %s101, %s115
      %p117 = scmp.eq.s32.totalorder %s28, 0
      %p118 = por %p116, %p117
      %s120 = sadd.s32 %s119, 1
      %p123 = scmp.eq.s32.totalorder %s22, 1
      %p124 = scmp.ne.s32.totalorder %s119, %s121
      %p125 = scmp.eq.s32.totalorder %s22, 0
      %p126 = por %p124, %p125
      %p127 = scmp.ne.s32.totalorder %s119, %s121
      %p128 = scmp.eq.s32.totalorder %s27, 1
      %p129 = por %p127, %p128
      %p130 = scmp.ne.s32.totalorder %s121, %s122
      %p131 = scmp.eq.s32.totalorder %s27, 0
      %p132 = por %p130, %p131
      %p133 = scmp.ne.s32.totalorder %s121, %s122
      %p134 = scmp.eq.s32.totalorder %s28, 1
      %p135 = por %p133, %p134
      %p137 = scmp.ne.s32.totalorder %s122, %s136
      %p138 = scmp.eq.s32.totalorder %s28, 0
      %p139 = por %p137, %p138
      %s141 = sadd.s32 %s140, 1
      %p144 = scmp.eq.s32.totalorder %s22, 1
      %p145 = scmp.ne.s32.totalorder %s140, %s142
      %p146 = scmp.eq.s32.totalorder %s22, 0
      %p147 = por %p145, %p146
      %p148 = scmp.ne.s32.totalorder %s140, %s142
      %p149 = scmp.eq.s32.totalorder %s27, 1
      %p150 = por %p148, %p149
      %p151 = scmp.ne.s32.totalorder %s142, %s143
      %p152 = scmp.eq.s32.totalorder %s27, 0
      %p153 = por %p151, %p152
      %p154 = scmp.ne.s32.totalorder %s142, %s143
      %p155 = scmp.eq.s32.totalorder %s28, 1
      %p156 = por %p154, %p155
      %p158 = scmp.ne.s32.totalorder %s143, %s157
      %p159 = scmp.eq.s32.totalorder %s28, 0
      %p160 = por %p158, %p159
      %s162 = sadd.s32 %s161, 1
      %p165 = scmp.eq.s32.totalorder %s22, 1
      %p166 = scmp.ne.s32.totalorder %s161, %s163
      %p167 = scmp.eq.s32.totalorder %s22, 0
      %p168 = por %p166, %p167
      %p169 = scmp.ne.s32.totalorder %s161, %s163
      %p170 = scmp.eq.s32.totalorder %s27, 1
      %p171 = por %p169, %p170
      %p172 = scmp.ne.s32.totalorder %s163, %s164
      %p173 = scmp.eq.s32.totalorder %s27, 0
      %p174 = por %p172, %p173
      %p175 = scmp.ne.s32.totalorder %s163, %s164
      %p176 = scmp.eq.s32.totalorder %s28, 1
      %p177 = por %p175, %p176
      %p179 = scmp.ne.s32.totalorder %s164, %s178
      %p180 = scmp.eq.s32.totalorder %s28, 0
      %p181 = por %p179, %p180
      %s182 = ssub.s32 %s22, %s29
      %p183 = scmp.eq.s32.totalorder %s182, 0
      %s185 = sadd.s32 %s184, 1
      %s186 = scalar_select %p183, %s184, %s185
      %p189 = pneg %p183
      %p190 = scmp.eq.s32.totalorder %s22, 1
      %p191 = por %p189, %p190
      %p192 = scmp.ne.s32.totalorder %s184, %s187
      %p193 = scmp.eq.s32.totalorder %s22, 0
      %p194 = por %p192, %p193
      %p195 = scmp.ne.s32.totalorder %s184, %s187
      %p196 = scmp.eq.s32.totalorder %s27, 1
      %p197 = por %p195, %p196
      %p198 = scmp.ne.s32.totalorder %s187, %s188
      %p199 = scmp.eq.s32.totalorder %s27, 0
      %p200 = por %p198, %p199
      %p201 = scmp.ne.s32.totalorder %s187, %s188
      %p202 = scmp.eq.s32.totalorder %s28, 1
      %p203 = por %p201, %p202
      %p205 = scmp.ne.s32.totalorder %s188, %s204
      %p206 = scmp.eq.s32.totalorder %s28, 0
      %p207 = por %p205, %p206
      %p208 = scmp.le.s32.totalorder 1, %s22
      %p209 = scmp.lt.s32.totalorder %s22, 3
      %p210 = pnand %p208, %p209
      %p211 = pneg %p210
      // Predicated region
      $region9: #{tpu_custom_call.1} parent=5 // pred_check
        _
      $region10: #{tpu_custom_call.1} parent=5 // pred_check_branch
        %213 = sbr.rel (%p210) target = $region12
      $region11: #{tpu_custom_call.1} parent=5 // pred_region
        %s214 = ssub.s32 %s22, 1
        // Predicated region
        $region13: #{tpu_custom_call.1} parent=11 // pred_check
          %p215 = pneg %p69
        $region14: #{tpu_custom_call.1} parent=11 // pred_check_branch
          %217 = sbr.rel (%p215) target = $region16
        $region15: #{tpu_custom_call.1} parent=11 // pred_region
          %s219 = ssub.s32 512, 512
          %220 = vsyncadd [#allocation6], %s219
          %s221 = sshll.u32 [#allocation5], 4
          %s222 = int_to_ptr.vmem [resolvable:$true] %s221
          %227 = dma.hbm_to_vmem [thread:$0]  %s1, 512, %s222, [#allocation6], 64, 64, 4
        $region16: #{tpu_custom_call.1} parent=11 // pred_fallthru
          _
        // Predicated region
        $region17: #{tpu_custom_call.1} parent=11 // pred_check
          %p228 = pneg %p90
        $region18: #{tpu_custom_call.1} parent=11 // pred_check_branch
          %230 = sbr.rel (%p228) target = $region20
        $region19: #{tpu_custom_call.1} parent=11 // pred_region
          %s232 = ssub.s32 128, 128
          %233 = vsyncadd [#allocation6], %s232
          %s234 = sshll.u32 [#allocation7], 4
          %s235 = int_to_ptr.vmem [resolvable:$true] %s234
          %240 = dma.hbm_to_vmem [thread:$0]  %s2, 128, %s235, [#allocation6], 64, 64, 4
        $region20: #{tpu_custom_call.1} parent=11 // pred_fallthru
          _
        // Predicated region
        $region21: #{tpu_custom_call.1} parent=11 // pred_check
          %p241 = pneg %p111
        $region22: #{tpu_custom_call.1} parent=11 // pred_check_branch
          %243 = sbr.rel (%p241) target = $region24
        $region23: #{tpu_custom_call.1} parent=11 // pred_region
          %s245 = ssub.s32 1024, 1024
          %246 = vsyncadd [#allocation9], %s245
          %s247 = sshll.u32 [#allocation8], 4
          %s248 = int_to_ptr.vmem [resolvable:$true] %s247
          %253 = dma.hbm_to_vmem [thread:$0]  %s3, 1024, %s248, [#allocation9], 64, 64, 4
        $region24: #{tpu_custom_call.1} parent=11 // pred_fallthru
          _
        // Predicated region
        $region25: #{tpu_custom_call.1} parent=11 // pred_check
          %p254 = pneg %p132
        $region26: #{tpu_custom_call.1} parent=11 // pred_check_branch
          %256 = sbr.rel (%p254) target = $region28
        $region27: #{tpu_custom_call.1} parent=11 // pred_region
          %s258 = ssub.s32 2048, 2048
          %259 = vsyncadd [#allocation9], %s258
          %s260 = sshll.u32 [#allocation10], 4
          %s261 = int_to_ptr.vmem [resolvable:$true] %s260
          %266 = dma.hbm_to_vmem [thread:$0]  %s4, 2048, %s261, [#allocation9], 128, 128, 8
        $region28: #{tpu_custom_call.1} parent=11 // pred_fallthru
          _
        // Predicated region
        $region29: #{tpu_custom_call.1} parent=11 // pred_check
          %p267 = pneg %p153
        $region30: #{tpu_custom_call.1} parent=11 // pred_check_branch
          %269 = sbr.rel (%p267) target = $region32
        $region31: #{tpu_custom_call.1} parent=11 // pred_region
          %s271 = ssub.s32 1024, 1024
          %272 = vsyncadd [#allocation12], %s271
          %s273 = sshll.u32 [#allocation11], 4
          %s274 = int_to_ptr.vmem [resolvable:$true] %s273
          %279 = dma.hbm_to_vmem [thread:$0]  %s5, 1024, %s274, [#allocation12], 64, 64, 4
        $region32: #{tpu_custom_call.1} parent=11 // pred_fallthru
          _
        // Predicated region
        $region33: #{tpu_custom_call.1} parent=11 // pred_check
          %p280 = pneg %p174
        $region34: #{tpu_custom_call.1} parent=11 // pred_check_branch
          %282 = sbr.rel (%p280) target = $region36
        $region35: #{tpu_custom_call.1} parent=11 // pred_region
          _
        $region36: #{tpu_custom_call.1} parent=11 // pred_fallthru
          _
      $region12: #{tpu_custom_call.1} parent=5 // pred_fallthru
        _
      %p283 = scmp.lt.s32.totalorder %s22, 2
      // Predicated region
      $region37: #{tpu_custom_call.1} parent=5 // pred_check
        %p284 = pneg %p283
      $region38: #{tpu_custom_call.1} parent=5 // pred_check_branch
        %286 = sbr.rel (%p284) target = $region40
      $region39: #{tpu_custom_call.1} parent=5 // pred_region
        // Predicated region
        $region41: #{tpu_custom_call.1} parent=39 // pred_check
          %p287 = pneg %p42
        $region42: #{tpu_custom_call.1} parent=39 // pred_check_branch
          %289 = sbr.rel (%p287) target = $region44
        $region43: #{tpu_custom_call.1} parent=39 // pred_region
          %s290 = sand.u32 %s32, 1
          %s291 = scalar_lea.sflag [#allocation3], %s290
          %s292 = sand.u32 %s32, 1
          %s293 = smul.addr %s292, 16
          %s294 = scalar_lea.vmem [#allocation2], %s293
          %s296 = ssub.s32 256, 256
          %297 = vsyncadd %s291, %s296
          %s298 = smul.addr %s22, 2
          %s299 = smul.addr %s298, 128
          %s300 = scalar_lea.hbm %s0, %s299
          %s301 = sshll.u32 %s294, 4
          %s302 = int_to_ptr.vmem [resolvable:$true] %s301
          %307 = dma.hbm_to_vmem [thread:$0]  %s300, 256, %s302, %s291, 128, 128, 8
        $region44: #{tpu_custom_call.1} parent=39 // pred_fallthru
          _
      $region40: #{tpu_custom_call.1} parent=5 // pred_fallthru
        _
      %p308 = scmp.le.s32.totalorder 1, %s22
      %p309 = scmp.lt.s32.totalorder %s22, 3
      %p310 = pnand %p308, %p309
      %p311 = pneg %p310
      // Predicated region
      $region45: #{tpu_custom_call.1} parent=5 // pred_check
        _
      $region46: #{tpu_custom_call.1} parent=5 // pred_check_branch
        %313 = sbr.rel (%p310) target = $region48
      $region47: #{tpu_custom_call.1} parent=5 // pred_region
        %s314 = ssub.s32 %s22, 1
        %s315 = sand.u32 %s35, 1
        %s316 = scalar_lea.sflag [#allocation3], %s315
        %s317 = sand.u32 %s35, 1
        %s318 = smul.addr %s317, 16
        %s319 = scalar_lea.vmem [#allocation2], %s318
        // Predicated region
        $region49: #{tpu_custom_call.1} parent=47 // pred_check
          %p320 = pneg %p48
        $region50: #{tpu_custom_call.1} parent=47 // pred_check_branch
          %322 = sbr.rel (%p320) target = $region52
        $region51: #{tpu_custom_call.1} parent=47 // pred_region
          %323 = dma.done %s316, 256
        $region52: #{tpu_custom_call.1} parent=47 // pred_fallthru
          _
        // Predicated region
        $region53: #{tpu_custom_call.1} parent=47 // pred_check
          %p324 = pneg %p69
        $region54: #{tpu_custom_call.1} parent=47 // pred_check_branch
          %326 = sbr.rel (%p324) target = $region56
        $region55: #{tpu_custom_call.1} parent=47 // pred_region
          %327 = dma.done [#allocation6], 512
        $region56: #{tpu_custom_call.1} parent=47 // pred_fallthru
          _
        // Predicated region
        $region57: #{tpu_custom_call.1} parent=47 // pred_check
          %p328 = pneg %p90
        $region58: #{tpu_custom_call.1} parent=47 // pred_check_branch
          %330 = sbr.rel (%p328) target = $region60
        $region59: #{tpu_custom_call.1} parent=47 // pred_region
          %331 = dma.done [#allocation6], 128
        $region60: #{tpu_custom_call.1} parent=47 // pred_fallthru
          _
        // Predicated region
        $region61: #{tpu_custom_call.1} parent=47 // pred_check
          %p332 = pneg %p111
        $region62: #{tpu_custom_call.1} parent=47 // pred_check_branch
          %334 = sbr.rel (%p332) target = $region64
        $region63: #{tpu_custom_call.1} parent=47 // pred_region
          %335 = dma.done [#allocation9], 1024
        $region64: #{tpu_custom_call.1} parent=47 // pred_fallthru
          _
        // Predicated region
        $region65: #{tpu_custom_call.1} parent=47 // pred_check
          %p336 = pneg %p132
        $region66: #{tpu_custom_call.1} parent=47 // pred_check_branch
          %338 = sbr.rel (%p336) target = $region68
        $region67: #{tpu_custom_call.1} parent=47 // pred_region
          %339 = dma.done [#allocation9], 2048
        $region68: #{tpu_custom_call.1} parent=47 // pred_fallthru
          _
        // Predicated region
        $region69: #{tpu_custom_call.1} parent=47 // pred_check
          %p340 = pneg %p153
        $region70: #{tpu_custom_call.1} parent=47 // pred_check_branch
          %342 = sbr.rel (%p340) target = $region72
        $region71: #{tpu_custom_call.1} parent=47 // pred_region
          %343 = dma.done [#allocation12], 1024
        $region72: #{tpu_custom_call.1} parent=47 // pred_fallthru
          _
        %s344 = sand.u32 %s35, 1
        %s345 = scalar_lea.sflag [#allocation3], %s344
        %s346 = sand.u32 %s35, 1
        %s347 = smul.addr %s346, 16
        %s348 = scalar_lea.vmem [#allocation2], %s347
        %p349 = pneg %p48
        %p350 = pneg %p45
        %p351 = pneg %p69
        %p352 = pneg %p66
        %p353 = pneg %p90
        %p354 = pneg %p87
        %p355 = pneg %p111
        %p356 = pneg %p108
        %p357 = pneg %p132
        %p358 = pneg %p129
        %p359 = pneg %p153
        %p360 = pneg %p150
        %p361 = pneg %p174
        %p362 = pneg %p171
        %p363 = pneg %p200
        %p364 = pneg %p197
        %s365 = sand.u32 %s187, 1
        %s366 = scalar_lea.sflag [#allocation4], %s365
        %s367 = sand.u32 %s187, 1
        %s368 = smul.addr %s367, 16
        %s369 = scalar_lea.vmem [#allocation13], %s368
        %v371 = vld [vmem:[%s319] sm:$0xff]
        %v372 = vld [vmem:[%s319 + $0x8] sm:$0xff]
        %v373 = vpack.c.bf16 %v372, %v371
        %v374 = vld [vmem:[#allocation8] sm:$0xf]
        %v375 = vld [vmem:[#allocation8 + $0x4] sm:$0xf]
        %v376 = vld [vmem:[#allocation8 + $0x8] sm:$0xf]
        %v377 = vld [vmem:[#allocation8 + $0xc] sm:$0xf]
        %v378 = vld [vmem:[#allocation8 + $0x10] sm:$0xf]
        %v379 = vld [vmem:[#allocation8 + $0x14] sm:$0xf]
        %v380 = vld [vmem:[#allocation8 + $0x18] sm:$0xf]
        %v381 = vld [vmem:[#allocation8 + $0x1c] sm:$0xf]
        %v382 = vld [vmem:[#allocation8 + $0x20] sm:$0xf]
        %v383 = vld [vmem:[#allocation8 + $0x24] sm:$0xf]
        %v384 = vld [vmem:[#allocation8 + $0x28] sm:$0xf]
        %v385 = vld [vmem:[#allocation8 + $0x2c] sm:$0xf]
        %v386 = vld [vmem:[#allocation8 + $0x30] sm:$0xf]
        %v387 = vld [vmem:[#allocation8 + $0x34] sm:$0xf]
        %v388 = vld [vmem:[#allocation8 + $0x38] sm:$0xf]
        %v389 = vld [vmem:[#allocation8 + $0x3c] sm:$0xf]
        %v406 = vunpack.c.l.b16 %v374
        %v407 = vunpack.c.l.b16 %v375
        %v408 = vunpack.c.l.b16 %v376
        %v409 = vunpack.c.l.b16 %v377
        %v410 = vunpack.c.l.b16 %v378
        %v411 = vunpack.c.l.b16 %v379
        %v412 = vunpack.c.l.b16 %v380
        %v413 = vunpack.c.l.b16 %v381
        %v414 = vunpack.c.l.b16 %v382
        %v415 = vunpack.c.l.b16 %v383
        %v416 = vunpack.c.l.b16 %v384
        %v417 = vunpack.c.l.b16 %v385
        %v418 = vunpack.c.l.b16 %v386
        %v419 = vunpack.c.l.b16 %v387
        %v420 = vunpack.c.l.b16 %v388
        %v421 = vunpack.c.l.b16 %v389
        %v422 = vpack.c.b16 %v407, %v406
        %v423 = vpack.c.b16 %v409, %v408
        %v424 = vpack.c.b16 %v411, %v410
        %v425 = vpack.c.b16 %v413, %v412
        %v426 = vpack.c.b16 %v415, %v414
        %v427 = vpack.c.b16 %v417, %v416
        %v428 = vpack.c.b16 %v419, %v418
        %v429 = vpack.c.b16 %v421, %v420
        %438 = vmatprep.subr.bf16.mxu0 0
        %439 = vmatpush1.bf16.msra.mxu0 %v422
        %440 = vmatprep.subr.bf16.mxu0 0
        %441 = vmatpush1.bf16.msra.mxu0 %v423
        %442 = vmatprep.subr.bf16.mxu0 0
        %443 = vmatpush1.bf16.msra.mxu0 %v424
        %444 = vmatprep.subr.bf16.mxu0 0
        %445 = vmatpush1.bf16.msra.mxu0 %v425
        %446 = vmatprep.subr.bf16.mxu0 0
        %447 = vmatpush1.bf16.msra.mxu0 %v426
        %448 = vmatprep.subr.bf16.mxu0 0
        %449 = vmatpush1.bf16.msra.mxu0 %v427
        %450 = vmatprep.subr.bf16.mxu0 0
        %451 = vmatpush1.bf16.msra.mxu0 %v428
        %452 = vmatprep.subr.bf16.mxu0 0
        %453 = vmatpush1.bf16.msra.mxu0 %v429
        %454 = vmatprep.subr.bf16.mxu0 0
        %455 = vmatpush1.bf16.msra.mxu0 0
        %456 = vmatprep.subr.bf16.mxu0 0
        %457 = vmatpush1.bf16.msra.mxu0 0
        %458 = vmatprep.subr.bf16.mxu0 0
        %459 = vmatpush1.bf16.msra.mxu0 0
        %460 = vmatprep.subr.bf16.mxu0 0
        %461 = vmatpush1.bf16.msra.mxu0 0
        %462 = vmatprep.subr.bf16.mxu0 0
        %463 = vmatpush1.bf16.msra.mxu0 0
        %464 = vmatprep.subr.bf16.mxu0 0
        %465 = vmatpush1.bf16.msra.mxu0 0
        %466 = vmatprep.subr.bf16.mxu0 0
        %467 = vmatpush1.bf16.msra.mxu0 0
        %468 = vmatprep.subr.bf16.mxu0 0
        %469 = vmatpush1.bf16.msra.mxu0 0
        %470 = vmatprep.mubr.bf16.mxu0 0
        %471 = vmatmul.mubr.bf16.gmra.mrb[0].mxu0 %v373
        %v472 = vpop.f32.mrb[0].mxu0
        %v473 = vadd.f32 0.0, %v472
        %v474 = vpop.f32.mrb[0].mxu0
        %v475 = vpop.f32.mrb[0].mxu0
        %v476 = vadd.f32 0.0, %v475
        %v477 = vpop.f32.mrb[0].mxu0
        %478 = vdwg.mxu0
        %v479 = vpack.c.bf16 %v476, %v473
        %v480 = vld [vmem:[#allocation10] sm:$0xff]
        %v481 = vld [vmem:[#allocation10 + $0x8] sm:$0xff]
        %v482 = vld [vmem:[#allocation10 + $0x10] sm:$0xff]
        %v483 = vld [vmem:[#allocation10 + $0x18] sm:$0xff]
        %v484 = vld [vmem:[#allocation10 + $0x20] sm:$0xff]
        %v485 = vld [vmem:[#allocation10 + $0x28] sm:$0xff]
        %v486 = vld [vmem:[#allocation10 + $0x30] sm:$0xff]
        %v487 = vld [vmem:[#allocation10 + $0x38] sm:$0xff]
        %v488 = vld [vmem:[#allocation10 + $0x40] sm:$0xff]
        %v489 = vld [vmem:[#allocation10 + $0x48] sm:$0xff]
        %v490 = vld [vmem:[#allocation10 + $0x50] sm:$0xff]
        %v491 = vld [vmem:[#allocation10 + $0x58] sm:$0xff]
        %v492 = vld [vmem:[#allocation10 + $0x60] sm:$0xff]
        %v493 = vld [vmem:[#allocation10 + $0x68] sm:$0xff]
        %v494 = vld [vmem:[#allocation10 + $0x70] sm:$0xff]
        %v495 = vld [vmem:[#allocation10 + $0x78] sm:$0xff]
        %v512 = vunpack.c.l.b16 %v480
        %v513 = vunpack.c.h.b16 %v480
        %v514 = vunpack.c.l.b16 %v481
        %v515 = vunpack.c.h.b16 %v481
        %v516 = vunpack.c.l.b16 %v482
        %v517 = vunpack.c.h.b16 %v482
        %v518 = vunpack.c.l.b16 %v483
        %v519 = vunpack.c.h.b16 %v483
        %v520 = vunpack.c.l.b16 %v484
        %v521 = vunpack.c.h.b16 %v484
        %v522 = vunpack.c.l.b16 %v485
        %v523 = vunpack.c.h.b16 %v485
        %v524 = vunpack.c.l.b16 %v486
        %v525 = vunpack.c.h.b16 %v486
        %v526 = vunpack.c.l.b16 %v487
        %v527 = vunpack.c.h.b16 %v487
        %v528 = vunpack.c.l.b16 %v488
        %v529 = vunpack.c.h.b16 %v488
        %v530 = vunpack.c.l.b16 %v489
        %v531 = vunpack.c.h.b16 %v489
        %v532 = vunpack.c.l.b16 %v490
        %v533 = vunpack.c.h.b16 %v490
        %v534 = vunpack.c.l.b16 %v491
        %v535 = vunpack.c.h.b16 %v491
        %v536 = vunpack.c.l.b16 %v492
        %v537 = vunpack.c.h.b16 %v492
        %v538 = vunpack.c.l.b16 %v493
        %v539 = vunpack.c.h.b16 %v493
        %v540 = vunpack.c.l.b16 %v494
        %v541 = vunpack.c.h.b16 %v494
        %v542 = vunpack.c.l.b16 %v495
        %v543 = vunpack.c.h.b16 %v495
        %v544 = vpack.c.b16 %v514, %v512
        %v545 = vpack.c.b16 %v515, %v513
        %v546 = vpack.c.b16 %v518, %v516
        %v547 = vpack.c.b16 %v519, %v517
        %v548 = vpack.c.b16 %v522, %v520
        %v549 = vpack.c.b16 %v523, %v521
        %v550 = vpack.c.b16 %v526, %v524
        %v551 = vpack.c.b16 %v527, %v525
        %v552 = vpack.c.b16 %v530, %v528
        %v553 = vpack.c.b16 %v531, %v529
        %v554 = vpack.c.b16 %v534, %v532
        %v555 = vpack.c.b16 %v535, %v533
        %v556 = vpack.c.b16 %v538, %v536
        %v557 = vpack.c.b16 %v539, %v537
        %v558 = vpack.c.b16 %v542, %v540
        %v559 = vpack.c.b16 %v543, %v541
        %576 = vmatprep.subr.bf16.mxu0 %v545
        %577 = vmatpush1.bf16.msra.mxu0 %v544
        %578 = vmatprep.subr.bf16.mxu0 %v547
        %579 = vmatpush1.bf16.msra.mxu0 %v546
        %580 = vmatprep.subr.bf16.mxu0 %v549
        %581 = vmatpush1.bf16.msra.mxu0 %v548
        %582 = vmatprep.subr.bf16.mxu0 %v551
        %583 = vmatpush1.bf16.msra.mxu0 %v550
        %584 = vmatprep.subr.bf16.mxu0 %v553
        %585 = vmatpush1.bf16.msra.mxu0 %v552
        %586 = vmatprep.subr.bf16.mxu0 %v555
        %587 = vmatpush1.bf16.msra.mxu0 %v554
        %588 = vmatprep.subr.bf16.mxu0 %v557
        %589 = vmatpush1.bf16.msra.mxu0 %v556
        %590 = vmatprep.subr.bf16.mxu0 %v559
        %591 = vmatpush1.bf16.msra.mxu0 %v558
        %592 = vmatprep.subr.bf16.mxu0 0
        %593 = vmatpush1.bf16.msra.mxu0 0
        %594 = vmatprep.subr.bf16.mxu0 0
        %595 = vmatpush1.bf16.msra.mxu0 0
        %596 = vmatprep.subr.bf16.mxu0 0
        %597 = vmatpush1.bf16.msra.mxu0 0
        %598 = vmatprep.subr.bf16.mxu0 0
        %599 = vmatpush1.bf16.msra.mxu0 0
        %600 = vmatprep.subr.bf16.mxu0 0
        %601 = vmatpush1.bf16.msra.mxu0 0
        %602 = vmatprep.subr.bf16.mxu0 0
        %603 = vmatpush1.bf16.msra.mxu0 0
        %604 = vmatprep.subr.bf16.mxu0 0
        %605 = vmatpush1.bf16.msra.mxu0 0
        %606 = vmatprep.subr.bf16.mxu0 0
        %607 = vmatpush1.bf16.msra.mxu0 0
        %608 = vmatprep.mubr.bf16.mxu0 0
        %609 = vmatmul.mubr.bf16.gmra.mrb[0].mxu0 %v373
        %v610 = vpop.f32.mrb[0].mxu0
        %v611 = vadd.f32 0.0, %v610
        %v612 = vpop.f32.mrb[0].mxu0
        %v613 = vadd.f32 0.0, %v612
        %v614 = vpop.f32.mrb[0].mxu0
        %v615 = vadd.f32 0.0, %v614
        %v616 = vpop.f32.mrb[0].mxu0
        %v617 = vadd.f32 0.0, %v616
        %618 = vdwg.mxu0
        %v619 = vpack.c.bf16 %v615, %v611
        %v620 = vpack.c.bf16 %v617, %v613
        %v621 = vld [vmem:[#allocation7] sm:$0xf]
        %v622 = vld [vmem:[#allocation7 + $0x4] sm:$0xf]
        %v623 = vld [vmem:[#allocation5] sm:$0xf]
        %v624 = vld [vmem:[#allocation5 + $0x4] sm:$0xf]
        %v625 = vld [vmem:[#allocation5 + $0x8] sm:$0xf]
        %v626 = vld [vmem:[#allocation5 + $0xc] sm:$0xf]
        %v627 = vld [vmem:[#allocation5 + $0x10] sm:$0xf]
        %v628 = vld [vmem:[#allocation5 + $0x14] sm:$0xf]
        %v629 = vld [vmem:[#allocation5 + $0x18] sm:$0xf]
        %v630 = vld [vmem:[#allocation5 + $0x1c] sm:$0xf]
        %v634 = vunpack.c.l.s4 1966171168
        %v635 = vunpack.c.0.s8 %v634
        %v636 = vlaneseq
        %v637 = vshrl.u32 %v636, 7
        %v638 = vsub.s32 %v635, %v637
        %v639 = vrot.slane %v621, %v638
        %v640 = vcombine.high %v639, %v639
        %v642 = vunpack.c.l.s4 1966171168
        %v643 = vunpack.c.0.s8 %v642
        %v644 = vlaneseq
        %v645 = vshrl.u32 %v644, 7
        %v646 = vsub.s32 %v643, %v645
        %v647 = vrot.slane %v639, %v646
        %v649 = vunpack.c.l.s4 1966171168
        %v650 = vunpack.c.0.s8 %v649
        %v651 = vlaneseq
        %v652 = vshrl.u32 %v651, 7
        %v653 = vsub.s32 %v650, %v652
        %v654 = vrot.slane %v640, %v653
        %v655 = vcombine.high %v647, %v647
        %v656 = vcombine.high %v654, %v654
        %v658 = vunpack.c.l.s4 1966171168
        %v659 = vunpack.c.0.s8 %v658
        %v660 = vlaneseq
        %v661 = vshrl.u32 %v660, 7
        %v662 = vsub.s32 %v659, %v661
        %v663 = vrot.slane %v622, %v662
        %v664 = vcombine.high %v663, %v663
        %v666 = vunpack.c.l.s4 1966171168
        %v667 = vunpack.c.0.s8 %v666
        %v668 = vlaneseq
        %v669 = vshrl.u32 %v668, 7
        %v670 = vsub.s32 %v667, %v669
        %v671 = vrot.slane %v663, %v670
        %v673 = vunpack.c.l.s4 1966171168
        %v674 = vunpack.c.0.s8 %v673
        %v675 = vlaneseq
        %v676 = vshrl.u32 %v675, 7
        %v677 = vsub.s32 %v674, %v676
        %v678 = vrot.slane %v664, %v677
        %v679 = vcombine.high %v671, %v671
        %v680 = vcombine.high %v678, %v678
        %v681 = vunpack.i.l.s16 %v647
        %v682 = vunpack.i.h.s16 %v647
        %v683 = vunpack.i.l.s16 %v654
        %v684 = vunpack.i.h.s16 %v654
        %v685 = vunpack.i.l.s16 %v655
        %v686 = vunpack.i.h.s16 %v655
        %v687 = vunpack.i.l.s16 %v656
        %v688 = vunpack.i.h.s16 %v656
        %v689 = vunpack.i.l.s16 %v671
        %v690 = vunpack.i.h.s16 %v671
        %v691 = vunpack.i.l.s16 %v678
        %v692 = vunpack.i.h.s16 %v678
        %v693 = vunpack.i.l.s16 %v679
        %v694 = vunpack.i.h.s16 %v679
        %v695 = vunpack.i.l.s16 %v680
        %v696 = vunpack.i.h.s16 %v680
        %v697 = vpack.i.b16 %v681, %v681
        %v698 = vpack.i.b16 %v682, %v682
        %v699 = vpack.i.b16 %v683, %v683
        %v700 = vpack.i.b16 %v684, %v684
        %v701 = vpack.i.b16 %v685, %v685
        %v702 = vpack.i.b16 %v686, %v686
        %v703 = vpack.i.b16 %v687, %v687
        %v704 = vpack.i.b16 %v688, %v688
        %v705 = vpack.i.b16 %v689, %v689
        %v706 = vpack.i.b16 %v690, %v690
        %v707 = vpack.i.b16 %v691, %v691
        %v708 = vpack.i.b16 %v692, %v692
        %v709 = vpack.i.b16 %v693, %v693
        %v710 = vpack.i.b16 %v694, %v694
        %v711 = vpack.i.b16 %v695, %v695
        %v712 = vpack.i.b16 %v696, %v696
        %v713 = vlaneseq
        %v714 = vshrl.u32 %v713, 7
        %v715 = vsub.s32 0, %v714
        %v716 = vrot.slane %v697, %v715
        %v717 = vlaneseq
        %v718 = vshrl.u32 %v717, 7
        %v719 = vsub.s32 0, %v718
        %v720 = vrot.slane %v698, %v719
        %v721 = vlaneseq
        %v722 = vshrl.u32 %v721, 7
        %v723 = vsub.s32 0, %v722
        %v724 = vrot.slane %v699, %v723
        %v725 = vlaneseq
        %v726 = vshrl.u32 %v725, 7
        %v727 = vsub.s32 0, %v726
        %v728 = vrot.slane %v700, %v727
        %v729 = vlaneseq
        %v730 = vshrl.u32 %v729, 7
        %v731 = vsub.s32 0, %v730
        %v732 = vrot.slane %v701, %v731
        %v733 = vlaneseq
        %v734 = vshrl.u32 %v733, 7
        %v735 = vsub.s32 0, %v734
        %v736 = vrot.slane %v702, %v735
        %v737 = vlaneseq
        %v738 = vshrl.u32 %v737, 7
        %v739 = vsub.s32 0, %v738
        %v740 = vrot.slane %v703, %v739
        %v741 = vlaneseq
        %v742 = vshrl.u32 %v741, 7
        %v743 = vsub.s32 0, %v742
        %v744 = vrot.slane %v704, %v743
        %v745 = vlaneseq
        %v746 = vshrl.u32 %v745, 7
        %v747 = vsub.s32 0, %v746
        %v748 = vrot.slane %v705, %v747
        %v749 = vlaneseq
        %v750 = vshrl.u32 %v749, 7
        %v751 = vsub.s32 0, %v750
        %v752 = vrot.slane %v706, %v751
        %v753 = vlaneseq
        %v754 = vshrl.u32 %v753, 7
        %v755 = vsub.s32 0, %v754
        %v756 = vrot.slane %v707, %v755
        %v757 = vlaneseq
        %v758 = vshrl.u32 %v757, 7
        %v759 = vsub.s32 0, %v758
        %v760 = vrot.slane %v708, %v759
        %v761 = vlaneseq
        %v762 = vshrl.u32 %v761, 7
        %v763 = vsub.s32 0, %v762
        %v764 = vrot.slane %v709, %v763
        %v765 = vlaneseq
        %v766 = vshrl.u32 %v765, 7
        %v767 = vsub.s32 0, %v766
        %v768 = vrot.slane %v710, %v767
        %v769 = vlaneseq
        %v770 = vshrl.u32 %v769, 7
        %v771 = vsub.s32 0, %v770
        %v772 = vrot.slane %v711, %v771
        %v773 = vlaneseq
        %v774 = vshrl.u32 %v773, 7
        %v775 = vsub.s32 0, %v774
        %v776 = vrot.slane %v712, %v775
        %v778 = vpack.i.b16 %v716, %v716
        %v780 = vlaneseq
        %v781 = vshrl.u32 %v780, 7
        %v782 = vsub.s32 0, %v781
        %v783 = vrot.slane %v778, %v782
        %v785 = vpack.i.b16 %v720, %v720
        %v787 = vlaneseq
        %v788 = vshrl.u32 %v787, 7
        %v789 = vsub.s32 0, %v788
        %v790 = vrot.slane %v785, %v789
        %v792 = vpack.i.b16 %v724, %v724
        %v794 = vlaneseq
        %v795 = vshrl.u32 %v794, 7
        %v796 = vsub.s32 0, %v795
        %v797 = vrot.slane %v792, %v796
        %v799 = vpack.i.b16 %v728, %v728
        %v801 = vlaneseq
        %v802 = vshrl.u32 %v801, 7
        %v803 = vsub.s32 0, %v802
        %v804 = vrot.slane %v799, %v803
        %v806 = vpack.i.b16 %v732, %v732
        %v808 = vlaneseq
        %v809 = vshrl.u32 %v808, 7
        %v810 = vsub.s32 0, %v809
        %v811 = vrot.slane %v806, %v810
        %v813 = vpack.i.b16 %v736, %v736
        %v815 = vlaneseq
        %v816 = vshrl.u32 %v815, 7
        %v817 = vsub.s32 0, %v816
        %v818 = vrot.slane %v813, %v817
        %v820 = vpack.i.b16 %v740, %v740
        %v822 = vlaneseq
        %v823 = vshrl.u32 %v822, 7
        %v824 = vsub.s32 0, %v823
        %v825 = vrot.slane %v820, %v824
        %v827 = vpack.i.b16 %v744, %v744
        %v829 = vlaneseq
        %v830 = vshrl.u32 %v829, 7
        %v831 = vsub.s32 0, %v830
        %v832 = vrot.slane %v827, %v831
        %v834 = vpack.i.b16 %v748, %v748
        %v836 = vlaneseq
        %v837 = vshrl.u32 %v836, 7
        %v838 = vsub.s32 0, %v837
        %v839 = vrot.slane %v834, %v838
        %v841 = vpack.i.b16 %v752, %v752
        %v843 = vlaneseq
        %v844 = vshrl.u32 %v843, 7
        %v845 = vsub.s32 0, %v844
        %v846 = vrot.slane %v841, %v845
        %v848 = vpack.i.b16 %v756, %v756
        %v850 = vlaneseq
        %v851 = vshrl.u32 %v850, 7
        %v852 = vsub.s32 0, %v851
        %v853 = vrot.slane %v848, %v852
        %v855 = vpack.i.b16 %v760, %v760
        %v857 = vlaneseq
        %v858 = vshrl.u32 %v857, 7
        %v859 = vsub.s32 0, %v858
        %v860 = vrot.slane %v855, %v859
        %v862 = vpack.i.b16 %v764, %v764
        %v864 = vlaneseq
        %v865 = vshrl.u32 %v864, 7
        %v866 = vsub.s32 0, %v865
        %v867 = vrot.slane %v862, %v866
        %v869 = vpack.i.b16 %v768, %v768
        %v871 = vlaneseq
        %v872 = vshrl.u32 %v871, 7
        %v873 = vsub.s32 0, %v872
        %v874 = vrot.slane %v869, %v873
        %v876 = vpack.i.b16 %v772, %v772
        %v878 = vlaneseq
        %v879 = vshrl.u32 %v878, 7
        %v880 = vsub.s32 0, %v879
        %v881 = vrot.slane %v876, %v880
        %v883 = vpack.i.b16 %v776, %v776
        %v885 = vlaneseq
        %v886 = vshrl.u32 %v885, 7
        %v887 = vsub.s32 0, %v886
        %v888 = vrot.slane %v883, %v887
        %v905 = vunpack.c.l.b16 %v783
        %v906 = vunpack.c.l.b16 %v790
        %v907 = vunpack.c.l.b16 %v797
        %v908 = vunpack.c.l.b16 %v804
        %v909 = vunpack.c.l.b16 %v811
        %v910 = vunpack.c.l.b16 %v818
        %v911 = vunpack.c.l.b16 %v825
        %v912 = vunpack.c.l.b16 %v832
        %v913 = vunpack.c.l.b16 %v839
        %v914 = vunpack.c.l.b16 %v846
        %v915 = vunpack.c.l.b16 %v853
        %v916 = vunpack.c.l.b16 %v860
        %v917 = vunpack.c.l.b16 %v867
        %v918 = vunpack.c.l.b16 %v874
        %v919 = vunpack.c.l.b16 %v881
        %v920 = vunpack.c.l.b16 %v888
        %v921 = vpack.c.b16 %v905, %v905
        %v922 = vpack.c.b16 %v906, %v906
        %v923 = vpack.c.b16 %v907, %v907
        %v924 = vpack.c.b16 %v908, %v908
        %v925 = vpack.c.b16 %v909, %v909
        %v926 = vpack.c.b16 %v910, %v910
        %v927 = vpack.c.b16 %v911, %v911
        %v928 = vpack.c.b16 %v912, %v912
        %v929 = vpack.c.b16 %v913, %v913
        %v930 = vpack.c.b16 %v914, %v914
        %v931 = vpack.c.b16 %v915, %v915
        %v932 = vpack.c.b16 %v916, %v916
        %v933 = vpack.c.b16 %v917, %v917
        %v934 = vpack.c.b16 %v918, %v918
        %v935 = vpack.c.b16 %v919, %v919
        %v936 = vpack.c.b16 %v920, %v920
        %v953 = vmul.bf16 %v623, %v921
        %v954 = vmul.bf16 %v624, %v921
        %v955 = vmul.bf16 %v625, %v921
        %v956 = vmul.bf16 %v626, %v921
        %v957 = vmul.bf16 %v627, %v921
        %v958 = vmul.bf16 %v628, %v921
        %v959 = vmul.bf16 %v629, %v921
        %v960 = vmul.bf16 %v630, %v921
        %v961 = vmul.bf16 %v623, %v922
        %v962 = vmul.bf16 %v624, %v922
        %v963 = vmul.bf16 %v625, %v922
        %v964 = vmul.bf16 %v626, %v922
        %v965 = vmul.bf16 %v627, %v922
        %v966 = vmul.bf16 %v628, %v922
        %v967 = vmul.bf16 %v629, %v922
        %v968 = vmul.bf16 %v630, %v922
        %v969 = vmul.bf16 %v623, %v923
        %v970 = vmul.bf16 %v624, %v923
        %v971 = vmul.bf16 %v625, %v923
        %v972 = vmul.bf16 %v626, %v923
        %v973 = vmul.bf16 %v627, %v923
        %v974 = vmul.bf16 %v628, %v923
        %v975 = vmul.bf16 %v629, %v923
        %v976 = vmul.bf16 %v630, %v923
        %v977 = vmul.bf16 %v623, %v924
        %v978 = vmul.bf16 %v624, %v924
        %v979 = vmul.bf16 %v625, %v924
        %v980 = vmul.bf16 %v626, %v924
        %v981 = vmul.bf16 %v627, %v924
        %v982 = vmul.bf16 %v628, %v924
        %v983 = vmul.bf16 %v629, %v924
        %v984 = vmul.bf16 %v630, %v924
        %v985 = vmul.bf16 %v623, %v925
        %v986 = vmul.bf16 %v624, %v925
        %v987 = vmul.bf16 %v625, %v925
        %v988 = vmul.bf16 %v626, %v925
        %v989 = vmul.bf16 %v627, %v925
        %v990 = vmul.bf16 %v628, %v925
        %v991 = vmul.bf16 %v629, %v925
        %v992 = vmul.bf16 %v630, %v925
        %v993 = vmul.bf16 %v623, %v926
        %v994 = vmul.bf16 %v624, %v926
        %v995 = vmul.bf16 %v625, %v926
        %v996 = vmul.bf16 %v626, %v926
        %v997 = vmul.bf16 %v627, %v926
        %v998 = vmul.bf16 %v628, %v926
        %v999 = vmul.bf16 %v629, %v926
        %v1000 = vmul.bf16 %v630, %v926
        %v1001 = vmul.bf16 %v623, %v927
        %v1002 = vmul.bf16 %v624, %v927
        %v1003 = vmul.bf16 %v625, %v927
        %v1004 = vmul.bf16 %v626, %v927
        %v1005 = vmul.bf16 %v627, %v927
        %v1006 = vmul.bf16 %v628, %v927
        %v1007 = vmul.bf16 %v629, %v927
        %v1008 = vmul.bf16 %v630, %v927
        %v1009 = vmul.bf16 %v623, %v928
        %v1010 = vmul.bf16 %v624, %v928
        %v1011 = vmul.bf16 %v625, %v928
        %v1012 = vmul.bf16 %v626, %v928
        %v1013 = vmul.bf16 %v627, %v928
        %v1014 = vmul.bf16 %v628, %v928
        %v1015 = vmul.bf16 %v629, %v928
        %v1016 = vmul.bf16 %v630, %v928
        %v1017 = vmul.bf16 %v623, %v929
        %v1018 = vmul.bf16 %v624, %v929
        %v1019 = vmul.bf16 %v625, %v929
        %v1020 = vmul.bf16 %v626, %v929
        %v1021 = vmul.bf16 %v627, %v929
        %v1022 = vmul.bf16 %v628, %v929
        %v1023 = vmul.bf16 %v629, %v929
        %v1024 = vmul.bf16 %v630, %v929
        %v1025 = vmul.bf16 %v623, %v930
        %v1026 = vmul.bf16 %v624, %v930
        %v1027 = vmul.bf16 %v625, %v930
        %v1028 = vmul.bf16 %v626, %v930
        %v1029 = vmul.bf16 %v627, %v930
        %v1030 = vmul.bf16 %v628, %v930
        %v1031 = vmul.bf16 %v629, %v930
        %v1032 = vmul.bf16 %v630, %v930
        %v1033 = vmul.bf16 %v623, %v931
        %v1034 = vmul.bf16 %v624, %v931
        %v1035 = vmul.bf16 %v625, %v931
        %v1036 = vmul.bf16 %v626, %v931
        %v1037 = vmul.bf16 %v627, %v931
        %v1038 = vmul.bf16 %v628, %v931
        %v1039 = vmul.bf16 %v629, %v931
        %v1040 = vmul.bf16 %v630, %v931
        %v1041 = vmul.bf16 %v623, %v932
        %v1042 = vmul.bf16 %v624, %v932
        %v1043 = vmul.bf16 %v625, %v932
        %v1044 = vmul.bf16 %v626, %v932
        %v1045 = vmul.bf16 %v627, %v932
        %v1046 = vmul.bf16 %v628, %v932
        %v1047 = vmul.bf16 %v629, %v932
        %v1048 = vmul.bf16 %v630, %v932
        %v1049 = vmul.bf16 %v623, %v933
        %v1050 = vmul.bf16 %v624, %v933
        %v1051 = vmul.bf16 %v625, %v933
        %v1052 = vmul.bf16 %v626, %v933
        %v1053 = vmul.bf16 %v627, %v933
        %v1054 = vmul.bf16 %v628, %v933
        %v1055 = vmul.bf16 %v629, %v933
        %v1056 = vmul.bf16 %v630, %v933
        %v1057 = vmul.bf16 %v623, %v934
        %v1058 = vmul.bf16 %v624, %v934
        %v1059 = vmul.bf16 %v625, %v934
        %v1060 = vmul.bf16 %v626, %v934
        %v1061 = vmul.bf16 %v627, %v934
        %v1062 = vmul.bf16 %v628, %v934
        %v1063 = vmul.bf16 %v629, %v934
        %v1064 = vmul.bf16 %v630, %v934
        %v1065 = vmul.bf16 %v623, %v935
        %v1066 = vmul.bf16 %v624, %v935
        %v1067 = vmul.bf16 %v625, %v935
        %v1068 = vmul.bf16 %v626, %v935
        %v1069 = vmul.bf16 %v627, %v935
        %v1070 = vmul.bf16 %v628, %v935
        %v1071 = vmul.bf16 %v629, %v935
        %v1072 = vmul.bf16 %v630, %v935
        %v1073 = vmul.bf16 %v623, %v936
        %v1074 = vmul.bf16 %v624, %v936
        %v1075 = vmul.bf16 %v625, %v936
        %v1076 = vmul.bf16 %v626, %v936
        %v1077 = vmul.bf16 %v627, %v936
        %v1078 = vmul.bf16 %v628, %v936
        %v1079 = vmul.bf16 %v629, %v936
        %v1080 = vmul.bf16 %v630, %v936
        %v1089 = vunpack.c.l.b16 %v953
        %v1090 = vunpack.c.l.b16 %v954
        %v1091 = vunpack.c.l.b16 %v955
        %v1092 = vunpack.c.l.b16 %v956
        %v1093 = vunpack.c.l.b16 %v957
        %v1094 = vunpack.c.l.b16 %v958
        %v1095 = vunpack.c.l.b16 %v959
        %v1096 = vunpack.c.l.b16 %v960
        %v1097 = vpack.c.b16 %v1090, %v1089
        %v1098 = vpack.c.b16 %v1092, %v1091
        %v1099 = vpack.c.b16 %v1094, %v1093
        %v1100 = vpack.c.b16 %v1096, %v1095
        %1105 = vmatprep.subr.bf16.mxu0 0
        %1106 = vmatpush1.bf16.xpose.msra.mxu0 %v619
        %1107 = vmatprep.subr.bf16.mxu0 0
        %1108 = vmatpush1.bf16.xpose.msra.mxu0 0
        %1109 = vmatprep.subr.bf16.mxu0 0
        %1110 = vmatpush1.bf16.xpose.msra.mxu0 0
        %1111 = vmatprep.subr.bf16.mxu0 0
        %1112 = vmatpush1.bf16.xpose.msra.mxu0 0
        %1113 = vmatprep.subr.bf16.mxu0 0
        %1114 = vmatpush1.bf16.xpose.msra.mxu0 0
        %1115 = vmatprep.subr.bf16.mxu0 0
        %1116 = vmatpush1.bf16.xpose.msra.mxu0 0
        %1117 = vmatprep.subr.bf16.mxu0 0
        %1118 = vmatpush1.bf16.xpose.msra.mxu0 0
        %1119 = vmatprep.subr.bf16.mxu0 0
        %1120 = vmatpush1.bf16.xpose.msra.mxu0 0
        %1121 = vmatprep.subr.bf16.mxu0 0
        %1122 = vmatpush1.bf16.xpose.msra.mxu0 0
        %1123 = vmatprep.subr.bf16.mxu0 0
        %1124 = vmatpush1.bf16.xpose.msra.mxu0 0
        %1125 = vmatprep.subr.bf16.mxu0 0
        %1126 = vmatpush1.bf16.xpose.msra.mxu0 0
        %1127 = vmatprep.subr.bf16.mxu0 0
        %1128 = vmatpush1.bf16.xpose.msra.mxu0 0
        %1129 = vmatprep.subr.bf16.mxu0 0
        %1130 = vmatpush1.bf16.xpose.msra.mxu0 0
        %1131 = vmatprep.subr.bf16.mxu0 0
        %1132 = vmatpush1.bf16.xpose.msra.mxu0 0
        %1133 = vmatprep.subr.bf16.mxu0 0
        %1134 = vmatpush1.bf16.xpose.msra.mxu0 0
        %1135 = vmatprep.subr.bf16.mxu0 0
        %1136 = vmatpush1.bf16.xpose.msra.mxu0 0
        %1137 = vmatprep.mubr.bf16.mxu0 0
        %1138 = vmatmul.mubr.bf16.gmra.mrb[0].mxu0 %v1097
        %v1139 = vpop.f32.mrb[0].mxu0
        %v1140 = vadd.f32 0.0, %v1139
        %v1141 = vpop.f32.mrb[0].mxu0
        %v1142 = vpop.f32.mrb[0].mxu0
        %v1143 = vadd.f32 0.0, %v1142
        %v1144 = vpop.f32.mrb[0].mxu0
        %1145 = vmatprep.mubr.bf16.mxu0 0
        %1146 = vmatmul.mubr.bf16.gmra.mrb[0].mxu0 %v1098
        %v1147 = vpop.f32.mrb[0].mxu0
        %v1148 = vadd.f32 0.0, %v1147
        %v1149 = vpop.f32.mrb[0].mxu0
        %v1150 = vpop.f32.mrb[0].mxu0
        %v1151 = vadd.f32 0.0, %v1150
        %v1152 = vpop.f32.mrb[0].mxu0
        %1153 = vmatprep.mubr.bf16.mxu0 0
        %1154 = vmatmul.mubr.bf16.gmra.mrb[0].mxu0 %v1099
        %v1155 = vpop.f32.mrb[0].mxu0
        %v1156 = vadd.f32 0.0, %v1155
        %v1157 = vpop.f32.mrb[0].mxu0
        %v1158 = vpop.f32.mrb[0].mxu0
        %v1159 = vadd.f32 0.0, %v1158
        %v1160 = vpop.f32.mrb[0].mxu0
        %1161 = vmatprep.mubr.bf16.mxu0 0
        %1162 = vmatmul.mubr.bf16.gmra.mrb[0].mxu0 %v1100
        %v1163 = vpop.f32.mrb[0].mxu0
        %v1164 = vadd.f32 0.0, %v1163
        %v1165 = vpop.f32.mrb[0].mxu0
        %v1166 = vpop.f32.mrb[0].mxu0
        %v1167 = vadd.f32 0.0, %v1166
        %v1168 = vpop.f32.mrb[0].mxu0
        %1169 = vdwg.mxu0
        %v1178 = vunpack.c.l.b16 %v961
        %v1179 = vunpack.c.l.b16 %v962
        %v1180 = vunpack.c.l.b16 %v963
        %v1181 = vunpack.c.l.b16 %v964
        %v1182 = vunpack.c.l.b16 %v965
        %v1183 = vunpack.c.l.b16 %v966
        %v1184 = vunpack.c.l.b16 %v967
        %v1185 = vunpack.c.l.b16 %v968
        %v1186 = vpack.c.b16 %v1179, %v1178
        %v1187 = vpack.c.b16 %v1181, %v1180
        %v1188 = vpack.c.b16 %v1183, %v1182
        %v1189 = vpack.c.b16 %v1185, %v1184
        %1194 = vmatprep.subr.bf16.mxu0 0
        %1195 = vmatpush1.bf16.xpose.msra.mxu0 %v619
        %1196 = vmatprep.subr.bf16.mxu0 0
        %1197 = vmatpush1.bf16.xpose.msra.mxu0 0
        %1198 = vmatprep.subr.bf16.mxu0 0
        %1199 = vmatpush1.bf16.xpose.msra.mxu0 0
        %1200 = vmatprep.subr.bf16.mxu0 0
        %1201 = vmatpush1.bf16.xpose.msra.mxu0 0
        %1202 = vmatprep.subr.bf16.mxu0 0
        %1203 = vmatpush1.bf16.xpose.msra.mxu0 0
        %1204 = vmatprep.subr.bf16.mxu0 0
        %1205 = vmatpush1.bf16.xpose.msra.mxu0 0
        %1206 = vmatprep.subr.bf16.mxu0 0
        %1207 = vmatpush1.bf16.xpose.msra.mxu0 0
        %1208 = vmatprep.subr.bf16.mxu0 0
        %1209 = vmatpush1.bf16.xpose.msra.mxu0 0
        %1210 = vmatprep.subr.bf16.mxu0 0
        %1211 = vmatpush1.bf16.xpose.msra.mxu0 0
        %1212 = vmatprep.subr.bf16.mxu0 0
        %1213 = vmatpush1.bf16.xpose.msra.mxu0 0
        %1214 = vmatprep.subr.bf16.mxu0 0
        %1215 = vmatpush1.bf16.xpose.msra.mxu0 0
        %1216 = vmatprep.subr.bf16.mxu0 0
        %1217 = vmatpush1.bf16.xpose.msra.mxu0 0
        %1218 = vmatprep.subr.bf16.mxu0 0
        %1219 = vmatpush1.bf16.xpose.msra.mxu0 0
        %1220 = vmatprep.subr.bf16.mxu0 0
        %1221 = vmatpush1.bf16.xpose.msra.mxu0 0
        %1222 = vmatprep.subr.bf16.mxu0 0
        %1223 = vmatpush1.bf16.xpose.msra.mxu0 0
        %1224 = vmatprep.subr.bf16.mxu0 0
        %1225 = vmatpush1.bf16.xpose.msra.mxu0 0
        %1226 = vmatprep.mubr.bf16.mxu0 0
        %1227 = vmatmul.mubr.bf16.gmra.mrb[0].mxu0 %v1186
        %v1228 = vpop.f32.mrb[0].mxu0
        %v1229 = vadd.f32 0.0, %v1228
        %v1230 = vpop.f32.mrb[0].mxu0
        %v1231 = vpop.f32.mrb[0].mxu0
        %v1232 = vadd.f32 0.0, %v1231
        %v1233 = vpop.f32.mrb[0].mxu0
        %1234 = vmatprep.mubr.bf16.mxu0 0
        %1235 = vmatmul.mubr.bf16.gmra.mrb[0].mxu0 %v1187
        %v1236 = vpop.f32.mrb[0].mxu0
        %v1237 = vadd.f32 0.0, %v1236
        %v1238 = vpop.f32.mrb[0].mxu0
        %v1239 = vpop.f32.mrb[0].mxu0
        %v1240 = vadd.f32 0.0, %v1239
        %v1241 = vpop.f32.mrb[0].mxu0
        %1242 = vmatprep.mubr.bf16.mxu0 0
        %1243 = vmatmul.mubr.bf16.gmra.mrb[0].mxu0 %v1188
        %v1244 = vpop.f32.mrb[0].mxu0
        %v1245 = vadd.f32 0.0, %v1244
        %v1246 = vpop.f32.mrb[0].mxu0
        %v1247 = vpop.f32.mrb[0].mxu0
        %v1248 = vadd.f32 0.0, %v1247
        %v1249 = vpop.f32.mrb[0].mxu0
        %1250 = vmatprep.mubr.bf16.mxu0 0
        %1251 = vmatmul.mubr.bf16.gmra.mrb[0].mxu0 %v1189
        %v1252 = vpop.f32.mrb[0].mxu0
        %v1253 = vadd.f32 0.0, %v1252
        %v1254 = vpop.f32.mrb[0].mxu0
        %v1255 = vpop.f32.mrb[0].mxu0
        %v1256 = vadd.f32 0.0, %v1255
        %v1257 = vpop.f32.mrb[0].mxu0
        %1258 = vdwg.mxu0
        %v1267 = vunpack.c.l.b16 %v969
        %v1268 = vunpack.c.l.b16 %v970
        %v1269 = vunpack.c.l.b16 %v971
        %v1270 = vunpack.c.l.b16 %v972
        %v1271 = vunpack.c.l.b16 %v973
        %v1272 = vunpack.c.l.b16 %v974
        %v1273 = vunpack.c.l.b16 %v975
        %v1274 = vunpack.c.l.b16 %v976
        %v1275 = vpack.c.b16 %v1268, %v1267
        %v1276 = vpack.c.b16 %v1270, %v1269
        %v1277 = vpack.c.b16 %v1272, %v1271
        %v1278 = vpack.c.b16 %v1274, %v1273
        %1283 = vmatprep.subr.bf16.mxu0 0
        %1284 = vmatpush1.bf16.xpose.msra.mxu0 %v619
        %1285 = vmatprep.subr.bf16.mxu0 0
        %1286 = vmatpush1.bf16.xpose.msra.mxu0 0
        %1287 = vmatprep.subr.bf16.mxu0 0
        %1288 = vmatpush1.bf16.xpose.msra.mxu0 0
        %1289 = vmatprep.subr.bf16.mxu0 0
        %1290 = vmatpush1.bf16.xpose.msra.mxu0 0
        %1291 = vmatprep.subr.bf16.mxu0 0
        %1292 = vmatpush1.bf16.xpose.msra.mxu0 0
        %1293 = vmatprep.subr.bf16.mxu0 0
        %1294 = vmatpush1.bf16.xpose.msra.mxu0 0
        %1295 = vmatprep.subr.bf16.mxu0 0
        %1296 = vmatpush1.bf16.xpose.msra.mxu0 0
        %1297 = vmatprep.subr.bf16.mxu0 0
        %1298 = vmatpush1.bf16.xpose.msra.mxu0 0
        %1299 = vmatprep.subr.bf16.mxu0 0
        %1300 = vmatpush1.bf16.xpose.msra.mxu0 0
        %1301 = vmatprep.subr.bf16.mxu0 0
        %1302 = vmatpush1.bf16.xpose.msra.mxu0 0
        %1303 = vmatprep.subr.bf16.mxu0 0
        %1304 = vmatpush1.bf16.xpose.msra.mxu0 0
        %1305 = vmatprep.subr.bf16.mxu0 0
        %1306 = vmatpush1.bf16.xpose.msra.mxu0 0
        %1307 = vmatprep.subr.bf16.mxu0 0
        %1308 = vmatpush1.bf16.xpose.msra.mxu0 0
        %1309 = vmatprep.subr.bf16.mxu0 0
        %1310 = vmatpush1.bf16.xpose.msra.mxu0 0
        %1311 = vmatprep.subr.bf16.mxu0 0
        %1312 = vmatpush1.bf16.xpose.msra.mxu0 0
        %1313 = vmatprep.subr.bf16.mxu0 0
        %1314 = vmatpush1.bf16.xpose.msra.mxu0 0
        %1315 = vmatprep.mubr.bf16.mxu0 0
        %1316 = vmatmul.mubr.bf16.gmra.mrb[0].mxu0 %v1275
        %v1317 = vpop.f32.mrb[0].mxu0
        %v1318 = vadd.f32 0.0, %v1317
        %v1319 = vpop.f32.mrb[0].mxu0
        %v1320 = vpop.f32.mrb[0].mxu0
        %v1321 = vadd.f32 0.0, %v1320
        %v1322 = vpop.f32.mrb[0].mxu0
        %1323 = vmatprep.mubr.bf16.mxu0 0
        %1324 = vmatmul.mubr.bf16.gmra.mrb[0].mxu0 %v1276
        %v1325 = vpop.f32.mrb[0].mxu0
        %v1326 = vadd.f32 0.0, %v1325
        %v1327 = vpop.f32.mrb[0].mxu0
        %v1328 = vpop.f32.mrb[0].mxu0
        %v1329 = vadd.f32 0.0, %v1328
        %v1330 = vpop.f32.mrb[0].mxu0
        %1331 = vmatprep.mubr.bf16.mxu0 0
        %1332 = vmatmul.mubr.bf16.gmra.mrb[0].mxu0 %v1277
        %v1333 = vpop.f32.mrb[0].mxu0
        %v1334 = vadd.f32 0.0, %v1333
        %v1335 = vpop.f32.mrb[0].mxu0
        %v1336 = vpop.f32.mrb[0].mxu0
        %v1337 = vadd.f32 0.0, %v1336
        %v1338 = vpop.f32.mrb[0].mxu0
        %1339 = vmatprep.mubr.bf16.mxu0 0
        %1340 = vmatmul.mubr.bf16.gmra.mrb[0].mxu0 %v1278
        %v1341 = vpop.f32.mrb[0].mxu0
        %v1342 = vadd.f32 0.0, %v1341
        %v1343 = vpop.f32.mrb[0].mxu0
        %v1344 = vpop.f32.mrb[0].mxu0
        %v1345 = vadd.f32 0.0, %v1344
        %v1346 = vpop.f32.mrb[0].mxu0
        %1347 = vdwg.mxu0
        %v1356 = vunpack.c.l.b16 %v977
        %v1357 = vunpack.c.l.b16 %v978
        %v1358 = vunpack.c.l.b16 %v979
        %v1359 = vunpack.c.l.b16 %v980
        %v1360 = vunpack.c.l.b16 %v981
        %v1361 = vunpack.c.l.b16 %v982
        %v1362 = vunpack.c.l.b16 %v983
        %v1363 = vunpack.c.l.b16 %v984
        %v1364 = vpack.c.b16 %v1357, %v1356
        %v1365 = vpack.c.b16 %v1359, %v1358
        %v1366 = vpack.c.b16 %v1361, %v1360
        %v1367 = vpack.c.b16 %v1363, %v1362
        %1372 = vmatprep.subr.bf16.mxu0 0
        %1373 = vmatpush1.bf16.xpose.msra.mxu0 %v619
        %1374 = vmatprep.subr.bf16.mxu0 0
        %1375 = vmatpush1.bf16.xpose.msra.mxu0 0
        %1376 = vmatprep.subr.bf16.mxu0 0
        %1377 = vmatpush1.bf16.xpose.msra.mxu0 0
        %1378 = vmatprep.subr.bf16.mxu0 0
        %1379 = vmatpush1.bf16.xpose.msra.mxu0 0
        %1380 = vmatprep.subr.bf16.mxu0 0
        %1381 = vmatpush1.bf16.xpose.msra.mxu0 0
        %1382 = vmatprep.subr.bf16.mxu0 0
        %1383 = vmatpush1.bf16.xpose.msra.mxu0 0
        %1384 = vmatprep.subr.bf16.mxu0 0
        %1385 = vmatpush1.bf16.xpose.msra.mxu0 0
        %1386 = vmatprep.subr.bf16.mxu0 0
        %1387 = vmatpush1.bf16.xpose.msra.mxu0 0
        %1388 = vmatprep.subr.bf16.mxu0 0
        %1389 = vmatpush1.bf16.xpose.msra.mxu0 0
        %1390 = vmatprep.subr.bf16.mxu0 0
        %1391 = vmatpush1.bf16.xpose.msra.mxu0 0
        %1392 = vmatprep.subr.bf16.mxu0 0
        %1393 = vmatpush1.bf16.xpose.msra.mxu0 0
        %1394 = vmatprep.subr.bf16.mxu0 0
        %1395 = vmatpush1.bf16.xpose.msra.mxu0 0
        %1396 = vmatprep.subr.bf16.mxu0 0
        %1397 = vmatpush1.bf16.xpose.msra.mxu0 0
        %1398 = vmatprep.subr.bf16.mxu0 0
        %1399 = vmatpush1.bf16.xpose.msra.mxu0 0
        %1400 = vmatprep.subr.bf16.mxu0 0
        %1401 = vmatpush1.bf16.xpose.msra.mxu0 0
        %1402 = vmatprep.subr.bf16.mxu0 0
        %1403 = vmatpush1.bf16.xpose.msra.mxu0 0
        %1404 = vmatprep.mubr.bf16.mxu0 0
        %1405 = vmatmul.mubr.bf16.gmra.mrb[0].mxu0 %v1364
        %v1406 = vpop.f32.mrb[0].mxu0
        %v1407 = vadd.f32 0.0, %v1406
        %v1408 = vpop.f32.mrb[0].mxu0
        %v1409 = vpop.f32.mrb[0].mxu0
        %v1410 = vadd.f32 0.0, %v1409
        %v1411 = vpop.f32.mrb[0].mxu0
        %1412 = vmatprep.mubr.bf16.mxu0 0
        %1413 = vmatmul.mubr.bf16.gmra.mrb[0].mxu0 %v1365
        %v1414 = vpop.f32.mrb[0].mxu0
        %v1415 = vadd.f32 0.0, %v1414
        %v1416 = vpop.f32.mrb[0].mxu0
        %v1417 = vpop.f32.mrb[0].mxu0
        %v1418 = vadd.f32 0.0, %v1417
        %v1419 = vpop.f32.mrb[0].mxu0
        %1420 = vmatprep.mubr.bf16.mxu0 0
        %1421 = vmatmul.mubr.bf16.gmra.mrb[0].mxu0 %v1366
        %v1422 = vpop.f32.mrb[0].mxu0
        %v1423 = vadd.f32 0.0, %v1422
        %v1424 = vpop.f32.mrb[0].mxu0
        %v1425 = vpop.f32.mrb[0].mxu0
        %v1426 = vadd.f32 0.0, %v1425
        %v1427 = vpop.f32.mrb[0].mxu0
        %1428 = vmatprep.mubr.bf16.mxu0 0
        %1429 = vmatmul.mubr.bf16.gmra.mrb[0].mxu0 %v1367
        %v1430 = vpop.f32.mrb[0].mxu0
        %v1431 = vadd.f32 0.0, %v1430
        %v1432 = vpop.f32.mrb[0].mxu0
        %v1433 = vpop.f32.mrb[0].mxu0
        %v1434 = vadd.f32 0.0, %v1433
        %v1435 = vpop.f32.mrb[0].mxu0
        %1436 = vdwg.mxu0
        %v1445 = vunpack.c.l.b16 %v985
        %v1446 = vunpack.c.l.b16 %v986
        %v1447 = vunpack.c.l.b16 %v987
        %v1448 = vunpack.c.l.b16 %v988
        %v1449 = vunpack.c.l.b16 %v989
        %v1450 = vunpack.c.l.b16 %v990
        %v1451 = vunpack.c.l.b16 %v991
        %v1452 = vunpack.c.l.b16 %v992
        %v1453 = vpack.c.b16 %v1446, %v1445
        %v1454 = vpack.c.b16 %v1448, %v1447
        %v1455 = vpack.c.b16 %v1450, %v1449
        %v1456 = vpack.c.b16 %v1452, %v1451
        %1461 = vmatprep.subr.bf16.mxu0 0
        %1462 = vmatpush1.bf16.xpose.msra.mxu0 %v619
        %1463 = vmatprep.subr.bf16.mxu0 0
        %1464 = vmatpush1.bf16.xpose.msra.mxu0 0
        %1465 = vmatprep.subr.bf16.mxu0 0
        %1466 = vmatpush1.bf16.xpose.msra.mxu0 0
        %1467 = vmatprep.subr.bf16.mxu0 0
        %1468 = vmatpush1.bf16.xpose.msra.mxu0 0
        %1469 = vmatprep.subr.bf16.mxu0 0
        %1470 = vmatpush1.bf16.xpose.msra.mxu0 0
        %1471 = vmatprep.subr.bf16.mxu0 0
        %1472 = vmatpush1.bf16.xpose.msra.mxu0 0
        %1473 = vmatprep.subr.bf16.mxu0 0
        %1474 = vmatpush1.bf16.xpose.msra.mxu0 0
        %1475 = vmatprep.subr.bf16.mxu0 0
        %1476 = vmatpush1.bf16.xpose.msra.mxu0 0
        %1477 = vmatprep.subr.bf16.mxu0 0
        %1478 = vmatpush1.bf16.xpose.msra.mxu0 0
        %1479 = vmatprep.subr.bf16.mxu0 0
        %1480 = vmatpush1.bf16.xpose.msra.mxu0 0
        %1481 = vmatprep.subr.bf16.mxu0 0
        %1482 = vmatpush1.bf16.xpose.msra.mxu0 0
        %1483 = vmatprep.subr.bf16.mxu0 0
        %1484 = vmatpush1.bf16.xpose.msra.mxu0 0
        %1485 = vmatprep.subr.bf16.mxu0 0
        %1486 = vmatpush1.bf16.xpose.msra.mxu0 0
        %1487 = vmatprep.subr.bf16.mxu0 0
        %1488 = vmatpush1.bf16.xpose.msra.mxu0 0
        %1489 = vmatprep.subr.bf16.mxu0 0
        %1490 = vmatpush1.bf16.xpose.msra.mxu0 0
        %1491 = vmatprep.subr.bf16.mxu0 0
        %1492 = vmatpush1.bf16.xpose.msra.mxu0 0
        %1493 = vmatprep.mubr.bf16.mxu0 0
        %1494 = vmatmul.mubr.bf16.gmra.mrb[0].mxu0 %v1453
        %v1495 = vpop.f32.mrb[0].mxu0
        %v1496 = vadd.f32 0.0, %v1495
        %v1497 = vpop.f32.mrb[0].mxu0
        %v1498 = vpop.f32.mrb[0].mxu0
        %v1499 = vadd.f32 0.0, %v1498
        %v1500 = vpop.f32.mrb[0].mxu0
        %1501 = vmatprep.mubr.bf16.mxu0 0
        %1502 = vmatmul.mubr.bf16.gmra.mrb[0].mxu0 %v1454
        %v1503 = vpop.f32.mrb[0].mxu0
        %v1504 = vadd.f32 0.0, %v1503
        %v1505 = vpop.f32.mrb[0].mxu0
        %v1506 = vpop.f32.mrb[0].mxu0
        %v1507 = vadd.f32 0.0, %v1506
        %v1508 = vpop.f32.mrb[0].mxu0
        %1509 = vmatprep.mubr.bf16.mxu0 0
        %1510 = vmatmul.mubr.bf16.gmra.mrb[0].mxu0 %v1455
        %v1511 = vpop.f32.mrb[0].mxu0
        %v1512 = vadd.f32 0.0, %v1511
        %v1513 = vpop.f32.mrb[0].mxu0
        %v1514 = vpop.f32.mrb[0].mxu0
        %v1515 = vadd.f32 0.0, %v1514
        %v1516 = vpop.f32.mrb[0].mxu0
        %1517 = vmatprep.mubr.bf16.mxu0 0
        %1518 = vmatmul.mubr.bf16.gmra.mrb[0].mxu0 %v1456
        %v1519 = vpop.f32.mrb[0].mxu0
        %v1520 = vadd.f32 0.0, %v1519
        %v1521 = vpop.f32.mrb[0].mxu0
        %v1522 = vpop.f32.mrb[0].mxu0
        %v1523 = vadd.f32 0.0, %v1522
        %v1524 = vpop.f32.mrb[0].mxu0
        %1525 = vdwg.mxu0
        %v1534 = vunpack.c.l.b16 %v993
        %v1535 = vunpack.c.l.b16 %v994
        %v1536 = vunpack.c.l.b16 %v995
        %v1537 = vunpack.c.l.b16 %v996
        %v1538 = vunpack.c.l.b16 %v997
        %v1539 = vunpack.c.l.b16 %v998
        %v1540 = vunpack.c.l.b16 %v999
        %v1541 = vunpack.c.l.b16 %v1000
        %v1542 = vpack.c.b16 %v1535, %v1534
        %v1543 = vpack.c.b16 %v1537, %v1536
        %v1544 = vpack.c.b16 %v1539, %v1538
        %v1545 = vpack.c.b16 %v1541, %v1540
        %1550 = vmatprep.subr.bf16.mxu0 0
        %1551 = vmatpush1.bf16.xpose.msra.mxu0 %v619
        %1552 = vmatprep.subr.bf16.mxu0 0
        %1553 = vmatpush1.bf16.xpose.msra.mxu0 0
        %1554 = vmatprep.subr.bf16.mxu0 0
        %1555 = vmatpush1.bf16.xpose.msra.mxu0 0
        %1556 = vmatprep.subr.bf16.mxu0 0
        %1557 = vmatpush1.bf16.xpose.msra.mxu0 0
        %1558 = vmatprep.subr.bf16.mxu0 0
        %1559 = vmatpush1.bf16.xpose.msra.mxu0 0
        %1560 = vmatprep.subr.bf16.mxu0 0
        %1561 = vmatpush1.bf16.xpose.msra.mxu0 0
        %1562 = vmatprep.subr.bf16.mxu0 0
        %1563 = vmatpush1.bf16.xpose.msra.mxu0 0
        %1564 = vmatprep.subr.bf16.mxu0 0
        %1565 = vmatpush1.bf16.xpose.msra.mxu0 0
        %1566 = vmatprep.subr.bf16.mxu0 0
        %1567 = vmatpush1.bf16.xpose.msra.mxu0 0
        %1568 = vmatprep.subr.bf16.mxu0 0
        %1569 = vmatpush1.bf16.xpose.msra.mxu0 0
        %1570 = vmatprep.subr.bf16.mxu0 0
        %1571 = vmatpush1.bf16.xpose.msra.mxu0 0
        %1572 = vmatprep.subr.bf16.mxu0 0
        %1573 = vmatpush1.bf16.xpose.msra.mxu0 0
        %1574 = vmatprep.subr.bf16.mxu0 0
        %1575 = vmatpush1.bf16.xpose.msra.mxu0 0
        %1576 = vmatprep.subr.bf16.mxu0 0
        %1577 = vmatpush1.bf16.xpose.msra.mxu0 0
        %1578 = vmatprep.subr.bf16.mxu0 0
        %1579 = vmatpush1.bf16.xpose.msra.mxu0 0
        %1580 = vmatprep.subr.bf16.mxu0 0
        %1581 = vmatpush1.bf16.xpose.msra.mxu0 0
        %1582 = vmatprep.mubr.bf16.mxu0 0
        %1583 = vmatmul.mubr.bf16.gmra.mrb[0].mxu0 %v1542
        %v1584 = vpop.f32.mrb[0].mxu0
        %v1585 = vadd.f32 0.0, %v1584
        %v1586 = vpop.f32.mrb[0].mxu0
        %v1587 = vpop.f32.mrb[0].mxu0
        %v1588 = vadd.f32 0.0, %v1587
        %v1589 = vpop.f32.mrb[0].mxu0
        %1590 = vmatprep.mubr.bf16.mxu0 0
        %1591 = vmatmul.mubr.bf16.gmra.mrb[0].mxu0 %v1543
        %v1592 = vpop.f32.mrb[0].mxu0
        %v1593 = vadd.f32 0.0, %v1592
        %v1594 = vpop.f32.mrb[0].mxu0
        %v1595 = vpop.f32.mrb[0].mxu0
        %v1596 = vadd.f32 0.0, %v1595
        %v1597 = vpop.f32.mrb[0].mxu0
        %1598 = vmatprep.mubr.bf16.mxu0 0
        %1599 = vmatmul.mubr.bf16.gmra.mrb[0].mxu0 %v1544
        %v1600 = vpop.f32.mrb[0].mxu0
        %v1601 = vadd.f32 0.0, %v1600
        %v1602 = vpop.f32.mrb[0].mxu0
        %v1603 = vpop.f32.mrb[0].mxu0
        %v1604 = vadd.f32 0.0, %v1603
        %v1605 = vpop.f32.mrb[0].mxu0
        %1606 = vmatprep.mubr.bf16.mxu0 0
        %1607 = vmatmul.mubr.bf16.gmra.mrb[0].mxu0 %v1545
        %v1608 = vpop.f32.mrb[0].mxu0
        %v1609 = vadd.f32 0.0, %v1608
        %v1610 = vpop.f32.mrb[0].mxu0
        %v1611 = vpop.f32.mrb[0].mxu0
        %v1612 = vadd.f32 0.0, %v1611
        %v1613 = vpop.f32.mrb[0].mxu0
        %1614 = vdwg.mxu0
        %v1623 = vunpack.c.l.b16 %v1001
        %v1624 = vunpack.c.l.b16 %v1002
        %v1625 = vunpack.c.l.b16 %v1003
        %v1626 = vunpack.c.l.b16 %v1004
        %v1627 = vunpack.c.l.b16 %v1005
        %v1628 = vunpack.c.l.b16 %v1006
        %v1629 = vunpack.c.l.b16 %v1007
        %v1630 = vunpack.c.l.b16 %v1008
        %v1631 = vpack.c.b16 %v1624, %v1623
        %v1632 = vpack.c.b16 %v1626, %v1625
        %v1633 = vpack.c.b16 %v1628, %v1627
        %v1634 = vpack.c.b16 %v1630, %v1629
        %1639 = vmatprep.subr.bf16.mxu0 0
        %1640 = vmatpush1.bf16.xpose.msra.mxu0 %v619
        %1641 = vmatprep.subr.bf16.mxu0 0
        %1642 = vmatpush1.bf16.xpose.msra.mxu0 0
        %1643 = vmatprep.subr.bf16.mxu0 0
        %1644 = vmatpush1.bf16.xpose.msra.mxu0 0
        %1645 = vmatprep.subr.bf16.mxu0 0
        %1646 = vmatpush1.bf16.xpose.msra.mxu0 0
        %1647 = vmatprep.subr.bf16.mxu0 0
        %1648 = vmatpush1.bf16.xpose.msra.mxu0 0
        %1649 = vmatprep.subr.bf16.mxu0 0
        %1650 = vmatpush1.bf16.xpose.msra.mxu0 0
        %1651 = vmatprep.subr.bf16.mxu0 0
        %1652 = vmatpush1.bf16.xpose.msra.mxu0 0
        %1653 = vmatprep.subr.bf16.mxu0 0
        %1654 = vmatpush1.bf16.xpose.msra.mxu0 0
        %1655 = vmatprep.subr.bf16.mxu0 0
        %1656 = vmatpush1.bf16.xpose.msra.mxu0 0
        %1657 = vmatprep.subr.bf16.mxu0 0
        %1658 = vmatpush1.bf16.xpose.msra.mxu0 0
        %1659 = vmatprep.subr.bf16.mxu0 0
        %1660 = vmatpush1.bf16.xpose.msra.mxu0 0
        %1661 = vmatprep.subr.bf16.mxu0 0
        %1662 = vmatpush1.bf16.xpose.msra.mxu0 0
        %1663 = vmatprep.subr.bf16.mxu0 0
        %1664 = vmatpush1.bf16.xpose.msra.mxu0 0
        %1665 = vmatprep.subr.bf16.mxu0 0
        %1666 = vmatpush1.bf16.xpose.msra.mxu0 0
        %1667 = vmatprep.subr.bf16.mxu0 0
        %1668 = vmatpush1.bf16.xpose.msra.mxu0 0
        %1669 = vmatprep.subr.bf16.mxu0 0
        %1670 = vmatpush1.bf16.xpose.msra.mxu0 0
        %1671 = vmatprep.mubr.bf16.mxu0 0
        %1672 = vmatmul.mubr.bf16.gmra.mrb[0].mxu0 %v1631
        %v1673 = vpop.f32.mrb[0].mxu0
        %v1674 = vadd.f32 0.0, %v1673
        %v1675 = vpop.f32.mrb[0].mxu0
        %v1676 = vpop.f32.mrb[0].mxu0
        %v1677 = vadd.f32 0.0, %v1676
        %v1678 = vpop.f32.mrb[0].mxu0
        %1679 = vmatprep.mubr.bf16.mxu0 0
        %1680 = vmatmul.mubr.bf16.gmra.mrb[0].mxu0 %v1632
        %v1681 = vpop.f32.mrb[0].mxu0
        %v1682 = vadd.f32 0.0, %v1681
        %v1683 = vpop.f32.mrb[0].mxu0
        %v1684 = vpop.f32.mrb[0].mxu0
        %v1685 = vadd.f32 0.0, %v1684
        %v1686 = vpop.f32.mrb[0].mxu0
        %1687 = vmatprep.mubr.bf16.mxu0 0
        %1688 = vmatmul.mubr.bf16.gmra.mrb[0].mxu0 %v1633
        %v1689 = vpop.f32.mrb[0].mxu0
        %v1690 = vadd.f32 0.0, %v1689
        %v1691 = vpop.f32.mrb[0].mxu0
        %v1692 = vpop.f32.mrb[0].mxu0
        %v1693 = vadd.f32 0.0, %v1692
        %v1694 = vpop.f32.mrb[0].mxu0
        %1695 = vmatprep.mubr.bf16.mxu0 0
        %1696 = vmatmul.mubr.bf16.gmra.mrb[0].mxu0 %v1634
        %v1697 = vpop.f32.mrb[0].mxu0
        %v1698 = vadd.f32 0.0, %v1697
        %v1699 = vpop.f32.mrb[0].mxu0
        %v1700 = vpop.f32.mrb[0].mxu0
        %v1701 = vadd.f32 0.0, %v1700
        %v1702 = vpop.f32.mrb[0].mxu0
        %1703 = vdwg.mxu0
        %v1712 = vunpack.c.l.b16 %v1009
        %v1713 = vunpack.c.l.b16 %v1010
        %v1714 = vunpack.c.l.b16 %v1011
        %v1715 = vunpack.c.l.b16 %v1012
        %v1716 = vunpack.c.l.b16 %v1013
        %v1717 = vunpack.c.l.b16 %v1014
        %v1718 = vunpack.c.l.b16 %v1015
        %v1719 = vunpack.c.l.b16 %v1016
        %v1720 = vpack.c.b16 %v1713, %v1712
        %v1721 = vpack.c.b16 %v1715, %v1714
        %v1722 = vpack.c.b16 %v1717, %v1716
        %v1723 = vpack.c.b16 %v1719, %v1718
        %1728 = vmatprep.subr.bf16.mxu0 0
        %1729 = vmatpush1.bf16.xpose.msra.mxu0 %v619
        %1730 = vmatprep.subr.bf16.mxu0 0
        %1731 = vmatpush1.bf16.xpose.msra.mxu0 0
        %1732 = vmatprep.subr.bf16.mxu0 0
        %1733 = vmatpush1.bf16.xpose.msra.mxu0 0
        %1734 = vmatprep.subr.bf16.mxu0 0
        %1735 = vmatpush1.bf16.xpose.msra.mxu0 0
        %1736 = vmatprep.subr.bf16.mxu0 0
        %1737 = vmatpush1.bf16.xpose.msra.mxu0 0
        %1738 = vmatprep.subr.bf16.mxu0 0
        %1739 = vmatpush1.bf16.xpose.msra.mxu0 0
        %1740 = vmatprep.subr.bf16.mxu0 0
        %1741 = vmatpush1.bf16.xpose.msra.mxu0 0
        %1742 = vmatprep.subr.bf16.mxu0 0
        %1743 = vmatpush1.bf16.xpose.msra.mxu0 0
        %1744 = vmatprep.subr.bf16.mxu0 0
        %1745 = vmatpush1.bf16.xpose.msra.mxu0 0
        %1746 = vmatprep.subr.bf16.mxu0 0
        %1747 = vmatpush1.bf16.xpose.msra.mxu0 0
        %1748 = vmatprep.subr.bf16.mxu0 0
        %1749 = vmatpush1.bf16.xpose.msra.mxu0 0
        %1750 = vmatprep.subr.bf16.mxu0 0
        %1751 = vmatpush1.bf16.xpose.msra.mxu0 0
        %1752 = vmatprep.subr.bf16.mxu0 0
        %1753 = vmatpush1.bf16.xpose.msra.mxu0 0
        %1754 = vmatprep.subr.bf16.mxu0 0
        %1755 = vmatpush1.bf16.xpose.msra.mxu0 0
        %1756 = vmatprep.subr.bf16.mxu0 0
        %1757 = vmatpush1.bf16.xpose.msra.mxu0 0
        %1758 = vmatprep.subr.bf16.mxu0 0
        %1759 = vmatpush1.bf16.xpose.msra.mxu0 0
        %1760 = vmatprep.mubr.bf16.mxu0 0
        %1761 = vmatmul.mubr.bf16.gmra.mrb[0].mxu0 %v1720
        %v1762 = vpop.f32.mrb[0].mxu0
        %v1763 = vadd.f32 0.0, %v1762
        %v1764 = vpop.f32.mrb[0].mxu0
        %v1765 = vpop.f32.mrb[0].mxu0
        %v1766 = vadd.f32 0.0, %v1765
        %v1767 = vpop.f32.mrb[0].mxu0
        %1768 = vmatprep.mubr.bf16.mxu0 0
        %1769 = vmatmul.mubr.bf16.gmra.mrb[0].mxu0 %v1721
        %v1770 = vpop.f32.mrb[0].mxu0
        %v1771 = vadd.f32 0.0, %v1770
        %v1772 = vpop.f32.mrb[0].mxu0
        %v1773 = vpop.f32.mrb[0].mxu0
        %v1774 = vadd.f32 0.0, %v1773
        %v1775 = vpop.f32.mrb[0].mxu0
        %1776 = vmatprep.mubr.bf16.mxu0 0
        %1777 = vmatmul.mubr.bf16.gmra.mrb[0].mxu0 %v1722
        %v1778 = vpop.f32.mrb[0].mxu0
        %v1779 = vadd.f32 0.0, %v1778
        %v1780 = vpop.f32.mrb[0].mxu0
        %v1781 = vpop.f32.mrb[0].mxu0
        %v1782 = vadd.f32 0.0, %v1781
        %v1783 = vpop.f32.mrb[0].mxu0
        %1784 = vmatprep.mubr.bf16.mxu0 0
        %1785 = vmatmul.mubr.bf16.gmra.mrb[0].mxu0 %v1723
        %v1786 = vpop.f32.mrb[0].mxu0
        %v1787 = vadd.f32 0.0, %v1786
        %v1788 = vpop.f32.mrb[0].mxu0
        %v1789 = vpop.f32.mrb[0].mxu0
        %v1790 = vadd.f32 0.0, %v1789
        %v1791 = vpop.f32.mrb[0].mxu0
        %1792 = vdwg.mxu0
        %v1801 = vunpack.c.l.b16 %v1017
        %v1802 = vunpack.c.l.b16 %v1018
        %v1803 = vunpack.c.l.b16 %v1019
        %v1804 = vunpack.c.l.b16 %v1020
        %v1805 = vunpack.c.l.b16 %v1021
        %v1806 = vunpack.c.l.b16 %v1022
        %v1807 = vunpack.c.l.b16 %v1023
        %v1808 = vunpack.c.l.b16 %v1024
        %v1809 = vpack.c.b16 %v1802, %v1801
        %v1810 = vpack.c.b16 %v1804, %v1803
        %v1811 = vpack.c.b16 %v1806, %v1805
        %v1812 = vpack.c.b16 %v1808, %v1807
        %1817 = vmatprep.subr.bf16.mxu0 0
        %1818 = vmatpush1.bf16.xpose.msra.mxu0 %v619
        %1819 = vmatprep.subr.bf16.mxu0 0
        %1820 = vmatpush1.bf16.xpose.msra.mxu0 0
        %1821 = vmatprep.subr.bf16.mxu0 0
        %1822 = vmatpush1.bf16.xpose.msra.mxu0 0
        %1823 = vmatprep.subr.bf16.mxu0 0
        %1824 = vmatpush1.bf16.xpose.msra.mxu0 0
        %1825 = vmatprep.subr.bf16.mxu0 0
        %1826 = vmatpush1.bf16.xpose.msra.mxu0 0
        %1827 = vmatprep.subr.bf16.mxu0 0
        %1828 = vmatpush1.bf16.xpose.msra.mxu0 0
        %1829 = vmatprep.subr.bf16.mxu0 0
        %1830 = vmatpush1.bf16.xpose.msra.mxu0 0
        %1831 = vmatprep.subr.bf16.mxu0 0
        %1832 = vmatpush1.bf16.xpose.msra.mxu0 0
        %1833 = vmatprep.subr.bf16.mxu0 0
        %1834 = vmatpush1.bf16.xpose.msra.mxu0 0
        %1835 = vmatprep.subr.bf16.mxu0 0
        %1836 = vmatpush1.bf16.xpose.msra.mxu0 0
        %1837 = vmatprep.subr.bf16.mxu0 0
        %1838 = vmatpush1.bf16.xpose.msra.mxu0 0
        %1839 = vmatprep.subr.bf16.mxu0 0
        %1840 = vmatpush1.bf16.xpose.msra.mxu0 0
        %1841 = vmatprep.subr.bf16.mxu0 0
        %1842 = vmatpush1.bf16.xpose.msra.mxu0 0
        %1843 = vmatprep.subr.bf16.mxu0 0
        %1844 = vmatpush1.bf16.xpose.msra.mxu0 0
        %1845 = vmatprep.subr.bf16.mxu0 0
        %1846 = vmatpush1.bf16.xpose.msra.mxu0 0
        %1847 = vmatprep.subr.bf16.mxu0 0
        %1848 = vmatpush1.bf16.xpose.msra.mxu0 0
        %1849 = vmatprep.mubr.bf16.mxu0 0
        %1850 = vmatmul.mubr.bf16.gmra.mrb[0].mxu0 %v1809
        %v1851 = vpop.f32.mrb[0].mxu0
        %v1852 = vadd.f32 0.0, %v1851
        %v1853 = vpop.f32.mrb[0].mxu0
        %v1854 = vpop.f32.mrb[0].mxu0
        %v1855 = vadd.f32 0.0, %v1854
        %v1856 = vpop.f32.mrb[0].mxu0
        %1857 = vmatprep.mubr.bf16.mxu0 0
        %1858 = vmatmul.mubr.bf16.gmra.mrb[0].mxu0 %v1810
        %v1859 = vpop.f32.mrb[0].mxu0
        %v1860 = vadd.f32 0.0, %v1859
        %v1861 = vpop.f32.mrb[0].mxu0
        %v1862 = vpop.f32.mrb[0].mxu0
        %v1863 = vadd.f32 0.0, %v1862
        %v1864 = vpop.f32.mrb[0].mxu0
        %1865 = vmatprep.mubr.bf16.mxu0 0
        %1866 = vmatmul.mubr.bf16.gmra.mrb[0].mxu0 %v1811
        %v1867 = vpop.f32.mrb[0].mxu0
        %v1868 = vadd.f32 0.0, %v1867
        %v1869 = vpop.f32.mrb[0].mxu0
        %v1870 = vpop.f32.mrb[0].mxu0
        %v1871 = vadd.f32 0.0, %v1870
        %v1872 = vpop.f32.mrb[0].mxu0
        %1873 = vmatprep.mubr.bf16.mxu0 0
        %1874 = vmatmul.mubr.bf16.gmra.mrb[0].mxu0 %v1812
        %v1875 = vpop.f32.mrb[0].mxu0
        %v1876 = vadd.f32 0.0, %v1875
        %v1877 = vpop.f32.mrb[0].mxu0
        %v1878 = vpop.f32.mrb[0].mxu0
        %v1879 = vadd.f32 0.0, %v1878
        %v1880 = vpop.f32.mrb[0].mxu0
        %1881 = vdwg.mxu0
        %v1890 = vunpack.c.l.b16 %v1025
        %v1891 = vunpack.c.l.b16 %v1026
        %v1892 = vunpack.c.l.b16 %v1027
        %v1893 = vunpack.c.l.b16 %v1028
        %v1894 = vunpack.c.l.b16 %v1029
        %v1895 = vunpack.c.l.b16 %v1030
        %v1896 = vunpack.c.l.b16 %v1031
        %v1897 = vunpack.c.l.b16 %v1032
        %v1898 = vpack.c.b16 %v1891, %v1890
        %v1899 = vpack.c.b16 %v1893, %v1892
        %v1900 = vpack.c.b16 %v1895, %v1894
        %v1901 = vpack.c.b16 %v1897, %v1896
        %1906 = vmatprep.subr.bf16.mxu0 0
        %1907 = vmatpush1.bf16.xpose.msra.mxu0 %v619
        %1908 = vmatprep.subr.bf16.mxu0 0
        %1909 = vmatpush1.bf16.xpose.msra.mxu0 0
        %1910 = vmatprep.subr.bf16.mxu0 0
        %1911 = vmatpush1.bf16.xpose.msra.mxu0 0
        %1912 = vmatprep.subr.bf16.mxu0 0
        %1913 = vmatpush1.bf16.xpose.msra.mxu0 0
        %1914 = vmatprep.subr.bf16.mxu0 0
        %1915 = vmatpush1.bf16.xpose.msra.mxu0 0
        %1916 = vmatprep.subr.bf16.mxu0 0
        %1917 = vmatpush1.bf16.xpose.msra.mxu0 0
        %1918 = vmatprep.subr.bf16.mxu0 0
        %1919 = vmatpush1.bf16.xpose.msra.mxu0 0
        %1920 = vmatprep.subr.bf16.mxu0 0
        %1921 = vmatpush1.bf16.xpose.msra.mxu0 0
        %1922 = vmatprep.subr.bf16.mxu0 0
        %1923 = vmatpush1.bf16.xpose.msra.mxu0 0
        %1924 = vmatprep.subr.bf16.mxu0 0
        %1925 = vmatpush1.bf16.xpose.msra.mxu0 0
        %1926 = vmatprep.subr.bf16.mxu0 0
        %1927 = vmatpush1.bf16.xpose.msra.mxu0 0
        %1928 = vmatprep.subr.bf16.mxu0 0
        %1929 = vmatpush1.bf16.xpose.msra.mxu0 0
        %1930 = vmatprep.subr.bf16.mxu0 0
        %1931 = vmatpush1.bf16.xpose.msra.mxu0 0
        %1932 = vmatprep.subr.bf16.mxu0 0
        %1933 = vmatpush1.bf16.xpose.msra.mxu0 0
        %1934 = vmatprep.subr.bf16.mxu0 0
        %1935 = vmatpush1.bf16.xpose.msra.mxu0 0
        %1936 = vmatprep.subr.bf16.mxu0 0
        %1937 = vmatpush1.bf16.xpose.msra.mxu0 0
        %1938 = vmatprep.mubr.bf16.mxu0 0
        %1939 = vmatmul.mubr.bf16.gmra.mrb[0].mxu0 %v1898
        %v1940 = vpop.f32.mrb[0].mxu0
        %v1941 = vadd.f32 0.0, %v1940
        %v1942 = vpop.f32.mrb[0].mxu0
        %v1943 = vpop.f32.mrb[0].mxu0
        %v1944 = vadd.f32 0.0, %v1943
        %v1945 = vpop.f32.mrb[0].mxu0
        %1946 = vmatprep.mubr.bf16.mxu0 0
        %1947 = vmatmul.mubr.bf16.gmra.mrb[0].mxu0 %v1899
        %v1948 = vpop.f32.mrb[0].mxu0
        %v1949 = vadd.f32 0.0, %v1948
        %v1950 = vpop.f32.mrb[0].mxu0
        %v1951 = vpop.f32.mrb[0].mxu0
        %v1952 = vadd.f32 0.0, %v1951
        %v1953 = vpop.f32.mrb[0].mxu0
        %1954 = vmatprep.mubr.bf16.mxu0 0
        %1955 = vmatmul.mubr.bf16.gmra.mrb[0].mxu0 %v1900
        %v1956 = vpop.f32.mrb[0].mxu0
        %v1957 = vadd.f32 0.0, %v1956
        %v1958 = vpop.f32.mrb[0].mxu0
        %v1959 = vpop.f32.mrb[0].mxu0
        %v1960 = vadd.f32 0.0, %v1959
        %v1961 = vpop.f32.mrb[0].mxu0
        %1962 = vmatprep.mubr.bf16.mxu0 0
        %1963 = vmatmul.mubr.bf16.gmra.mrb[0].mxu0 %v1901
        %v1964 = vpop.f32.mrb[0].mxu0
        %v1965 = vadd.f32 0.0, %v1964
        %v1966 = vpop.f32.mrb[0].mxu0
        %v1967 = vpop.f32.mrb[0].mxu0
        %v1968 = vadd.f32 0.0, %v1967
        %v1969 = vpop.f32.mrb[0].mxu0
        %1970 = vdwg.mxu0
        %v1979 = vunpack.c.l.b16 %v1033
        %v1980 = vunpack.c.l.b16 %v1034
        %v1981 = vunpack.c.l.b16 %v1035
        %v1982 = vunpack.c.l.b16 %v1036
        %v1983 = vunpack.c.l.b16 %v1037
        %v1984 = vunpack.c.l.b16 %v1038
        %v1985 = vunpack.c.l.b16 %v1039
        %v1986 = vunpack.c.l.b16 %v1040
        %v1987 = vpack.c.b16 %v1980, %v1979
        %v1988 = vpack.c.b16 %v1982, %v1981
        %v1989 = vpack.c.b16 %v1984, %v1983
        %v1990 = vpack.c.b16 %v1986, %v1985
        %1995 = vmatprep.subr.bf16.mxu0 0
        %1996 = vmatpush1.bf16.xpose.msra.mxu0 %v619
        %1997 = vmatprep.subr.bf16.mxu0 0
        %1998 = vmatpush1.bf16.xpose.msra.mxu0 0
        %1999 = vmatprep.subr.bf16.mxu0 0
        %2000 = vmatpush1.bf16.xpose.msra.mxu0 0
        %2001 = vmatprep.subr.bf16.mxu0 0
        %2002 = vmatpush1.bf16.xpose.msra.mxu0 0
        %2003 = vmatprep.subr.bf16.mxu0 0
        %2004 = vmatpush1.bf16.xpose.msra.mxu0 0
        %2005 = vmatprep.subr.bf16.mxu0 0
        %2006 = vmatpush1.bf16.xpose.msra.mxu0 0
        %2007 = vmatprep.subr.bf16.mxu0 0
        %2008 = vmatpush1.bf16.xpose.msra.mxu0 0
        %2009 = vmatprep.subr.bf16.mxu0 0
        %2010 = vmatpush1.bf16.xpose.msra.mxu0 0
        %2011 = vmatprep.subr.bf16.mxu0 0
        %2012 = vmatpush1.bf16.xpose.msra.mxu0 0
        %2013 = vmatprep.subr.bf16.mxu0 0
        %2014 = vmatpush1.bf16.xpose.msra.mxu0 0
        %2015 = vmatprep.subr.bf16.mxu0 0
        %2016 = vmatpush1.bf16.xpose.msra.mxu0 0
        %2017 = vmatprep.subr.bf16.mxu0 0
        %2018 = vmatpush1.bf16.xpose.msra.mxu0 0
        %2019 = vmatprep.subr.bf16.mxu0 0
        %2020 = vmatpush1.bf16.xpose.msra.mxu0 0
        %2021 = vmatprep.subr.bf16.mxu0 0
        %2022 = vmatpush1.bf16.xpose.msra.mxu0 0
        %2023 = vmatprep.subr.bf16.mxu0 0
        %2024 = vmatpush1.bf16.xpose.msra.mxu0 0
        %2025 = vmatprep.subr.bf16.mxu0 0
        %2026 = vmatpush1.bf16.xpose.msra.mxu0 0
        %2027 = vmatprep.mubr.bf16.mxu0 0
        %2028 = vmatmul.mubr.bf16.gmra.mrb[0].mxu0 %v1987
        %v2029 = vpop.f32.mrb[0].mxu0
        %v2030 = vadd.f32 0.0, %v2029
        %v2031 = vpop.f32.mrb[0].mxu0
        %v2032 = vpop.f32.mrb[0].mxu0
        %v2033 = vadd.f32 0.0, %v2032
        %v2034 = vpop.f32.mrb[0].mxu0
        %2035 = vmatprep.mubr.bf16.mxu0 0
        %2036 = vmatmul.mubr.bf16.gmra.mrb[0].mxu0 %v1988
        %v2037 = vpop.f32.mrb[0].mxu0
        %v2038 = vadd.f32 0.0, %v2037
        %v2039 = vpop.f32.mrb[0].mxu0
        %v2040 = vpop.f32.mrb[0].mxu0
        %v2041 = vadd.f32 0.0, %v2040
        %v2042 = vpop.f32.mrb[0].mxu0
        %2043 = vmatprep.mubr.bf16.mxu0 0
        %2044 = vmatmul.mubr.bf16.gmra.mrb[0].mxu0 %v1989
        %v2045 = vpop.f32.mrb[0].mxu0
        %v2046 = vadd.f32 0.0, %v2045
        %v2047 = vpop.f32.mrb[0].mxu0
        %v2048 = vpop.f32.mrb[0].mxu0
        %v2049 = vadd.f32 0.0, %v2048
        %v2050 = vpop.f32.mrb[0].mxu0
        %2051 = vmatprep.mubr.bf16.mxu0 0
        %2052 = vmatmul.mubr.bf16.gmra.mrb[0].mxu0 %v1990
        %v2053 = vpop.f32.mrb[0].mxu0
        %v2054 = vadd.f32 0.0, %v2053
        %v2055 = vpop.f32.mrb[0].mxu0
        %v2056 = vpop.f32.mrb[0].mxu0
        %v2057 = vadd.f32 0.0, %v2056
        %v2058 = vpop.f32.mrb[0].mxu0
        %2059 = vdwg.mxu0
        %v2068 = vunpack.c.l.b16 %v1041
        %v2069 = vunpack.c.l.b16 %v1042
        %v2070 = vunpack.c.l.b16 %v1043
        %v2071 = vunpack.c.l.b16 %v1044
        %v2072 = vunpack.c.l.b16 %v1045
        %v2073 = vunpack.c.l.b16 %v1046
        %v2074 = vunpack.c.l.b16 %v1047
        %v2075 = vunpack.c.l.b16 %v1048
        %v2076 = vpack.c.b16 %v2069, %v2068
        %v2077 = vpack.c.b16 %v2071, %v2070
        %v2078 = vpack.c.b16 %v2073, %v2072
        %v2079 = vpack.c.b16 %v2075, %v2074
        %2084 = vmatprep.subr.bf16.mxu0 0
        %2085 = vmatpush1.bf16.xpose.msra.mxu0 %v619
        %2086 = vmatprep.subr.bf16.mxu0 0
        %2087 = vmatpush1.bf16.xpose.msra.mxu0 0
        %2088 = vmatprep.subr.bf16.mxu0 0
        %2089 = vmatpush1.bf16.xpose.msra.mxu0 0
        %2090 = vmatprep.subr.bf16.mxu0 0
        %2091 = vmatpush1.bf16.xpose.msra.mxu0 0
        %2092 = vmatprep.subr.bf16.mxu0 0
        %2093 = vmatpush1.bf16.xpose.msra.mxu0 0
        %2094 = vmatprep.subr.bf16.mxu0 0
        %2095 = vmatpush1.bf16.xpose.msra.mxu0 0
        %2096 = vmatprep.subr.bf16.mxu0 0
        %2097 = vmatpush1.bf16.xpose.msra.mxu0 0
        %2098 = vmatprep.subr.bf16.mxu0 0
        %2099 = vmatpush1.bf16.xpose.msra.mxu0 0
        %2100 = vmatprep.subr.bf16.mxu0 0
        %2101 = vmatpush1.bf16.xpose.msra.mxu0 0
        %2102 = vmatprep.subr.bf16.mxu0 0
        %2103 = vmatpush1.bf16.xpose.msra.mxu0 0
        %2104 = vmatprep.subr.bf16.mxu0 0
        %2105 = vmatpush1.bf16.xpose.msra.mxu0 0
        %2106 = vmatprep.subr.bf16.mxu0 0
        %2107 = vmatpush1.bf16.xpose.msra.mxu0 0
        %2108 = vmatprep.subr.bf16.mxu0 0
        %2109 = vmatpush1.bf16.xpose.msra.mxu0 0
        %2110 = vmatprep.subr.bf16.mxu0 0
        %2111 = vmatpush1.bf16.xpose.msra.mxu0 0
        %2112 = vmatprep.subr.bf16.mxu0 0
        %2113 = vmatpush1.bf16.xpose.msra.mxu0 0
        %2114 = vmatprep.subr.bf16.mxu0 0
        %2115 = vmatpush1.bf16.xpose.msra.mxu0 0
        %2116 = vmatprep.mubr.bf16.mxu0 0
        %2117 = vmatmul.mubr.bf16.gmra.mrb[0].mxu0 %v2076
        %v2118 = vpop.f32.mrb[0].mxu0
        %v2119 = vadd.f32 0.0, %v2118
        %v2120 = vpop.f32.mrb[0].mxu0
        %v2121 = vpop.f32.mrb[0].mxu0
        %v2122 = vadd.f32 0.0, %v2121
        %v2123 = vpop.f32.mrb[0].mxu0
        %2124 = vmatprep.mubr.bf16.mxu0 0
        %2125 = vmatmul.mubr.bf16.gmra.mrb[0].mxu0 %v2077
        %v2126 = vpop.f32.mrb[0].mxu0
        %v2127 = vadd.f32 0.0, %v2126
        %v2128 = vpop.f32.mrb[0].mxu0
        %v2129 = vpop.f32.mrb[0].mxu0
        %v2130 = vadd.f32 0.0, %v2129
        %v2131 = vpop.f32.mrb[0].mxu0
        %2132 = vmatprep.mubr.bf16.mxu0 0
        %2133 = vmatmul.mubr.bf16.gmra.mrb[0].mxu0 %v2078
        %v2134 = vpop.f32.mrb[0].mxu0
        %v2135 = vadd.f32 0.0, %v2134
        %v2136 = vpop.f32.mrb[0].mxu0
        %v2137 = vpop.f32.mrb[0].mxu0
        %v2138 = vadd.f32 0.0, %v2137
        %v2139 = vpop.f32.mrb[0].mxu0
        %2140 = vmatprep.mubr.bf16.mxu0 0
        %2141 = vmatmul.mubr.bf16.gmra.mrb[0].mxu0 %v2079
        %v2142 = vpop.f32.mrb[0].mxu0
        %v2143 = vadd.f32 0.0, %v2142
        %v2144 = vpop.f32.mrb[0].mxu0
        %v2145 = vpop.f32.mrb[0].mxu0
        %v2146 = vadd.f32 0.0, %v2145
        %v2147 = vpop.f32.mrb[0].mxu0
        %2148 = vdwg.mxu0
        %v2157 = vunpack.c.l.b16 %v1049
        %v2158 = vunpack.c.l.b16 %v1050
        %v2159 = vunpack.c.l.b16 %v1051
        %v2160 = vunpack.c.l.b16 %v1052
        %v2161 = vunpack.c.l.b16 %v1053
        %v2162 = vunpack.c.l.b16 %v1054
        %v2163 = vunpack.c.l.b16 %v1055
        %v2164 = vunpack.c.l.b16 %v1056
        %v2165 = vpack.c.b16 %v2158, %v2157
        %v2166 = vpack.c.b16 %v2160, %v2159
        %v2167 = vpack.c.b16 %v2162, %v2161
        %v2168 = vpack.c.b16 %v2164, %v2163
        %2173 = vmatprep.subr.bf16.mxu0 0
        %2174 = vmatpush1.bf16.xpose.msra.mxu0 %v619
        %2175 = vmatprep.subr.bf16.mxu0 0
        %2176 = vmatpush1.bf16.xpose.msra.mxu0 0
        %2177 = vmatprep.subr.bf16.mxu0 0
        %2178 = vmatpush1.bf16.xpose.msra.mxu0 0
        %2179 = vmatprep.subr.bf16.mxu0 0
        %2180 = vmatpush1.bf16.xpose.msra.mxu0 0
        %2181 = vmatprep.subr.bf16.mxu0 0
        %2182 = vmatpush1.bf16.xpose.msra.mxu0 0
        %2183 = vmatprep.subr.bf16.mxu0 0
        %2184 = vmatpush1.bf16.xpose.msra.mxu0 0
        %2185 = vmatprep.subr.bf16.mxu0 0
        %2186 = vmatpush1.bf16.xpose.msra.mxu0 0
        %2187 = vmatprep.subr.bf16.mxu0 0
        %2188 = vmatpush1.bf16.xpose.msra.mxu0 0
        %2189 = vmatprep.subr.bf16.mxu0 0
        %2190 = vmatpush1.bf16.xpose.msra.mxu0 0
        %2191 = vmatprep.subr.bf16.mxu0 0
        %2192 = vmatpush1.bf16.xpose.msra.mxu0 0
        %2193 = vmatprep.subr.bf16.mxu0 0
        %2194 = vmatpush1.bf16.xpose.msra.mxu0 0
        %2195 = vmatprep.subr.bf16.mxu0 0
        %2196 = vmatpush1.bf16.xpose.msra.mxu0 0
        %2197 = vmatprep.subr.bf16.mxu0 0
        %2198 = vmatpush1.bf16.xpose.msra.mxu0 0
        %2199 = vmatprep.subr.bf16.mxu0 0
        %2200 = vmatpush1.bf16.xpose.msra.mxu0 0
        %2201 = vmatprep.subr.bf16.mxu0 0
        %2202 = vmatpush1.bf16.xpose.msra.mxu0 0
        %2203 = vmatprep.subr.bf16.mxu0 0
        %2204 = vmatpush1.bf16.xpose.msra.mxu0 0
        %2205 = vmatprep.mubr.bf16.mxu0 0
        %2206 = vmatmul.mubr.bf16.gmra.mrb[0].mxu0 %v2165
        %v2207 = vpop.f32.mrb[0].mxu0
        %v2208 = vadd.f32 0.0, %v2207
        %v2209 = vpop.f32.mrb[0].mxu0
        %v2210 = vpop.f32.mrb[0].mxu0
        %v2211 = vadd.f32 0.0, %v2210
        %v2212 = vpop.f32.mrb[0].mxu0
        %2213 = vmatprep.mubr.bf16.mxu0 0
        %2214 = vmatmul.mubr.bf16.gmra.mrb[0].mxu0 %v2166
        %v2215 = vpop.f32.mrb[0].mxu0
        %v2216 = vadd.f32 0.0, %v2215
        %v2217 = vpop.f32.mrb[0].mxu0
        %v2218 = vpop.f32.mrb[0].mxu0
        %v2219 = vadd.f32 0.0, %v2218
        %v2220 = vpop.f32.mrb[0].mxu0
        %2221 = vmatprep.mubr.bf16.mxu0 0
        %2222 = vmatmul.mubr.bf16.gmra.mrb[0].mxu0 %v2167
        %v2223 = vpop.f32.mrb[0].mxu0
        %v2224 = vadd.f32 0.0, %v2223
        %v2225 = vpop.f32.mrb[0].mxu0
        %v2226 = vpop.f32.mrb[0].mxu0
        %v2227 = vadd.f32 0.0, %v2226
        %v2228 = vpop.f32.mrb[0].mxu0
        %2229 = vmatprep.mubr.bf16.mxu0 0
        %2230 = vmatmul.mubr.bf16.gmra.mrb[0].mxu0 %v2168
        %v2231 = vpop.f32.mrb[0].mxu0
        %v2232 = vadd.f32 0.0, %v2231
        %v2233 = vpop.f32.mrb[0].mxu0
        %v2234 = vpop.f32.mrb[0].mxu0
        %v2235 = vadd.f32 0.0, %v2234
        %v2236 = vpop.f32.mrb[0].mxu0
        %2237 = vdwg.mxu0
        %v2246 = vunpack.c.l.b16 %v1057
        %v2247 = vunpack.c.l.b16 %v1058
        %v2248 = vunpack.c.l.b16 %v1059
        %v2249 = vunpack.c.l.b16 %v1060
        %v2250 = vunpack.c.l.b16 %v1061
        %v2251 = vunpack.c.l.b16 %v1062
        %v2252 = vunpack.c.l.b16 %v1063
        %v2253 = vunpack.c.l.b16 %v1064
        %v2254 = vpack.c.b16 %v2247, %v2246
        %v2255 = vpack.c.b16 %v2249, %v2248
        %v2256 = vpack.c.b16 %v2251, %v2250
        %v2257 = vpack.c.b16 %v2253, %v2252
        %2262 = vmatprep.subr.bf16.mxu0 0
        %2263 = vmatpush1.bf16.xpose.msra.mxu0 %v619
        %2264 = vmatprep.subr.bf16.mxu0 0
        %2265 = vmatpush1.bf16.xpose.msra.mxu0 0
        %2266 = vmatprep.subr.bf16.mxu0 0
        %2267 = vmatpush1.bf16.xpose.msra.mxu0 0
        %2268 = vmatprep.subr.bf16.mxu0 0
        %2269 = vmatpush1.bf16.xpose.msra.mxu0 0
        %2270 = vmatprep.subr.bf16.mxu0 0
        %2271 = vmatpush1.bf16.xpose.msra.mxu0 0
        %2272 = vmatprep.subr.bf16.mxu0 0
        %2273 = vmatpush1.bf16.xpose.msra.mxu0 0
        %2274 = vmatprep.subr.bf16.mxu0 0
        %2275 = vmatpush1.bf16.xpose.msra.mxu0 0
        %2276 = vmatprep.subr.bf16.mxu0 0
        %2277 = vmatpush1.bf16.xpose.msra.mxu0 0
        %2278 = vmatprep.subr.bf16.mxu0 0
        %2279 = vmatpush1.bf16.xpose.msra.mxu0 0
        %2280 = vmatprep.subr.bf16.mxu0 0
        %2281 = vmatpush1.bf16.xpose.msra.mxu0 0
        %2282 = vmatprep.subr.bf16.mxu0 0
        %2283 = vmatpush1.bf16.xpose.msra.mxu0 0
        %2284 = vmatprep.subr.bf16.mxu0 0
        %2285 = vmatpush1.bf16.xpose.msra.mxu0 0
        %2286 = vmatprep.subr.bf16.mxu0 0
        %2287 = vmatpush1.bf16.xpose.msra.mxu0 0
        %2288 = vmatprep.subr.bf16.mxu0 0
        %2289 = vmatpush1.bf16.xpose.msra.mxu0 0
        %2290 = vmatprep.subr.bf16.mxu0 0
        %2291 = vmatpush1.bf16.xpose.msra.mxu0 0
        %2292 = vmatprep.subr.bf16.mxu0 0
        %2293 = vmatpush1.bf16.xpose.msra.mxu0 0
        %2294 = vmatprep.mubr.bf16.mxu0 0
        %2295 = vmatmul.mubr.bf16.gmra.mrb[0].mxu0 %v2254
        %v2296 = vpop.f32.mrb[0].mxu0
        %v2297 = vadd.f32 0.0, %v2296
        %v2298 = vpop.f32.mrb[0].mxu0
        %v2299 = vpop.f32.mrb[0].mxu0
        %v2300 = vadd.f32 0.0, %v2299
        %v2301 = vpop.f32.mrb[0].mxu0
        %2302 = vmatprep.mubr.bf16.mxu0 0
        %2303 = vmatmul.mubr.bf16.gmra.mrb[0].mxu0 %v2255
        %v2304 = vpop.f32.mrb[0].mxu0
        %v2305 = vadd.f32 0.0, %v2304
        %v2306 = vpop.f32.mrb[0].mxu0
        %v2307 = vpop.f32.mrb[0].mxu0
        %v2308 = vadd.f32 0.0, %v2307
        %v2309 = vpop.f32.mrb[0].mxu0
        %2310 = vmatprep.mubr.bf16.mxu0 0
        %2311 = vmatmul.mubr.bf16.gmra.mrb[0].mxu0 %v2256
        %v2312 = vpop.f32.mrb[0].mxu0
        %v2313 = vadd.f32 0.0, %v2312
        %v2314 = vpop.f32.mrb[0].mxu0
        %v2315 = vpop.f32.mrb[0].mxu0
        %v2316 = vadd.f32 0.0, %v2315
        %v2317 = vpop.f32.mrb[0].mxu0
        %2318 = vmatprep.mubr.bf16.mxu0 0
        %2319 = vmatmul.mubr.bf16.gmra.mrb[0].mxu0 %v2257
        %v2320 = vpop.f32.mrb[0].mxu0
        %v2321 = vadd.f32 0.0, %v2320
        %v2322 = vpop.f32.mrb[0].mxu0
        %v2323 = vpop.f32.mrb[0].mxu0
        %v2324 = vadd.f32 0.0, %v2323
        %v2325 = vpop.f32.mrb[0].mxu0
        %2326 = vdwg.mxu0
        %v2335 = vunpack.c.l.b16 %v1065
        %v2336 = vunpack.c.l.b16 %v1066
        %v2337 = vunpack.c.l.b16 %v1067
        %v2338 = vunpack.c.l.b16 %v1068
        %v2339 = vunpack.c.l.b16 %v1069
        %v2340 = vunpack.c.l.b16 %v1070
        %v2341 = vunpack.c.l.b16 %v1071
        %v2342 = vunpack.c.l.b16 %v1072
        %v2343 = vpack.c.b16 %v2336, %v2335
        %v2344 = vpack.c.b16 %v2338, %v2337
        %v2345 = vpack.c.b16 %v2340, %v2339
        %v2346 = vpack.c.b16 %v2342, %v2341
        %2351 = vmatprep.subr.bf16.mxu0 0
        %2352 = vmatpush1.bf16.xpose.msra.mxu0 %v619
        %2353 = vmatprep.subr.bf16.mxu0 0
        %2354 = vmatpush1.bf16.xpose.msra.mxu0 0
        %2355 = vmatprep.subr.bf16.mxu0 0
        %2356 = vmatpush1.bf16.xpose.msra.mxu0 0
        %2357 = vmatprep.subr.bf16.mxu0 0
        %2358 = vmatpush1.bf16.xpose.msra.mxu0 0
        %2359 = vmatprep.subr.bf16.mxu0 0
        %2360 = vmatpush1.bf16.xpose.msra.mxu0 0
        %2361 = vmatprep.subr.bf16.mxu0 0
        %2362 = vmatpush1.bf16.xpose.msra.mxu0 0
        %2363 = vmatprep.subr.bf16.mxu0 0
        %2364 = vmatpush1.bf16.xpose.msra.mxu0 0
        %2365 = vmatprep.subr.bf16.mxu0 0
        %2366 = vmatpush1.bf16.xpose.msra.mxu0 0
        %2367 = vmatprep.subr.bf16.mxu0 0
        %2368 = vmatpush1.bf16.xpose.msra.mxu0 0
        %2369 = vmatprep.subr.bf16.mxu0 0
        %2370 = vmatpush1.bf16.xpose.msra.mxu0 0
        %2371 = vmatprep.subr.bf16.mxu0 0
        %2372 = vmatpush1.bf16.xpose.msra.mxu0 0
        %2373 = vmatprep.subr.bf16.mxu0 0
        %2374 = vmatpush1.bf16.xpose.msra.mxu0 0
        %2375 = vmatprep.subr.bf16.mxu0 0
        %2376 = vmatpush1.bf16.xpose.msra.mxu0 0
        %2377 = vmatprep.subr.bf16.mxu0 0
        %2378 = vmatpush1.bf16.xpose.msra.mxu0 0
        %2379 = vmatprep.subr.bf16.mxu0 0
        %2380 = vmatpush1.bf16.xpose.msra.mxu0 0
        %2381 = vmatprep.subr.bf16.mxu0 0
        %2382 = vmatpush1.bf16.xpose.msra.mxu0 0
        %2383 = vmatprep.mubr.bf16.mxu0 0
        %2384 = vmatmul.mubr.bf16.gmra.mrb[0].mxu0 %v2343
        %v2385 = vpop.f32.mrb[0].mxu0
        %v2386 = vadd.f32 0.0, %v2385
        %v2387 = vpop.f32.mrb[0].mxu0
        %v2388 = vpop.f32.mrb[0].mxu0
        %v2389 = vadd.f32 0.0, %v2388
        %v2390 = vpop.f32.mrb[0].mxu0
        %2391 = vmatprep.mubr.bf16.mxu0 0
        %2392 = vmatmul.mubr.bf16.gmra.mrb[0].mxu0 %v2344
        %v2393 = vpop.f32.mrb[0].mxu0
        %v2394 = vadd.f32 0.0, %v2393
        %v2395 = vpop.f32.mrb[0].mxu0
        %v2396 = vpop.f32.mrb[0].mxu0
        %v2397 = vadd.f32 0.0, %v2396
        %v2398 = vpop.f32.mrb[0].mxu0
        %2399 = vmatprep.mubr.bf16.mxu0 0
        %2400 = vmatmul.mubr.bf16.gmra.mrb[0].mxu0 %v2345
        %v2401 = vpop.f32.mrb[0].mxu0
        %v2402 = vadd.f32 0.0, %v2401
        %v2403 = vpop.f32.mrb[0].mxu0
        %v2404 = vpop.f32.mrb[0].mxu0
        %v2405 = vadd.f32 0.0, %v2404
        %v2406 = vpop.f32.mrb[0].mxu0
        %2407 = vmatprep.mubr.bf16.mxu0 0
        %2408 = vmatmul.mubr.bf16.gmra.mrb[0].mxu0 %v2346
        %v2409 = vpop.f32.mrb[0].mxu0
        %v2410 = vadd.f32 0.0, %v2409
        %v2411 = vpop.f32.mrb[0].mxu0
        %v2412 = vpop.f32.mrb[0].mxu0
        %v2413 = vadd.f32 0.0, %v2412
        %v2414 = vpop.f32.mrb[0].mxu0
        %2415 = vdwg.mxu0
        %v2424 = vunpack.c.l.b16 %v1073
        %v2425 = vunpack.c.l.b16 %v1074
        %v2426 = vunpack.c.l.b16 %v1075
        %v2427 = vunpack.c.l.b16 %v1076
        %v2428 = vunpack.c.l.b16 %v1077
        %v2429 = vunpack.c.l.b16 %v1078
        %v2430 = vunpack.c.l.b16 %v1079
        %v2431 = vunpack.c.l.b16 %v1080
        %v2432 = vpack.c.b16 %v2425, %v2424
        %v2433 = vpack.c.b16 %v2427, %v2426
        %v2434 = vpack.c.b16 %v2429, %v2428
        %v2435 = vpack.c.b16 %v2431, %v2430
        %2440 = vmatprep.subr.bf16.mxu0 0
        %2441 = vmatpush1.bf16.xpose.msra.mxu0 %v619
        %2442 = vmatprep.subr.bf16.mxu0 0
        %2443 = vmatpush1.bf16.xpose.msra.mxu0 0
        %2444 = vmatprep.subr.bf16.mxu0 0
        %2445 = vmatpush1.bf16.xpose.msra.mxu0 0
        %2446 = vmatprep.subr.bf16.mxu0 0
        %2447 = vmatpush1.bf16.xpose.msra.mxu0 0
        %2448 = vmatprep.subr.bf16.mxu0 0
        %2449 = vmatpush1.bf16.xpose.msra.mxu0 0
        %2450 = vmatprep.subr.bf16.mxu0 0
        %2451 = vmatpush1.bf16.xpose.msra.mxu0 0
        %2452 = vmatprep.subr.bf16.mxu0 0
        %2453 = vmatpush1.bf16.xpose.msra.mxu0 0
        %2454 = vmatprep.subr.bf16.mxu0 0
        %2455 = vmatpush1.bf16.xpose.msra.mxu0 0
        %2456 = vmatprep.subr.bf16.mxu0 0
        %2457 = vmatpush1.bf16.xpose.msra.mxu0 0
        %2458 = vmatprep.subr.bf16.mxu0 0
        %2459 = vmatpush1.bf16.xpose.msra.mxu0 0
        %2460 = vmatprep.subr.bf16.mxu0 0
        %2461 = vmatpush1.bf16.xpose.msra.mxu0 0
        %2462 = vmatprep.subr.bf16.mxu0 0
        %2463 = vmatpush1.bf16.xpose.msra.mxu0 0
        %2464 = vmatprep.subr.bf16.mxu0 0
        %2465 = vmatpush1.bf16.xpose.msra.mxu0 0
        %2466 = vmatprep.subr.bf16.mxu0 0
        %2467 = vmatpush1.bf16.xpose.msra.mxu0 0
        %2468 = vmatprep.subr.bf16.mxu0 0
        %2469 = vmatpush1.bf16.xpose.msra.mxu0 0
        %2470 = vmatprep.subr.bf16.mxu0 0
        %2471 = vmatpush1.bf16.xpose.msra.mxu0 0
        %2472 = vmatprep.mubr.bf16.mxu0 0
        %2473 = vmatmul.mubr.bf16.gmra.mrb[0].mxu0 %v2432
        %v2474 = vpop.f32.mrb[0].mxu0
        %v2475 = vadd.f32 0.0, %v2474
        %v2476 = vpop.f32.mrb[0].mxu0
        %v2477 = vpop.f32.mrb[0].mxu0
        %v2478 = vadd.f32 0.0, %v2477
        %v2479 = vpop.f32.mrb[0].mxu0
        %2480 = vmatprep.mubr.bf16.mxu0 0
        %2481 = vmatmul.mubr.bf16.gmra.mrb[0].mxu0 %v2433
        %v2482 = vpop.f32.mrb[0].mxu0
        %v2483 = vadd.f32 0.0, %v2482
        %v2484 = vpop.f32.mrb[0].mxu0
        %v2485 = vpop.f32.mrb[0].mxu0
        %v2486 = vadd.f32 0.0, %v2485
        %v2487 = vpop.f32.mrb[0].mxu0
        %2488 = vmatprep.mubr.bf16.mxu0 0
        %2489 = vmatmul.mubr.bf16.gmra.mrb[0].mxu0 %v2434
        %v2490 = vpop.f32.mrb[0].mxu0
        %v2491 = vadd.f32 0.0, %v2490
        %v2492 = vpop.f32.mrb[0].mxu0
        %v2493 = vpop.f32.mrb[0].mxu0
        %v2494 = vadd.f32 0.0, %v2493
        %v2495 = vpop.f32.mrb[0].mxu0
        %2496 = vmatprep.mubr.bf16.mxu0 0
        %2497 = vmatmul.mubr.bf16.gmra.mrb[0].mxu0 %v2435
        %v2498 = vpop.f32.mrb[0].mxu0
        %v2499 = vadd.f32 0.0, %v2498
        %v2500 = vpop.f32.mrb[0].mxu0
        %v2501 = vpop.f32.mrb[0].mxu0
        %v2502 = vadd.f32 0.0, %v2501
        %v2503 = vpop.f32.mrb[0].mxu0
        %2504 = vdwg.mxu0
        %vm2505 = vcmask 130048
        %v2506 = vsel %vm2505, %v1140, -inf
        %2507 = vmax.xlane.f32.xlu0 %v2506
        %v2508 = vpop.xlane.xlu0 %2507
        %v2509 = vsel %vm2505, %v1143, -inf
        %2510 = vmax.xlane.f32.xlu0 %v2509
        %v2511 = vpop.xlane.xlu0 %2510
        %v2512 = vsel %vm2505, %v1148, -inf
        %2513 = vmax.xlane.f32.xlu0 %v2512
        %v2514 = vpop.xlane.xlu0 %2513
        %v2515 = vsel %vm2505, %v1151, -inf
        %2516 = vmax.xlane.f32.xlu0 %v2515
        %v2517 = vpop.xlane.xlu0 %2516
        %v2518 = vsel %vm2505, %v1156, -inf
        %2519 = vmax.xlane.f32.xlu0 %v2518
        %v2520 = vpop.xlane.xlu0 %2519
        %v2521 = vsel %vm2505, %v1159, -inf
        %2522 = vmax.xlane.f32.xlu0 %v2521
        %v2523 = vpop.xlane.xlu0 %2522
        %v2524 = vsel %vm2505, %v1164, -inf
        %2525 = vmax.xlane.f32.xlu0 %v2524
        %v2526 = vpop.xlane.xlu0 %2525
        %v2527 = vsel %vm2505, %v1167, -inf
        %2528 = vmax.xlane.f32.xlu0 %v2527
        %v2529 = vpop.xlane.xlu0 %2528
        %v2530 = vsel %vm2505, %v1229, -inf
        %2531 = vmax.xlane.f32.xlu0 %v2530
        %v2532 = vpop.xlane.xlu0 %2531
        %v2533 = vsel %vm2505, %v1232, -inf
        %2534 = vmax.xlane.f32.xlu0 %v2533
        %v2535 = vpop.xlane.xlu0 %2534
        %v2536 = vsel %vm2505, %v1237, -inf
        %2537 = vmax.xlane.f32.xlu0 %v2536
        %v2538 = vpop.xlane.xlu0 %2537
        %v2539 = vsel %vm2505, %v1240, -inf
        %2540 = vmax.xlane.f32.xlu0 %v2539
        %v2541 = vpop.xlane.xlu0 %2540
        %v2542 = vsel %vm2505, %v1245, -inf
        %2543 = vmax.xlane.f32.xlu0 %v2542
        %v2544 = vpop.xlane.xlu0 %2543
        %v2545 = vsel %vm2505, %v1248, -inf
        %2546 = vmax.xlane.f32.xlu0 %v2545
        %v2547 = vpop.xlane.xlu0 %2546
        %v2548 = vsel %vm2505, %v1253, -inf
        %2549 = vmax.xlane.f32.xlu0 %v2548
        %v2550 = vpop.xlane.xlu0 %2549
        %v2551 = vsel %vm2505, %v1256, -inf
        %2552 = vmax.xlane.f32.xlu0 %v2551
        %v2553 = vpop.xlane.xlu0 %2552
        %v2554 = vsel %vm2505, %v1318, -inf
        %2555 = vmax.xlane.f32.xlu0 %v2554
        %v2556 = vpop.xlane.xlu0 %2555
        %v2557 = vsel %vm2505, %v1321, -inf
        %2558 = vmax.xlane.f32.xlu0 %v2557
        %v2559 = vpop.xlane.xlu0 %2558
        %v2560 = vsel %vm2505, %v1326, -inf
        %2561 = vmax.xlane.f32.xlu0 %v2560
        %v2562 = vpop.xlane.xlu0 %2561
        %v2563 = vsel %vm2505, %v1329, -inf
        %2564 = vmax.xlane.f32.xlu0 %v2563
        %v2565 = vpop.xlane.xlu0 %2564
        %v2566 = vsel %vm2505, %v1334, -inf
        %2567 = vmax.xlane.f32.xlu0 %v2566
        %v2568 = vpop.xlane.xlu0 %2567
        %v2569 = vsel %vm2505, %v1337, -inf
        %2570 = vmax.xlane.f32.xlu0 %v2569
        %v2571 = vpop.xlane.xlu0 %2570
        %v2572 = vsel %vm2505, %v1342, -inf
        %2573 = vmax.xlane.f32.xlu0 %v2572
        %v2574 = vpop.xlane.xlu0 %2573
        %v2575 = vsel %vm2505, %v1345, -inf
        %2576 = vmax.xlane.f32.xlu0 %v2575
        %v2577 = vpop.xlane.xlu0 %2576
        %v2578 = vsel %vm2505, %v1407, -inf
        %2579 = vmax.xlane.f32.xlu0 %v2578
        %v2580 = vpop.xlane.xlu0 %2579
        %v2581 = vsel %vm2505, %v1410, -inf
        %2582 = vmax.xlane.f32.xlu0 %v2581
        %v2583 = vpop.xlane.xlu0 %2582
        %v2584 = vsel %vm2505, %v1415, -inf
        %2585 = vmax.xlane.f32.xlu0 %v2584
        %v2586 = vpop.xlane.xlu0 %2585
        %v2587 = vsel %vm2505, %v1418, -inf
        %2588 = vmax.xlane.f32.xlu0 %v2587
        %v2589 = vpop.xlane.xlu0 %2588
        %v2590 = vsel %vm2505, %v1423, -inf
        %2591 = vmax.xlane.f32.xlu0 %v2590
        %v2592 = vpop.xlane.xlu0 %2591
        %v2593 = vsel %vm2505, %v1426, -inf
        %2594 = vmax.xlane.f32.xlu0 %v2593
        %v2595 = vpop.xlane.xlu0 %2594
        %v2596 = vsel %vm2505, %v1431, -inf
        %2597 = vmax.xlane.f32.xlu0 %v2596
        %v2598 = vpop.xlane.xlu0 %2597
        %v2599 = vsel %vm2505, %v1434, -inf
        %2600 = vmax.xlane.f32.xlu0 %v2599
        %v2601 = vpop.xlane.xlu0 %2600
        %v2602 = vsel %vm2505, %v1496, -inf
        %2603 = vmax.xlane.f32.xlu0 %v2602
        %v2604 = vpop.xlane.xlu0 %2603
        %v2605 = vsel %vm2505, %v1499, -inf
        %2606 = vmax.xlane.f32.xlu0 %v2605
        %v2607 = vpop.xlane.xlu0 %2606
        %v2608 = vsel %vm2505, %v1504, -inf
        %2609 = vmax.xlane.f32.xlu0 %v2608
        %v2610 = vpop.xlane.xlu0 %2609
        %v2611 = vsel %vm2505, %v1507, -inf
        %2612 = vmax.xlane.f32.xlu0 %v2611
        %v2613 = vpop.xlane.xlu0 %2612
        %v2614 = vsel %vm2505, %v1512, -inf
        %2615 = vmax.xlane.f32.xlu0 %v2614
        %v2616 = vpop.xlane.xlu0 %2615
        %v2617 = vsel %vm2505, %v1515, -inf
        %2618 = vmax.xlane.f32.xlu0 %v2617
        %v2619 = vpop.xlane.xlu0 %2618
        %v2620 = vsel %vm2505, %v1520, -inf
        %2621 = vmax.xlane.f32.xlu0 %v2620
        %v2622 = vpop.xlane.xlu0 %2621
        %v2623 = vsel %vm2505, %v1523, -inf
        %2624 = vmax.xlane.f32.xlu0 %v2623
        %v2625 = vpop.xlane.xlu0 %2624
        %v2626 = vsel %vm2505, %v1585, -inf
        %2627 = vmax.xlane.f32.xlu0 %v2626
        %v2628 = vpop.xlane.xlu0 %2627
        %v2629 = vsel %vm2505, %v1588, -inf
        %2630 = vmax.xlane.f32.xlu0 %v2629
        %v2631 = vpop.xlane.xlu0 %2630
        %v2632 = vsel %vm2505, %v1593, -inf
        %2633 = vmax.xlane.f32.xlu0 %v2632
        %v2634 = vpop.xlane.xlu0 %2633
        %v2635 = vsel %vm2505, %v1596, -inf
        %2636 = vmax.xlane.f32.xlu0 %v2635
        %v2637 = vpop.xlane.xlu0 %2636
        %v2638 = vsel %vm2505, %v1601, -inf
        %2639 = vmax.xlane.f32.xlu0 %v2638
        %v2640 = vpop.xlane.xlu0 %2639
        %v2641 = vsel %vm2505, %v1604, -inf
        %2642 = vmax.xlane.f32.xlu0 %v2641
        %v2643 = vpop.xlane.xlu0 %2642
        %v2644 = vsel %vm2505, %v1609, -inf
        %2645 = vmax.xlane.f32.xlu0 %v2644
        %v2646 = vpop.xlane.xlu0 %2645
        %v2647 = vsel %vm2505, %v1612, -inf
        %2648 = vmax.xlane.f32.xlu0 %v2647
        %v2649 = vpop.xlane.xlu0 %2648
        %v2650 = vsel %vm2505, %v1674, -inf
        %2651 = vmax.xlane.f32.xlu0 %v2650
        %v2652 = vpop.xlane.xlu0 %2651
        %v2653 = vsel %vm2505, %v1677, -inf
        %2654 = vmax.xlane.f32.xlu0 %v2653
        %v2655 = vpop.xlane.xlu0 %2654
        %v2656 = vsel %vm2505, %v1682, -inf
        %2657 = vmax.xlane.f32.xlu0 %v2656
        %v2658 = vpop.xlane.xlu0 %2657
        %v2659 = vsel %vm2505, %v1685, -inf
        %2660 = vmax.xlane.f32.xlu0 %v2659
        %v2661 = vpop.xlane.xlu0 %2660
        %v2662 = vsel %vm2505, %v1690, -inf
        %2663 = vmax.xlane.f32.xlu0 %v2662
        %v2664 = vpop.xlane.xlu0 %2663
        %v2665 = vsel %vm2505, %v1693, -inf
        %2666 = vmax.xlane.f32.xlu0 %v2665
        %v2667 = vpop.xlane.xlu0 %2666
        %v2668 = vsel %vm2505, %v1698, -inf
        %2669 = vmax.xlane.f32.xlu0 %v2668
        %v2670 = vpop.xlane.xlu0 %2669
        %v2671 = vsel %vm2505, %v1701, -inf
        %2672 = vmax.xlane.f32.xlu0 %v2671
        %v2673 = vpop.xlane.xlu0 %2672
        %v2674 = vsel %vm2505, %v1763, -inf
        %2675 = vmax.xlane.f32.xlu0 %v2674
        %v2676 = vpop.xlane.xlu0 %2675
        %v2677 = vsel %vm2505, %v1766, -inf
        %2678 = vmax.xlane.f32.xlu0 %v2677
        %v2679 = vpop.xlane.xlu0 %2678
        %v2680 = vsel %vm2505, %v1771, -inf
        %2681 = vmax.xlane.f32.xlu0 %v2680
        %v2682 = vpop.xlane.xlu0 %2681
        %v2683 = vsel %vm2505, %v1774, -inf
        %2684 = vmax.xlane.f32.xlu0 %v2683
        %v2685 = vpop.xlane.xlu0 %2684
        %v2686 = vsel %vm2505, %v1779, -inf
        %2687 = vmax.xlane.f32.xlu0 %v2686
        %v2688 = vpop.xlane.xlu0 %2687
        %v2689 = vsel %vm2505, %v1782, -inf
        %2690 = vmax.xlane.f32.xlu0 %v2689
        %v2691 = vpop.xlane.xlu0 %2690
        %v2692 = vsel %vm2505, %v1787, -inf
        %2693 = vmax.xlane.f32.xlu0 %v2692
        %v2694 = vpop.xlane.xlu0 %2693
        %v2695 = vsel %vm2505, %v1790, -inf
        %2696 = vmax.xlane.f32.xlu0 %v2695
        %v2697 = vpop.xlane.xlu0 %2696
        %v2698 = vsel %vm2505, %v1852, -inf
        %2699 = vmax.xlane.f32.xlu0 %v2698
        %v2700 = vpop.xlane.xlu0 %2699
        %v2701 = vsel %vm2505, %v1855, -inf
        %2702 = vmax.xlane.f32.xlu0 %v2701
        %v2703 = vpop.xlane.xlu0 %2702
        %v2704 = vsel %vm2505, %v1860, -inf
        %2705 = vmax.xlane.f32.xlu0 %v2704
        %v2706 = vpop.xlane.xlu0 %2705
        %v2707 = vsel %vm2505, %v1863, -inf
        %2708 = vmax.xlane.f32.xlu0 %v2707
        %v2709 = vpop.xlane.xlu0 %2708
        %v2710 = vsel %vm2505, %v1868, -inf
        %2711 = vmax.xlane.f32.xlu0 %v2710
        %v2712 = vpop.xlane.xlu0 %2711
        %v2713 = vsel %vm2505, %v1871, -inf
        %2714 = vmax.xlane.f32.xlu0 %v2713
        %v2715 = vpop.xlane.xlu0 %2714
        %v2716 = vsel %vm2505, %v1876, -inf
        %2717 = vmax.xlane.f32.xlu0 %v2716
        %v2718 = vpop.xlane.xlu0 %2717
        %v2719 = vsel %vm2505, %v1879, -inf
        %2720 = vmax.xlane.f32.xlu0 %v2719
        %v2721 = vpop.xlane.xlu0 %2720
        %v2722 = vsel %vm2505, %v1941, -inf
        %2723 = vmax.xlane.f32.xlu0 %v2722
        %v2724 = vpop.xlane.xlu0 %2723
        %v2725 = vsel %vm2505, %v1944, -inf
        %2726 = vmax.xlane.f32.xlu0 %v2725
        %v2727 = vpop.xlane.xlu0 %2726
        %v2728 = vsel %vm2505, %v1949, -inf
        %2729 = vmax.xlane.f32.xlu0 %v2728
        %v2730 = vpop.xlane.xlu0 %2729
        %v2731 = vsel %vm2505, %v1952, -inf
        %2732 = vmax.xlane.f32.xlu0 %v2731
        %v2733 = vpop.xlane.xlu0 %2732
        %v2734 = vsel %vm2505, %v1957, -inf
        %2735 = vmax.xlane.f32.xlu0 %v2734
        %v2736 = vpop.xlane.xlu0 %2735
        %v2737 = vsel %vm2505, %v1960, -inf
        %2738 = vmax.xlane.f32.xlu0 %v2737
        %v2739 = vpop.xlane.xlu0 %2738
        %v2740 = vsel %vm2505, %v1965, -inf
        %2741 = vmax.xlane.f32.xlu0 %v2740
        %v2742 = vpop.xlane.xlu0 %2741
        %v2743 = vsel %vm2505, %v1968, -inf
        %2744 = vmax.xlane.f32.xlu0 %v2743
        %v2745 = vpop.xlane.xlu0 %2744
        %v2746 = vsel %vm2505, %v2030, -inf
        %2747 = vmax.xlane.f32.xlu0 %v2746
        %v2748 = vpop.xlane.xlu0 %2747
        %v2749 = vsel %vm2505, %v2033, -inf
        %2750 = vmax.xlane.f32.xlu0 %v2749
        %v2751 = vpop.xlane.xlu0 %2750
        %v2752 = vsel %vm2505, %v2038, -inf
        %2753 = vmax.xlane.f32.xlu0 %v2752
        %v2754 = vpop.xlane.xlu0 %2753
        %v2755 = vsel %vm2505, %v2041, -inf
        %2756 = vmax.xlane.f32.xlu0 %v2755
        %v2757 = vpop.xlane.xlu0 %2756
        %v2758 = vsel %vm2505, %v2046, -inf
        %2759 = vmax.xlane.f32.xlu0 %v2758
        %v2760 = vpop.xlane.xlu0 %2759
        %v2761 = vsel %vm2505, %v2049, -inf
        %2762 = vmax.xlane.f32.xlu0 %v2761
        %v2763 = vpop.xlane.xlu0 %2762
        %v2764 = vsel %vm2505, %v2054, -inf
        %2765 = vmax.xlane.f32.xlu0 %v2764
        %v2766 = vpop.xlane.xlu0 %2765
        %v2767 = vsel %vm2505, %v2057, -inf
        %2768 = vmax.xlane.f32.xlu0 %v2767
        %v2769 = vpop.xlane.xlu0 %2768
        %v2770 = vsel %vm2505, %v2119, -inf
        %2771 = vmax.xlane.f32.xlu0 %v2770
        %v2772 = vpop.xlane.xlu0 %2771
        %v2773 = vsel %vm2505, %v2122, -inf
        %2774 = vmax.xlane.f32.xlu0 %v2773
        %v2775 = vpop.xlane.xlu0 %2774
        %v2776 = vsel %vm2505, %v2127, -inf
        %2777 = vmax.xlane.f32.xlu0 %v2776
        %v2778 = vpop.xlane.xlu0 %2777
        %v2779 = vsel %vm2505, %v2130, -inf
        %2780 = vmax.xlane.f32.xlu0 %v2779
        %v2781 = vpop.xlane.xlu0 %2780
        %v2782 = vsel %vm2505, %v2135, -inf
        %2783 = vmax.xlane.f32.xlu0 %v2782
        %v2784 = vpop.xlane.xlu0 %2783
        %v2785 = vsel %vm2505, %v2138, -inf
        %2786 = vmax.xlane.f32.xlu0 %v2785
        %v2787 = vpop.xlane.xlu0 %2786
        %v2788 = vsel %vm2505, %v2143, -inf
        %2789 = vmax.xlane.f32.xlu0 %v2788
        %v2790 = vpop.xlane.xlu0 %2789
        %v2791 = vsel %vm2505, %v2146, -inf
        %2792 = vmax.xlane.f32.xlu0 %v2791
        %v2793 = vpop.xlane.xlu0 %2792
        %v2794 = vsel %vm2505, %v2208, -inf
        %2795 = vmax.xlane.f32.xlu0 %v2794
        %v2796 = vpop.xlane.xlu0 %2795
        %v2797 = vsel %vm2505, %v2211, -inf
        %2798 = vmax.xlane.f32.xlu0 %v2797
        %v2799 = vpop.xlane.xlu0 %2798
        %v2800 = vsel %vm2505, %v2216, -inf
        %2801 = vmax.xlane.f32.xlu0 %v2800
        %v2802 = vpop.xlane.xlu0 %2801
        %v2803 = vsel %vm2505, %v2219, -inf
        %2804 = vmax.xlane.f32.xlu0 %v2803
        %v2805 = vpop.xlane.xlu0 %2804
        %v2806 = vsel %vm2505, %v2224, -inf
        %2807 = vmax.xlane.f32.xlu0 %v2806
        %v2808 = vpop.xlane.xlu0 %2807
        %v2809 = vsel %vm2505, %v2227, -inf
        %2810 = vmax.xlane.f32.xlu0 %v2809
        %v2811 = vpop.xlane.xlu0 %2810
        %v2812 = vsel %vm2505, %v2232, -inf
        %2813 = vmax.xlane.f32.xlu0 %v2812
        %v2814 = vpop.xlane.xlu0 %2813
        %v2815 = vsel %vm2505, %v2235, -inf
        %2816 = vmax.xlane.f32.xlu0 %v2815
        %v2817 = vpop.xlane.xlu0 %2816
        %v2818 = vsel %vm2505, %v2297, -inf
        %2819 = vmax.xlane.f32.xlu0 %v2818
        %v2820 = vpop.xlane.xlu0 %2819
        %v2821 = vsel %vm2505, %v2300, -inf
        %2822 = vmax.xlane.f32.xlu0 %v2821
        %v2823 = vpop.xlane.xlu0 %2822
        %v2824 = vsel %vm2505, %v2305, -inf
        %2825 = vmax.xlane.f32.xlu0 %v2824
        %v2826 = vpop.xlane.xlu0 %2825
        %v2827 = vsel %vm2505, %v2308, -inf
        %2828 = vmax.xlane.f32.xlu0 %v2827
        %v2829 = vpop.xlane.xlu0 %2828
        %v2830 = vsel %vm2505, %v2313, -inf
        %2831 = vmax.xlane.f32.xlu0 %v2830
        %v2832 = vpop.xlane.xlu0 %2831
        %v2833 = vsel %vm2505, %v2316, -inf
        %2834 = vmax.xlane.f32.xlu0 %v2833
        %v2835 = vpop.xlane.xlu0 %2834
        %v2836 = vsel %vm2505, %v2321, -inf
        %2837 = vmax.xlane.f32.xlu0 %v2836
        %v2838 = vpop.xlane.xlu0 %2837
        %v2839 = vsel %vm2505, %v2324, -inf
        %2840 = vmax.xlane.f32.xlu0 %v2839
        %v2841 = vpop.xlane.xlu0 %2840
        %v2842 = vsel %vm2505, %v2386, -inf
        %2843 = vmax.xlane.f32.xlu0 %v2842
        %v2844 = vpop.xlane.xlu0 %2843
        %v2845 = vsel %vm2505, %v2389, -inf
        %2846 = vmax.xlane.f32.xlu0 %v2845
        %v2847 = vpop.xlane.xlu0 %2846
        %v2848 = vsel %vm2505, %v2394, -inf
        %2849 = vmax.xlane.f32.xlu0 %v2848
        %v2850 = vpop.xlane.xlu0 %2849
        %v2851 = vsel %vm2505, %v2397, -inf
        %2852 = vmax.xlane.f32.xlu0 %v2851
        %v2853 = vpop.xlane.xlu0 %2852
        %v2854 = vsel %vm2505, %v2402, -inf
        %2855 = vmax.xlane.f32.xlu0 %v2854
        %v2856 = vpop.xlane.xlu0 %2855
        %v2857 = vsel %vm2505, %v2405, -inf
        %2858 = vmax.xlane.f32.xlu0 %v2857
        %v2859 = vpop.xlane.xlu0 %2858
        %v2860 = vsel %vm2505, %v2410, -inf
        %2861 = vmax.xlane.f32.xlu0 %v2860
        %v2862 = vpop.xlane.xlu0 %2861
        %v2863 = vsel %vm2505, %v2413, -inf
        %2864 = vmax.xlane.f32.xlu0 %v2863
        %v2865 = vpop.xlane.xlu0 %2864
        %v2866 = vsel %vm2505, %v2475, -inf
        %2867 = vmax.xlane.f32.xlu0 %v2866
        %v2868 = vpop.xlane.xlu0 %2867
        %v2869 = vsel %vm2505, %v2478, -inf
        %2870 = vmax.xlane.f32.xlu0 %v2869
        %v2871 = vpop.xlane.xlu0 %2870
        %v2872 = vsel %vm2505, %v2483, -inf
        %2873 = vmax.xlane.f32.xlu0 %v2872
        %v2874 = vpop.xlane.xlu0 %2873
        %v2875 = vsel %vm2505, %v2486, -inf
        %2876 = vmax.xlane.f32.xlu0 %v2875
        %v2877 = vpop.xlane.xlu0 %2876
        %v2878 = vsel %vm2505, %v2491, -inf
        %2879 = vmax.xlane.f32.xlu0 %v2878
        %v2880 = vpop.xlane.xlu0 %2879
        %v2881 = vsel %vm2505, %v2494, -inf
        %2882 = vmax.xlane.f32.xlu0 %v2881
        %v2883 = vpop.xlane.xlu0 %2882
        %v2884 = vsel %vm2505, %v2499, -inf
        %2885 = vmax.xlane.f32.xlu0 %v2884
        %v2886 = vpop.xlane.xlu0 %2885
        %v2887 = vsel %vm2505, %v2502, -inf
        %2888 = vmax.xlane.f32.xlu0 %v2887
        %v2889 = vpop.xlane.xlu0 %2888
        %v2890 = vsub.f32 %v1140, %v2508
        %v2891 = vsub.f32 %v1143, %v2511
        %v2892 = vsub.f32 %v1148, %v2514
        %v2893 = vsub.f32 %v1151, %v2517
        %v2894 = vsub.f32 %v1156, %v2520
        %v2895 = vsub.f32 %v1159, %v2523
        %v2896 = vsub.f32 %v1164, %v2526
        %v2897 = vsub.f32 %v1167, %v2529
        %v2898 = vsub.f32 %v1229, %v2532
        %v2899 = vsub.f32 %v1232, %v2535
        %v2900 = vsub.f32 %v1237, %v2538
        %v2901 = vsub.f32 %v1240, %v2541
        %v2902 = vsub.f32 %v1245, %v2544
        %v2903 = vsub.f32 %v1248, %v2547
        %v2904 = vsub.f32 %v1253, %v2550
        %v2905 = vsub.f32 %v1256, %v2553
        %v2906 = vsub.f32 %v1318, %v2556
        %v2907 = vsub.f32 %v1321, %v2559
        %v2908 = vsub.f32 %v1326, %v2562
        %v2909 = vsub.f32 %v1329, %v2565
        %v2910 = vsub.f32 %v1334, %v2568
        %v2911 = vsub.f32 %v1337, %v2571
        %v2912 = vsub.f32 %v1342, %v2574
        %v2913 = vsub.f32 %v1345, %v2577
        %v2914 = vsub.f32 %v1407, %v2580
        %v2915 = vsub.f32 %v1410, %v2583
        %v2916 = vsub.f32 %v1415, %v2586
        %v2917 = vsub.f32 %v1418, %v2589
        %v2918 = vsub.f32 %v1423, %v2592
        %v2919 = vsub.f32 %v1426, %v2595
        %v2920 = vsub.f32 %v1431, %v2598
        %v2921 = vsub.f32 %v1434, %v2601
        %v2922 = vsub.f32 %v1496, %v2604
        %v2923 = vsub.f32 %v1499, %v2607
        %v2924 = vsub.f32 %v1504, %v2610
        %v2925 = vsub.f32 %v1507, %v2613
        %v2926 = vsub.f32 %v1512, %v2616
        %v2927 = vsub.f32 %v1515, %v2619
        %v2928 = vsub.f32 %v1520, %v2622
        %v2929 = vsub.f32 %v1523, %v2625
        %v2930 = vsub.f32 %v1585, %v2628
        %v2931 = vsub.f32 %v1588, %v2631
        %v2932 = vsub.f32 %v1593, %v2634
        %v2933 = vsub.f32 %v1596, %v2637
        %v2934 = vsub.f32 %v1601, %v2640
        %v2935 = vsub.f32 %v1604, %v2643
        %v2936 = vsub.f32 %v1609, %v2646
        %v2937 = vsub.f32 %v1612, %v2649
        %v2938 = vsub.f32 %v1674, %v2652
        %v2939 = vsub.f32 %v1677, %v2655
        %v2940 = vsub.f32 %v1682, %v2658
        %v2941 = vsub.f32 %v1685, %v2661
        %v2942 = vsub.f32 %v1690, %v2664
        %v2943 = vsub.f32 %v1693, %v2667
        %v2944 = vsub.f32 %v1698, %v2670
        %v2945 = vsub.f32 %v1701, %v2673
        %v2946 = vsub.f32 %v1763, %v2676
        %v2947 = vsub.f32 %v1766, %v2679
        %v2948 = vsub.f32 %v1771, %v2682
        %v2949 = vsub.f32 %v1774, %v2685
        %v2950 = vsub.f32 %v1779, %v2688
        %v2951 = vsub.f32 %v1782, %v2691
        %v2952 = vsub.f32 %v1787, %v2694
        %v2953 = vsub.f32 %v1790, %v2697
        %v2954 = vsub.f32 %v1852, %v2700
        %v2955 = vsub.f32 %v1855, %v2703
        %v2956 = vsub.f32 %v1860, %v2706
        %v2957 = vsub.f32 %v1863, %v2709
        %v2958 = vsub.f32 %v1868, %v2712
        %v2959 = vsub.f32 %v1871, %v2715
        %v2960 = vsub.f32 %v1876, %v2718
        %v2961 = vsub.f32 %v1879, %v2721
        %v2962 = vsub.f32 %v1941, %v2724
        %v2963 = vsub.f32 %v1944, %v2727
        %v2964 = vsub.f32 %v1949, %v2730
        %v2965 = vsub.f32 %v1952, %v2733
        %v2966 = vsub.f32 %v1957, %v2736
        %v2967 = vsub.f32 %v1960, %v2739
        %v2968 = vsub.f32 %v1965, %v2742
        %v2969 = vsub.f32 %v1968, %v2745
        %v2970 = vsub.f32 %v2030, %v2748
        %v2971 = vsub.f32 %v2033, %v2751
        %v2972 = vsub.f32 %v2038, %v2754
        %v2973 = vsub.f32 %v2041, %v2757
        %v2974 = vsub.f32 %v2046, %v2760
        %v2975 = vsub.f32 %v2049, %v2763
        %v2976 = vsub.f32 %v2054, %v2766
        %v2977 = vsub.f32 %v2057, %v2769
        %v2978 = vsub.f32 %v2119, %v2772
        %v2979 = vsub.f32 %v2122, %v2775
        %v2980 = vsub.f32 %v2127, %v2778
        %v2981 = vsub.f32 %v2130, %v2781
        %v2982 = vsub.f32 %v2135, %v2784
        %v2983 = vsub.f32 %v2138, %v2787
        %v2984 = vsub.f32 %v2143, %v2790
        %v2985 = vsub.f32 %v2146, %v2793
        %v2986 = vsub.f32 %v2208, %v2796
        %v2987 = vsub.f32 %v2211, %v2799
        %v2988 = vsub.f32 %v2216, %v2802
        %v2989 = vsub.f32 %v2219, %v2805
        %v2990 = vsub.f32 %v2224, %v2808
        %v2991 = vsub.f32 %v2227, %v2811
        %v2992 = vsub.f32 %v2232, %v2814
        %v2993 = vsub.f32 %v2235, %v2817
        %v2994 = vsub.f32 %v2297, %v2820
        %v2995 = vsub.f32 %v2300, %v2823
        %v2996 = vsub.f32 %v2305, %v2826
        %v2997 = vsub.f32 %v2308, %v2829
        %v2998 = vsub.f32 %v2313, %v2832
        %v2999 = vsub.f32 %v2316, %v2835
        %v3000 = vsub.f32 %v2321, %v2838
        %v3001 = vsub.f32 %v2324, %v2841
        %v3002 = vsub.f32 %v2386, %v2844
        %v3003 = vsub.f32 %v2389, %v2847
        %v3004 = vsub.f32 %v2394, %v2850
        %v3005 = vsub.f32 %v2397, %v2853
        %v3006 = vsub.f32 %v2402, %v2856
        %v3007 = vsub.f32 %v2405, %v2859
        %v3008 = vsub.f32 %v2410, %v2862
        %v3009 = vsub.f32 %v2413, %v2865
        %v3010 = vsub.f32 %v2475, %v2868
        %v3011 = vsub.f32 %v2478, %v2871
        %v3012 = vsub.f32 %v2483, %v2874
        %v3013 = vsub.f32 %v2486, %v2877
        %v3014 = vsub.f32 %v2491, %v2880
        %v3015 = vsub.f32 %v2494, %v2883
        %v3016 = vsub.f32 %v2499, %v2886
        %v3017 = vsub.f32 %v2502, %v2889
        %v3018 = vmul.f32 %v2890, 1.442695
        %v3019 = vpow.pop %v3018
        %v3020 = vmul.f32 %v2891, 1.442695
        %v3021 = vpow.pop %v3020
        %v3022 = vmul.f32 %v2892, 1.442695
        %v3023 = vpow.pop %v3022
        %v3024 = vmul.f32 %v2893, 1.442695
        %v3025 = vpow.pop %v3024
        %v3026 = vmul.f32 %v2894, 1.442695
        %v3027 = vpow.pop %v3026
        %v3028 = vmul.f32 %v2895, 1.442695
        %v3029 = vpow.pop %v3028
        %v3030 = vmul.f32 %v2896, 1.442695
        %v3031 = vpow.pop %v3030
        %v3032 = vmul.f32 %v2897, 1.442695
        %v3033 = vpow.pop %v3032
        %v3034 = vmul.f32 %v2898, 1.442695
        %v3035 = vpow.pop %v3034
        %v3036 = vmul.f32 %v2899, 1.442695
        %v3037 = vpow.pop %v3036
        %v3038 = vmul.f32 %v2900, 1.442695
        %v3039 = vpow.pop %v3038
        %v3040 = vmul.f32 %v2901, 1.442695
        %v3041 = vpow.pop %v3040
        %v3042 = vmul.f32 %v2902, 1.442695
        %v3043 = vpow.pop %v3042
        %v3044 = vmul.f32 %v2903, 1.442695
        %v3045 = vpow.pop %v3044
        %v3046 = vmul.f32 %v2904, 1.442695
        %v3047 = vpow.pop %v3046
        %v3048 = vmul.f32 %v2905, 1.442695
        %v3049 = vpow.pop %v3048
        %v3050 = vmul.f32 %v2906, 1.442695
        %v3051 = vpow.pop %v3050
        %v3052 = vmul.f32 %v2907, 1.442695
        %v3053 = vpow.pop %v3052
        %v3054 = vmul.f32 %v2908, 1.442695
        %v3055 = vpow.pop %v3054
        %v3056 = vmul.f32 %v2909, 1.442695
        %v3057 = vpow.pop %v3056
        %v3058 = vmul.f32 %v2910, 1.442695
        %v3059 = vpow.pop %v3058
        %v3060 = vmul.f32 %v2911, 1.442695
        %v3061 = vpow.pop %v3060
        %v3062 = vmul.f32 %v2912, 1.442695
        %v3063 = vpow.pop %v3062
        %v3064 = vmul.f32 %v2913, 1.442695
        %v3065 = vpow.pop %v3064
        %v3066 = vmul.f32 %v2914, 1.442695
        %v3067 = vpow.pop %v3066
        %v3068 = vmul.f32 %v2915, 1.442695
        %v3069 = vpow.pop %v3068
        %v3070 = vmul.f32 %v2916, 1.442695
        %v3071 = vpow.pop %v3070
        %v3072 = vmul.f32 %v2917, 1.442695
        %v3073 = vpow.pop %v3072
        %v3074 = vmul.f32 %v2918, 1.442695
        %v3075 = vpow.pop %v3074
        %v3076 = vmul.f32 %v2919, 1.442695
        %v3077 = vpow.pop %v3076
        %v3078 = vmul.f32 %v2920, 1.442695
        %v3079 = vpow.pop %v3078
        %v3080 = vmul.f32 %v2921, 1.442695
        %v3081 = vpow.pop %v3080
        %v3082 = vmul.f32 %v2922, 1.442695
        %v3083 = vpow.pop %v3082
        %v3084 = vmul.f32 %v2923, 1.442695
        %v3085 = vpow.pop %v3084
        %v3086 = vmul.f32 %v2924, 1.442695
        %v3087 = vpow.pop %v3086
        %v3088 = vmul.f32 %v2925, 1.442695
        %v3089 = vpow.pop %v3088
        %v3090 = vmul.f32 %v2926, 1.442695
        %v3091 = vpow.pop %v3090
        %v3092 = vmul.f32 %v2927, 1.442695
        %v3093 = vpow.pop %v3092
        %v3094 = vmul.f32 %v2928, 1.442695
        %v3095 = vpow.pop %v3094
        %v3096 = vmul.f32 %v2929, 1.442695
        %v3097 = vpow.pop %v3096
        %v3098 = vmul.f32 %v2930, 1.442695
        %v3099 = vpow.pop %v3098
        %v3100 = vmul.f32 %v2931, 1.442695
        %v3101 = vpow.pop %v3100
        %v3102 = vmul.f32 %v2932, 1.442695
        %v3103 = vpow.pop %v3102
        %v3104 = vmul.f32 %v2933, 1.442695
        %v3105 = vpow.pop %v3104
        %v3106 = vmul.f32 %v2934, 1.442695
        %v3107 = vpow.pop %v3106
        %v3108 = vmul.f32 %v2935, 1.442695
        %v3109 = vpow.pop %v3108
        %v3110 = vmul.f32 %v2936, 1.442695
        %v3111 = vpow.pop %v3110
        %v3112 = vmul.f32 %v2937, 1.442695
        %v3113 = vpow.pop %v3112
        %v3114 = vmul.f32 %v2938, 1.442695
        %v3115 = vpow.pop %v3114
        %v3116 = vmul.f32 %v2939, 1.442695
        %v3117 = vpow.pop %v3116
        %v3118 = vmul.f32 %v2940, 1.442695
        %v3119 = vpow.pop %v3118
        %v3120 = vmul.f32 %v2941, 1.442695
        %v3121 = vpow.pop %v3120
        %v3122 = vmul.f32 %v2942, 1.442695
        %v3123 = vpow.pop %v3122
        %v3124 = vmul.f32 %v2943, 1.442695
        %v3125 = vpow.pop %v3124
        %v3126 = vmul.f32 %v2944, 1.442695
        %v3127 = vpow.pop %v3126
        %v3128 = vmul.f32 %v2945, 1.442695
        %v3129 = vpow.pop %v3128
        %v3130 = vmul.f32 %v2946, 1.442695
        %v3131 = vpow.pop %v3130
        %v3132 = vmul.f32 %v2947, 1.442695
        %v3133 = vpow.pop %v3132
        %v3134 = vmul.f32 %v2948, 1.442695
        %v3135 = vpow.pop %v3134
        %v3136 = vmul.f32 %v2949, 1.442695
        %v3137 = vpow.pop %v3136
        %v3138 = vmul.f32 %v2950, 1.442695
        %v3139 = vpow.pop %v3138
        %v3140 = vmul.f32 %v2951, 1.442695
        %v3141 = vpow.pop %v3140
        %v3142 = vmul.f32 %v2952, 1.442695
        %v3143 = vpow.pop %v3142
        %v3144 = vmul.f32 %v2953, 1.442695
        %v3145 = vpow.pop %v3144
        %v3146 = vmul.f32 %v2954, 1.442695
        %v3147 = vpow.pop %v3146
        %v3148 = vmul.f32 %v2955, 1.442695
        %v3149 = vpow.pop %v3148
        %v3150 = vmul.f32 %v2956, 1.442695
        %v3151 = vpow.pop %v3150
        %v3152 = vmul.f32 %v2957, 1.442695
        %v3153 = vpow.pop %v3152
        %v3154 = vmul.f32 %v2958, 1.442695
        %v3155 = vpow.pop %v3154
        %v3156 = vmul.f32 %v2959, 1.442695
        %v3157 = vpow.pop %v3156
        %v3158 = vmul.f32 %v2960, 1.442695
        %v3159 = vpow.pop %v3158
        %v3160 = vmul.f32 %v2961, 1.442695
        %v3161 = vpow.pop %v3160
        %v3162 = vmul.f32 %v2962, 1.442695
        %v3163 = vpow.pop %v3162
        %v3164 = vmul.f32 %v2963, 1.442695
        %v3165 = vpow.pop %v3164
        %v3166 = vmul.f32 %v2964, 1.442695
        %v3167 = vpow.pop %v3166
        %v3168 = vmul.f32 %v2965, 1.442695
        %v3169 = vpow.pop %v3168
        %v3170 = vmul.f32 %v2966, 1.442695
        %v3171 = vpow.pop %v3170
        %v3172 = vmul.f32 %v2967, 1.442695
        %v3173 = vpow.pop %v3172
        %v3174 = vmul.f32 %v2968, 1.442695
        %v3175 = vpow.pop %v3174
        %v3176 = vmul.f32 %v2969, 1.442695
        %v3177 = vpow.pop %v3176
        %v3178 = vmul.f32 %v2970, 1.442695
        %v3179 = vpow.pop %v3178
        %v3180 = vmul.f32 %v2971, 1.442695
        %v3181 = vpow.pop %v3180
        %v3182 = vmul.f32 %v2972, 1.442695
        %v3183 = vpow.pop %v3182
        %v3184 = vmul.f32 %v2973, 1.442695
        %v3185 = vpow.pop %v3184
        %v3186 = vmul.f32 %v2974, 1.442695
        %v3187 = vpow.pop %v3186
        %v3188 = vmul.f32 %v2975, 1.442695
        %v3189 = vpow.pop %v3188
        %v3190 = vmul.f32 %v2976, 1.442695
        %v3191 = vpow.pop %v3190
        %v3192 = vmul.f32 %v2977, 1.442695
        %v3193 = vpow.pop %v3192
        %v3194 = vmul.f32 %v2978, 1.442695
        %v3195 = vpow.pop %v3194
        %v3196 = vmul.f32 %v2979, 1.442695
        %v3197 = vpow.pop %v3196
        %v3198 = vmul.f32 %v2980, 1.442695
        %v3199 = vpow.pop %v3198
        %v3200 = vmul.f32 %v2981, 1.442695
        %v3201 = vpow.pop %v3200
        %v3202 = vmul.f32 %v2982, 1.442695
        %v3203 = vpow.pop %v3202
        %v3204 = vmul.f32 %v2983, 1.442695
        %v3205 = vpow.pop %v3204
        %v3206 = vmul.f32 %v2984, 1.442695
        %v3207 = vpow.pop %v3206
        %v3208 = vmul.f32 %v2985, 1.442695
        %v3209 = vpow.pop %v3208
        %v3210 = vmul.f32 %v2986, 1.442695
        %v3211 = vpow.pop %v3210
        %v3212 = vmul.f32 %v2987, 1.442695
        %v3213 = vpow.pop %v3212
        %v3214 = vmul.f32 %v2988, 1.442695
        %v3215 = vpow.pop %v3214
        %v3216 = vmul.f32 %v2989, 1.442695
        %v3217 = vpow.pop %v3216
        %v3218 = vmul.f32 %v2990, 1.442695
        %v3219 = vpow.pop %v3218
        %v3220 = vmul.f32 %v2991, 1.442695
        %v3221 = vpow.pop %v3220
        %v3222 = vmul.f32 %v2992, 1.442695
        %v3223 = vpow.pop %v3222
        %v3224 = vmul.f32 %v2993, 1.442695
        %v3225 = vpow.pop %v3224
        %v3226 = vmul.f32 %v2994, 1.442695
        %v3227 = vpow.pop %v3226
        %v3228 = vmul.f32 %v2995, 1.442695
        %v3229 = vpow.pop %v3228
        %v3230 = vmul.f32 %v2996, 1.442695
        %v3231 = vpow.pop %v3230
        %v3232 = vmul.f32 %v2997, 1.442695
        %v3233 = vpow.pop %v3232
        %v3234 = vmul.f32 %v2998, 1.442695
        %v3235 = vpow.pop %v3234
        %v3236 = vmul.f32 %v2999, 1.442695
        %v3237 = vpow.pop %v3236
        %v3238 = vmul.f32 %v3000, 1.442695
        %v3239 = vpow.pop %v3238
        %v3240 = vmul.f32 %v3001, 1.442695
        %v3241 = vpow.pop %v3240
        %v3242 = vmul.f32 %v3002, 1.442695
        %v3243 = vpow.pop %v3242
        %v3244 = vmul.f32 %v3003, 1.442695
        %v3245 = vpow.pop %v3244
        %v3246 = vmul.f32 %v3004, 1.442695
        %v3247 = vpow.pop %v3246
        %v3248 = vmul.f32 %v3005, 1.442695
        %v3249 = vpow.pop %v3248
        %v3250 = vmul.f32 %v3006, 1.442695
        %v3251 = vpow.pop %v3250
        %v3252 = vmul.f32 %v3007, 1.442695
        %v3253 = vpow.pop %v3252
        %v3254 = vmul.f32 %v3008, 1.442695
        %v3255 = vpow.pop %v3254
        %v3256 = vmul.f32 %v3009, 1.442695
        %v3257 = vpow.pop %v3256
        %v3258 = vmul.f32 %v3010, 1.442695
        %v3259 = vpow.pop %v3258
        %v3260 = vmul.f32 %v3011, 1.442695
        %v3261 = vpow.pop %v3260
        %v3262 = vmul.f32 %v3012, 1.442695
        %v3263 = vpow.pop %v3262
        %v3264 = vmul.f32 %v3013, 1.442695
        %v3265 = vpow.pop %v3264
        %v3266 = vmul.f32 %v3014, 1.442695
        %v3267 = vpow.pop %v3266
        %v3268 = vmul.f32 %v3015, 1.442695
        %v3269 = vpow.pop %v3268
        %v3270 = vmul.f32 %v3016, 1.442695
        %v3271 = vpow.pop %v3270
        %v3272 = vmul.f32 %v3017, 1.442695
        %v3273 = vpow.pop %v3272
        %v3274 = vsel %vm2505, %v3019, 0.0
        %3275 = vadd.xlane.f32.xlu0 %v3274
        %v3276 = vpop.xlane.xlu0 %3275
        %v3277 = vsel %vm2505, %v3021, 0.0
        %3278 = vadd.xlane.f32.xlu0 %v3277
        %v3279 = vpop.xlane.xlu0 %3278
        %v3280 = vsel %vm2505, %v3023, 0.0
        %3281 = vadd.xlane.f32.xlu0 %v3280
        %v3282 = vpop.xlane.xlu0 %3281
        %v3283 = vsel %vm2505, %v3025, 0.0
        %3284 = vadd.xlane.f32.xlu0 %v3283
        %v3285 = vpop.xlane.xlu0 %3284
        %v3286 = vsel %vm2505, %v3027, 0.0
        %3287 = vadd.xlane.f32.xlu0 %v3286
        %v3288 = vpop.xlane.xlu0 %3287
        %v3289 = vsel %vm2505, %v3029, 0.0
        %3290 = vadd.xlane.f32.xlu0 %v3289
        %v3291 = vpop.xlane.xlu0 %3290
        %v3292 = vsel %vm2505, %v3031, 0.0
        %3293 = vadd.xlane.f32.xlu0 %v3292
        %v3294 = vpop.xlane.xlu0 %3293
        %v3295 = vsel %vm2505, %v3033, 0.0
        %3296 = vadd.xlane.f32.xlu0 %v3295
        %v3297 = vpop.xlane.xlu0 %3296
        %v3298 = vsel %vm2505, %v3035, 0.0
        %3299 = vadd.xlane.f32.xlu0 %v3298
        %v3300 = vpop.xlane.xlu0 %3299
        %v3301 = vsel %vm2505, %v3037, 0.0
        %3302 = vadd.xlane.f32.xlu0 %v3301
        %v3303 = vpop.xlane.xlu0 %3302
        %v3304 = vsel %vm2505, %v3039, 0.0
        %3305 = vadd.xlane.f32.xlu0 %v3304
        %v3306 = vpop.xlane.xlu0 %3305
        %v3307 = vsel %vm2505, %v3041, 0.0
        %3308 = vadd.xlane.f32.xlu0 %v3307
        %v3309 = vpop.xlane.xlu0 %3308
        %v3310 = vsel %vm2505, %v3043, 0.0
        %3311 = vadd.xlane.f32.xlu0 %v3310
        %v3312 = vpop.xlane.xlu0 %3311
        %v3313 = vsel %vm2505, %v3045, 0.0
        %3314 = vadd.xlane.f32.xlu0 %v3313
        %v3315 = vpop.xlane.xlu0 %3314
        %v3316 = vsel %vm2505, %v3047, 0.0
        %3317 = vadd.xlane.f32.xlu0 %v3316
        %v3318 = vpop.xlane.xlu0 %3317
        %v3319 = vsel %vm2505, %v3049, 0.0
        %3320 = vadd.xlane.f32.xlu0 %v3319
        %v3321 = vpop.xlane.xlu0 %3320
        %v3322 = vsel %vm2505, %v3051, 0.0
        %3323 = vadd.xlane.f32.xlu0 %v3322
        %v3324 = vpop.xlane.xlu0 %3323
        %v3325 = vsel %vm2505, %v3053, 0.0
        %3326 = vadd.xlane.f32.xlu0 %v3325
        %v3327 = vpop.xlane.xlu0 %3326
        %v3328 = vsel %vm2505, %v3055, 0.0
        %3329 = vadd.xlane.f32.xlu0 %v3328
        %v3330 = vpop.xlane.xlu0 %3329
        %v3331 = vsel %vm2505, %v3057, 0.0
        %3332 = vadd.xlane.f32.xlu0 %v3331
        %v3333 = vpop.xlane.xlu0 %3332
        %v3334 = vsel %vm2505, %v3059, 0.0
        %3335 = vadd.xlane.f32.xlu0 %v3334
        %v3336 = vpop.xlane.xlu0 %3335
        %v3337 = vsel %vm2505, %v3061, 0.0
        %3338 = vadd.xlane.f32.xlu0 %v3337
        %v3339 = vpop.xlane.xlu0 %3338
        %v3340 = vsel %vm2505, %v3063, 0.0
        %3341 = vadd.xlane.f32.xlu0 %v3340
        %v3342 = vpop.xlane.xlu0 %3341
        %v3343 = vsel %vm2505, %v3065, 0.0
        %3344 = vadd.xlane.f32.xlu0 %v3343
        %v3345 = vpop.xlane.xlu0 %3344
        %v3346 = vsel %vm2505, %v3067, 0.0
        %3347 = vadd.xlane.f32.xlu0 %v3346
        %v3348 = vpop.xlane.xlu0 %3347
        %v3349 = vsel %vm2505, %v3069, 0.0
        %3350 = vadd.xlane.f32.xlu0 %v3349
        %v3351 = vpop.xlane.xlu0 %3350
        %v3352 = vsel %vm2505, %v3071, 0.0
        %3353 = vadd.xlane.f32.xlu0 %v3352
        %v3354 = vpop.xlane.xlu0 %3353
        %v3355 = vsel %vm2505, %v3073, 0.0
        %3356 = vadd.xlane.f32.xlu0 %v3355
        %v3357 = vpop.xlane.xlu0 %3356
        %v3358 = vsel %vm2505, %v3075, 0.0
        %3359 = vadd.xlane.f32.xlu0 %v3358
        %v3360 = vpop.xlane.xlu0 %3359
        %v3361 = vsel %vm2505, %v3077, 0.0
        %3362 = vadd.xlane.f32.xlu0 %v3361
        %v3363 = vpop.xlane.xlu0 %3362
        %v3364 = vsel %vm2505, %v3079, 0.0
        %3365 = vadd.xlane.f32.xlu0 %v3364
        %v3366 = vpop.xlane.xlu0 %3365
        %v3367 = vsel %vm2505, %v3081, 0.0
        %3368 = vadd.xlane.f32.xlu0 %v3367
        %v3369 = vpop.xlane.xlu0 %3368
        %v3370 = vsel %vm2505, %v3083, 0.0
        %3371 = vadd.xlane.f32.xlu0 %v3370
        %v3372 = vpop.xlane.xlu0 %3371
        %v3373 = vsel %vm2505, %v3085, 0.0
        %3374 = vadd.xlane.f32.xlu0 %v3373
        %v3375 = vpop.xlane.xlu0 %3374
        %v3376 = vsel %vm2505, %v3087, 0.0
        %3377 = vadd.xlane.f32.xlu0 %v3376
        %v3378 = vpop.xlane.xlu0 %3377
        %v3379 = vsel %vm2505, %v3089, 0.0
        %3380 = vadd.xlane.f32.xlu0 %v3379
        %v3381 = vpop.xlane.xlu0 %3380
        %v3382 = vsel %vm2505, %v3091, 0.0
        %3383 = vadd.xlane.f32.xlu0 %v3382
        %v3384 = vpop.xlane.xlu0 %3383
        %v3385 = vsel %vm2505, %v3093, 0.0
        %3386 = vadd.xlane.f32.xlu0 %v3385
        %v3387 = vpop.xlane.xlu0 %3386
        %v3388 = vsel %vm2505, %v3095, 0.0
        %3389 = vadd.xlane.f32.xlu0 %v3388
        %v3390 = vpop.xlane.xlu0 %3389
        %v3391 = vsel %vm2505, %v3097, 0.0
        %3392 = vadd.xlane.f32.xlu0 %v3391
        %v3393 = vpop.xlane.xlu0 %3392
        %v3394 = vsel %vm2505, %v3099, 0.0
        %3395 = vadd.xlane.f32.xlu0 %v3394
        %v3396 = vpop.xlane.xlu0 %3395
        %v3397 = vsel %vm2505, %v3101, 0.0
        %3398 = vadd.xlane.f32.xlu0 %v3397
        %v3399 = vpop.xlane.xlu0 %3398
        %v3400 = vsel %vm2505, %v3103, 0.0
        %3401 = vadd.xlane.f32.xlu0 %v3400
        %v3402 = vpop.xlane.xlu0 %3401
        %v3403 = vsel %vm2505, %v3105, 0.0
        %3404 = vadd.xlane.f32.xlu0 %v3403
        %v3405 = vpop.xlane.xlu0 %3404
        %v3406 = vsel %vm2505, %v3107, 0.0
        %3407 = vadd.xlane.f32.xlu0 %v3406
        %v3408 = vpop.xlane.xlu0 %3407
        %v3409 = vsel %vm2505, %v3109, 0.0
        %3410 = vadd.xlane.f32.xlu0 %v3409
        %v3411 = vpop.xlane.xlu0 %3410
        %v3412 = vsel %vm2505, %v3111, 0.0
        %3413 = vadd.xlane.f32.xlu0 %v3412
        %v3414 = vpop.xlane.xlu0 %3413
        %v3415 = vsel %vm2505, %v3113, 0.0
        %3416 = vadd.xlane.f32.xlu0 %v3415
        %v3417 = vpop.xlane.xlu0 %3416
        %v3418 = vsel %vm2505, %v3115, 0.0
        %3419 = vadd.xlane.f32.xlu0 %v3418
        %v3420 = vpop.xlane.xlu0 %3419
        %v3421 = vsel %vm2505, %v3117, 0.0
        %3422 = vadd.xlane.f32.xlu0 %v3421
        %v3423 = vpop.xlane.xlu0 %3422
        %v3424 = vsel %vm2505, %v3119, 0.0
        %3425 = vadd.xlane.f32.xlu0 %v3424
        %v3426 = vpop.xlane.xlu0 %3425
        %v3427 = vsel %vm2505, %v3121, 0.0
        %3428 = vadd.xlane.f32.xlu0 %v3427
        %v3429 = vpop.xlane.xlu0 %3428
        %v3430 = vsel %vm2505, %v3123, 0.0
        %3431 = vadd.xlane.f32.xlu0 %v3430
        %v3432 = vpop.xlane.xlu0 %3431
        %v3433 = vsel %vm2505, %v3125, 0.0
        %3434 = vadd.xlane.f32.xlu0 %v3433
        %v3435 = vpop.xlane.xlu0 %3434
        %v3436 = vsel %vm2505, %v3127, 0.0
        %3437 = vadd.xlane.f32.xlu0 %v3436
        %v3438 = vpop.xlane.xlu0 %3437
        %v3439 = vsel %vm2505, %v3129, 0.0
        %3440 = vadd.xlane.f32.xlu0 %v3439
        %v3441 = vpop.xlane.xlu0 %3440
        %v3442 = vsel %vm2505, %v3131, 0.0
        %3443 = vadd.xlane.f32.xlu0 %v3442
        %v3444 = vpop.xlane.xlu0 %3443
        %v3445 = vsel %vm2505, %v3133, 0.0
        %3446 = vadd.xlane.f32.xlu0 %v3445
        %v3447 = vpop.xlane.xlu0 %3446
        %v3448 = vsel %vm2505, %v3135, 0.0
        %3449 = vadd.xlane.f32.xlu0 %v3448
        %v3450 = vpop.xlane.xlu0 %3449
        %v3451 = vsel %vm2505, %v3137, 0.0
        %3452 = vadd.xlane.f32.xlu0 %v3451
        %v3453 = vpop.xlane.xlu0 %3452
        %v3454 = vsel %vm2505, %v3139, 0.0
        %3455 = vadd.xlane.f32.xlu0 %v3454
        %v3456 = vpop.xlane.xlu0 %3455
        %v3457 = vsel %vm2505, %v3141, 0.0
        %3458 = vadd.xlane.f32.xlu0 %v3457
        %v3459 = vpop.xlane.xlu0 %3458
        %v3460 = vsel %vm2505, %v3143, 0.0
        %3461 = vadd.xlane.f32.xlu0 %v3460
        %v3462 = vpop.xlane.xlu0 %3461
        %v3463 = vsel %vm2505, %v3145, 0.0
        %3464 = vadd.xlane.f32.xlu0 %v3463
        %v3465 = vpop.xlane.xlu0 %3464
        %v3466 = vsel %vm2505, %v3147, 0.0
        %3467 = vadd.xlane.f32.xlu0 %v3466
        %v3468 = vpop.xlane.xlu0 %3467
        %v3469 = vsel %vm2505, %v3149, 0.0
        %3470 = vadd.xlane.f32.xlu0 %v3469
        %v3471 = vpop.xlane.xlu0 %3470
        %v3472 = vsel %vm2505, %v3151, 0.0
        %3473 = vadd.xlane.f32.xlu0 %v3472
        %v3474 = vpop.xlane.xlu0 %3473
        %v3475 = vsel %vm2505, %v3153, 0.0
        %3476 = vadd.xlane.f32.xlu0 %v3475
        %v3477 = vpop.xlane.xlu0 %3476
        %v3478 = vsel %vm2505, %v3155, 0.0
        %3479 = vadd.xlane.f32.xlu0 %v3478
        %v3480 = vpop.xlane.xlu0 %3479
        %v3481 = vsel %vm2505, %v3157, 0.0
        %3482 = vadd.xlane.f32.xlu0 %v3481
        %v3483 = vpop.xlane.xlu0 %3482
        %v3484 = vsel %vm2505, %v3159, 0.0
        %3485 = vadd.xlane.f32.xlu0 %v3484
        %v3486 = vpop.xlane.xlu0 %3485
        %v3487 = vsel %vm2505, %v3161, 0.0
        %3488 = vadd.xlane.f32.xlu0 %v3487
        %v3489 = vpop.xlane.xlu0 %3488
        %v3490 = vsel %vm2505, %v3163, 0.0
        %3491 = vadd.xlane.f32.xlu0 %v3490
        %v3492 = vpop.xlane.xlu0 %3491
        %v3493 = vsel %vm2505, %v3165, 0.0
        %3494 = vadd.xlane.f32.xlu0 %v3493
        %v3495 = vpop.xlane.xlu0 %3494
        %v3496 = vsel %vm2505, %v3167, 0.0
        %3497 = vadd.xlane.f32.xlu0 %v3496
        %v3498 = vpop.xlane.xlu0 %3497
        %v3499 = vsel %vm2505, %v3169, 0.0
        %3500 = vadd.xlane.f32.xlu0 %v3499
        %v3501 = vpop.xlane.xlu0 %3500
        %v3502 = vsel %vm2505, %v3171, 0.0
        %3503 = vadd.xlane.f32.xlu0 %v3502
        %v3504 = vpop.xlane.xlu0 %3503
        %v3505 = vsel %vm2505, %v3173, 0.0
        %3506 = vadd.xlane.f32.xlu0 %v3505
        %v3507 = vpop.xlane.xlu0 %3506
        %v3508 = vsel %vm2505, %v3175, 0.0
        %3509 = vadd.xlane.f32.xlu0 %v3508
        %v3510 = vpop.xlane.xlu0 %3509
        %v3511 = vsel %vm2505, %v3177, 0.0
        %3512 = vadd.xlane.f32.xlu0 %v3511
        %v3513 = vpop.xlane.xlu0 %3512
        %v3514 = vsel %vm2505, %v3179, 0.0
        %3515 = vadd.xlane.f32.xlu0 %v3514
        %v3516 = vpop.xlane.xlu0 %3515
        %v3517 = vsel %vm2505, %v3181, 0.0
        %3518 = vadd.xlane.f32.xlu0 %v3517
        %v3519 = vpop.xlane.xlu0 %3518
        %v3520 = vsel %vm2505, %v3183, 0.0
        %3521 = vadd.xlane.f32.xlu0 %v3520
        %v3522 = vpop.xlane.xlu0 %3521
        %v3523 = vsel %vm2505, %v3185, 0.0
        %3524 = vadd.xlane.f32.xlu0 %v3523
        %v3525 = vpop.xlane.xlu0 %3524
        %v3526 = vsel %vm2505, %v3187, 0.0
        %3527 = vadd.xlane.f32.xlu0 %v3526
        %v3528 = vpop.xlane.xlu0 %3527
        %v3529 = vsel %vm2505, %v3189, 0.0
        %3530 = vadd.xlane.f32.xlu0 %v3529
        %v3531 = vpop.xlane.xlu0 %3530
        %v3532 = vsel %vm2505, %v3191, 0.0
        %3533 = vadd.xlane.f32.xlu0 %v3532
        %v3534 = vpop.xlane.xlu0 %3533
        %v3535 = vsel %vm2505, %v3193, 0.0
        %3536 = vadd.xlane.f32.xlu0 %v3535
        %v3537 = vpop.xlane.xlu0 %3536
        %v3538 = vsel %vm2505, %v3195, 0.0
        %3539 = vadd.xlane.f32.xlu0 %v3538
        %v3540 = vpop.xlane.xlu0 %3539
        %v3541 = vsel %vm2505, %v3197, 0.0
        %3542 = vadd.xlane.f32.xlu0 %v3541
        %v3543 = vpop.xlane.xlu0 %3542
        %v3544 = vsel %vm2505, %v3199, 0.0
        %3545 = vadd.xlane.f32.xlu0 %v3544
        %v3546 = vpop.xlane.xlu0 %3545
        %v3547 = vsel %vm2505, %v3201, 0.0
        %3548 = vadd.xlane.f32.xlu0 %v3547
        %v3549 = vpop.xlane.xlu0 %3548
        %v3550 = vsel %vm2505, %v3203, 0.0
        %3551 = vadd.xlane.f32.xlu0 %v3550
        %v3552 = vpop.xlane.xlu0 %3551
        %v3553 = vsel %vm2505, %v3205, 0.0
        %3554 = vadd.xlane.f32.xlu0 %v3553
        %v3555 = vpop.xlane.xlu0 %3554
        %v3556 = vsel %vm2505, %v3207, 0.0
        %3557 = vadd.xlane.f32.xlu0 %v3556
        %v3558 = vpop.xlane.xlu0 %3557
        %v3559 = vsel %vm2505, %v3209, 0.0
        %3560 = vadd.xlane.f32.xlu0 %v3559
        %v3561 = vpop.xlane.xlu0 %3560
        %v3562 = vsel %vm2505, %v3211, 0.0
        %3563 = vadd.xlane.f32.xlu0 %v3562
        %v3564 = vpop.xlane.xlu0 %3563
        %v3565 = vsel %vm2505, %v3213, 0.0
        %3566 = vadd.xlane.f32.xlu0 %v3565
        %v3567 = vpop.xlane.xlu0 %3566
        %v3568 = vsel %vm2505, %v3215, 0.0
        %3569 = vadd.xlane.f32.xlu0 %v3568
        %v3570 = vpop.xlane.xlu0 %3569
        %v3571 = vsel %vm2505, %v3217, 0.0
        %3572 = vadd.xlane.f32.xlu0 %v3571
        %v3573 = vpop.xlane.xlu0 %3572
        %v3574 = vsel %vm2505, %v3219, 0.0
        %3575 = vadd.xlane.f32.xlu0 %v3574
        %v3576 = vpop.xlane.xlu0 %3575
        %v3577 = vsel %vm2505, %v3221, 0.0
        %3578 = vadd.xlane.f32.xlu0 %v3577
        %v3579 = vpop.xlane.xlu0 %3578
        %v3580 = vsel %vm2505, %v3223, 0.0
        %3581 = vadd.xlane.f32.xlu0 %v3580
        %v3582 = vpop.xlane.xlu0 %3581
        %v3583 = vsel %vm2505, %v3225, 0.0
        %3584 = vadd.xlane.f32.xlu0 %v3583
        %v3585 = vpop.xlane.xlu0 %3584
        %v3586 = vsel %vm2505, %v3227, 0.0
        %3587 = vadd.xlane.f32.xlu0 %v3586
        %v3588 = vpop.xlane.xlu0 %3587
        %v3589 = vsel %vm2505, %v3229, 0.0
        %3590 = vadd.xlane.f32.xlu0 %v3589
        %v3591 = vpop.xlane.xlu0 %3590
        %v3592 = vsel %vm2505, %v3231, 0.0
        %3593 = vadd.xlane.f32.xlu0 %v3592
        %v3594 = vpop.xlane.xlu0 %3593
        %v3595 = vsel %vm2505, %v3233, 0.0
        %3596 = vadd.xlane.f32.xlu0 %v3595
        %v3597 = vpop.xlane.xlu0 %3596
        %v3598 = vsel %vm2505, %v3235, 0.0
        %3599 = vadd.xlane.f32.xlu0 %v3598
        %v3600 = vpop.xlane.xlu0 %3599
        %v3601 = vsel %vm2505, %v3237, 0.0
        %3602 = vadd.xlane.f32.xlu0 %v3601
        %v3603 = vpop.xlane.xlu0 %3602
        %v3604 = vsel %vm2505, %v3239, 0.0
        %3605 = vadd.xlane.f32.xlu0 %v3604
        %v3606 = vpop.xlane.xlu0 %3605
        %v3607 = vsel %vm2505, %v3241, 0.0
        %3608 = vadd.xlane.f32.xlu0 %v3607
        %v3609 = vpop.xlane.xlu0 %3608
        %v3610 = vsel %vm2505, %v3243, 0.0
        %3611 = vadd.xlane.f32.xlu0 %v3610
        %v3612 = vpop.xlane.xlu0 %3611
        %v3613 = vsel %vm2505, %v3245, 0.0
        %3614 = vadd.xlane.f32.xlu0 %v3613
        %v3615 = vpop.xlane.xlu0 %3614
        %v3616 = vsel %vm2505, %v3247, 0.0
        %3617 = vadd.xlane.f32.xlu0 %v3616
        %v3618 = vpop.xlane.xlu0 %3617
        %v3619 = vsel %vm2505, %v3249, 0.0
        %3620 = vadd.xlane.f32.xlu0 %v3619
        %v3621 = vpop.xlane.xlu0 %3620
        %v3622 = vsel %vm2505, %v3251, 0.0
        %3623 = vadd.xlane.f32.xlu0 %v3622
        %v3624 = vpop.xlane.xlu0 %3623
        %v3625 = vsel %vm2505, %v3253, 0.0
        %3626 = vadd.xlane.f32.xlu0 %v3625
        %v3627 = vpop.xlane.xlu0 %3626
        %v3628 = vsel %vm2505, %v3255, 0.0
        %3629 = vadd.xlane.f32.xlu0 %v3628
        %v3630 = vpop.xlane.xlu0 %3629
        %v3631 = vsel %vm2505, %v3257, 0.0
        %3632 = vadd.xlane.f32.xlu0 %v3631
        %v3633 = vpop.xlane.xlu0 %3632
        %v3634 = vsel %vm2505, %v3259, 0.0
        %3635 = vadd.xlane.f32.xlu0 %v3634
        %v3636 = vpop.xlane.xlu0 %3635
        %v3637 = vsel %vm2505, %v3261, 0.0
        %3638 = vadd.xlane.f32.xlu0 %v3637
        %v3639 = vpop.xlane.xlu0 %3638
        %v3640 = vsel %vm2505, %v3263, 0.0
        %3641 = vadd.xlane.f32.xlu0 %v3640
        %v3642 = vpop.xlane.xlu0 %3641
        %v3643 = vsel %vm2505, %v3265, 0.0
        %3644 = vadd.xlane.f32.xlu0 %v3643
        %v3645 = vpop.xlane.xlu0 %3644
        %v3646 = vsel %vm2505, %v3267, 0.0
        %3647 = vadd.xlane.f32.xlu0 %v3646
        %v3648 = vpop.xlane.xlu0 %3647
        %v3649 = vsel %vm2505, %v3269, 0.0
        %3650 = vadd.xlane.f32.xlu0 %v3649
        %v3651 = vpop.xlane.xlu0 %3650
        %v3652 = vsel %vm2505, %v3271, 0.0
        %3653 = vadd.xlane.f32.xlu0 %v3652
        %v3654 = vpop.xlane.xlu0 %3653
        %v3655 = vsel %vm2505, %v3273, 0.0
        %3656 = vadd.xlane.f32.xlu0 %v3655
        %v3657 = vpop.xlane.xlu0 %3656
        %v3658 = vrcp.pop %v3276
        %v3659 = vrcp.pop %v3279
        %v3660 = vrcp.pop %v3282
        %v3661 = vrcp.pop %v3285
        %v3662 = vrcp.pop %v3288
        %v3663 = vrcp.pop %v3291
        %v3664 = vrcp.pop %v3294
        %v3665 = vrcp.pop %v3297
        %v3666 = vrcp.pop %v3300
        %v3667 = vrcp.pop %v3303
        %v3668 = vrcp.pop %v3306
        %v3669 = vrcp.pop %v3309
        %v3670 = vrcp.pop %v3312
        %v3671 = vrcp.pop %v3315
        %v3672 = vrcp.pop %v3318
        %v3673 = vrcp.pop %v3321
        %v3674 = vrcp.pop %v3324
        %v3675 = vrcp.pop %v3327
        %v3676 = vrcp.pop %v3330
        %v3677 = vrcp.pop %v3333
        %v3678 = vrcp.pop %v3336
        %v3679 = vrcp.pop %v3339
        %v3680 = vrcp.pop %v3342
        %v3681 = vrcp.pop %v3345
        %v3682 = vrcp.pop %v3348
        %v3683 = vrcp.pop %v3351
        %v3684 = vrcp.pop %v3354
        %v3685 = vrcp.pop %v3357
        %v3686 = vrcp.pop %v3360
        %v3687 = vrcp.pop %v3363
        %v3688 = vrcp.pop %v3366
        %v3689 = vrcp.pop %v3369
        %v3690 = vrcp.pop %v3372
        %v3691 = vrcp.pop %v3375
        %v3692 = vrcp.pop %v3378
        %v3693 = vrcp.pop %v3381
        %v3694 = vrcp.pop %v3384
        %v3695 = vrcp.pop %v3387
        %v3696 = vrcp.pop %v3390
        %v3697 = vrcp.pop %v3393
        %v3698 = vrcp.pop %v3396
        %v3699 = vrcp.pop %v3399
        %v3700 = vrcp.pop %v3402
        %v3701 = vrcp.pop %v3405
        %v3702 = vrcp.pop %v3408
        %v3703 = vrcp.pop %v3411
        %v3704 = vrcp.pop %v3414
        %v3705 = vrcp.pop %v3417
        %v3706 = vrcp.pop %v3420
        %v3707 = vrcp.pop %v3423
        %v3708 = vrcp.pop %v3426
        %v3709 = vrcp.pop %v3429
        %v3710 = vrcp.pop %v3432
        %v3711 = vrcp.pop %v3435
        %v3712 = vrcp.pop %v3438
        %v3713 = vrcp.pop %v3441
        %v3714 = vrcp.pop %v3444
        %v3715 = vrcp.pop %v3447
        %v3716 = vrcp.pop %v3450
        %v3717 = vrcp.pop %v3453
        %v3718 = vrcp.pop %v3456
        %v3719 = vrcp.pop %v3459
        %v3720 = vrcp.pop %v3462
        %v3721 = vrcp.pop %v3465
        %v3722 = vrcp.pop %v3468
        %v3723 = vrcp.pop %v3471
        %v3724 = vrcp.pop %v3474
        %v3725 = vrcp.pop %v3477
        %v3726 = vrcp.pop %v3480
        %v3727 = vrcp.pop %v3483
        %v3728 = vrcp.pop %v3486
        %v3729 = vrcp.pop %v3489
        %v3730 = vrcp.pop %v3492
        %v3731 = vrcp.pop %v3495
        %v3732 = vrcp.pop %v3498
        %v3733 = vrcp.pop %v3501
        %v3734 = vrcp.pop %v3504
        %v3735 = vrcp.pop %v3507
        %v3736 = vrcp.pop %v3510
        %v3737 = vrcp.pop %v3513
        %v3738 = vrcp.pop %v3516
        %v3739 = vrcp.pop %v3519
        %v3740 = vrcp.pop %v3522
        %v3741 = vrcp.pop %v3525
        %v3742 = vrcp.pop %v3528
        %v3743 = vrcp.pop %v3531
        %v3744 = vrcp.pop %v3534
        %v3745 = vrcp.pop %v3537
        %v3746 = vrcp.pop %v3540
        %v3747 = vrcp.pop %v3543
        %v3748 = vrcp.pop %v3546
        %v3749 = vrcp.pop %v3549
        %v3750 = vrcp.pop %v3552
        %v3751 = vrcp.pop %v3555
        %v3752 = vrcp.pop %v3558
        %v3753 = vrcp.pop %v3561
        %v3754 = vrcp.pop %v3564
        %v3755 = vrcp.pop %v3567
        %v3756 = vrcp.pop %v3570
        %v3757 = vrcp.pop %v3573
        %v3758 = vrcp.pop %v3576
        %v3759 = vrcp.pop %v3579
        %v3760 = vrcp.pop %v3582
        %v3761 = vrcp.pop %v3585
        %v3762 = vrcp.pop %v3588
        %v3763 = vrcp.pop %v3591
        %v3764 = vrcp.pop %v3594
        %v3765 = vrcp.pop %v3597
        %v3766 = vrcp.pop %v3600
        %v3767 = vrcp.pop %v3603
        %v3768 = vrcp.pop %v3606
        %v3769 = vrcp.pop %v3609
        %v3770 = vrcp.pop %v3612
        %v3771 = vrcp.pop %v3615
        %v3772 = vrcp.pop %v3618
        %v3773 = vrcp.pop %v3621
        %v3774 = vrcp.pop %v3624
        %v3775 = vrcp.pop %v3627
        %v3776 = vrcp.pop %v3630
        %v3777 = vrcp.pop %v3633
        %v3778 = vrcp.pop %v3636
        %v3779 = vrcp.pop %v3639
        %v3780 = vrcp.pop %v3642
        %v3781 = vrcp.pop %v3645
        %v3782 = vrcp.pop %v3648
        %v3783 = vrcp.pop %v3651
        %v3784 = vrcp.pop %v3654
        %v3785 = vrcp.pop %v3657
        %v3786 = vmul.f32 %v3019, %v3658
        %v3787 = vmul.f32 %v3021, %v3659
        %v3788 = vmul.f32 %v3023, %v3660
        %v3789 = vmul.f32 %v3025, %v3661
        %v3790 = vmul.f32 %v3027, %v3662
        %v3791 = vmul.f32 %v3029, %v3663
        %v3792 = vmul.f32 %v3031, %v3664
        %v3793 = vmul.f32 %v3033, %v3665
        %v3794 = vmul.f32 %v3035, %v3666
        %v3795 = vmul.f32 %v3037, %v3667
        %v3796 = vmul.f32 %v3039, %v3668
        %v3797 = vmul.f32 %v3041, %v3669
        %v3798 = vmul.f32 %v3043, %v3670
        %v3799 = vmul.f32 %v3045, %v3671
        %v3800 = vmul.f32 %v3047, %v3672
        %v3801 = vmul.f32 %v3049, %v3673
        %v3802 = vmul.f32 %v3051, %v3674
        %v3803 = vmul.f32 %v3053, %v3675
        %v3804 = vmul.f32 %v3055, %v3676
        %v3805 = vmul.f32 %v3057, %v3677
        %v3806 = vmul.f32 %v3059, %v3678
        %v3807 = vmul.f32 %v3061, %v3679
        %v3808 = vmul.f32 %v3063, %v3680
        %v3809 = vmul.f32 %v3065, %v3681
        %v3810 = vmul.f32 %v3067, %v3682
        %v3811 = vmul.f32 %v3069, %v3683
        %v3812 = vmul.f32 %v3071, %v3684
        %v3813 = vmul.f32 %v3073, %v3685
        %v3814 = vmul.f32 %v3075, %v3686
        %v3815 = vmul.f32 %v3077, %v3687
        %v3816 = vmul.f32 %v3079, %v3688
        %v3817 = vmul.f32 %v3081, %v3689
        %v3818 = vmul.f32 %v3083, %v3690
        %v3819 = vmul.f32 %v3085, %v3691
        %v3820 = vmul.f32 %v3087, %v3692
        %v3821 = vmul.f32 %v3089, %v3693
        %v3822 = vmul.f32 %v3091, %v3694
        %v3823 = vmul.f32 %v3093, %v3695
        %v3824 = vmul.f32 %v3095, %v3696
        %v3825 = vmul.f32 %v3097, %v3697
        %v3826 = vmul.f32 %v3099, %v3698
        %v3827 = vmul.f32 %v3101, %v3699
        %v3828 = vmul.f32 %v3103, %v3700
        %v3829 = vmul.f32 %v3105, %v3701
        %v3830 = vmul.f32 %v3107, %v3702
        %v3831 = vmul.f32 %v3109, %v3703
        %v3832 = vmul.f32 %v3111, %v3704
        %v3833 = vmul.f32 %v3113, %v3705
        %v3834 = vmul.f32 %v3115, %v3706
        %v3835 = vmul.f32 %v3117, %v3707
        %v3836 = vmul.f32 %v3119, %v3708
        %v3837 = vmul.f32 %v3121, %v3709
        %v3838 = vmul.f32 %v3123, %v3710
        %v3839 = vmul.f32 %v3125, %v3711
        %v3840 = vmul.f32 %v3127, %v3712
        %v3841 = vmul.f32 %v3129, %v3713
        %v3842 = vmul.f32 %v3131, %v3714
        %v3843 = vmul.f32 %v3133, %v3715
        %v3844 = vmul.f32 %v3135, %v3716
        %v3845 = vmul.f32 %v3137, %v3717
        %v3846 = vmul.f32 %v3139, %v3718
        %v3847 = vmul.f32 %v3141, %v3719
        %v3848 = vmul.f32 %v3143, %v3720
        %v3849 = vmul.f32 %v3145, %v3721
        %v3850 = vmul.f32 %v3147, %v3722
        %v3851 = vmul.f32 %v3149, %v3723
        %v3852 = vmul.f32 %v3151, %v3724
        %v3853 = vmul.f32 %v3153, %v3725
        %v3854 = vmul.f32 %v3155, %v3726
        %v3855 = vmul.f32 %v3157, %v3727
        %v3856 = vmul.f32 %v3159, %v3728
        %v3857 = vmul.f32 %v3161, %v3729
        %v3858 = vmul.f32 %v3163, %v3730
        %v3859 = vmul.f32 %v3165, %v3731
        %v3860 = vmul.f32 %v3167, %v3732
        %v3861 = vmul.f32 %v3169, %v3733
        %v3862 = vmul.f32 %v3171, %v3734
        %v3863 = vmul.f32 %v3173, %v3735
        %v3864 = vmul.f32 %v3175, %v3736
        %v3865 = vmul.f32 %v3177, %v3737
        %v3866 = vmul.f32 %v3179, %v3738
        %v3867 = vmul.f32 %v3181, %v3739
        %v3868 = vmul.f32 %v3183, %v3740
        %v3869 = vmul.f32 %v3185, %v3741
        %v3870 = vmul.f32 %v3187, %v3742
        %v3871 = vmul.f32 %v3189, %v3743
        %v3872 = vmul.f32 %v3191, %v3744
        %v3873 = vmul.f32 %v3193, %v3745
        %v3874 = vmul.f32 %v3195, %v3746
        %v3875 = vmul.f32 %v3197, %v3747
        %v3876 = vmul.f32 %v3199, %v3748
        %v3877 = vmul.f32 %v3201, %v3749
        %v3878 = vmul.f32 %v3203, %v3750
        %v3879 = vmul.f32 %v3205, %v3751
        %v3880 = vmul.f32 %v3207, %v3752
        %v3881 = vmul.f32 %v3209, %v3753
        %v3882 = vmul.f32 %v3211, %v3754
        %v3883 = vmul.f32 %v3213, %v3755
        %v3884 = vmul.f32 %v3215, %v3756
        %v3885 = vmul.f32 %v3217, %v3757
        %v3886 = vmul.f32 %v3219, %v3758
        %v3887 = vmul.f32 %v3221, %v3759
        %v3888 = vmul.f32 %v3223, %v3760
        %v3889 = vmul.f32 %v3225, %v3761
        %v3890 = vmul.f32 %v3227, %v3762
        %v3891 = vmul.f32 %v3229, %v3763
        %v3892 = vmul.f32 %v3231, %v3764
        %v3893 = vmul.f32 %v3233, %v3765
        %v3894 = vmul.f32 %v3235, %v3766
        %v3895 = vmul.f32 %v3237, %v3767
        %v3896 = vmul.f32 %v3239, %v3768
        %v3897 = vmul.f32 %v3241, %v3769
        %v3898 = vmul.f32 %v3243, %v3770
        %v3899 = vmul.f32 %v3245, %v3771
        %v3900 = vmul.f32 %v3247, %v3772
        %v3901 = vmul.f32 %v3249, %v3773
        %v3902 = vmul.f32 %v3251, %v3774
        %v3903 = vmul.f32 %v3253, %v3775
        %v3904 = vmul.f32 %v3255, %v3776
        %v3905 = vmul.f32 %v3257, %v3777
        %v3906 = vmul.f32 %v3259, %v3778
        %v3907 = vmul.f32 %v3261, %v3779
        %v3908 = vmul.f32 %v3263, %v3780
        %v3909 = vmul.f32 %v3265, %v3781
        %v3910 = vmul.f32 %v3267, %v3782
        %v3911 = vmul.f32 %v3269, %v3783
        %v3912 = vmul.f32 %v3271, %v3784
        %v3913 = vmul.f32 %v3273, %v3785
        %v3914 = vpack.c.bf16 %v3787, %v3786
        %v3915 = vpack.c.bf16 %v3789, %v3788
        %v3916 = vpack.c.bf16 %v3791, %v3790
        %v3917 = vpack.c.bf16 %v3793, %v3792
        %v3918 = vpack.c.bf16 %v3795, %v3794
        %v3919 = vpack.c.bf16 %v3797, %v3796
        %v3920 = vpack.c.bf16 %v3799, %v3798
        %v3921 = vpack.c.bf16 %v3801, %v3800
        %v3922 = vpack.c.bf16 %v3803, %v3802
        %v3923 = vpack.c.bf16 %v3805, %v3804
        %v3924 = vpack.c.bf16 %v3807, %v3806
        %v3925 = vpack.c.bf16 %v3809, %v3808
        %v3926 = vpack.c.bf16 %v3811, %v3810
        %v3927 = vpack.c.bf16 %v3813, %v3812
        %v3928 = vpack.c.bf16 %v3815, %v3814
        %v3929 = vpack.c.bf16 %v3817, %v3816
        %v3930 = vpack.c.bf16 %v3819, %v3818
        %v3931 = vpack.c.bf16 %v3821, %v3820
        %v3932 = vpack.c.bf16 %v3823, %v3822
        %v3933 = vpack.c.bf16 %v3825, %v3824
        %v3934 = vpack.c.bf16 %v3827, %v3826
        %v3935 = vpack.c.bf16 %v3829, %v3828
        %v3936 = vpack.c.bf16 %v3831, %v3830
        %v3937 = vpack.c.bf16 %v3833, %v3832
        %v3938 = vpack.c.bf16 %v3835, %v3834
        %v3939 = vpack.c.bf16 %v3837, %v3836
        %v3940 = vpack.c.bf16 %v3839, %v3838
        %v3941 = vpack.c.bf16 %v3841, %v3840
        %v3942 = vpack.c.bf16 %v3843, %v3842
        %v3943 = vpack.c.bf16 %v3845, %v3844
        %v3944 = vpack.c.bf16 %v3847, %v3846
        %v3945 = vpack.c.bf16 %v3849, %v3848
        %v3946 = vpack.c.bf16 %v3851, %v3850
        %v3947 = vpack.c.bf16 %v3853, %v3852
        %v3948 = vpack.c.bf16 %v3855, %v3854
        %v3949 = vpack.c.bf16 %v3857, %v3856
        %v3950 = vpack.c.bf16 %v3859, %v3858
        %v3951 = vpack.c.bf16 %v3861, %v3860
        %v3952 = vpack.c.bf16 %v3863, %v3862
        %v3953 = vpack.c.bf16 %v3865, %v3864
        %v3954 = vpack.c.bf16 %v3867, %v3866
        %v3955 = vpack.c.bf16 %v3869, %v3868
        %v3956 = vpack.c.bf16 %v3871, %v3870
        %v3957 = vpack.c.bf16 %v3873, %v3872
        %v3958 = vpack.c.bf16 %v3875, %v3874
        %v3959 = vpack.c.bf16 %v3877, %v3876
        %v3960 = vpack.c.bf16 %v3879, %v3878
        %v3961 = vpack.c.bf16 %v3881, %v3880
        %v3962 = vpack.c.bf16 %v3883, %v3882
        %v3963 = vpack.c.bf16 %v3885, %v3884
        %v3964 = vpack.c.bf16 %v3887, %v3886
        %v3965 = vpack.c.bf16 %v3889, %v3888
        %v3966 = vpack.c.bf16 %v3891, %v3890
        %v3967 = vpack.c.bf16 %v3893, %v3892
        %v3968 = vpack.c.bf16 %v3895, %v3894
        %v3969 = vpack.c.bf16 %v3897, %v3896
        %v3970 = vpack.c.bf16 %v3899, %v3898
        %v3971 = vpack.c.bf16 %v3901, %v3900
        %v3972 = vpack.c.bf16 %v3903, %v3902
        %v3973 = vpack.c.bf16 %v3905, %v3904
        %v3974 = vpack.c.bf16 %v3907, %v3906
        %v3975 = vpack.c.bf16 %v3909, %v3908
        %v3976 = vpack.c.bf16 %v3911, %v3910
        %v3977 = vpack.c.bf16 %v3913, %v3912
        %v3979 = vsel %vm2505, %v3914, 0
        %v3982 = vsel %vm2505, %v3915, 0
        %v3985 = vsel %vm2505, %v3916, 0
        %v3988 = vsel %vm2505, %v3917, 0
        %3990 = vmatprep.subr.bf16.mxu0 0
        %3991 = vmatpush1.bf16.msra.mxu0 %v620
        %3992 = vmatprep.subr.bf16.mxu0 0
        %3993 = vmatpush1.bf16.msra.mxu0 0
        %3994 = vmatprep.subr.bf16.mxu0 0
        %3995 = vmatpush1.bf16.msra.mxu0 0
        %3996 = vmatprep.subr.bf16.mxu0 0
        %3997 = vmatpush1.bf16.msra.mxu0 0
        %3998 = vmatprep.subr.bf16.mxu0 0
        %3999 = vmatpush1.bf16.msra.mxu0 0
        %4000 = vmatprep.subr.bf16.mxu0 0
        %4001 = vmatpush1.bf16.msra.mxu0 0
        %4002 = vmatprep.subr.bf16.mxu0 0
        %4003 = vmatpush1.bf16.msra.mxu0 0
        %4004 = vmatprep.subr.bf16.mxu0 0
        %4005 = vmatpush1.bf16.msra.mxu0 0
        %4006 = vmatprep.subr.bf16.mxu0 0
        %4007 = vmatpush1.bf16.msra.mxu0 0
        %4008 = vmatprep.subr.bf16.mxu0 0
        %4009 = vmatpush1.bf16.msra.mxu0 0
        %4010 = vmatprep.subr.bf16.mxu0 0
        %4011 = vmatpush1.bf16.msra.mxu0 0
        %4012 = vmatprep.subr.bf16.mxu0 0
        %4013 = vmatpush1.bf16.msra.mxu0 0
        %4014 = vmatprep.subr.bf16.mxu0 0
        %4015 = vmatpush1.bf16.msra.mxu0 0
        %4016 = vmatprep.subr.bf16.mxu0 0
        %4017 = vmatpush1.bf16.msra.mxu0 0
        %4018 = vmatprep.subr.bf16.mxu0 0
        %4019 = vmatpush1.bf16.msra.mxu0 0
        %4020 = vmatprep.subr.bf16.mxu0 0
        %4021 = vmatpush1.bf16.msra.mxu0 0
        %4022 = vmatprep.mubr.bf16.mxu0 0
        %4023 = vmatmul.mubr.bf16.gmra.mrb[0].mxu0 %v3979
        %v4024 = vpop.f32.mrb[0].mxu0
        %v4025 = vadd.f32 0.0, %v4024
        %v4026 = vpop.f32.mrb[0].mxu0
        %v4027 = vpop.f32.mrb[0].mxu0
        %v4028 = vadd.f32 0.0, %v4027
        %v4029 = vpop.f32.mrb[0].mxu0
        %4030 = vmatprep.mubr.bf16.mxu0 0
        %4031 = vmatmul.mubr.bf16.gmra.mrb[0].mxu0 %v3982
        %v4032 = vpop.f32.mrb[0].mxu0
        %v4033 = vadd.f32 0.0, %v4032
        %v4034 = vpop.f32.mrb[0].mxu0
        %v4035 = vpop.f32.mrb[0].mxu0
        %v4036 = vadd.f32 0.0, %v4035
        %v4037 = vpop.f32.mrb[0].mxu0
        %4038 = vmatprep.mubr.bf16.mxu0 0
        %4039 = vmatmul.mubr.bf16.gmra.mrb[0].mxu0 %v3985
        %v4040 = vpop.f32.mrb[0].mxu0
        %v4041 = vadd.f32 0.0, %v4040
        %v4042 = vpop.f32.mrb[0].mxu0
        %v4043 = vpop.f32.mrb[0].mxu0
        %v4044 = vadd.f32 0.0, %v4043
        %v4045 = vpop.f32.mrb[0].mxu0
        %4046 = vmatprep.mubr.bf16.mxu0 0
        %4047 = vmatmul.mubr.bf16.gmra.mrb[0].mxu0 %v3988
        %v4048 = vpop.f32.mrb[0].mxu0
        %v4049 = vadd.f32 0.0, %v4048
        %v4050 = vpop.f32.mrb[0].mxu0
        %v4051 = vpop.f32.mrb[0].mxu0
        %v4052 = vadd.f32 0.0, %v4051
        %v4053 = vpop.f32.mrb[0].mxu0
        %4054 = vdwg.mxu0
        %v4056 = vsel %vm2505, %v3918, 0
        %v4059 = vsel %vm2505, %v3919, 0
        %v4062 = vsel %vm2505, %v3920, 0
        %v4065 = vsel %vm2505, %v3921, 0
        %4067 = vmatprep.subr.bf16.mxu0 0
        %4068 = vmatpush1.bf16.msra.mxu0 %v620
        %4069 = vmatprep.subr.bf16.mxu0 0
        %4070 = vmatpush1.bf16.msra.mxu0 0
        %4071 = vmatprep.subr.bf16.mxu0 0
        %4072 = vmatpush1.bf16.msra.mxu0 0
        %4073 = vmatprep.subr.bf16.mxu0 0
        %4074 = vmatpush1.bf16.msra.mxu0 0
        %4075 = vmatprep.subr.bf16.mxu0 0
        %4076 = vmatpush1.bf16.msra.mxu0 0
        %4077 = vmatprep.subr.bf16.mxu0 0
        %4078 = vmatpush1.bf16.msra.mxu0 0
        %4079 = vmatprep.subr.bf16.mxu0 0
        %4080 = vmatpush1.bf16.msra.mxu0 0
        %4081 = vmatprep.subr.bf16.mxu0 0
        %4082 = vmatpush1.bf16.msra.mxu0 0
        %4083 = vmatprep.subr.bf16.mxu0 0
        %4084 = vmatpush1.bf16.msra.mxu0 0
        %4085 = vmatprep.subr.bf16.mxu0 0
        %4086 = vmatpush1.bf16.msra.mxu0 0
        %4087 = vmatprep.subr.bf16.mxu0 0
        %4088 = vmatpush1.bf16.msra.mxu0 0
        %4089 = vmatprep.subr.bf16.mxu0 0
        %4090 = vmatpush1.bf16.msra.mxu0 0
        %4091 = vmatprep.subr.bf16.mxu0 0
        %4092 = vmatpush1.bf16.msra.mxu0 0
        %4093 = vmatprep.subr.bf16.mxu0 0
        %4094 = vmatpush1.bf16.msra.mxu0 0
        %4095 = vmatprep.subr.bf16.mxu0 0
        %4096 = vmatpush1.bf16.msra.mxu0 0
        %4097 = vmatprep.subr.bf16.mxu0 0
        %4098 = vmatpush1.bf16.msra.mxu0 0
        %4099 = vmatprep.mubr.bf16.mxu0 0
        %4100 = vmatmul.mubr.bf16.gmra.mrb[0].mxu0 %v4056
        %v4101 = vpop.f32.mrb[0].mxu0
        %v4102 = vadd.f32 0.0, %v4101
        %v4103 = vpop.f32.mrb[0].mxu0
        %v4104 = vpop.f32.mrb[0].mxu0
        %v4105 = vadd.f32 0.0, %v4104
        %v4106 = vpop.f32.mrb[0].mxu0
        %4107 = vmatprep.mubr.bf16.mxu0 0
        %4108 = vmatmul.mubr.bf16.gmra.mrb[0].mxu0 %v4059
        %v4109 = vpop.f32.mrb[0].mxu0
        %v4110 = vadd.f32 0.0, %v4109
        %v4111 = vpop.f32.mrb[0].mxu0
        %v4112 = vpop.f32.mrb[0].mxu0
        %v4113 = vadd.f32 0.0, %v4112
        %v4114 = vpop.f32.mrb[0].mxu0
        %4115 = vmatprep.mubr.bf16.mxu0 0
        %4116 = vmatmul.mubr.bf16.gmra.mrb[0].mxu0 %v4062
        %v4117 = vpop.f32.mrb[0].mxu0
        %v4118 = vadd.f32 0.0, %v4117
        %v4119 = vpop.f32.mrb[0].mxu0
        %v4120 = vpop.f32.mrb[0].mxu0
        %v4121 = vadd.f32 0.0, %v4120
        %v4122 = vpop.f32.mrb[0].mxu0
        %4123 = vmatprep.mubr.bf16.mxu0 0
        %4124 = vmatmul.mubr.bf16.gmra.mrb[0].mxu0 %v4065
        %v4125 = vpop.f32.mrb[0].mxu0
        %v4126 = vadd.f32 0.0, %v4125
        %v4127 = vpop.f32.mrb[0].mxu0
        %v4128 = vpop.f32.mrb[0].mxu0
        %v4129 = vadd.f32 0.0, %v4128
        %v4130 = vpop.f32.mrb[0].mxu0
        %4131 = vdwg.mxu0
        %v4133 = vsel %vm2505, %v3922, 0
        %v4136 = vsel %vm2505, %v3923, 0
        %v4139 = vsel %vm2505, %v3924, 0
        %v4142 = vsel %vm2505, %v3925, 0
        %4144 = vmatprep.subr.bf16.mxu0 0
        %4145 = vmatpush1.bf16.msra.mxu0 %v620
        %4146 = vmatprep.subr.bf16.mxu0 0
        %4147 = vmatpush1.bf16.msra.mxu0 0
        %4148 = vmatprep.subr.bf16.mxu0 0
        %4149 = vmatpush1.bf16.msra.mxu0 0
        %4150 = vmatprep.subr.bf16.mxu0 0
        %4151 = vmatpush1.bf16.msra.mxu0 0
        %4152 = vmatprep.subr.bf16.mxu0 0
        %4153 = vmatpush1.bf16.msra.mxu0 0
        %4154 = vmatprep.subr.bf16.mxu0 0
        %4155 = vmatpush1.bf16.msra.mxu0 0
        %4156 = vmatprep.subr.bf16.mxu0 0
        %4157 = vmatpush1.bf16.msra.mxu0 0
        %4158 = vmatprep.subr.bf16.mxu0 0
        %4159 = vmatpush1.bf16.msra.mxu0 0
        %4160 = vmatprep.subr.bf16.mxu0 0
        %4161 = vmatpush1.bf16.msra.mxu0 0
        %4162 = vmatprep.subr.bf16.mxu0 0
        %4163 = vmatpush1.bf16.msra.mxu0 0
        %4164 = vmatprep.subr.bf16.mxu0 0
        %4165 = vmatpush1.bf16.msra.mxu0 0
        %4166 = vmatprep.subr.bf16.mxu0 0
        %4167 = vmatpush1.bf16.msra.mxu0 0
        %4168 = vmatprep.subr.bf16.mxu0 0
        %4169 = vmatpush1.bf16.msra.mxu0 0
        %4170 = vmatprep.subr.bf16.mxu0 0
        %4171 = vmatpush1.bf16.msra.mxu0 0
        %4172 = vmatprep.subr.bf16.mxu0 0
        %4173 = vmatpush1.bf16.msra.mxu0 0
        %4174 = vmatprep.subr.bf16.mxu0 0
        %4175 = vmatpush1.bf16.msra.mxu0 0
        %4176 = vmatprep.mubr.bf16.mxu0 0
        %4177 = vmatmul.mubr.bf16.gmra.mrb[0].mxu0 %v4133
        %v4178 = vpop.f32.mrb[0].mxu0
        %v4179 = vadd.f32 0.0, %v4178
        %v4180 = vpop.f32.mrb[0].mxu0
        %v4181 = vpop.f32.mrb[0].mxu0
        %v4182 = vadd.f32 0.0, %v4181
        %v4183 = vpop.f32.mrb[0].mxu0
        %4184 = vmatprep.mubr.bf16.mxu0 0
        %4185 = vmatmul.mubr.bf16.gmra.mrb[0].mxu0 %v4136
        %v4186 = vpop.f32.mrb[0].mxu0
        %v4187 = vadd.f32 0.0, %v4186
        %v4188 = vpop.f32.mrb[0].mxu0
        %v4189 = vpop.f32.mrb[0].mxu0
        %v4190 = vadd.f32 0.0, %v4189
        %v4191 = vpop.f32.mrb[0].mxu0
        %4192 = vmatprep.mubr.bf16.mxu0 0
        %4193 = vmatmul.mubr.bf16.gmra.mrb[0].mxu0 %v4139
        %v4194 = vpop.f32.mrb[0].mxu0
        %v4195 = vadd.f32 0.0, %v4194
        %v4196 = vpop.f32.mrb[0].mxu0
        %v4197 = vpop.f32.mrb[0].mxu0
        %v4198 = vadd.f32 0.0, %v4197
        %v4199 = vpop.f32.mrb[0].mxu0
        %4200 = vmatprep.mubr.bf16.mxu0 0
        %4201 = vmatmul.mubr.bf16.gmra.mrb[0].mxu0 %v4142
        %v4202 = vpop.f32.mrb[0].mxu0
        %v4203 = vadd.f32 0.0, %v4202
        %v4204 = vpop.f32.mrb[0].mxu0
        %v4205 = vpop.f32.mrb[0].mxu0
        %v4206 = vadd.f32 0.0, %v4205
        %v4207 = vpop.f32.mrb[0].mxu0
        %4208 = vdwg.mxu0
        %v4210 = vsel %vm2505, %v3926, 0
        %v4213 = vsel %vm2505, %v3927, 0
        %v4216 = vsel %vm2505, %v3928, 0
        %v4219 = vsel %vm2505, %v3929, 0
        %4221 = vmatprep.subr.bf16.mxu0 0
        %4222 = vmatpush1.bf16.msra.mxu0 %v620
        %4223 = vmatprep.subr.bf16.mxu0 0
        %4224 = vmatpush1.bf16.msra.mxu0 0
        %4225 = vmatprep.subr.bf16.mxu0 0
        %4226 = vmatpush1.bf16.msra.mxu0 0
        %4227 = vmatprep.subr.bf16.mxu0 0
        %4228 = vmatpush1.bf16.msra.mxu0 0
        %4229 = vmatprep.subr.bf16.mxu0 0
        %4230 = vmatpush1.bf16.msra.mxu0 0
        %4231 = vmatprep.subr.bf16.mxu0 0
        %4232 = vmatpush1.bf16.msra.mxu0 0
        %4233 = vmatprep.subr.bf16.mxu0 0
        %4234 = vmatpush1.bf16.msra.mxu0 0
        %4235 = vmatprep.subr.bf16.mxu0 0
        %4236 = vmatpush1.bf16.msra.mxu0 0
        %4237 = vmatprep.subr.bf16.mxu0 0
        %4238 = vmatpush1.bf16.msra.mxu0 0
        %4239 = vmatprep.subr.bf16.mxu0 0
        %4240 = vmatpush1.bf16.msra.mxu0 0
        %4241 = vmatprep.subr.bf16.mxu0 0
        %4242 = vmatpush1.bf16.msra.mxu0 0
        %4243 = vmatprep.subr.bf16.mxu0 0
        %4244 = vmatpush1.bf16.msra.mxu0 0
        %4245 = vmatprep.subr.bf16.mxu0 0
        %4246 = vmatpush1.bf16.msra.mxu0 0
        %4247 = vmatprep.subr.bf16.mxu0 0
        %4248 = vmatpush1.bf16.msra.mxu0 0
        %4249 = vmatprep.subr.bf16.mxu0 0
        %4250 = vmatpush1.bf16.msra.mxu0 0
        %4251 = vmatprep.subr.bf16.mxu0 0
        %4252 = vmatpush1.bf16.msra.mxu0 0
        %4253 = vmatprep.mubr.bf16.mxu0 0
        %4254 = vmatmul.mubr.bf16.gmra.mrb[0].mxu0 %v4210
        %v4255 = vpop.f32.mrb[0].mxu0
        %v4256 = vadd.f32 0.0, %v4255
        %v4257 = vpop.f32.mrb[0].mxu0
        %v4258 = vpop.f32.mrb[0].mxu0
        %v4259 = vadd.f32 0.0, %v4258
        %v4260 = vpop.f32.mrb[0].mxu0
        %4261 = vmatprep.mubr.bf16.mxu0 0
        %4262 = vmatmul.mubr.bf16.gmra.mrb[0].mxu0 %v4213
        %v4263 = vpop.f32.mrb[0].mxu0
        %v4264 = vadd.f32 0.0, %v4263
        %v4265 = vpop.f32.mrb[0].mxu0
        %v4266 = vpop.f32.mrb[0].mxu0
        %v4267 = vadd.f32 0.0, %v4266
        %v4268 = vpop.f32.mrb[0].mxu0
        %4269 = vmatprep.mubr.bf16.mxu0 0
        %4270 = vmatmul.mubr.bf16.gmra.mrb[0].mxu0 %v4216
        %v4271 = vpop.f32.mrb[0].mxu0
        %v4272 = vadd.f32 0.0, %v4271
        %v4273 = vpop.f32.mrb[0].mxu0
        %v4274 = vpop.f32.mrb[0].mxu0
        %v4275 = vadd.f32 0.0, %v4274
        %v4276 = vpop.f32.mrb[0].mxu0
        %4277 = vmatprep.mubr.bf16.mxu0 0
        %4278 = vmatmul.mubr.bf16.gmra.mrb[0].mxu0 %v4219
        %v4279 = vpop.f32.mrb[0].mxu0
        %v4280 = vadd.f32 0.0, %v4279
        %v4281 = vpop.f32.mrb[0].mxu0
        %v4282 = vpop.f32.mrb[0].mxu0
        %v4283 = vadd.f32 0.0, %v4282
        %v4284 = vpop.f32.mrb[0].mxu0
        %4285 = vdwg.mxu0
        %v4287 = vsel %vm2505, %v3930, 0
        %v4290 = vsel %vm2505, %v3931, 0
        %v4293 = vsel %vm2505, %v3932, 0
        %v4296 = vsel %vm2505, %v3933, 0
        %4298 = vmatprep.subr.bf16.mxu0 0
        %4299 = vmatpush1.bf16.msra.mxu0 %v620
        %4300 = vmatprep.subr.bf16.mxu0 0
        %4301 = vmatpush1.bf16.msra.mxu0 0
        %4302 = vmatprep.subr.bf16.mxu0 0
        %4303 = vmatpush1.bf16.msra.mxu0 0
        %4304 = vmatprep.subr.bf16.mxu0 0
        %4305 = vmatpush1.bf16.msra.mxu0 0
        %4306 = vmatprep.subr.bf16.mxu0 0
        %4307 = vmatpush1.bf16.msra.mxu0 0
        %4308 = vmatprep.subr.bf16.mxu0 0
        %4309 = vmatpush1.bf16.msra.mxu0 0
        %4310 = vmatprep.subr.bf16.mxu0 0
        %4311 = vmatpush1.bf16.msra.mxu0 0
        %4312 = vmatprep.subr.bf16.mxu0 0
        %4313 = vmatpush1.bf16.msra.mxu0 0
        %4314 = vmatprep.subr.bf16.mxu0 0
        %4315 = vmatpush1.bf16.msra.mxu0 0
        %4316 = vmatprep.subr.bf16.mxu0 0
        %4317 = vmatpush1.bf16.msra.mxu0 0
        %4318 = vmatprep.subr.bf16.mxu0 0
        %4319 = vmatpush1.bf16.msra.mxu0 0
        %4320 = vmatprep.subr.bf16.mxu0 0
        %4321 = vmatpush1.bf16.msra.mxu0 0
        %4322 = vmatprep.subr.bf16.mxu0 0
        %4323 = vmatpush1.bf16.msra.mxu0 0
        %4324 = vmatprep.subr.bf16.mxu0 0
        %4325 = vmatpush1.bf16.msra.mxu0 0
        %4326 = vmatprep.subr.bf16.mxu0 0
        %4327 = vmatpush1.bf16.msra.mxu0 0
        %4328 = vmatprep.subr.bf16.mxu0 0
        %4329 = vmatpush1.bf16.msra.mxu0 0
        %4330 = vmatprep.mubr.bf16.mxu0 0
        %4331 = vmatmul.mubr.bf16.gmra.mrb[0].mxu0 %v4287
        %v4332 = vpop.f32.mrb[0].mxu0
        %v4333 = vadd.f32 0.0, %v4332
        %v4334 = vpop.f32.mrb[0].mxu0
        %v4335 = vpop.f32.mrb[0].mxu0
        %v4336 = vadd.f32 0.0, %v4335
        %v4337 = vpop.f32.mrb[0].mxu0
        %4338 = vmatprep.mubr.bf16.mxu0 0
        %4339 = vmatmul.mubr.bf16.gmra.mrb[0].mxu0 %v4290
        %v4340 = vpop.f32.mrb[0].mxu0
        %v4341 = vadd.f32 0.0, %v4340
        %v4342 = vpop.f32.mrb[0].mxu0
        %v4343 = vpop.f32.mrb[0].mxu0
        %v4344 = vadd.f32 0.0, %v4343
        %v4345 = vpop.f32.mrb[0].mxu0
        %4346 = vmatprep.mubr.bf16.mxu0 0
        %4347 = vmatmul.mubr.bf16.gmra.mrb[0].mxu0 %v4293
        %v4348 = vpop.f32.mrb[0].mxu0
        %v4349 = vadd.f32 0.0, %v4348
        %v4350 = vpop.f32.mrb[0].mxu0
        %v4351 = vpop.f32.mrb[0].mxu0
        %v4352 = vadd.f32 0.0, %v4351
        %v4353 = vpop.f32.mrb[0].mxu0
        %4354 = vmatprep.mubr.bf16.mxu0 0
        %4355 = vmatmul.mubr.bf16.gmra.mrb[0].mxu0 %v4296
        %v4356 = vpop.f32.mrb[0].mxu0
        %v4357 = vadd.f32 0.0, %v4356
        %v4358 = vpop.f32.mrb[0].mxu0
        %v4359 = vpop.f32.mrb[0].mxu0
        %v4360 = vadd.f32 0.0, %v4359
        %v4361 = vpop.f32.mrb[0].mxu0
        %4362 = vdwg.mxu0
        %v4364 = vsel %vm2505, %v3934, 0
        %v4367 = vsel %vm2505, %v3935, 0
        %v4370 = vsel %vm2505, %v3936, 0
        %v4373 = vsel %vm2505, %v3937, 0
        %4375 = vmatprep.subr.bf16.mxu0 0
        %4376 = vmatpush1.bf16.msra.mxu0 %v620
        %4377 = vmatprep.subr.bf16.mxu0 0
        %4378 = vmatpush1.bf16.msra.mxu0 0
        %4379 = vmatprep.subr.bf16.mxu0 0
        %4380 = vmatpush1.bf16.msra.mxu0 0
        %4381 = vmatprep.subr.bf16.mxu0 0
        %4382 = vmatpush1.bf16.msra.mxu0 0
        %4383 = vmatprep.subr.bf16.mxu0 0
        %4384 = vmatpush1.bf16.msra.mxu0 0
        %4385 = vmatprep.subr.bf16.mxu0 0
        %4386 = vmatpush1.bf16.msra.mxu0 0
        %4387 = vmatprep.subr.bf16.mxu0 0
        %4388 = vmatpush1.bf16.msra.mxu0 0
        %4389 = vmatprep.subr.bf16.mxu0 0
        %4390 = vmatpush1.bf16.msra.mxu0 0
        %4391 = vmatprep.subr.bf16.mxu0 0
        %4392 = vmatpush1.bf16.msra.mxu0 0
        %4393 = vmatprep.subr.bf16.mxu0 0
        %4394 = vmatpush1.bf16.msra.mxu0 0
        %4395 = vmatprep.subr.bf16.mxu0 0
        %4396 = vmatpush1.bf16.msra.mxu0 0
        %4397 = vmatprep.subr.bf16.mxu0 0
        %4398 = vmatpush1.bf16.msra.mxu0 0
        %4399 = vmatprep.subr.bf16.mxu0 0
        %4400 = vmatpush1.bf16.msra.mxu0 0
        %4401 = vmatprep.subr.bf16.mxu0 0
        %4402 = vmatpush1.bf16.msra.mxu0 0
        %4403 = vmatprep.subr.bf16.mxu0 0
        %4404 = vmatpush1.bf16.msra.mxu0 0
        %4405 = vmatprep.subr.bf16.mxu0 0
        %4406 = vmatpush1.bf16.msra.mxu0 0
        %4407 = vmatprep.mubr.bf16.mxu0 0
        %4408 = vmatmul.mubr.bf16.gmra.mrb[0].mxu0 %v4364
        %v4409 = vpop.f32.mrb[0].mxu0
        %v4410 = vadd.f32 0.0, %v4409
        %v4411 = vpop.f32.mrb[0].mxu0
        %v4412 = vpop.f32.mrb[0].mxu0
        %v4413 = vadd.f32 0.0, %v4412
        %v4414 = vpop.f32.mrb[0].mxu0
        %4415 = vmatprep.mubr.bf16.mxu0 0
        %4416 = vmatmul.mubr.bf16.gmra.mrb[0].mxu0 %v4367
        %v4417 = vpop.f32.mrb[0].mxu0
        %v4418 = vadd.f32 0.0, %v4417
        %v4419 = vpop.f32.mrb[0].mxu0
        %v4420 = vpop.f32.mrb[0].mxu0
        %v4421 = vadd.f32 0.0, %v4420
        %v4422 = vpop.f32.mrb[0].mxu0
        %4423 = vmatprep.mubr.bf16.mxu0 0
        %4424 = vmatmul.mubr.bf16.gmra.mrb[0].mxu0 %v4370
        %v4425 = vpop.f32.mrb[0].mxu0
        %v4426 = vadd.f32 0.0, %v4425
        %v4427 = vpop.f32.mrb[0].mxu0
        %v4428 = vpop.f32.mrb[0].mxu0
        %v4429 = vadd.f32 0.0, %v4428
        %v4430 = vpop.f32.mrb[0].mxu0
        %4431 = vmatprep.mubr.bf16.mxu0 0
        %4432 = vmatmul.mubr.bf16.gmra.mrb[0].mxu0 %v4373
        %v4433 = vpop.f32.mrb[0].mxu0
        %v4434 = vadd.f32 0.0, %v4433
        %v4435 = vpop.f32.mrb[0].mxu0
        %v4436 = vpop.f32.mrb[0].mxu0
        %v4437 = vadd.f32 0.0, %v4436
        %v4438 = vpop.f32.mrb[0].mxu0
        %4439 = vdwg.mxu0
        %v4441 = vsel %vm2505, %v3938, 0
        %v4444 = vsel %vm2505, %v3939, 0
        %v4447 = vsel %vm2505, %v3940, 0
        %v4450 = vsel %vm2505, %v3941, 0
        %4452 = vmatprep.subr.bf16.mxu0 0
        %4453 = vmatpush1.bf16.msra.mxu0 %v620
        %4454 = vmatprep.subr.bf16.mxu0 0
        %4455 = vmatpush1.bf16.msra.mxu0 0
        %4456 = vmatprep.subr.bf16.mxu0 0
        %4457 = vmatpush1.bf16.msra.mxu0 0
        %4458 = vmatprep.subr.bf16.mxu0 0
        %4459 = vmatpush1.bf16.msra.mxu0 0
        %4460 = vmatprep.subr.bf16.mxu0 0
        %4461 = vmatpush1.bf16.msra.mxu0 0
        %4462 = vmatprep.subr.bf16.mxu0 0
        %4463 = vmatpush1.bf16.msra.mxu0 0
        %4464 = vmatprep.subr.bf16.mxu0 0
        %4465 = vmatpush1.bf16.msra.mxu0 0
        %4466 = vmatprep.subr.bf16.mxu0 0
        %4467 = vmatpush1.bf16.msra.mxu0 0
        %4468 = vmatprep.subr.bf16.mxu0 0
        %4469 = vmatpush1.bf16.msra.mxu0 0
        %4470 = vmatprep.subr.bf16.mxu0 0
        %4471 = vmatpush1.bf16.msra.mxu0 0
        %4472 = vmatprep.subr.bf16.mxu0 0
        %4473 = vmatpush1.bf16.msra.mxu0 0
        %4474 = vmatprep.subr.bf16.mxu0 0
        %4475 = vmatpush1.bf16.msra.mxu0 0
        %4476 = vmatprep.subr.bf16.mxu0 0
        %4477 = vmatpush1.bf16.msra.mxu0 0
        %4478 = vmatprep.subr.bf16.mxu0 0
        %4479 = vmatpush1.bf16.msra.mxu0 0
        %4480 = vmatprep.subr.bf16.mxu0 0
        %4481 = vmatpush1.bf16.msra.mxu0 0
        %4482 = vmatprep.subr.bf16.mxu0 0
        %4483 = vmatpush1.bf16.msra.mxu0 0
        %4484 = vmatprep.mubr.bf16.mxu0 0
        %4485 = vmatmul.mubr.bf16.gmra.mrb[0].mxu0 %v4441
        %v4486 = vpop.f32.mrb[0].mxu0
        %v4487 = vadd.f32 0.0, %v4486
        %v4488 = vpop.f32.mrb[0].mxu0
        %v4489 = vpop.f32.mrb[0].mxu0
        %v4490 = vadd.f32 0.0, %v4489
        %v4491 = vpop.f32.mrb[0].mxu0
        %4492 = vmatprep.mubr.bf16.mxu0 0
        %4493 = vmatmul.mubr.bf16.gmra.mrb[0].mxu0 %v4444
        %v4494 = vpop.f32.mrb[0].mxu0
        %v4495 = vadd.f32 0.0, %v4494
        %v4496 = vpop.f32.mrb[0].mxu0
        %v4497 = vpop.f32.mrb[0].mxu0
        %v4498 = vadd.f32 0.0, %v4497
        %v4499 = vpop.f32.mrb[0].mxu0
        %4500 = vmatprep.mubr.bf16.mxu0 0
        %4501 = vmatmul.mubr.bf16.gmra.mrb[0].mxu0 %v4447
        %v4502 = vpop.f32.mrb[0].mxu0
        %v4503 = vadd.f32 0.0, %v4502
        %v4504 = vpop.f32.mrb[0].mxu0
        %v4505 = vpop.f32.mrb[0].mxu0
        %v4506 = vadd.f32 0.0, %v4505
        %v4507 = vpop.f32.mrb[0].mxu0
        %4508 = vmatprep.mubr.bf16.mxu0 0
        %4509 = vmatmul.mubr.bf16.gmra.mrb[0].mxu0 %v4450
        %v4510 = vpop.f32.mrb[0].mxu0
        %v4511 = vadd.f32 0.0, %v4510
        %v4512 = vpop.f32.mrb[0].mxu0
        %v4513 = vpop.f32.mrb[0].mxu0
        %v4514 = vadd.f32 0.0, %v4513
        %v4515 = vpop.f32.mrb[0].mxu0
        %4516 = vdwg.mxu0
        %v4518 = vsel %vm2505, %v3942, 0
        %v4521 = vsel %vm2505, %v3943, 0
        %v4524 = vsel %vm2505, %v3944, 0
        %v4527 = vsel %vm2505, %v3945, 0
        %4529 = vmatprep.subr.bf16.mxu0 0
        %4530 = vmatpush1.bf16.msra.mxu0 %v620
        %4531 = vmatprep.subr.bf16.mxu0 0
        %4532 = vmatpush1.bf16.msra.mxu0 0
        %4533 = vmatprep.subr.bf16.mxu0 0
        %4534 = vmatpush1.bf16.msra.mxu0 0
        %4535 = vmatprep.subr.bf16.mxu0 0
        %4536 = vmatpush1.bf16.msra.mxu0 0
        %4537 = vmatprep.subr.bf16.mxu0 0
        %4538 = vmatpush1.bf16.msra.mxu0 0
        %4539 = vmatprep.subr.bf16.mxu0 0
        %4540 = vmatpush1.bf16.msra.mxu0 0
        %4541 = vmatprep.subr.bf16.mxu0 0
        %4542 = vmatpush1.bf16.msra.mxu0 0
        %4543 = vmatprep.subr.bf16.mxu0 0
        %4544 = vmatpush1.bf16.msra.mxu0 0
        %4545 = vmatprep.subr.bf16.mxu0 0
        %4546 = vmatpush1.bf16.msra.mxu0 0
        %4547 = vmatprep.subr.bf16.mxu0 0
        %4548 = vmatpush1.bf16.msra.mxu0 0
        %4549 = vmatprep.subr.bf16.mxu0 0
        %4550 = vmatpush1.bf16.msra.mxu0 0
        %4551 = vmatprep.subr.bf16.mxu0 0
        %4552 = vmatpush1.bf16.msra.mxu0 0
        %4553 = vmatprep.subr.bf16.mxu0 0
        %4554 = vmatpush1.bf16.msra.mxu0 0
        %4555 = vmatprep.subr.bf16.mxu0 0
        %4556 = vmatpush1.bf16.msra.mxu0 0
        %4557 = vmatprep.subr.bf16.mxu0 0
        %4558 = vmatpush1.bf16.msra.mxu0 0
        %4559 = vmatprep.subr.bf16.mxu0 0
        %4560 = vmatpush1.bf16.msra.mxu0 0
        %4561 = vmatprep.mubr.bf16.mxu0 0
        %4562 = vmatmul.mubr.bf16.gmra.mrb[0].mxu0 %v4518
        %v4563 = vpop.f32.mrb[0].mxu0
        %v4564 = vadd.f32 0.0, %v4563
        %v4565 = vpop.f32.mrb[0].mxu0
        %v4566 = vpop.f32.mrb[0].mxu0
        %v4567 = vadd.f32 0.0, %v4566
        %v4568 = vpop.f32.mrb[0].mxu0
        %4569 = vmatprep.mubr.bf16.mxu0 0
        %4570 = vmatmul.mubr.bf16.gmra.mrb[0].mxu0 %v4521
        %v4571 = vpop.f32.mrb[0].mxu0
        %v4572 = vadd.f32 0.0, %v4571
        %v4573 = vpop.f32.mrb[0].mxu0
        %v4574 = vpop.f32.mrb[0].mxu0
        %v4575 = vadd.f32 0.0, %v4574
        %v4576 = vpop.f32.mrb[0].mxu0
        %4577 = vmatprep.mubr.bf16.mxu0 0
        %4578 = vmatmul.mubr.bf16.gmra.mrb[0].mxu0 %v4524
        %v4579 = vpop.f32.mrb[0].mxu0
        %v4580 = vadd.f32 0.0, %v4579
        %v4581 = vpop.f32.mrb[0].mxu0
        %v4582 = vpop.f32.mrb[0].mxu0
        %v4583 = vadd.f32 0.0, %v4582
        %v4584 = vpop.f32.mrb[0].mxu0
        %4585 = vmatprep.mubr.bf16.mxu0 0
        %4586 = vmatmul.mubr.bf16.gmra.mrb[0].mxu0 %v4527
        %v4587 = vpop.f32.mrb[0].mxu0
        %v4588 = vadd.f32 0.0, %v4587
        %v4589 = vpop.f32.mrb[0].mxu0
        %v4590 = vpop.f32.mrb[0].mxu0
        %v4591 = vadd.f32 0.0, %v4590
        %v4592 = vpop.f32.mrb[0].mxu0
        %4593 = vdwg.mxu0
        %v4595 = vsel %vm2505, %v3946, 0
        %v4598 = vsel %vm2505, %v3947, 0
        %v4601 = vsel %vm2505, %v3948, 0
        %v4604 = vsel %vm2505, %v3949, 0
        %4606 = vmatprep.subr.bf16.mxu0 0
        %4607 = vmatpush1.bf16.msra.mxu0 %v620
        %4608 = vmatprep.subr.bf16.mxu0 0
        %4609 = vmatpush1.bf16.msra.mxu0 0
        %4610 = vmatprep.subr.bf16.mxu0 0
        %4611 = vmatpush1.bf16.msra.mxu0 0
        %4612 = vmatprep.subr.bf16.mxu0 0
        %4613 = vmatpush1.bf16.msra.mxu0 0
        %4614 = vmatprep.subr.bf16.mxu0 0
        %4615 = vmatpush1.bf16.msra.mxu0 0
        %4616 = vmatprep.subr.bf16.mxu0 0
        %4617 = vmatpush1.bf16.msra.mxu0 0
        %4618 = vmatprep.subr.bf16.mxu0 0
        %4619 = vmatpush1.bf16.msra.mxu0 0
        %4620 = vmatprep.subr.bf16.mxu0 0
        %4621 = vmatpush1.bf16.msra.mxu0 0
        %4622 = vmatprep.subr.bf16.mxu0 0
        %4623 = vmatpush1.bf16.msra.mxu0 0
        %4624 = vmatprep.subr.bf16.mxu0 0
        %4625 = vmatpush1.bf16.msra.mxu0 0
        %4626 = vmatprep.subr.bf16.mxu0 0
        %4627 = vmatpush1.bf16.msra.mxu0 0
        %4628 = vmatprep.subr.bf16.mxu0 0
        %4629 = vmatpush1.bf16.msra.mxu0 0
        %4630 = vmatprep.subr.bf16.mxu0 0
        %4631 = vmatpush1.bf16.msra.mxu0 0
        %4632 = vmatprep.subr.bf16.mxu0 0
        %4633 = vmatpush1.bf16.msra.mxu0 0
        %4634 = vmatprep.subr.bf16.mxu0 0
        %4635 = vmatpush1.bf16.msra.mxu0 0
        %4636 = vmatprep.subr.bf16.mxu0 0
        %4637 = vmatpush1.bf16.msra.mxu0 0
        %4638 = vmatprep.mubr.bf16.mxu0 0
        %4639 = vmatmul.mubr.bf16.gmra.mrb[0].mxu0 %v4595
        %v4640 = vpop.f32.mrb[0].mxu0
        %v4641 = vadd.f32 0.0, %v4640
        %v4642 = vpop.f32.mrb[0].mxu0
        %v4643 = vpop.f32.mrb[0].mxu0
        %v4644 = vadd.f32 0.0, %v4643
        %v4645 = vpop.f32.mrb[0].mxu0
        %4646 = vmatprep.mubr.bf16.mxu0 0
        %4647 = vmatmul.mubr.bf16.gmra.mrb[0].mxu0 %v4598
        %v4648 = vpop.f32.mrb[0].mxu0
        %v4649 = vadd.f32 0.0, %v4648
        %v4650 = vpop.f32.mrb[0].mxu0
        %v4651 = vpop.f32.mrb[0].mxu0
        %v4652 = vadd.f32 0.0, %v4651
        %v4653 = vpop.f32.mrb[0].mxu0
        %4654 = vmatprep.mubr.bf16.mxu0 0
        %4655 = vmatmul.mubr.bf16.gmra.mrb[0].mxu0 %v4601
        %v4656 = vpop.f32.mrb[0].mxu0
        %v4657 = vadd.f32 0.0, %v4656
        %v4658 = vpop.f32.mrb[0].mxu0
        %v4659 = vpop.f32.mrb[0].mxu0
        %v4660 = vadd.f32 0.0, %v4659
        %v4661 = vpop.f32.mrb[0].mxu0
        %4662 = vmatprep.mubr.bf16.mxu0 0
        %4663 = vmatmul.mubr.bf16.gmra.mrb[0].mxu0 %v4604
        %v4664 = vpop.f32.mrb[0].mxu0
        %v4665 = vadd.f32 0.0, %v4664
        %v4666 = vpop.f32.mrb[0].mxu0
        %v4667 = vpop.f32.mrb[0].mxu0
        %v4668 = vadd.f32 0.0, %v4667
        %v4669 = vpop.f32.mrb[0].mxu0
        %4670 = vdwg.mxu0
        %v4672 = vsel %vm2505, %v3950, 0
        %v4675 = vsel %vm2505, %v3951, 0
        %v4678 = vsel %vm2505, %v3952, 0
        %v4681 = vsel %vm2505, %v3953, 0
        %4683 = vmatprep.subr.bf16.mxu0 0
        %4684 = vmatpush1.bf16.msra.mxu0 %v620
        %4685 = vmatprep.subr.bf16.mxu0 0
        %4686 = vmatpush1.bf16.msra.mxu0 0
        %4687 = vmatprep.subr.bf16.mxu0 0
        %4688 = vmatpush1.bf16.msra.mxu0 0
        %4689 = vmatprep.subr.bf16.mxu0 0
        %4690 = vmatpush1.bf16.msra.mxu0 0
        %4691 = vmatprep.subr.bf16.mxu0 0
        %4692 = vmatpush1.bf16.msra.mxu0 0
        %4693 = vmatprep.subr.bf16.mxu0 0
        %4694 = vmatpush1.bf16.msra.mxu0 0
        %4695 = vmatprep.subr.bf16.mxu0 0
        %4696 = vmatpush1.bf16.msra.mxu0 0
        %4697 = vmatprep.subr.bf16.mxu0 0
        %4698 = vmatpush1.bf16.msra.mxu0 0
        %4699 = vmatprep.subr.bf16.mxu0 0
        %4700 = vmatpush1.bf16.msra.mxu0 0
        %4701 = vmatprep.subr.bf16.mxu0 0
        %4702 = vmatpush1.bf16.msra.mxu0 0
        %4703 = vmatprep.subr.bf16.mxu0 0
        %4704 = vmatpush1.bf16.msra.mxu0 0
        %4705 = vmatprep.subr.bf16.mxu0 0
        %4706 = vmatpush1.bf16.msra.mxu0 0
        %4707 = vmatprep.subr.bf16.mxu0 0
        %4708 = vmatpush1.bf16.msra.mxu0 0
        %4709 = vmatprep.subr.bf16.mxu0 0
        %4710 = vmatpush1.bf16.msra.mxu0 0
        %4711 = vmatprep.subr.bf16.mxu0 0
        %4712 = vmatpush1.bf16.msra.mxu0 0
        %4713 = vmatprep.subr.bf16.mxu0 0
        %4714 = vmatpush1.bf16.msra.mxu0 0
        %4715 = vmatprep.mubr.bf16.mxu0 0
        %4716 = vmatmul.mubr.bf16.gmra.mrb[0].mxu0 %v4672
        %v4717 = vpop.f32.mrb[0].mxu0
        %v4718 = vadd.f32 0.0, %v4717
        %v4719 = vpop.f32.mrb[0].mxu0
        %v4720 = vpop.f32.mrb[0].mxu0
        %v4721 = vadd.f32 0.0, %v4720
        %v4722 = vpop.f32.mrb[0].mxu0
        %4723 = vmatprep.mubr.bf16.mxu0 0
        %4724 = vmatmul.mubr.bf16.gmra.mrb[0].mxu0 %v4675
        %v4725 = vpop.f32.mrb[0].mxu0
        %v4726 = vadd.f32 0.0, %v4725
        %v4727 = vpop.f32.mrb[0].mxu0
        %v4728 = vpop.f32.mrb[0].mxu0
        %v4729 = vadd.f32 0.0, %v4728
        %v4730 = vpop.f32.mrb[0].mxu0
        %4731 = vmatprep.mubr.bf16.mxu0 0
        %4732 = vmatmul.mubr.bf16.gmra.mrb[0].mxu0 %v4678
        %v4733 = vpop.f32.mrb[0].mxu0
        %v4734 = vadd.f32 0.0, %v4733
        %v4735 = vpop.f32.mrb[0].mxu0
        %v4736 = vpop.f32.mrb[0].mxu0
        %v4737 = vadd.f32 0.0, %v4736
        %v4738 = vpop.f32.mrb[0].mxu0
        %4739 = vmatprep.mubr.bf16.mxu0 0
        %4740 = vmatmul.mubr.bf16.gmra.mrb[0].mxu0 %v4681
        %v4741 = vpop.f32.mrb[0].mxu0
        %v4742 = vadd.f32 0.0, %v4741
        %v4743 = vpop.f32.mrb[0].mxu0
        %v4744 = vpop.f32.mrb[0].mxu0
        %v4745 = vadd.f32 0.0, %v4744
        %v4746 = vpop.f32.mrb[0].mxu0
        %4747 = vdwg.mxu0
        %v4749 = vsel %vm2505, %v3954, 0
        %v4752 = vsel %vm2505, %v3955, 0
        %v4755 = vsel %vm2505, %v3956, 0
        %v4758 = vsel %vm2505, %v3957, 0
        %4760 = vmatprep.subr.bf16.mxu0 0
        %4761 = vmatpush1.bf16.msra.mxu0 %v620
        %4762 = vmatprep.subr.bf16.mxu0 0
        %4763 = vmatpush1.bf16.msra.mxu0 0
        %4764 = vmatprep.subr.bf16.mxu0 0
        %4765 = vmatpush1.bf16.msra.mxu0 0
        %4766 = vmatprep.subr.bf16.mxu0 0
        %4767 = vmatpush1.bf16.msra.mxu0 0
        %4768 = vmatprep.subr.bf16.mxu0 0
        %4769 = vmatpush1.bf16.msra.mxu0 0
        %4770 = vmatprep.subr.bf16.mxu0 0
        %4771 = vmatpush1.bf16.msra.mxu0 0
        %4772 = vmatprep.subr.bf16.mxu0 0
        %4773 = vmatpush1.bf16.msra.mxu0 0
        %4774 = vmatprep.subr.bf16.mxu0 0
        %4775 = vmatpush1.bf16.msra.mxu0 0
        %4776 = vmatprep.subr.bf16.mxu0 0
        %4777 = vmatpush1.bf16.msra.mxu0 0
        %4778 = vmatprep.subr.bf16.mxu0 0
        %4779 = vmatpush1.bf16.msra.mxu0 0
        %4780 = vmatprep.subr.bf16.mxu0 0
        %4781 = vmatpush1.bf16.msra.mxu0 0
        %4782 = vmatprep.subr.bf16.mxu0 0
        %4783 = vmatpush1.bf16.msra.mxu0 0
        %4784 = vmatprep.subr.bf16.mxu0 0
        %4785 = vmatpush1.bf16.msra.mxu0 0
        %4786 = vmatprep.subr.bf16.mxu0 0
        %4787 = vmatpush1.bf16.msra.mxu0 0
        %4788 = vmatprep.subr.bf16.mxu0 0
        %4789 = vmatpush1.bf16.msra.mxu0 0
        %4790 = vmatprep.subr.bf16.mxu0 0
        %4791 = vmatpush1.bf16.msra.mxu0 0
        %4792 = vmatprep.mubr.bf16.mxu0 0
        %4793 = vmatmul.mubr.bf16.gmra.mrb[0].mxu0 %v4749
        %v4794 = vpop.f32.mrb[0].mxu0
        %v4795 = vadd.f32 0.0, %v4794
        %v4796 = vpop.f32.mrb[0].mxu0
        %v4797 = vpop.f32.mrb[0].mxu0
        %v4798 = vadd.f32 0.0, %v4797
        %v4799 = vpop.f32.mrb[0].mxu0
        %4800 = vmatprep.mubr.bf16.mxu0 0
        %4801 = vmatmul.mubr.bf16.gmra.mrb[0].mxu0 %v4752
        %v4802 = vpop.f32.mrb[0].mxu0
        %v4803 = vadd.f32 0.0, %v4802
        %v4804 = vpop.f32.mrb[0].mxu0
        %v4805 = vpop.f32.mrb[0].mxu0
        %v4806 = vadd.f32 0.0, %v4805
        %v4807 = vpop.f32.mrb[0].mxu0
        %4808 = vmatprep.mubr.bf16.mxu0 0
        %4809 = vmatmul.mubr.bf16.gmra.mrb[0].mxu0 %v4755
        %v4810 = vpop.f32.mrb[0].mxu0
        %v4811 = vadd.f32 0.0, %v4810
        %v4812 = vpop.f32.mrb[0].mxu0
        %v4813 = vpop.f32.mrb[0].mxu0
        %v4814 = vadd.f32 0.0, %v4813
        %v4815 = vpop.f32.mrb[0].mxu0
        %4816 = vmatprep.mubr.bf16.mxu0 0
        %4817 = vmatmul.mubr.bf16.gmra.mrb[0].mxu0 %v4758
        %v4818 = vpop.f32.mrb[0].mxu0
        %v4819 = vadd.f32 0.0, %v4818
        %v4820 = vpop.f32.mrb[0].mxu0
        %v4821 = vpop.f32.mrb[0].mxu0
        %v4822 = vadd.f32 0.0, %v4821
        %v4823 = vpop.f32.mrb[0].mxu0
        %4824 = vdwg.mxu0
        %v4826 = vsel %vm2505, %v3958, 0
        %v4829 = vsel %vm2505, %v3959, 0
        %v4832 = vsel %vm2505, %v3960, 0
        %v4835 = vsel %vm2505, %v3961, 0
        %4837 = vmatprep.subr.bf16.mxu0 0
        %4838 = vmatpush1.bf16.msra.mxu0 %v620
        %4839 = vmatprep.subr.bf16.mxu0 0
        %4840 = vmatpush1.bf16.msra.mxu0 0
        %4841 = vmatprep.subr.bf16.mxu0 0
        %4842 = vmatpush1.bf16.msra.mxu0 0
        %4843 = vmatprep.subr.bf16.mxu0 0
        %4844 = vmatpush1.bf16.msra.mxu0 0
        %4845 = vmatprep.subr.bf16.mxu0 0
        %4846 = vmatpush1.bf16.msra.mxu0 0
        %4847 = vmatprep.subr.bf16.mxu0 0
        %4848 = vmatpush1.bf16.msra.mxu0 0
        %4849 = vmatprep.subr.bf16.mxu0 0
        %4850 = vmatpush1.bf16.msra.mxu0 0
        %4851 = vmatprep.subr.bf16.mxu0 0
        %4852 = vmatpush1.bf16.msra.mxu0 0
        %4853 = vmatprep.subr.bf16.mxu0 0
        %4854 = vmatpush1.bf16.msra.mxu0 0
        %4855 = vmatprep.subr.bf16.mxu0 0
        %4856 = vmatpush1.bf16.msra.mxu0 0
        %4857 = vmatprep.subr.bf16.mxu0 0
        %4858 = vmatpush1.bf16.msra.mxu0 0
        %4859 = vmatprep.subr.bf16.mxu0 0
        %4860 = vmatpush1.bf16.msra.mxu0 0
        %4861 = vmatprep.subr.bf16.mxu0 0
        %4862 = vmatpush1.bf16.msra.mxu0 0
        %4863 = vmatprep.subr.bf16.mxu0 0
        %4864 = vmatpush1.bf16.msra.mxu0 0
        %4865 = vmatprep.subr.bf16.mxu0 0
        %4866 = vmatpush1.bf16.msra.mxu0 0
        %4867 = vmatprep.subr.bf16.mxu0 0
        %4868 = vmatpush1.bf16.msra.mxu0 0
        %4869 = vmatprep.mubr.bf16.mxu0 0
        %4870 = vmatmul.mubr.bf16.gmra.mrb[0].mxu0 %v4826
        %v4871 = vpop.f32.mrb[0].mxu0
        %v4872 = vadd.f32 0.0, %v4871
        %v4873 = vpop.f32.mrb[0].mxu0
        %v4874 = vpop.f32.mrb[0].mxu0
        %v4875 = vadd.f32 0.0, %v4874
        %v4876 = vpop.f32.mrb[0].mxu0
        %4877 = vmatprep.mubr.bf16.mxu0 0
        %4878 = vmatmul.mubr.bf16.gmra.mrb[0].mxu0 %v4829
        %v4879 = vpop.f32.mrb[0].mxu0
        %v4880 = vadd.f32 0.0, %v4879
        %v4881 = vpop.f32.mrb[0].mxu0
        %v4882 = vpop.f32.mrb[0].mxu0
        %v4883 = vadd.f32 0.0, %v4882
        %v4884 = vpop.f32.mrb[0].mxu0
        %4885 = vmatprep.mubr.bf16.mxu0 0
        %4886 = vmatmul.mubr.bf16.gmra.mrb[0].mxu0 %v4832
        %v4887 = vpop.f32.mrb[0].mxu0
        %v4888 = vadd.f32 0.0, %v4887
        %v4889 = vpop.f32.mrb[0].mxu0
        %v4890 = vpop.f32.mrb[0].mxu0
        %v4891 = vadd.f32 0.0, %v4890
        %v4892 = vpop.f32.mrb[0].mxu0
        %4893 = vmatprep.mubr.bf16.mxu0 0
        %4894 = vmatmul.mubr.bf16.gmra.mrb[0].mxu0 %v4835
        %v4895 = vpop.f32.mrb[0].mxu0
        %v4896 = vadd.f32 0.0, %v4895
        %v4897 = vpop.f32.mrb[0].mxu0
        %v4898 = vpop.f32.mrb[0].mxu0
        %v4899 = vadd.f32 0.0, %v4898
        %v4900 = vpop.f32.mrb[0].mxu0
        %4901 = vdwg.mxu0
        %v4903 = vsel %vm2505, %v3962, 0
        %v4906 = vsel %vm2505, %v3963, 0
        %v4909 = vsel %vm2505, %v3964, 0
        %v4912 = vsel %vm2505, %v3965, 0
        %4914 = vmatprep.subr.bf16.mxu0 0
        %4915 = vmatpush1.bf16.msra.mxu0 %v620
        %4916 = vmatprep.subr.bf16.mxu0 0
        %4917 = vmatpush1.bf16.msra.mxu0 0
        %4918 = vmatprep.subr.bf16.mxu0 0
        %4919 = vmatpush1.bf16.msra.mxu0 0
        %4920 = vmatprep.subr.bf16.mxu0 0
        %4921 = vmatpush1.bf16.msra.mxu0 0
        %4922 = vmatprep.subr.bf16.mxu0 0
        %4923 = vmatpush1.bf16.msra.mxu0 0
        %4924 = vmatprep.subr.bf16.mxu0 0
        %4925 = vmatpush1.bf16.msra.mxu0 0
        %4926 = vmatprep.subr.bf16.mxu0 0
        %4927 = vmatpush1.bf16.msra.mxu0 0
        %4928 = vmatprep.subr.bf16.mxu0 0
        %4929 = vmatpush1.bf16.msra.mxu0 0
        %4930 = vmatprep.subr.bf16.mxu0 0
        %4931 = vmatpush1.bf16.msra.mxu0 0
        %4932 = vmatprep.subr.bf16.mxu0 0
        %4933 = vmatpush1.bf16.msra.mxu0 0
        %4934 = vmatprep.subr.bf16.mxu0 0
        %4935 = vmatpush1.bf16.msra.mxu0 0
        %4936 = vmatprep.subr.bf16.mxu0 0
        %4937 = vmatpush1.bf16.msra.mxu0 0
        %4938 = vmatprep.subr.bf16.mxu0 0
        %4939 = vmatpush1.bf16.msra.mxu0 0
        %4940 = vmatprep.subr.bf16.mxu0 0
        %4941 = vmatpush1.bf16.msra.mxu0 0
        %4942 = vmatprep.subr.bf16.mxu0 0
        %4943 = vmatpush1.bf16.msra.mxu0 0
        %4944 = vmatprep.subr.bf16.mxu0 0
        %4945 = vmatpush1.bf16.msra.mxu0 0
        %4946 = vmatprep.mubr.bf16.mxu0 0
        %4947 = vmatmul.mubr.bf16.gmra.mrb[0].mxu0 %v4903
        %v4948 = vpop.f32.mrb[0].mxu0
        %v4949 = vadd.f32 0.0, %v4948
        %v4950 = vpop.f32.mrb[0].mxu0
        %v4951 = vpop.f32.mrb[0].mxu0
        %v4952 = vadd.f32 0.0, %v4951
        %v4953 = vpop.f32.mrb[0].mxu0
        %4954 = vmatprep.mubr.bf16.mxu0 0
        %4955 = vmatmul.mubr.bf16.gmra.mrb[0].mxu0 %v4906
        %v4956 = vpop.f32.mrb[0].mxu0
        %v4957 = vadd.f32 0.0, %v4956
        %v4958 = vpop.f32.mrb[0].mxu0
        %v4959 = vpop.f32.mrb[0].mxu0
        %v4960 = vadd.f32 0.0, %v4959
        %v4961 = vpop.f32.mrb[0].mxu0
        %4962 = vmatprep.mubr.bf16.mxu0 0
        %4963 = vmatmul.mubr.bf16.gmra.mrb[0].mxu0 %v4909
        %v4964 = vpop.f32.mrb[0].mxu0
        %v4965 = vadd.f32 0.0, %v4964
        %v4966 = vpop.f32.mrb[0].mxu0
        %v4967 = vpop.f32.mrb[0].mxu0
        %v4968 = vadd.f32 0.0, %v4967
        %v4969 = vpop.f32.mrb[0].mxu0
        %4970 = vmatprep.mubr.bf16.mxu0 0
        %4971 = vmatmul.mubr.bf16.gmra.mrb[0].mxu0 %v4912
        %v4972 = vpop.f32.mrb[0].mxu0
        %v4973 = vadd.f32 0.0, %v4972
        %v4974 = vpop.f32.mrb[0].mxu0
        %v4975 = vpop.f32.mrb[0].mxu0
        %v4976 = vadd.f32 0.0, %v4975
        %v4977 = vpop.f32.mrb[0].mxu0
        %4978 = vdwg.mxu0
        %v4980 = vsel %vm2505, %v3966, 0
        %v4983 = vsel %vm2505, %v3967, 0
        %v4986 = vsel %vm2505, %v3968, 0
        %v4989 = vsel %vm2505, %v3969, 0
        %4991 = vmatprep.subr.bf16.mxu0 0
        %4992 = vmatpush1.bf16.msra.mxu0 %v620
        %4993 = vmatprep.subr.bf16.mxu0 0
        %4994 = vmatpush1.bf16.msra.mxu0 0
        %4995 = vmatprep.subr.bf16.mxu0 0
        %4996 = vmatpush1.bf16.msra.mxu0 0
        %4997 = vmatprep.subr.bf16.mxu0 0
        %4998 = vmatpush1.bf16.msra.mxu0 0
        %4999 = vmatprep.subr.bf16.mxu0 0
        %5000 = vmatpush1.bf16.msra.mxu0 0
        %5001 = vmatprep.subr.bf16.mxu0 0
        %5002 = vmatpush1.bf16.msra.mxu0 0
        %5003 = vmatprep.subr.bf16.mxu0 0
        %5004 = vmatpush1.bf16.msra.mxu0 0
        %5005 = vmatprep.subr.bf16.mxu0 0
        %5006 = vmatpush1.bf16.msra.mxu0 0
        %5007 = vmatprep.subr.bf16.mxu0 0
        %5008 = vmatpush1.bf16.msra.mxu0 0
        %5009 = vmatprep.subr.bf16.mxu0 0
        %5010 = vmatpush1.bf16.msra.mxu0 0
        %5011 = vmatprep.subr.bf16.mxu0 0
        %5012 = vmatpush1.bf16.msra.mxu0 0
        %5013 = vmatprep.subr.bf16.mxu0 0
        %5014 = vmatpush1.bf16.msra.mxu0 0
        %5015 = vmatprep.subr.bf16.mxu0 0
        %5016 = vmatpush1.bf16.msra.mxu0 0
        %5017 = vmatprep.subr.bf16.mxu0 0
        %5018 = vmatpush1.bf16.msra.mxu0 0
        %5019 = vmatprep.subr.bf16.mxu0 0
        %5020 = vmatpush1.bf16.msra.mxu0 0
        %5021 = vmatprep.subr.bf16.mxu0 0
        %5022 = vmatpush1.bf16.msra.mxu0 0
        %5023 = vmatprep.mubr.bf16.mxu0 0
        %5024 = vmatmul.mubr.bf16.gmra.mrb[0].mxu0 %v4980
        %v5025 = vpop.f32.mrb[0].mxu0
        %v5026 = vadd.f32 0.0, %v5025
        %v5027 = vpop.f32.mrb[0].mxu0
        %v5028 = vpop.f32.mrb[0].mxu0
        %v5029 = vadd.f32 0.0, %v5028
        %v5030 = vpop.f32.mrb[0].mxu0
        %5031 = vmatprep.mubr.bf16.mxu0 0
        %5032 = vmatmul.mubr.bf16.gmra.mrb[0].mxu0 %v4983
        %v5033 = vpop.f32.mrb[0].mxu0
        %v5034 = vadd.f32 0.0, %v5033
        %v5035 = vpop.f32.mrb[0].mxu0
        %v5036 = vpop.f32.mrb[0].mxu0
        %v5037 = vadd.f32 0.0, %v5036
        %v5038 = vpop.f32.mrb[0].mxu0
        %5039 = vmatprep.mubr.bf16.mxu0 0
        %5040 = vmatmul.mubr.bf16.gmra.mrb[0].mxu0 %v4986
        %v5041 = vpop.f32.mrb[0].mxu0
        %v5042 = vadd.f32 0.0, %v5041
        %v5043 = vpop.f32.mrb[0].mxu0
        %v5044 = vpop.f32.mrb[0].mxu0
        %v5045 = vadd.f32 0.0, %v5044
        %v5046 = vpop.f32.mrb[0].mxu0
        %5047 = vmatprep.mubr.bf16.mxu0 0
        %5048 = vmatmul.mubr.bf16.gmra.mrb[0].mxu0 %v4989
        %v5049 = vpop.f32.mrb[0].mxu0
        %v5050 = vadd.f32 0.0, %v5049
        %v5051 = vpop.f32.mrb[0].mxu0
        %v5052 = vpop.f32.mrb[0].mxu0
        %v5053 = vadd.f32 0.0, %v5052
        %v5054 = vpop.f32.mrb[0].mxu0
        %5055 = vdwg.mxu0
        %v5057 = vsel %vm2505, %v3970, 0
        %v5060 = vsel %vm2505, %v3971, 0
        %v5063 = vsel %vm2505, %v3972, 0
        %v5066 = vsel %vm2505, %v3973, 0
        %5068 = vmatprep.subr.bf16.mxu0 0
        %5069 = vmatpush1.bf16.msra.mxu0 %v620
        %5070 = vmatprep.subr.bf16.mxu0 0
        %5071 = vmatpush1.bf16.msra.mxu0 0
        %5072 = vmatprep.subr.bf16.mxu0 0
        %5073 = vmatpush1.bf16.msra.mxu0 0
        %5074 = vmatprep.subr.bf16.mxu0 0
        %5075 = vmatpush1.bf16.msra.mxu0 0
        %5076 = vmatprep.subr.bf16.mxu0 0
        %5077 = vmatpush1.bf16.msra.mxu0 0
        %5078 = vmatprep.subr.bf16.mxu0 0
        %5079 = vmatpush1.bf16.msra.mxu0 0
        %5080 = vmatprep.subr.bf16.mxu0 0
        %5081 = vmatpush1.bf16.msra.mxu0 0
        %5082 = vmatprep.subr.bf16.mxu0 0
        %5083 = vmatpush1.bf16.msra.mxu0 0
        %5084 = vmatprep.subr.bf16.mxu0 0
        %5085 = vmatpush1.bf16.msra.mxu0 0
        %5086 = vmatprep.subr.bf16.mxu0 0
        %5087 = vmatpush1.bf16.msra.mxu0 0
        %5088 = vmatprep.subr.bf16.mxu0 0
        %5089 = vmatpush1.bf16.msra.mxu0 0
        %5090 = vmatprep.subr.bf16.mxu0 0
        %5091 = vmatpush1.bf16.msra.mxu0 0
        %5092 = vmatprep.subr.bf16.mxu0 0
        %5093 = vmatpush1.bf16.msra.mxu0 0
        %5094 = vmatprep.subr.bf16.mxu0 0
        %5095 = vmatpush1.bf16.msra.mxu0 0
        %5096 = vmatprep.subr.bf16.mxu0 0
        %5097 = vmatpush1.bf16.msra.mxu0 0
        %5098 = vmatprep.subr.bf16.mxu0 0
        %5099 = vmatpush1.bf16.msra.mxu0 0
        %5100 = vmatprep.mubr.bf16.mxu0 0
        %5101 = vmatmul.mubr.bf16.gmra.mrb[0].mxu0 %v5057
        %v5102 = vpop.f32.mrb[0].mxu0
        %v5103 = vadd.f32 0.0, %v5102
        %v5104 = vpop.f32.mrb[0].mxu0
        %v5105 = vpop.f32.mrb[0].mxu0
        %v5106 = vadd.f32 0.0, %v5105
        %v5107 = vpop.f32.mrb[0].mxu0
        %5108 = vmatprep.mubr.bf16.mxu0 0
        %5109 = vmatmul.mubr.bf16.gmra.mrb[0].mxu0 %v5060
        %v5110 = vpop.f32.mrb[0].mxu0
        %v5111 = vadd.f32 0.0, %v5110
        %v5112 = vpop.f32.mrb[0].mxu0
        %v5113 = vpop.f32.mrb[0].mxu0
        %v5114 = vadd.f32 0.0, %v5113
        %v5115 = vpop.f32.mrb[0].mxu0
        %5116 = vmatprep.mubr.bf16.mxu0 0
        %5117 = vmatmul.mubr.bf16.gmra.mrb[0].mxu0 %v5063
        %v5118 = vpop.f32.mrb[0].mxu0
        %v5119 = vadd.f32 0.0, %v5118
        %v5120 = vpop.f32.mrb[0].mxu0
        %v5121 = vpop.f32.mrb[0].mxu0
        %v5122 = vadd.f32 0.0, %v5121
        %v5123 = vpop.f32.mrb[0].mxu0
        %5124 = vmatprep.mubr.bf16.mxu0 0
        %5125 = vmatmul.mubr.bf16.gmra.mrb[0].mxu0 %v5066
        %v5126 = vpop.f32.mrb[0].mxu0
        %v5127 = vadd.f32 0.0, %v5126
        %v5128 = vpop.f32.mrb[0].mxu0
        %v5129 = vpop.f32.mrb[0].mxu0
        %v5130 = vadd.f32 0.0, %v5129
        %v5131 = vpop.f32.mrb[0].mxu0
        %5132 = vdwg.mxu0
        %v5134 = vsel %vm2505, %v3974, 0
        %v5137 = vsel %vm2505, %v3975, 0
        %v5140 = vsel %vm2505, %v3976, 0
        %v5143 = vsel %vm2505, %v3977, 0
        %5145 = vmatprep.subr.bf16.mxu0 0
        %5146 = vmatpush1.bf16.msra.mxu0 %v620
        %5147 = vmatprep.subr.bf16.mxu0 0
        %5148 = vmatpush1.bf16.msra.mxu0 0
        %5149 = vmatprep.subr.bf16.mxu0 0
        %5150 = vmatpush1.bf16.msra.mxu0 0
        %5151 = vmatprep.subr.bf16.mxu0 0
        %5152 = vmatpush1.bf16.msra.mxu0 0
        %5153 = vmatprep.subr.bf16.mxu0 0
        %5154 = vmatpush1.bf16.msra.mxu0 0
        %5155 = vmatprep.subr.bf16.mxu0 0
        %5156 = vmatpush1.bf16.msra.mxu0 0
        %5157 = vmatprep.subr.bf16.mxu0 0
        %5158 = vmatpush1.bf16.msra.mxu0 0
        %5159 = vmatprep.subr.bf16.mxu0 0
        %5160 = vmatpush1.bf16.msra.mxu0 0
        %5161 = vmatprep.subr.bf16.mxu0 0
        %5162 = vmatpush1.bf16.msra.mxu0 0
        %5163 = vmatprep.subr.bf16.mxu0 0
        %5164 = vmatpush1.bf16.msra.mxu0 0
        %5165 = vmatprep.subr.bf16.mxu0 0
        %5166 = vmatpush1.bf16.msra.mxu0 0
        %5167 = vmatprep.subr.bf16.mxu0 0
        %5168 = vmatpush1.bf16.msra.mxu0 0
        %5169 = vmatprep.subr.bf16.mxu0 0
        %5170 = vmatpush1.bf16.msra.mxu0 0
        %5171 = vmatprep.subr.bf16.mxu0 0
        %5172 = vmatpush1.bf16.msra.mxu0 0
        %5173 = vmatprep.subr.bf16.mxu0 0
        %5174 = vmatpush1.bf16.msra.mxu0 0
        %5175 = vmatprep.subr.bf16.mxu0 0
        %5176 = vmatpush1.bf16.msra.mxu0 0
        %5177 = vmatprep.mubr.bf16.mxu0 0
        %5178 = vmatmul.mubr.bf16.gmra.mrb[0].mxu0 %v5134
        %v5179 = vpop.f32.mrb[0].mxu0
        %v5180 = vadd.f32 0.0, %v5179
        %v5181 = vpop.f32.mrb[0].mxu0
        %v5182 = vpop.f32.mrb[0].mxu0
        %v5183 = vadd.f32 0.0, %v5182
        %v5184 = vpop.f32.mrb[0].mxu0
        %5185 = vmatprep.mubr.bf16.mxu0 0
        %5186 = vmatmul.mubr.bf16.gmra.mrb[0].mxu0 %v5137
        %v5187 = vpop.f32.mrb[0].mxu0
        %v5188 = vadd.f32 0.0, %v5187
        %v5189 = vpop.f32.mrb[0].mxu0
        %v5190 = vpop.f32.mrb[0].mxu0
        %v5191 = vadd.f32 0.0, %v5190
        %v5192 = vpop.f32.mrb[0].mxu0
        %5193 = vmatprep.mubr.bf16.mxu0 0
        %5194 = vmatmul.mubr.bf16.gmra.mrb[0].mxu0 %v5140
        %v5195 = vpop.f32.mrb[0].mxu0
        %v5196 = vadd.f32 0.0, %v5195
        %v5197 = vpop.f32.mrb[0].mxu0
        %v5198 = vpop.f32.mrb[0].mxu0
        %v5199 = vadd.f32 0.0, %v5198
        %v5200 = vpop.f32.mrb[0].mxu0
        %5201 = vmatprep.mubr.bf16.mxu0 0
        %5202 = vmatmul.mubr.bf16.gmra.mrb[0].mxu0 %v5143
        %v5203 = vpop.f32.mrb[0].mxu0
        %v5204 = vadd.f32 0.0, %v5203
        %v5205 = vpop.f32.mrb[0].mxu0
        %v5206 = vpop.f32.mrb[0].mxu0
        %v5207 = vadd.f32 0.0, %v5206
        %v5208 = vpop.f32.mrb[0].mxu0
        %5209 = vdwg.mxu0
        %v5211 = vunpack.c.l.s4 286326784
        %v5212 = vunpack.c.0.s8 %v5211
        %v5213 = vlaneseq
        %v5214 = vshrl.u32 %v5213, 7
        %v5215 = vsub.s32 %v5212, %v5214
        %v5216 = vrot.slane %v697, %v5215
        %v5218 = vunpack.c.l.s4 286326784
        %v5219 = vunpack.c.0.s8 %v5218
        %v5220 = vlaneseq
        %v5221 = vshrl.u32 %v5220, 7
        %v5222 = vsub.s32 %v5219, %v5221
        %v5223 = vrot.slane %v698, %v5222
        %v5225 = vunpack.c.l.s4 286326784
        %v5226 = vunpack.c.0.s8 %v5225
        %v5227 = vlaneseq
        %v5228 = vshrl.u32 %v5227, 7
        %v5229 = vsub.s32 %v5226, %v5228
        %v5230 = vrot.slane %v699, %v5229
        %v5232 = vunpack.c.l.s4 286326784
        %v5233 = vunpack.c.0.s8 %v5232
        %v5234 = vlaneseq
        %v5235 = vshrl.u32 %v5234, 7
        %v5236 = vsub.s32 %v5233, %v5235
        %v5237 = vrot.slane %v700, %v5236
        %v5239 = vunpack.c.l.s4 286326784
        %v5240 = vunpack.c.0.s8 %v5239
        %v5241 = vlaneseq
        %v5242 = vshrl.u32 %v5241, 7
        %v5243 = vsub.s32 %v5240, %v5242
        %v5244 = vrot.slane %v701, %v5243
        %v5246 = vunpack.c.l.s4 286326784
        %v5247 = vunpack.c.0.s8 %v5246
        %v5248 = vlaneseq
        %v5249 = vshrl.u32 %v5248, 7
        %v5250 = vsub.s32 %v5247, %v5249
        %v5251 = vrot.slane %v702, %v5250
        %v5253 = vunpack.c.l.s4 286326784
        %v5254 = vunpack.c.0.s8 %v5253
        %v5255 = vlaneseq
        %v5256 = vshrl.u32 %v5255, 7
        %v5257 = vsub.s32 %v5254, %v5256
        %v5258 = vrot.slane %v703, %v5257
        %v5260 = vunpack.c.l.s4 286326784
        %v5261 = vunpack.c.0.s8 %v5260
        %v5262 = vlaneseq
        %v5263 = vshrl.u32 %v5262, 7
        %v5264 = vsub.s32 %v5261, %v5263
        %v5265 = vrot.slane %v704, %v5264
        %v5267 = vunpack.c.l.s4 286326784
        %v5268 = vunpack.c.0.s8 %v5267
        %v5269 = vlaneseq
        %v5270 = vshrl.u32 %v5269, 7
        %v5271 = vsub.s32 %v5268, %v5270
        %v5272 = vrot.slane %v705, %v5271
        %v5274 = vunpack.c.l.s4 286326784
        %v5275 = vunpack.c.0.s8 %v5274
        %v5276 = vlaneseq
        %v5277 = vshrl.u32 %v5276, 7
        %v5278 = vsub.s32 %v5275, %v5277
        %v5279 = vrot.slane %v706, %v5278
        %v5281 = vunpack.c.l.s4 286326784
        %v5282 = vunpack.c.0.s8 %v5281
        %v5283 = vlaneseq
        %v5284 = vshrl.u32 %v5283, 7
        %v5285 = vsub.s32 %v5282, %v5284
        %v5286 = vrot.slane %v707, %v5285
        %v5288 = vunpack.c.l.s4 286326784
        %v5289 = vunpack.c.0.s8 %v5288
        %v5290 = vlaneseq
        %v5291 = vshrl.u32 %v5290, 7
        %v5292 = vsub.s32 %v5289, %v5291
        %v5293 = vrot.slane %v708, %v5292
        %v5295 = vunpack.c.l.s4 286326784
        %v5296 = vunpack.c.0.s8 %v5295
        %v5297 = vlaneseq
        %v5298 = vshrl.u32 %v5297, 7
        %v5299 = vsub.s32 %v5296, %v5298
        %v5300 = vrot.slane %v709, %v5299
        %v5302 = vunpack.c.l.s4 286326784
        %v5303 = vunpack.c.0.s8 %v5302
        %v5304 = vlaneseq
        %v5305 = vshrl.u32 %v5304, 7
        %v5306 = vsub.s32 %v5303, %v5305
        %v5307 = vrot.slane %v710, %v5306
        %v5309 = vunpack.c.l.s4 286326784
        %v5310 = vunpack.c.0.s8 %v5309
        %v5311 = vlaneseq
        %v5312 = vshrl.u32 %v5311, 7
        %v5313 = vsub.s32 %v5310, %v5312
        %v5314 = vrot.slane %v711, %v5313
        %v5316 = vunpack.c.l.s4 286326784
        %v5317 = vunpack.c.0.s8 %v5316
        %v5318 = vlaneseq
        %v5319 = vshrl.u32 %v5318, 7
        %v5320 = vsub.s32 %v5317, %v5319
        %v5321 = vrot.slane %v712, %v5320
        %v5338 = vunpack.c.l.bf16 %v5216
        %v5339 = vunpack.c.l.bf16 %v5223
        %v5340 = vunpack.c.l.bf16 %v5230
        %v5341 = vunpack.c.l.bf16 %v5237
        %v5342 = vunpack.c.l.bf16 %v5244
        %v5343 = vunpack.c.l.bf16 %v5251
        %v5344 = vunpack.c.l.bf16 %v5258
        %v5345 = vunpack.c.l.bf16 %v5265
        %v5346 = vunpack.c.l.bf16 %v5272
        %v5347 = vunpack.c.l.bf16 %v5279
        %v5348 = vunpack.c.l.bf16 %v5286
        %v5349 = vunpack.c.l.bf16 %v5293
        %v5350 = vunpack.c.l.bf16 %v5300
        %v5351 = vunpack.c.l.bf16 %v5307
        %v5352 = vunpack.c.l.bf16 %v5314
        %v5353 = vunpack.c.l.bf16 %v5321
        %v5354 = vlaneseq
        %v5355 = vshrl.u32 %v5354, 7
        %v5356 = vsub.s32 0, %v5355
        %v5357 = vrot.slane %v5338, %v5356
        %v5358 = vlaneseq
        %v5359 = vshrl.u32 %v5358, 7
        %v5360 = vsub.s32 0, %v5359
        %v5361 = vrot.slane %v5339, %v5360
        %v5362 = vlaneseq
        %v5363 = vshrl.u32 %v5362, 7
        %v5364 = vsub.s32 0, %v5363
        %v5365 = vrot.slane %v5340, %v5364
        %v5366 = vlaneseq
        %v5367 = vshrl.u32 %v5366, 7
        %v5368 = vsub.s32 0, %v5367
        %v5369 = vrot.slane %v5341, %v5368
        %v5370 = vlaneseq
        %v5371 = vshrl.u32 %v5370, 7
        %v5372 = vsub.s32 0, %v5371
        %v5373 = vrot.slane %v5342, %v5372
        %v5374 = vlaneseq
        %v5375 = vshrl.u32 %v5374, 7
        %v5376 = vsub.s32 0, %v5375
        %v5377 = vrot.slane %v5343, %v5376
        %v5378 = vlaneseq
        %v5379 = vshrl.u32 %v5378, 7
        %v5380 = vsub.s32 0, %v5379
        %v5381 = vrot.slane %v5344, %v5380
        %v5382 = vlaneseq
        %v5383 = vshrl.u32 %v5382, 7
        %v5384 = vsub.s32 0, %v5383
        %v5385 = vrot.slane %v5345, %v5384
        %v5386 = vlaneseq
        %v5387 = vshrl.u32 %v5386, 7
        %v5388 = vsub.s32 0, %v5387
        %v5389 = vrot.slane %v5346, %v5388
        %v5390 = vlaneseq
        %v5391 = vshrl.u32 %v5390, 7
        %v5392 = vsub.s32 0, %v5391
        %v5393 = vrot.slane %v5347, %v5392
        %v5394 = vlaneseq
        %v5395 = vshrl.u32 %v5394, 7
        %v5396 = vsub.s32 0, %v5395
        %v5397 = vrot.slane %v5348, %v5396
        %v5398 = vlaneseq
        %v5399 = vshrl.u32 %v5398, 7
        %v5400 = vsub.s32 0, %v5399
        %v5401 = vrot.slane %v5349, %v5400
        %v5402 = vlaneseq
        %v5403 = vshrl.u32 %v5402, 7
        %v5404 = vsub.s32 0, %v5403
        %v5405 = vrot.slane %v5350, %v5404
        %v5406 = vlaneseq
        %v5407 = vshrl.u32 %v5406, 7
        %v5408 = vsub.s32 0, %v5407
        %v5409 = vrot.slane %v5351, %v5408
        %v5410 = vlaneseq
        %v5411 = vshrl.u32 %v5410, 7
        %v5412 = vsub.s32 0, %v5411
        %v5413 = vrot.slane %v5352, %v5412
        %v5414 = vlaneseq
        %v5415 = vshrl.u32 %v5414, 7
        %v5416 = vsub.s32 0, %v5415
        %v5417 = vrot.slane %v5353, %v5416
        %v5418 = vmul.f32 %v4025, %v5357
        %v5419 = vmul.f32 %v4028, %v5357
        %v5420 = vmul.f32 %v4033, %v5357
        %v5421 = vmul.f32 %v4036, %v5357
        %v5422 = vmul.f32 %v4041, %v5357
        %v5423 = vmul.f32 %v4044, %v5357
        %v5424 = vmul.f32 %v4049, %v5357
        %v5425 = vmul.f32 %v4052, %v5357
        %v5426 = vmul.f32 %v4102, %v5361
        %v5427 = vmul.f32 %v4105, %v5361
        %v5428 = vmul.f32 %v4110, %v5361
        %v5429 = vmul.f32 %v4113, %v5361
        %v5430 = vmul.f32 %v4118, %v5361
        %v5431 = vmul.f32 %v4121, %v5361
        %v5432 = vmul.f32 %v4126, %v5361
        %v5433 = vmul.f32 %v4129, %v5361
        %v5434 = vmul.f32 %v4179, %v5365
        %v5435 = vmul.f32 %v4182, %v5365
        %v5436 = vmul.f32 %v4187, %v5365
        %v5437 = vmul.f32 %v4190, %v5365
        %v5438 = vmul.f32 %v4195, %v5365
        %v5439 = vmul.f32 %v4198, %v5365
        %v5440 = vmul.f32 %v4203, %v5365
        %v5441 = vmul.f32 %v4206, %v5365
        %v5442 = vmul.f32 %v4256, %v5369
        %v5443 = vmul.f32 %v4259, %v5369
        %v5444 = vmul.f32 %v4264, %v5369
        %v5445 = vmul.f32 %v4267, %v5369
        %v5446 = vmul.f32 %v4272, %v5369
        %v5447 = vmul.f32 %v4275, %v5369
        %v5448 = vmul.f32 %v4280, %v5369
        %v5449 = vmul.f32 %v4283, %v5369
        %v5450 = vmul.f32 %v4333, %v5373
        %v5451 = vmul.f32 %v4336, %v5373
        %v5452 = vmul.f32 %v4341, %v5373
        %v5453 = vmul.f32 %v4344, %v5373
        %v5454 = vmul.f32 %v4349, %v5373
        %v5455 = vmul.f32 %v4352, %v5373
        %v5456 = vmul.f32 %v4357, %v5373
        %v5457 = vmul.f32 %v4360, %v5373
        %v5458 = vmul.f32 %v4410, %v5377
        %v5459 = vmul.f32 %v4413, %v5377
        %v5460 = vmul.f32 %v4418, %v5377
        %v5461 = vmul.f32 %v4421, %v5377
        %v5462 = vmul.f32 %v4426, %v5377
        %v5463 = vmul.f32 %v4429, %v5377
        %v5464 = vmul.f32 %v4434, %v5377
        %v5465 = vmul.f32 %v4437, %v5377
        %v5466 = vmul.f32 %v4487, %v5381
        %v5467 = vmul.f32 %v4490, %v5381
        %v5468 = vmul.f32 %v4495, %v5381
        %v5469 = vmul.f32 %v4498, %v5381
        %v5470 = vmul.f32 %v4503, %v5381
        %v5471 = vmul.f32 %v4506, %v5381
        %v5472 = vmul.f32 %v4511, %v5381
        %v5473 = vmul.f32 %v4514, %v5381
        %v5474 = vmul.f32 %v4564, %v5385
        %v5475 = vmul.f32 %v4567, %v5385
        %v5476 = vmul.f32 %v4572, %v5385
        %v5477 = vmul.f32 %v4575, %v5385
        %v5478 = vmul.f32 %v4580, %v5385
        %v5479 = vmul.f32 %v4583, %v5385
        %v5480 = vmul.f32 %v4588, %v5385
        %v5481 = vmul.f32 %v4591, %v5385
        %v5482 = vmul.f32 %v4641, %v5389
        %v5483 = vmul.f32 %v4644, %v5389
        %v5484 = vmul.f32 %v4649, %v5389
        %v5485 = vmul.f32 %v4652, %v5389
        %v5486 = vmul.f32 %v4657, %v5389
        %v5487 = vmul.f32 %v4660, %v5389
        %v5488 = vmul.f32 %v4665, %v5389
        %v5489 = vmul.f32 %v4668, %v5389
        %v5490 = vmul.f32 %v4718, %v5393
        %v5491 = vmul.f32 %v4721, %v5393
        %v5492 = vmul.f32 %v4726, %v5393
        %v5493 = vmul.f32 %v4729, %v5393
        %v5494 = vmul.f32 %v4734, %v5393
        %v5495 = vmul.f32 %v4737, %v5393
        %v5496 = vmul.f32 %v4742, %v5393
        %v5497 = vmul.f32 %v4745, %v5393
        %v5498 = vmul.f32 %v4795, %v5397
        %v5499 = vmul.f32 %v4798, %v5397
        %v5500 = vmul.f32 %v4803, %v5397
        %v5501 = vmul.f32 %v4806, %v5397
        %v5502 = vmul.f32 %v4811, %v5397
        %v5503 = vmul.f32 %v4814, %v5397
        %v5504 = vmul.f32 %v4819, %v5397
        %v5505 = vmul.f32 %v4822, %v5397
        %v5506 = vmul.f32 %v4872, %v5401
        %v5507 = vmul.f32 %v4875, %v5401
        %v5508 = vmul.f32 %v4880, %v5401
        %v5509 = vmul.f32 %v4883, %v5401
        %v5510 = vmul.f32 %v4888, %v5401
        %v5511 = vmul.f32 %v4891, %v5401
        %v5512 = vmul.f32 %v4896, %v5401
        %v5513 = vmul.f32 %v4899, %v5401
        %v5514 = vmul.f32 %v4949, %v5405
        %v5515 = vmul.f32 %v4952, %v5405
        %v5516 = vmul.f32 %v4957, %v5405
        %v5517 = vmul.f32 %v4960, %v5405
        %v5518 = vmul.f32 %v4965, %v5405
        %v5519 = vmul.f32 %v4968, %v5405
        %v5520 = vmul.f32 %v4973, %v5405
        %v5521 = vmul.f32 %v4976, %v5405
        %v5522 = vmul.f32 %v5026, %v5409
        %v5523 = vmul.f32 %v5029, %v5409
        %v5524 = vmul.f32 %v5034, %v5409
        %v5525 = vmul.f32 %v5037, %v5409
        %v5526 = vmul.f32 %v5042, %v5409
        %v5527 = vmul.f32 %v5045, %v5409
        %v5528 = vmul.f32 %v5050, %v5409
        %v5529 = vmul.f32 %v5053, %v5409
        %v5530 = vmul.f32 %v5103, %v5413
        %v5531 = vmul.f32 %v5106, %v5413
        %v5532 = vmul.f32 %v5111, %v5413
        %v5533 = vmul.f32 %v5114, %v5413
        %v5534 = vmul.f32 %v5119, %v5413
        %v5535 = vmul.f32 %v5122, %v5413
        %v5536 = vmul.f32 %v5127, %v5413
        %v5537 = vmul.f32 %v5130, %v5413
        %v5538 = vmul.f32 %v5180, %v5417
        %v5539 = vmul.f32 %v5183, %v5417
        %v5540 = vmul.f32 %v5188, %v5417
        %v5541 = vmul.f32 %v5191, %v5417
        %v5542 = vmul.f32 %v5196, %v5417
        %v5543 = vmul.f32 %v5199, %v5417
        %v5544 = vmul.f32 %v5204, %v5417
        %v5545 = vmul.f32 %v5207, %v5417
        %v5546 = vpack.c.bf16 %v5419, %v5418
        %v5547 = vpack.c.bf16 %v5421, %v5420
        %v5548 = vpack.c.bf16 %v5423, %v5422
        %v5549 = vpack.c.bf16 %v5425, %v5424
        %v5550 = vpack.c.bf16 %v5427, %v5426
        %v5551 = vpack.c.bf16 %v5429, %v5428
        %v5552 = vpack.c.bf16 %v5431, %v5430
        %v5553 = vpack.c.bf16 %v5433, %v5432
        %v5554 = vpack.c.bf16 %v5435, %v5434
        %v5555 = vpack.c.bf16 %v5437, %v5436
        %v5556 = vpack.c.bf16 %v5439, %v5438
        %v5557 = vpack.c.bf16 %v5441, %v5440
        %v5558 = vpack.c.bf16 %v5443, %v5442
        %v5559 = vpack.c.bf16 %v5445, %v5444
        %v5560 = vpack.c.bf16 %v5447, %v5446
        %v5561 = vpack.c.bf16 %v5449, %v5448
        %v5562 = vpack.c.bf16 %v5451, %v5450
        %v5563 = vpack.c.bf16 %v5453, %v5452
        %v5564 = vpack.c.bf16 %v5455, %v5454
        %v5565 = vpack.c.bf16 %v5457, %v5456
        %v5566 = vpack.c.bf16 %v5459, %v5458
        %v5567 = vpack.c.bf16 %v5461, %v5460
        %v5568 = vpack.c.bf16 %v5463, %v5462
        %v5569 = vpack.c.bf16 %v5465, %v5464
        %v5570 = vpack.c.bf16 %v5467, %v5466
        %v5571 = vpack.c.bf16 %v5469, %v5468
        %v5572 = vpack.c.bf16 %v5471, %v5470
        %v5573 = vpack.c.bf16 %v5473, %v5472
        %v5574 = vpack.c.bf16 %v5475, %v5474
        %v5575 = vpack.c.bf16 %v5477, %v5476
        %v5576 = vpack.c.bf16 %v5479, %v5478
        %v5577 = vpack.c.bf16 %v5481, %v5480
        %v5578 = vpack.c.bf16 %v5483, %v5482
        %v5579 = vpack.c.bf16 %v5485, %v5484
        %v5580 = vpack.c.bf16 %v5487, %v5486
        %v5581 = vpack.c.bf16 %v5489, %v5488
        %v5582 = vpack.c.bf16 %v5491, %v5490
        %v5583 = vpack.c.bf16 %v5493, %v5492
        %v5584 = vpack.c.bf16 %v5495, %v5494
        %v5585 = vpack.c.bf16 %v5497, %v5496
        %v5586 = vpack.c.bf16 %v5499, %v5498
        %v5587 = vpack.c.bf16 %v5501, %v5500
        %v5588 = vpack.c.bf16 %v5503, %v5502
        %v5589 = vpack.c.bf16 %v5505, %v5504
        %v5590 = vpack.c.bf16 %v5507, %v5506
        %v5591 = vpack.c.bf16 %v5509, %v5508
        %v5592 = vpack.c.bf16 %v5511, %v5510
        %v5593 = vpack.c.bf16 %v5513, %v5512
        %v5594 = vpack.c.bf16 %v5515, %v5514
        %v5595 = vpack.c.bf16 %v5517, %v5516
        %v5596 = vpack.c.bf16 %v5519, %v5518
        %v5597 = vpack.c.bf16 %v5521, %v5520
        %v5598 = vpack.c.bf16 %v5523, %v5522
        %v5599 = vpack.c.bf16 %v5525, %v5524
        %v5600 = vpack.c.bf16 %v5527, %v5526
        %v5601 = vpack.c.bf16 %v5529, %v5528
        %v5602 = vpack.c.bf16 %v5531, %v5530
        %v5603 = vpack.c.bf16 %v5533, %v5532
        %v5604 = vpack.c.bf16 %v5535, %v5534
        %v5605 = vpack.c.bf16 %v5537, %v5536
        %v5606 = vpack.c.bf16 %v5539, %v5538
        %v5607 = vpack.c.bf16 %v5541, %v5540
        %v5608 = vpack.c.bf16 %v5543, %v5542
        %v5609 = vpack.c.bf16 %v5545, %v5544
        %5610 = vmatprep.subr.bf16.mxu0 0
        %5611 = vmatpush1.bf16.xpose.msra.mxu0 %v1097
        %5612 = vmatprep.subr.bf16.mxu0 0
        %5613 = vmatpush1.bf16.xpose.msra.mxu0 %v1098
        %5614 = vmatprep.subr.bf16.mxu0 0
        %5615 = vmatpush1.bf16.xpose.msra.mxu0 %v1099
        %5616 = vmatprep.subr.bf16.mxu0 0
        %5617 = vmatpush1.bf16.xpose.msra.mxu0 %v1100
        %5618 = vmatprep.subr.bf16.mxu0 0
        %5619 = vmatpush1.bf16.xpose.msra.mxu0 0
        %5620 = vmatprep.subr.bf16.mxu0 0
        %5621 = vmatpush1.bf16.xpose.msra.mxu0 0
        %5622 = vmatprep.subr.bf16.mxu0 0
        %5623 = vmatpush1.bf16.xpose.msra.mxu0 0
        %5624 = vmatprep.subr.bf16.mxu0 0
        %5625 = vmatpush1.bf16.xpose.msra.mxu0 0
        %5626 = vmatprep.subr.bf16.mxu0 0
        %5627 = vmatpush1.bf16.xpose.msra.mxu0 0
        %5628 = vmatprep.subr.bf16.mxu0 0
        %5629 = vmatpush1.bf16.xpose.msra.mxu0 0
        %5630 = vmatprep.subr.bf16.mxu0 0
        %5631 = vmatpush1.bf16.xpose.msra.mxu0 0
        %5632 = vmatprep.subr.bf16.mxu0 0
        %5633 = vmatpush1.bf16.xpose.msra.mxu0 0
        %5634 = vmatprep.subr.bf16.mxu0 0
        %5635 = vmatpush1.bf16.xpose.msra.mxu0 0
        %5636 = vmatprep.subr.bf16.mxu0 0
        %5637 = vmatpush1.bf16.xpose.msra.mxu0 0
        %5638 = vmatprep.subr.bf16.mxu0 0
        %5639 = vmatpush1.bf16.xpose.msra.mxu0 0
        %5640 = vmatprep.subr.bf16.mxu0 0
        %5641 = vmatpush1.bf16.xpose.msra.mxu0 0
        %5642 = vmatprep.mubr.bf16.mxu0 0
        %5643 = vmatmul.mubr.bf16.gmra.mrb[0].mxu0 %v479
        %v5644 = vpop.f32.mrb[0].mxu0
        %v5645 = vadd.f32 0.0, %v5644
        %v5646 = vpop.f32.mrb[0].mxu0
        %v5647 = vpop.f32.mrb[0].mxu0
        %v5648 = vadd.f32 0.0, %v5647
        %v5649 = vpop.f32.mrb[0].mxu0
        %5650 = vdwg.mxu0
        %5651 = vmatprep.subr.bf16.mxu0 0
        %5652 = vmatpush1.bf16.xpose.msra.mxu0 %v1186
        %5653 = vmatprep.subr.bf16.mxu0 0
        %5654 = vmatpush1.bf16.xpose.msra.mxu0 %v1187
        %5655 = vmatprep.subr.bf16.mxu0 0
        %5656 = vmatpush1.bf16.xpose.msra.mxu0 %v1188
        %5657 = vmatprep.subr.bf16.mxu0 0
        %5658 = vmatpush1.bf16.xpose.msra.mxu0 %v1189
        %5659 = vmatprep.subr.bf16.mxu0 0
        %5660 = vmatpush1.bf16.xpose.msra.mxu0 0
        %5661 = vmatprep.subr.bf16.mxu0 0
        %5662 = vmatpush1.bf16.xpose.msra.mxu0 0
        %5663 = vmatprep.subr.bf16.mxu0 0
        %5664 = vmatpush1.bf16.xpose.msra.mxu0 0
        %5665 = vmatprep.subr.bf16.mxu0 0
        %5666 = vmatpush1.bf16.xpose.msra.mxu0 0
        %5667 = vmatprep.subr.bf16.mxu0 0
        %5668 = vmatpush1.bf16.xpose.msra.mxu0 0
        %5669 = vmatprep.subr.bf16.mxu0 0
        %5670 = vmatpush1.bf16.xpose.msra.mxu0 0
        %5671 = vmatprep.subr.bf16.mxu0 0
        %5672 = vmatpush1.bf16.xpose.msra.mxu0 0
        %5673 = vmatprep.subr.bf16.mxu0 0
        %5674 = vmatpush1.bf16.xpose.msra.mxu0 0
        %5675 = vmatprep.subr.bf16.mxu0 0
        %5676 = vmatpush1.bf16.xpose.msra.mxu0 0
        %5677 = vmatprep.subr.bf16.mxu0 0
        %5678 = vmatpush1.bf16.xpose.msra.mxu0 0
        %5679 = vmatprep.subr.bf16.mxu0 0
        %5680 = vmatpush1.bf16.xpose.msra.mxu0 0
        %5681 = vmatprep.subr.bf16.mxu0 0
        %5682 = vmatpush1.bf16.xpose.msra.mxu0 0
        %5683 = vmatprep.mubr.bf16.mxu0 0
        %5684 = vmatmul.mubr.bf16.gmra.mrb[0].mxu0 %v479
        %v5685 = vpop.f32.mrb[0].mxu0
        %v5686 = vadd.f32 0.0, %v5685
        %v5687 = vpop.f32.mrb[0].mxu0
        %v5688 = vpop.f32.mrb[0].mxu0
        %v5689 = vadd.f32 0.0, %v5688
        %v5690 = vpop.f32.mrb[0].mxu0
        %5691 = vdwg.mxu0
        %5692 = vmatprep.subr.bf16.mxu0 0
        %5693 = vmatpush1.bf16.xpose.msra.mxu0 %v1275
        %5694 = vmatprep.subr.bf16.mxu0 0
        %5695 = vmatpush1.bf16.xpose.msra.mxu0 %v1276
        %5696 = vmatprep.subr.bf16.mxu0 0
        %5697 = vmatpush1.bf16.xpose.msra.mxu0 %v1277
        %5698 = vmatprep.subr.bf16.mxu0 0
        %5699 = vmatpush1.bf16.xpose.msra.mxu0 %v1278
        %5700 = vmatprep.subr.bf16.mxu0 0
        %5701 = vmatpush1.bf16.xpose.msra.mxu0 0
        %5702 = vmatprep.subr.bf16.mxu0 0
        %5703 = vmatpush1.bf16.xpose.msra.mxu0 0
        %5704 = vmatprep.subr.bf16.mxu0 0
        %5705 = vmatpush1.bf16.xpose.msra.mxu0 0
        %5706 = vmatprep.subr.bf16.mxu0 0
        %5707 = vmatpush1.bf16.xpose.msra.mxu0 0
        %5708 = vmatprep.subr.bf16.mxu0 0
        %5709 = vmatpush1.bf16.xpose.msra.mxu0 0
        %5710 = vmatprep.subr.bf16.mxu0 0
        %5711 = vmatpush1.bf16.xpose.msra.mxu0 0
        %5712 = vmatprep.subr.bf16.mxu0 0
        %5713 = vmatpush1.bf16.xpose.msra.mxu0 0
        %5714 = vmatprep.subr.bf16.mxu0 0
        %5715 = vmatpush1.bf16.xpose.msra.mxu0 0
        %5716 = vmatprep.subr.bf16.mxu0 0
        %5717 = vmatpush1.bf16.xpose.msra.mxu0 0
        %5718 = vmatprep.subr.bf16.mxu0 0
        %5719 = vmatpush1.bf16.xpose.msra.mxu0 0
        %5720 = vmatprep.subr.bf16.mxu0 0
        %5721 = vmatpush1.bf16.xpose.msra.mxu0 0
        %5722 = vmatprep.subr.bf16.mxu0 0
        %5723 = vmatpush1.bf16.xpose.msra.mxu0 0
        %5724 = vmatprep.mubr.bf16.mxu0 0
        %5725 = vmatmul.mubr.bf16.gmra.mrb[0].mxu0 %v479
        %v5726 = vpop.f32.mrb[0].mxu0
        %v5727 = vadd.f32 0.0, %v5726
        %v5728 = vpop.f32.mrb[0].mxu0
        %v5729 = vpop.f32.mrb[0].mxu0
        %v5730 = vadd.f32 0.0, %v5729
        %v5731 = vpop.f32.mrb[0].mxu0
        %5732 = vdwg.mxu0
        %5733 = vmatprep.subr.bf16.mxu0 0
        %5734 = vmatpush1.bf16.xpose.msra.mxu0 %v1364
        %5735 = vmatprep.subr.bf16.mxu0 0
        %5736 = vmatpush1.bf16.xpose.msra.mxu0 %v1365
        %5737 = vmatprep.subr.bf16.mxu0 0
        %5738 = vmatpush1.bf16.xpose.msra.mxu0 %v1366
        %5739 = vmatprep.subr.bf16.mxu0 0
        %5740 = vmatpush1.bf16.xpose.msra.mxu0 %v1367
        %5741 = vmatprep.subr.bf16.mxu0 0
        %5742 = vmatpush1.bf16.xpose.msra.mxu0 0
        %5743 = vmatprep.subr.bf16.mxu0 0
        %5744 = vmatpush1.bf16.xpose.msra.mxu0 0
        %5745 = vmatprep.subr.bf16.mxu0 0
        %5746 = vmatpush1.bf16.xpose.msra.mxu0 0
        %5747 = vmatprep.subr.bf16.mxu0 0
        %5748 = vmatpush1.bf16.xpose.msra.mxu0 0
        %5749 = vmatprep.subr.bf16.mxu0 0
        %5750 = vmatpush1.bf16.xpose.msra.mxu0 0
        %5751 = vmatprep.subr.bf16.mxu0 0
        %5752 = vmatpush1.bf16.xpose.msra.mxu0 0
        %5753 = vmatprep.subr.bf16.mxu0 0
        %5754 = vmatpush1.bf16.xpose.msra.mxu0 0
        %5755 = vmatprep.subr.bf16.mxu0 0
        %5756 = vmatpush1.bf16.xpose.msra.mxu0 0
        %5757 = vmatprep.subr.bf16.mxu0 0
        %5758 = vmatpush1.bf16.xpose.msra.mxu0 0
        %5759 = vmatprep.subr.bf16.mxu0 0
        %5760 = vmatpush1.bf16.xpose.msra.mxu0 0
        %5761 = vmatprep.subr.bf16.mxu0 0
        %5762 = vmatpush1.bf16.xpose.msra.mxu0 0
        %5763 = vmatprep.subr.bf16.mxu0 0
        %5764 = vmatpush1.bf16.xpose.msra.mxu0 0
        %5765 = vmatprep.mubr.bf16.mxu0 0
        %5766 = vmatmul.mubr.bf16.gmra.mrb[0].mxu0 %v479
        %v5767 = vpop.f32.mrb[0].mxu0
        %v5768 = vadd.f32 0.0, %v5767
        %v5769 = vpop.f32.mrb[0].mxu0
        %v5770 = vpop.f32.mrb[0].mxu0
        %v5771 = vadd.f32 0.0, %v5770
        %v5772 = vpop.f32.mrb[0].mxu0
        %5773 = vdwg.mxu0
        %5774 = vmatprep.subr.bf16.mxu0 0
        %5775 = vmatpush1.bf16.xpose.msra.mxu0 %v1453
        %5776 = vmatprep.subr.bf16.mxu0 0
        %5777 = vmatpush1.bf16.xpose.msra.mxu0 %v1454
        %5778 = vmatprep.subr.bf16.mxu0 0
        %5779 = vmatpush1.bf16.xpose.msra.mxu0 %v1455
        %5780 = vmatprep.subr.bf16.mxu0 0
        %5781 = vmatpush1.bf16.xpose.msra.mxu0 %v1456
        %5782 = vmatprep.subr.bf16.mxu0 0
        %5783 = vmatpush1.bf16.xpose.msra.mxu0 0
        %5784 = vmatprep.subr.bf16.mxu0 0
        %5785 = vmatpush1.bf16.xpose.msra.mxu0 0
        %5786 = vmatprep.subr.bf16.mxu0 0
        %5787 = vmatpush1.bf16.xpose.msra.mxu0 0
        %5788 = vmatprep.subr.bf16.mxu0 0
        %5789 = vmatpush1.bf16.xpose.msra.mxu0 0
        %5790 = vmatprep.subr.bf16.mxu0 0
        %5791 = vmatpush1.bf16.xpose.msra.mxu0 0
        %5792 = vmatprep.subr.bf16.mxu0 0
        %5793 = vmatpush1.bf16.xpose.msra.mxu0 0
        %5794 = vmatprep.subr.bf16.mxu0 0
        %5795 = vmatpush1.bf16.xpose.msra.mxu0 0
        %5796 = vmatprep.subr.bf16.mxu0 0
        %5797 = vmatpush1.bf16.xpose.msra.mxu0 0
        %5798 = vmatprep.subr.bf16.mxu0 0
        %5799 = vmatpush1.bf16.xpose.msra.mxu0 0
        %5800 = vmatprep.subr.bf16.mxu0 0
        %5801 = vmatpush1.bf16.xpose.msra.mxu0 0
        %5802 = vmatprep.subr.bf16.mxu0 0
        %5803 = vmatpush1.bf16.xpose.msra.mxu0 0
        %5804 = vmatprep.subr.bf16.mxu0 0
        %5805 = vmatpush1.bf16.xpose.msra.mxu0 0
        %5806 = vmatprep.mubr.bf16.mxu0 0
        %5807 = vmatmul.mubr.bf16.gmra.mrb[0].mxu0 %v479
        %v5808 = vpop.f32.mrb[0].mxu0
        %v5809 = vadd.f32 0.0, %v5808
        %v5810 = vpop.f32.mrb[0].mxu0
        %v5811 = vpop.f32.mrb[0].mxu0
        %v5812 = vadd.f32 0.0, %v5811
        %v5813 = vpop.f32.mrb[0].mxu0
        %5814 = vdwg.mxu0
        %5815 = vmatprep.subr.bf16.mxu0 0
        %5816 = vmatpush1.bf16.xpose.msra.mxu0 %v1542
        %5817 = vmatprep.subr.bf16.mxu0 0
        %5818 = vmatpush1.bf16.xpose.msra.mxu0 %v1543
        %5819 = vmatprep.subr.bf16.mxu0 0
        %5820 = vmatpush1.bf16.xpose.msra.mxu0 %v1544
        %5821 = vmatprep.subr.bf16.mxu0 0
        %5822 = vmatpush1.bf16.xpose.msra.mxu0 %v1545
        %5823 = vmatprep.subr.bf16.mxu0 0
        %5824 = vmatpush1.bf16.xpose.msra.mxu0 0
        %5825 = vmatprep.subr.bf16.mxu0 0
        %5826 = vmatpush1.bf16.xpose.msra.mxu0 0
        %5827 = vmatprep.subr.bf16.mxu0 0
        %5828 = vmatpush1.bf16.xpose.msra.mxu0 0
        %5829 = vmatprep.subr.bf16.mxu0 0
        %5830 = vmatpush1.bf16.xpose.msra.mxu0 0
        %5831 = vmatprep.subr.bf16.mxu0 0
        %5832 = vmatpush1.bf16.xpose.msra.mxu0 0
        %5833 = vmatprep.subr.bf16.mxu0 0
        %5834 = vmatpush1.bf16.xpose.msra.mxu0 0
        %5835 = vmatprep.subr.bf16.mxu0 0
        %5836 = vmatpush1.bf16.xpose.msra.mxu0 0
        %5837 = vmatprep.subr.bf16.mxu0 0
        %5838 = vmatpush1.bf16.xpose.msra.mxu0 0
        %5839 = vmatprep.subr.bf16.mxu0 0
        %5840 = vmatpush1.bf16.xpose.msra.mxu0 0
        %5841 = vmatprep.subr.bf16.mxu0 0
        %5842 = vmatpush1.bf16.xpose.msra.mxu0 0
        %5843 = vmatprep.subr.bf16.mxu0 0
        %5844 = vmatpush1.bf16.xpose.msra.mxu0 0
        %5845 = vmatprep.subr.bf16.mxu0 0
        %5846 = vmatpush1.bf16.xpose.msra.mxu0 0
        %5847 = vmatprep.mubr.bf16.mxu0 0
        %5848 = vmatmul.mubr.bf16.gmra.mrb[0].mxu0 %v479
        %v5849 = vpop.f32.mrb[0].mxu0
        %v5850 = vadd.f32 0.0, %v5849
        %v5851 = vpop.f32.mrb[0].mxu0
        %v5852 = vpop.f32.mrb[0].mxu0
        %v5853 = vadd.f32 0.0, %v5852
        %v5854 = vpop.f32.mrb[0].mxu0
        %5855 = vdwg.mxu0
        %5856 = vmatprep.subr.bf16.mxu0 0
        %5857 = vmatpush1.bf16.xpose.msra.mxu0 %v1631
        %5858 = vmatprep.subr.bf16.mxu0 0
        %5859 = vmatpush1.bf16.xpose.msra.mxu0 %v1632
        %5860 = vmatprep.subr.bf16.mxu0 0
        %5861 = vmatpush1.bf16.xpose.msra.mxu0 %v1633
        %5862 = vmatprep.subr.bf16.mxu0 0
        %5863 = vmatpush1.bf16.xpose.msra.mxu0 %v1634
        %5864 = vmatprep.subr.bf16.mxu0 0
        %5865 = vmatpush1.bf16.xpose.msra.mxu0 0
        %5866 = vmatprep.subr.bf16.mxu0 0
        %5867 = vmatpush1.bf16.xpose.msra.mxu0 0
        %5868 = vmatprep.subr.bf16.mxu0 0
        %5869 = vmatpush1.bf16.xpose.msra.mxu0 0
        %5870 = vmatprep.subr.bf16.mxu0 0
        %5871 = vmatpush1.bf16.xpose.msra.mxu0 0
        %5872 = vmatprep.subr.bf16.mxu0 0
        %5873 = vmatpush1.bf16.xpose.msra.mxu0 0
        %5874 = vmatprep.subr.bf16.mxu0 0
        %5875 = vmatpush1.bf16.xpose.msra.mxu0 0
        %5876 = vmatprep.subr.bf16.mxu0 0
        %5877 = vmatpush1.bf16.xpose.msra.mxu0 0
        %5878 = vmatprep.subr.bf16.mxu0 0
        %5879 = vmatpush1.bf16.xpose.msra.mxu0 0
        %5880 = vmatprep.subr.bf16.mxu0 0
        %5881 = vmatpush1.bf16.xpose.msra.mxu0 0
        %5882 = vmatprep.subr.bf16.mxu0 0
        %5883 = vmatpush1.bf16.xpose.msra.mxu0 0
        %5884 = vmatprep.subr.bf16.mxu0 0
        %5885 = vmatpush1.bf16.xpose.msra.mxu0 0
        %5886 = vmatprep.subr.bf16.mxu0 0
        %5887 = vmatpush1.bf16.xpose.msra.mxu0 0
        %5888 = vmatprep.mubr.bf16.mxu0 0
        %5889 = vmatmul.mubr.bf16.gmra.mrb[0].mxu0 %v479
        %v5890 = vpop.f32.mrb[0].mxu0
        %v5891 = vadd.f32 0.0, %v5890
        %v5892 = vpop.f32.mrb[0].mxu0
        %v5893 = vpop.f32.mrb[0].mxu0
        %v5894 = vadd.f32 0.0, %v5893
        %v5895 = vpop.f32.mrb[0].mxu0
        %5896 = vdwg.mxu0
        %5897 = vmatprep.subr.bf16.mxu0 0
        %5898 = vmatpush1.bf16.xpose.msra.mxu0 %v1720
        %5899 = vmatprep.subr.bf16.mxu0 0
        %5900 = vmatpush1.bf16.xpose.msra.mxu0 %v1721
        %5901 = vmatprep.subr.bf16.mxu0 0
        %5902 = vmatpush1.bf16.xpose.msra.mxu0 %v1722
        %5903 = vmatprep.subr.bf16.mxu0 0
        %5904 = vmatpush1.bf16.xpose.msra.mxu0 %v1723
        %5905 = vmatprep.subr.bf16.mxu0 0
        %5906 = vmatpush1.bf16.xpose.msra.mxu0 0
        %5907 = vmatprep.subr.bf16.mxu0 0
        %5908 = vmatpush1.bf16.xpose.msra.mxu0 0
        %5909 = vmatprep.subr.bf16.mxu0 0
        %5910 = vmatpush1.bf16.xpose.msra.mxu0 0
        %5911 = vmatprep.subr.bf16.mxu0 0
        %5912 = vmatpush1.bf16.xpose.msra.mxu0 0
        %5913 = vmatprep.subr.bf16.mxu0 0
        %5914 = vmatpush1.bf16.xpose.msra.mxu0 0
        %5915 = vmatprep.subr.bf16.mxu0 0
        %5916 = vmatpush1.bf16.xpose.msra.mxu0 0
        %5917 = vmatprep.subr.bf16.mxu0 0
        %5918 = vmatpush1.bf16.xpose.msra.mxu0 0
        %5919 = vmatprep.subr.bf16.mxu0 0
        %5920 = vmatpush1.bf16.xpose.msra.mxu0 0
        %5921 = vmatprep.subr.bf16.mxu0 0
        %5922 = vmatpush1.bf16.xpose.msra.mxu0 0
        %5923 = vmatprep.subr.bf16.mxu0 0
        %5924 = vmatpush1.bf16.xpose.msra.mxu0 0
        %5925 = vmatprep.subr.bf16.mxu0 0
        %5926 = vmatpush1.bf16.xpose.msra.mxu0 0
        %5927 = vmatprep.subr.bf16.mxu0 0
        %5928 = vmatpush1.bf16.xpose.msra.mxu0 0
        %5929 = vmatprep.mubr.bf16.mxu0 0
        %5930 = vmatmul.mubr.bf16.gmra.mrb[0].mxu0 %v479
        %v5931 = vpop.f32.mrb[0].mxu0
        %v5932 = vadd.f32 0.0, %v5931
        %v5933 = vpop.f32.mrb[0].mxu0
        %v5934 = vpop.f32.mrb[0].mxu0
        %v5935 = vadd.f32 0.0, %v5934
        %v5936 = vpop.f32.mrb[0].mxu0
        %5937 = vdwg.mxu0
        %5938 = vmatprep.subr.bf16.mxu0 0
        %5939 = vmatpush1.bf16.xpose.msra.mxu0 %v1809
        %5940 = vmatprep.subr.bf16.mxu0 0
        %5941 = vmatpush1.bf16.xpose.msra.mxu0 %v1810
        %5942 = vmatprep.subr.bf16.mxu0 0
        %5943 = vmatpush1.bf16.xpose.msra.mxu0 %v1811
        %5944 = vmatprep.subr.bf16.mxu0 0
        %5945 = vmatpush1.bf16.xpose.msra.mxu0 %v1812
        %5946 = vmatprep.subr.bf16.mxu0 0
        %5947 = vmatpush1.bf16.xpose.msra.mxu0 0
        %5948 = vmatprep.subr.bf16.mxu0 0
        %5949 = vmatpush1.bf16.xpose.msra.mxu0 0
        %5950 = vmatprep.subr.bf16.mxu0 0
        %5951 = vmatpush1.bf16.xpose.msra.mxu0 0
        %5952 = vmatprep.subr.bf16.mxu0 0
        %5953 = vmatpush1.bf16.xpose.msra.mxu0 0
        %5954 = vmatprep.subr.bf16.mxu0 0
        %5955 = vmatpush1.bf16.xpose.msra.mxu0 0
        %5956 = vmatprep.subr.bf16.mxu0 0
        %5957 = vmatpush1.bf16.xpose.msra.mxu0 0
        %5958 = vmatprep.subr.bf16.mxu0 0
        %5959 = vmatpush1.bf16.xpose.msra.mxu0 0
        %5960 = vmatprep.subr.bf16.mxu0 0
        %5961 = vmatpush1.bf16.xpose.msra.mxu0 0
        %5962 = vmatprep.subr.bf16.mxu0 0
        %5963 = vmatpush1.bf16.xpose.msra.mxu0 0
        %5964 = vmatprep.subr.bf16.mxu0 0
        %5965 = vmatpush1.bf16.xpose.msra.mxu0 0
        %5966 = vmatprep.subr.bf16.mxu0 0
        %5967 = vmatpush1.bf16.xpose.msra.mxu0 0
        %5968 = vmatprep.subr.bf16.mxu0 0
        %5969 = vmatpush1.bf16.xpose.msra.mxu0 0
        %5970 = vmatprep.mubr.bf16.mxu0 0
        %5971 = vmatmul.mubr.bf16.gmra.mrb[0].mxu0 %v479
        %v5972 = vpop.f32.mrb[0].mxu0
        %v5973 = vadd.f32 0.0, %v5972
        %v5974 = vpop.f32.mrb[0].mxu0
        %v5975 = vpop.f32.mrb[0].mxu0
        %v5976 = vadd.f32 0.0, %v5975
        %v5977 = vpop.f32.mrb[0].mxu0
        %5978 = vdwg.mxu0
        %5979 = vmatprep.subr.bf16.mxu0 0
        %5980 = vmatpush1.bf16.xpose.msra.mxu0 %v1898
        %5981 = vmatprep.subr.bf16.mxu0 0
        %5982 = vmatpush1.bf16.xpose.msra.mxu0 %v1899
        %5983 = vmatprep.subr.bf16.mxu0 0
        %5984 = vmatpush1.bf16.xpose.msra.mxu0 %v1900
        %5985 = vmatprep.subr.bf16.mxu0 0
        %5986 = vmatpush1.bf16.xpose.msra.mxu0 %v1901
        %5987 = vmatprep.subr.bf16.mxu0 0
        %5988 = vmatpush1.bf16.xpose.msra.mxu0 0
        %5989 = vmatprep.subr.bf16.mxu0 0
        %5990 = vmatpush1.bf16.xpose.msra.mxu0 0
        %5991 = vmatprep.subr.bf16.mxu0 0
        %5992 = vmatpush1.bf16.xpose.msra.mxu0 0
        %5993 = vmatprep.subr.bf16.mxu0 0
        %5994 = vmatpush1.bf16.xpose.msra.mxu0 0
        %5995 = vmatprep.subr.bf16.mxu0 0
        %5996 = vmatpush1.bf16.xpose.msra.mxu0 0
        %5997 = vmatprep.subr.bf16.mxu0 0
        %5998 = vmatpush1.bf16.xpose.msra.mxu0 0
        %5999 = vmatprep.subr.bf16.mxu0 0
        %6000 = vmatpush1.bf16.xpose.msra.mxu0 0
        %6001 = vmatprep.subr.bf16.mxu0 0
        %6002 = vmatpush1.bf16.xpose.msra.mxu0 0
        %6003 = vmatprep.subr.bf16.mxu0 0
        %6004 = vmatpush1.bf16.xpose.msra.mxu0 0
        %6005 = vmatprep.subr.bf16.mxu0 0
        %6006 = vmatpush1.bf16.xpose.msra.mxu0 0
        %6007 = vmatprep.subr.bf16.mxu0 0
        %6008 = vmatpush1.bf16.xpose.msra.mxu0 0
        %6009 = vmatprep.subr.bf16.mxu0 0
        %6010 = vmatpush1.bf16.xpose.msra.mxu0 0
        %6011 = vmatprep.mubr.bf16.mxu0 0
        %6012 = vmatmul.mubr.bf16.gmra.mrb[0].mxu0 %v479
        %v6013 = vpop.f32.mrb[0].mxu0
        %v6014 = vadd.f32 0.0, %v6013
        %v6015 = vpop.f32.mrb[0].mxu0
        %v6016 = vpop.f32.mrb[0].mxu0
        %v6017 = vadd.f32 0.0, %v6016
        %v6018 = vpop.f32.mrb[0].mxu0
        %6019 = vdwg.mxu0
        %6020 = vmatprep.subr.bf16.mxu0 0
        %6021 = vmatpush1.bf16.xpose.msra.mxu0 %v1987
        %6022 = vmatprep.subr.bf16.mxu0 0
        %6023 = vmatpush1.bf16.xpose.msra.mxu0 %v1988
        %6024 = vmatprep.subr.bf16.mxu0 0
        %6025 = vmatpush1.bf16.xpose.msra.mxu0 %v1989
        %6026 = vmatprep.subr.bf16.mxu0 0
        %6027 = vmatpush1.bf16.xpose.msra.mxu0 %v1990
        %6028 = vmatprep.subr.bf16.mxu0 0
        %6029 = vmatpush1.bf16.xpose.msra.mxu0 0
        %6030 = vmatprep.subr.bf16.mxu0 0
        %6031 = vmatpush1.bf16.xpose.msra.mxu0 0
        %6032 = vmatprep.subr.bf16.mxu0 0
        %6033 = vmatpush1.bf16.xpose.msra.mxu0 0
        %6034 = vmatprep.subr.bf16.mxu0 0
        %6035 = vmatpush1.bf16.xpose.msra.mxu0 0
        %6036 = vmatprep.subr.bf16.mxu0 0
        %6037 = vmatpush1.bf16.xpose.msra.mxu0 0
        %6038 = vmatprep.subr.bf16.mxu0 0
        %6039 = vmatpush1.bf16.xpose.msra.mxu0 0
        %6040 = vmatprep.subr.bf16.mxu0 0
        %6041 = vmatpush1.bf16.xpose.msra.mxu0 0
        %6042 = vmatprep.subr.bf16.mxu0 0
        %6043 = vmatpush1.bf16.xpose.msra.mxu0 0
        %6044 = vmatprep.subr.bf16.mxu0 0
        %6045 = vmatpush1.bf16.xpose.msra.mxu0 0
        %6046 = vmatprep.subr.bf16.mxu0 0
        %6047 = vmatpush1.bf16.xpose.msra.mxu0 0
        %6048 = vmatprep.subr.bf16.mxu0 0
        %6049 = vmatpush1.bf16.xpose.msra.mxu0 0
        %6050 = vmatprep.subr.bf16.mxu0 0
        %6051 = vmatpush1.bf16.xpose.msra.mxu0 0
        %6052 = vmatprep.mubr.bf16.mxu0 0
        %6053 = vmatmul.mubr.bf16.gmra.mrb[0].mxu0 %v479
        %v6054 = vpop.f32.mrb[0].mxu0
        %v6055 = vadd.f32 0.0, %v6054
        %v6056 = vpop.f32.mrb[0].mxu0
        %v6057 = vpop.f32.mrb[0].mxu0
        %v6058 = vadd.f32 0.0, %v6057
        %v6059 = vpop.f32.mrb[0].mxu0
        %6060 = vdwg.mxu0
        %6061 = vmatprep.subr.bf16.mxu0 0
        %6062 = vmatpush1.bf16.xpose.msra.mxu0 %v2076
        %6063 = vmatprep.subr.bf16.mxu0 0
        %6064 = vmatpush1.bf16.xpose.msra.mxu0 %v2077
        %6065 = vmatprep.subr.bf16.mxu0 0
        %6066 = vmatpush1.bf16.xpose.msra.mxu0 %v2078
        %6067 = vmatprep.subr.bf16.mxu0 0
        %6068 = vmatpush1.bf16.xpose.msra.mxu0 %v2079
        %6069 = vmatprep.subr.bf16.mxu0 0
        %6070 = vmatpush1.bf16.xpose.msra.mxu0 0
        %6071 = vmatprep.subr.bf16.mxu0 0
        %6072 = vmatpush1.bf16.xpose.msra.mxu0 0
        %6073 = vmatprep.subr.bf16.mxu0 0
        %6074 = vmatpush1.bf16.xpose.msra.mxu0 0
        %6075 = vmatprep.subr.bf16.mxu0 0
        %6076 = vmatpush1.bf16.xpose.msra.mxu0 0
        %6077 = vmatprep.subr.bf16.mxu0 0
        %6078 = vmatpush1.bf16.xpose.msra.mxu0 0
        %6079 = vmatprep.subr.bf16.mxu0 0
        %6080 = vmatpush1.bf16.xpose.msra.mxu0 0
        %6081 = vmatprep.subr.bf16.mxu0 0
        %6082 = vmatpush1.bf16.xpose.msra.mxu0 0
        %6083 = vmatprep.subr.bf16.mxu0 0
        %6084 = vmatpush1.bf16.xpose.msra.mxu0 0
        %6085 = vmatprep.subr.bf16.mxu0 0
        %6086 = vmatpush1.bf16.xpose.msra.mxu0 0
        %6087 = vmatprep.subr.bf16.mxu0 0
        %6088 = vmatpush1.bf16.xpose.msra.mxu0 0
        %6089 = vmatprep.subr.bf16.mxu0 0
        %6090 = vmatpush1.bf16.xpose.msra.mxu0 0
        %6091 = vmatprep.subr.bf16.mxu0 0
        %6092 = vmatpush1.bf16.xpose.msra.mxu0 0
        %6093 = vmatprep.mubr.bf16.mxu0 0
        %6094 = vmatmul.mubr.bf16.gmra.mrb[0].mxu0 %v479
        %v6095 = vpop.f32.mrb[0].mxu0
        %v6096 = vadd.f32 0.0, %v6095
        %v6097 = vpop.f32.mrb[0].mxu0
        %v6098 = vpop.f32.mrb[0].mxu0
        %v6099 = vadd.f32 0.0, %v6098
        %v6100 = vpop.f32.mrb[0].mxu0
        %6101 = vdwg.mxu0
        %6102 = vmatprep.subr.bf16.mxu0 0
        %6103 = vmatpush1.bf16.xpose.msra.mxu0 %v2165
        %6104 = vmatprep.subr.bf16.mxu0 0
        %6105 = vmatpush1.bf16.xpose.msra.mxu0 %v2166
        %6106 = vmatprep.subr.bf16.mxu0 0
        %6107 = vmatpush1.bf16.xpose.msra.mxu0 %v2167
        %6108 = vmatprep.subr.bf16.mxu0 0
        %6109 = vmatpush1.bf16.xpose.msra.mxu0 %v2168
        %6110 = vmatprep.subr.bf16.mxu0 0
        %6111 = vmatpush1.bf16.xpose.msra.mxu0 0
        %6112 = vmatprep.subr.bf16.mxu0 0
        %6113 = vmatpush1.bf16.xpose.msra.mxu0 0
        %6114 = vmatprep.subr.bf16.mxu0 0
        %6115 = vmatpush1.bf16.xpose.msra.mxu0 0
        %6116 = vmatprep.subr.bf16.mxu0 0
        %6117 = vmatpush1.bf16.xpose.msra.mxu0 0
        %6118 = vmatprep.subr.bf16.mxu0 0
        %6119 = vmatpush1.bf16.xpose.msra.mxu0 0
        %6120 = vmatprep.subr.bf16.mxu0 0
        %6121 = vmatpush1.bf16.xpose.msra.mxu0 0
        %6122 = vmatprep.subr.bf16.mxu0 0
        %6123 = vmatpush1.bf16.xpose.msra.mxu0 0
        %6124 = vmatprep.subr.bf16.mxu0 0
        %6125 = vmatpush1.bf16.xpose.msra.mxu0 0
        %6126 = vmatprep.subr.bf16.mxu0 0
        %6127 = vmatpush1.bf16.xpose.msra.mxu0 0
        %6128 = vmatprep.subr.bf16.mxu0 0
        %6129 = vmatpush1.bf16.xpose.msra.mxu0 0
        %6130 = vmatprep.subr.bf16.mxu0 0
        %6131 = vmatpush1.bf16.xpose.msra.mxu0 0
        %6132 = vmatprep.subr.bf16.mxu0 0
        %6133 = vmatpush1.bf16.xpose.msra.mxu0 0
        %6134 = vmatprep.mubr.bf16.mxu0 0
        %6135 = vmatmul.mubr.bf16.gmra.mrb[0].mxu0 %v479
        %v6136 = vpop.f32.mrb[0].mxu0
        %v6137 = vadd.f32 0.0, %v6136
        %v6138 = vpop.f32.mrb[0].mxu0
        %v6139 = vpop.f32.mrb[0].mxu0
        %v6140 = vadd.f32 0.0, %v6139
        %v6141 = vpop.f32.mrb[0].mxu0
        %6142 = vdwg.mxu0
        %6143 = vmatprep.subr.bf16.mxu0 0
        %6144 = vmatpush1.bf16.xpose.msra.mxu0 %v2254
        %6145 = vmatprep.subr.bf16.mxu0 0
        %6146 = vmatpush1.bf16.xpose.msra.mxu0 %v2255
        %6147 = vmatprep.subr.bf16.mxu0 0
        %6148 = vmatpush1.bf16.xpose.msra.mxu0 %v2256
        %6149 = vmatprep.subr.bf16.mxu0 0
        %6150 = vmatpush1.bf16.xpose.msra.mxu0 %v2257
        %6151 = vmatprep.subr.bf16.mxu0 0
        %6152 = vmatpush1.bf16.xpose.msra.mxu0 0
        %6153 = vmatprep.subr.bf16.mxu0 0
        %6154 = vmatpush1.bf16.xpose.msra.mxu0 0
        %6155 = vmatprep.subr.bf16.mxu0 0
        %6156 = vmatpush1.bf16.xpose.msra.mxu0 0
        %6157 = vmatprep.subr.bf16.mxu0 0
        %6158 = vmatpush1.bf16.xpose.msra.mxu0 0
        %6159 = vmatprep.subr.bf16.mxu0 0
        %6160 = vmatpush1.bf16.xpose.msra.mxu0 0
        %6161 = vmatprep.subr.bf16.mxu0 0
        %6162 = vmatpush1.bf16.xpose.msra.mxu0 0
        %6163 = vmatprep.subr.bf16.mxu0 0
        %6164 = vmatpush1.bf16.xpose.msra.mxu0 0
        %6165 = vmatprep.subr.bf16.mxu0 0
        %6166 = vmatpush1.bf16.xpose.msra.mxu0 0
        %6167 = vmatprep.subr.bf16.mxu0 0
        %6168 = vmatpush1.bf16.xpose.msra.mxu0 0
        %6169 = vmatprep.subr.bf16.mxu0 0
        %6170 = vmatpush1.bf16.xpose.msra.mxu0 0
        %6171 = vmatprep.subr.bf16.mxu0 0
        %6172 = vmatpush1.bf16.xpose.msra.mxu0 0
        %6173 = vmatprep.subr.bf16.mxu0 0
        %6174 = vmatpush1.bf16.xpose.msra.mxu0 0
        %6175 = vmatprep.mubr.bf16.mxu0 0
        %6176 = vmatmul.mubr.bf16.gmra.mrb[0].mxu0 %v479
        %v6177 = vpop.f32.mrb[0].mxu0
        %v6178 = vadd.f32 0.0, %v6177
        %v6179 = vpop.f32.mrb[0].mxu0
        %v6180 = vpop.f32.mrb[0].mxu0
        %v6181 = vadd.f32 0.0, %v6180
        %v6182 = vpop.f32.mrb[0].mxu0
        %6183 = vdwg.mxu0
        %6184 = vmatprep.subr.bf16.mxu0 0
        %6185 = vmatpush1.bf16.xpose.msra.mxu0 %v2343
        %6186 = vmatprep.subr.bf16.mxu0 0
        %6187 = vmatpush1.bf16.xpose.msra.mxu0 %v2344
        %6188 = vmatprep.subr.bf16.mxu0 0
        %6189 = vmatpush1.bf16.xpose.msra.mxu0 %v2345
        %6190 = vmatprep.subr.bf16.mxu0 0
        %6191 = vmatpush1.bf16.xpose.msra.mxu0 %v2346
        %6192 = vmatprep.subr.bf16.mxu0 0
        %6193 = vmatpush1.bf16.xpose.msra.mxu0 0
        %6194 = vmatprep.subr.bf16.mxu0 0
        %6195 = vmatpush1.bf16.xpose.msra.mxu0 0
        %6196 = vmatprep.subr.bf16.mxu0 0
        %6197 = vmatpush1.bf16.xpose.msra.mxu0 0
        %6198 = vmatprep.subr.bf16.mxu0 0
        %6199 = vmatpush1.bf16.xpose.msra.mxu0 0
        %6200 = vmatprep.subr.bf16.mxu0 0
        %6201 = vmatpush1.bf16.xpose.msra.mxu0 0
        %6202 = vmatprep.subr.bf16.mxu0 0
        %6203 = vmatpush1.bf16.xpose.msra.mxu0 0
        %6204 = vmatprep.subr.bf16.mxu0 0
        %6205 = vmatpush1.bf16.xpose.msra.mxu0 0
        %6206 = vmatprep.subr.bf16.mxu0 0
        %6207 = vmatpush1.bf16.xpose.msra.mxu0 0
        %6208 = vmatprep.subr.bf16.mxu0 0
        %6209 = vmatpush1.bf16.xpose.msra.mxu0 0
        %6210 = vmatprep.subr.bf16.mxu0 0
        %6211 = vmatpush1.bf16.xpose.msra.mxu0 0
        %6212 = vmatprep.subr.bf16.mxu0 0
        %6213 = vmatpush1.bf16.xpose.msra.mxu0 0
        %6214 = vmatprep.subr.bf16.mxu0 0
        %6215 = vmatpush1.bf16.xpose.msra.mxu0 0
        %6216 = vmatprep.mubr.bf16.mxu0 0
        %6217 = vmatmul.mubr.bf16.gmra.mrb[0].mxu0 %v479
        %v6218 = vpop.f32.mrb[0].mxu0
        %v6219 = vadd.f32 0.0, %v6218
        %v6220 = vpop.f32.mrb[0].mxu0
        %v6221 = vpop.f32.mrb[0].mxu0
        %v6222 = vadd.f32 0.0, %v6221
        %v6223 = vpop.f32.mrb[0].mxu0
        %6224 = vdwg.mxu0
        %6225 = vmatprep.subr.bf16.mxu0 0
        %6226 = vmatpush1.bf16.xpose.msra.mxu0 %v2432
        %6227 = vmatprep.subr.bf16.mxu0 0
        %6228 = vmatpush1.bf16.xpose.msra.mxu0 %v2433
        %6229 = vmatprep.subr.bf16.mxu0 0
        %6230 = vmatpush1.bf16.xpose.msra.mxu0 %v2434
        %6231 = vmatprep.subr.bf16.mxu0 0
        %6232 = vmatpush1.bf16.xpose.msra.mxu0 %v2435
        %6233 = vmatprep.subr.bf16.mxu0 0
        %6234 = vmatpush1.bf16.xpose.msra.mxu0 0
        %6235 = vmatprep.subr.bf16.mxu0 0
        %6236 = vmatpush1.bf16.xpose.msra.mxu0 0
        %6237 = vmatprep.subr.bf16.mxu0 0
        %6238 = vmatpush1.bf16.xpose.msra.mxu0 0
        %6239 = vmatprep.subr.bf16.mxu0 0
        %6240 = vmatpush1.bf16.xpose.msra.mxu0 0
        %6241 = vmatprep.subr.bf16.mxu0 0
        %6242 = vmatpush1.bf16.xpose.msra.mxu0 0
        %6243 = vmatprep.subr.bf16.mxu0 0
        %6244 = vmatpush1.bf16.xpose.msra.mxu0 0
        %6245 = vmatprep.subr.bf16.mxu0 0
        %6246 = vmatpush1.bf16.xpose.msra.mxu0 0
        %6247 = vmatprep.subr.bf16.mxu0 0
        %6248 = vmatpush1.bf16.xpose.msra.mxu0 0
        %6249 = vmatprep.subr.bf16.mxu0 0
        %6250 = vmatpush1.bf16.xpose.msra.mxu0 0
        %6251 = vmatprep.subr.bf16.mxu0 0
        %6252 = vmatpush1.bf16.xpose.msra.mxu0 0
        %6253 = vmatprep.subr.bf16.mxu0 0
        %6254 = vmatpush1.bf16.xpose.msra.mxu0 0
        %6255 = vmatprep.subr.bf16.mxu0 0
        %6256 = vmatpush1.bf16.xpose.msra.mxu0 0
        %6257 = vmatprep.mubr.bf16.mxu0 0
        %6258 = vmatmul.mubr.bf16.gmra.mrb[0].mxu0 %v479
        %v6259 = vpop.f32.mrb[0].mxu0
        %v6260 = vadd.f32 0.0, %v6259
        %v6261 = vpop.f32.mrb[0].mxu0
        %v6262 = vpop.f32.mrb[0].mxu0
        %v6263 = vadd.f32 0.0, %v6262
        %v6264 = vpop.f32.mrb[0].mxu0
        %6265 = vdwg.mxu0
        %vm6266 = vcmask 523264
        %v6267 = vsel %vm6266, %v5645, -inf
        %6268 = vmax.xlane.f32.xlu0 %v6267
        %v6269 = vpop.xlane.xlu0 %6268
        %v6270 = vsel %vm6266, %v5648, -inf
        %6271 = vmax.xlane.f32.xlu0 %v6270
        %v6272 = vpop.xlane.xlu0 %6271
        %v6273 = vsel %vm6266, %v5686, -inf
        %6274 = vmax.xlane.f32.xlu0 %v6273
        %v6275 = vpop.xlane.xlu0 %6274
        %v6276 = vsel %vm6266, %v5689, -inf
        %6277 = vmax.xlane.f32.xlu0 %v6276
        %v6278 = vpop.xlane.xlu0 %6277
        %v6279 = vsel %vm6266, %v5727, -inf
        %6280 = vmax.xlane.f32.xlu0 %v6279
        %v6281 = vpop.xlane.xlu0 %6280
        %v6282 = vsel %vm6266, %v5730, -inf
        %6283 = vmax.xlane.f32.xlu0 %v6282
        %v6284 = vpop.xlane.xlu0 %6283
        %v6285 = vsel %vm6266, %v5768, -inf
        %6286 = vmax.xlane.f32.xlu0 %v6285
        %v6287 = vpop.xlane.xlu0 %6286
        %v6288 = vsel %vm6266, %v5771, -inf
        %6289 = vmax.xlane.f32.xlu0 %v6288
        %v6290 = vpop.xlane.xlu0 %6289
        %v6291 = vsel %vm6266, %v5809, -inf
        %6292 = vmax.xlane.f32.xlu0 %v6291
        %v6293 = vpop.xlane.xlu0 %6292
        %v6294 = vsel %vm6266, %v5812, -inf
        %6295 = vmax.xlane.f32.xlu0 %v6294
        %v6296 = vpop.xlane.xlu0 %6295
        %v6297 = vsel %vm6266, %v5850, -inf
        %6298 = vmax.xlane.f32.xlu0 %v6297
        %v6299 = vpop.xlane.xlu0 %6298
        %v6300 = vsel %vm6266, %v5853, -inf
        %6301 = vmax.xlane.f32.xlu0 %v6300
        %v6302 = vpop.xlane.xlu0 %6301
        %v6303 = vsel %vm6266, %v5891, -inf
        %6304 = vmax.xlane.f32.xlu0 %v6303
        %v6305 = vpop.xlane.xlu0 %6304
        %v6306 = vsel %vm6266, %v5894, -inf
        %6307 = vmax.xlane.f32.xlu0 %v6306
        %v6308 = vpop.xlane.xlu0 %6307
        %v6309 = vsel %vm6266, %v5932, -inf
        %6310 = vmax.xlane.f32.xlu0 %v6309
        %v6311 = vpop.xlane.xlu0 %6310
        %v6312 = vsel %vm6266, %v5935, -inf
        %6313 = vmax.xlane.f32.xlu0 %v6312
        %v6314 = vpop.xlane.xlu0 %6313
        %v6315 = vsel %vm6266, %v5973, -inf
        %6316 = vmax.xlane.f32.xlu0 %v6315
        %v6317 = vpop.xlane.xlu0 %6316
        %v6318 = vsel %vm6266, %v5976, -inf
        %6319 = vmax.xlane.f32.xlu0 %v6318
        %v6320 = vpop.xlane.xlu0 %6319
        %v6321 = vsel %vm6266, %v6014, -inf
        %6322 = vmax.xlane.f32.xlu0 %v6321
        %v6323 = vpop.xlane.xlu0 %6322
        %v6324 = vsel %vm6266, %v6017, -inf
        %6325 = vmax.xlane.f32.xlu0 %v6324
        %v6326 = vpop.xlane.xlu0 %6325
        %v6327 = vsel %vm6266, %v6055, -inf
        %6328 = vmax.xlane.f32.xlu0 %v6327
        %v6329 = vpop.xlane.xlu0 %6328
        %v6330 = vsel %vm6266, %v6058, -inf
        %6331 = vmax.xlane.f32.xlu0 %v6330
        %v6332 = vpop.xlane.xlu0 %6331
        %v6333 = vsel %vm6266, %v6096, -inf
        %6334 = vmax.xlane.f32.xlu0 %v6333
        %v6335 = vpop.xlane.xlu0 %6334
        %v6336 = vsel %vm6266, %v6099, -inf
        %6337 = vmax.xlane.f32.xlu0 %v6336
        %v6338 = vpop.xlane.xlu0 %6337
        %v6339 = vsel %vm6266, %v6137, -inf
        %6340 = vmax.xlane.f32.xlu0 %v6339
        %v6341 = vpop.xlane.xlu0 %6340
        %v6342 = vsel %vm6266, %v6140, -inf
        %6343 = vmax.xlane.f32.xlu0 %v6342
        %v6344 = vpop.xlane.xlu0 %6343
        %v6345 = vsel %vm6266, %v6178, -inf
        %6346 = vmax.xlane.f32.xlu0 %v6345
        %v6347 = vpop.xlane.xlu0 %6346
        %v6348 = vsel %vm6266, %v6181, -inf
        %6349 = vmax.xlane.f32.xlu0 %v6348
        %v6350 = vpop.xlane.xlu0 %6349
        %v6351 = vsel %vm6266, %v6219, -inf
        %6352 = vmax.xlane.f32.xlu0 %v6351
        %v6353 = vpop.xlane.xlu0 %6352
        %v6354 = vsel %vm6266, %v6222, -inf
        %6355 = vmax.xlane.f32.xlu0 %v6354
        %v6356 = vpop.xlane.xlu0 %6355
        %v6357 = vsel %vm6266, %v6260, -inf
        %6358 = vmax.xlane.f32.xlu0 %v6357
        %v6359 = vpop.xlane.xlu0 %6358
        %v6360 = vsel %vm6266, %v6263, -inf
        %6361 = vmax.xlane.f32.xlu0 %v6360
        %v6362 = vpop.xlane.xlu0 %6361
        %v6363 = vsub.f32 %v5645, %v6269
        %v6364 = vsub.f32 %v5648, %v6272
        %v6365 = vsub.f32 %v5686, %v6275
        %v6366 = vsub.f32 %v5689, %v6278
        %v6367 = vsub.f32 %v5727, %v6281
        %v6368 = vsub.f32 %v5730, %v6284
        %v6369 = vsub.f32 %v5768, %v6287
        %v6370 = vsub.f32 %v5771, %v6290
        %v6371 = vsub.f32 %v5809, %v6293
        %v6372 = vsub.f32 %v5812, %v6296
        %v6373 = vsub.f32 %v5850, %v6299
        %v6374 = vsub.f32 %v5853, %v6302
        %v6375 = vsub.f32 %v5891, %v6305
        %v6376 = vsub.f32 %v5894, %v6308
        %v6377 = vsub.f32 %v5932, %v6311
        %v6378 = vsub.f32 %v5935, %v6314
        %v6379 = vsub.f32 %v5973, %v6317
        %v6380 = vsub.f32 %v5976, %v6320
        %v6381 = vsub.f32 %v6014, %v6323
        %v6382 = vsub.f32 %v6017, %v6326
        %v6383 = vsub.f32 %v6055, %v6329
        %v6384 = vsub.f32 %v6058, %v6332
        %v6385 = vsub.f32 %v6096, %v6335
        %v6386 = vsub.f32 %v6099, %v6338
        %v6387 = vsub.f32 %v6137, %v6341
        %v6388 = vsub.f32 %v6140, %v6344
        %v6389 = vsub.f32 %v6178, %v6347
        %v6390 = vsub.f32 %v6181, %v6350
        %v6391 = vsub.f32 %v6219, %v6353
        %v6392 = vsub.f32 %v6222, %v6356
        %v6393 = vsub.f32 %v6260, %v6359
        %v6394 = vsub.f32 %v6263, %v6362
        %v6395 = vmul.f32 %v6363, 1.442695
        %v6396 = vpow.pop %v6395
        %v6397 = vmul.f32 %v6364, 1.442695
        %v6398 = vpow.pop %v6397
        %v6399 = vmul.f32 %v6365, 1.442695
        %v6400 = vpow.pop %v6399
        %v6401 = vmul.f32 %v6366, 1.442695
        %v6402 = vpow.pop %v6401
        %v6403 = vmul.f32 %v6367, 1.442695
        %v6404 = vpow.pop %v6403
        %v6405 = vmul.f32 %v6368, 1.442695
        %v6406 = vpow.pop %v6405
        %v6407 = vmul.f32 %v6369, 1.442695
        %v6408 = vpow.pop %v6407
        %v6409 = vmul.f32 %v6370, 1.442695
        %v6410 = vpow.pop %v6409
        %v6411 = vmul.f32 %v6371, 1.442695
        %v6412 = vpow.pop %v6411
        %v6413 = vmul.f32 %v6372, 1.442695
        %v6414 = vpow.pop %v6413
        %v6415 = vmul.f32 %v6373, 1.442695
        %v6416 = vpow.pop %v6415
        %v6417 = vmul.f32 %v6374, 1.442695
        %v6418 = vpow.pop %v6417
        %v6419 = vmul.f32 %v6375, 1.442695
        %v6420 = vpow.pop %v6419
        %v6421 = vmul.f32 %v6376, 1.442695
        %v6422 = vpow.pop %v6421
        %v6423 = vmul.f32 %v6377, 1.442695
        %v6424 = vpow.pop %v6423
        %v6425 = vmul.f32 %v6378, 1.442695
        %v6426 = vpow.pop %v6425
        %v6427 = vmul.f32 %v6379, 1.442695
        %v6428 = vpow.pop %v6427
        %v6429 = vmul.f32 %v6380, 1.442695
        %v6430 = vpow.pop %v6429
        %v6431 = vmul.f32 %v6381, 1.442695
        %v6432 = vpow.pop %v6431
        %v6433 = vmul.f32 %v6382, 1.442695
        %v6434 = vpow.pop %v6433
        %v6435 = vmul.f32 %v6383, 1.442695
        %v6436 = vpow.pop %v6435
        %v6437 = vmul.f32 %v6384, 1.442695
        %v6438 = vpow.pop %v6437
        %v6439 = vmul.f32 %v6385, 1.442695
        %v6440 = vpow.pop %v6439
        %v6441 = vmul.f32 %v6386, 1.442695
        %v6442 = vpow.pop %v6441
        %v6443 = vmul.f32 %v6387, 1.442695
        %v6444 = vpow.pop %v6443
        %v6445 = vmul.f32 %v6388, 1.442695
        %v6446 = vpow.pop %v6445
        %v6447 = vmul.f32 %v6389, 1.442695
        %v6448 = vpow.pop %v6447
        %v6449 = vmul.f32 %v6390, 1.442695
        %v6450 = vpow.pop %v6449
        %v6451 = vmul.f32 %v6391, 1.442695
        %v6452 = vpow.pop %v6451
        %v6453 = vmul.f32 %v6392, 1.442695
        %v6454 = vpow.pop %v6453
        %v6455 = vmul.f32 %v6393, 1.442695
        %v6456 = vpow.pop %v6455
        %v6457 = vmul.f32 %v6394, 1.442695
        %v6458 = vpow.pop %v6457
        %v6459 = vsel %vm6266, %v6396, 0.0
        %6460 = vadd.xlane.f32.xlu0 %v6459
        %v6461 = vpop.xlane.xlu0 %6460
        %v6462 = vsel %vm6266, %v6398, 0.0
        %6463 = vadd.xlane.f32.xlu0 %v6462
        %v6464 = vpop.xlane.xlu0 %6463
        %v6465 = vsel %vm6266, %v6400, 0.0
        %6466 = vadd.xlane.f32.xlu0 %v6465
        %v6467 = vpop.xlane.xlu0 %6466
        %v6468 = vsel %vm6266, %v6402, 0.0
        %6469 = vadd.xlane.f32.xlu0 %v6468
        %v6470 = vpop.xlane.xlu0 %6469
        %v6471 = vsel %vm6266, %v6404, 0.0
        %6472 = vadd.xlane.f32.xlu0 %v6471
        %v6473 = vpop.xlane.xlu0 %6472
        %v6474 = vsel %vm6266, %v6406, 0.0
        %6475 = vadd.xlane.f32.xlu0 %v6474
        %v6476 = vpop.xlane.xlu0 %6475
        %v6477 = vsel %vm6266, %v6408, 0.0
        %6478 = vadd.xlane.f32.xlu0 %v6477
        %v6479 = vpop.xlane.xlu0 %6478
        %v6480 = vsel %vm6266, %v6410, 0.0
        %6481 = vadd.xlane.f32.xlu0 %v6480
        %v6482 = vpop.xlane.xlu0 %6481
        %v6483 = vsel %vm6266, %v6412, 0.0
        %6484 = vadd.xlane.f32.xlu0 %v6483
        %v6485 = vpop.xlane.xlu0 %6484
        %v6486 = vsel %vm6266, %v6414, 0.0
        %6487 = vadd.xlane.f32.xlu0 %v6486
        %v6488 = vpop.xlane.xlu0 %6487
        %v6489 = vsel %vm6266, %v6416, 0.0
        %6490 = vadd.xlane.f32.xlu0 %v6489
        %v6491 = vpop.xlane.xlu0 %6490
        %v6492 = vsel %vm6266, %v6418, 0.0
        %6493 = vadd.xlane.f32.xlu0 %v6492
        %v6494 = vpop.xlane.xlu0 %6493
        %v6495 = vsel %vm6266, %v6420, 0.0
        %6496 = vadd.xlane.f32.xlu0 %v6495
        %v6497 = vpop.xlane.xlu0 %6496
        %v6498 = vsel %vm6266, %v6422, 0.0
        %6499 = vadd.xlane.f32.xlu0 %v6498
        %v6500 = vpop.xlane.xlu0 %6499
        %v6501 = vsel %vm6266, %v6424, 0.0
        %6502 = vadd.xlane.f32.xlu0 %v6501
        %v6503 = vpop.xlane.xlu0 %6502
        %v6504 = vsel %vm6266, %v6426, 0.0
        %6505 = vadd.xlane.f32.xlu0 %v6504
        %v6506 = vpop.xlane.xlu0 %6505
        %v6507 = vsel %vm6266, %v6428, 0.0
        %6508 = vadd.xlane.f32.xlu0 %v6507
        %v6509 = vpop.xlane.xlu0 %6508
        %v6510 = vsel %vm6266, %v6430, 0.0
        %6511 = vadd.xlane.f32.xlu0 %v6510
        %v6512 = vpop.xlane.xlu0 %6511
        %v6513 = vsel %vm6266, %v6432, 0.0
        %6514 = vadd.xlane.f32.xlu0 %v6513
        %v6515 = vpop.xlane.xlu0 %6514
        %v6516 = vsel %vm6266, %v6434, 0.0
        %6517 = vadd.xlane.f32.xlu0 %v6516
        %v6518 = vpop.xlane.xlu0 %6517
        %v6519 = vsel %vm6266, %v6436, 0.0
        %6520 = vadd.xlane.f32.xlu0 %v6519
        %v6521 = vpop.xlane.xlu0 %6520
        %v6522 = vsel %vm6266, %v6438, 0.0
        %6523 = vadd.xlane.f32.xlu0 %v6522
        %v6524 = vpop.xlane.xlu0 %6523
        %v6525 = vsel %vm6266, %v6440, 0.0
        %6526 = vadd.xlane.f32.xlu0 %v6525
        %v6527 = vpop.xlane.xlu0 %6526
        %v6528 = vsel %vm6266, %v6442, 0.0
        %6529 = vadd.xlane.f32.xlu0 %v6528
        %v6530 = vpop.xlane.xlu0 %6529
        %v6531 = vsel %vm6266, %v6444, 0.0
        %6532 = vadd.xlane.f32.xlu0 %v6531
        %v6533 = vpop.xlane.xlu0 %6532
        %v6534 = vsel %vm6266, %v6446, 0.0
        %6535 = vadd.xlane.f32.xlu0 %v6534
        %v6536 = vpop.xlane.xlu0 %6535
        %v6537 = vsel %vm6266, %v6448, 0.0
        %6538 = vadd.xlane.f32.xlu0 %v6537
        %v6539 = vpop.xlane.xlu0 %6538
        %v6540 = vsel %vm6266, %v6450, 0.0
        %6541 = vadd.xlane.f32.xlu0 %v6540
        %v6542 = vpop.xlane.xlu0 %6541
        %v6543 = vsel %vm6266, %v6452, 0.0
        %6544 = vadd.xlane.f32.xlu0 %v6543
        %v6545 = vpop.xlane.xlu0 %6544
        %v6546 = vsel %vm6266, %v6454, 0.0
        %6547 = vadd.xlane.f32.xlu0 %v6546
        %v6548 = vpop.xlane.xlu0 %6547
        %v6549 = vsel %vm6266, %v6456, 0.0
        %6550 = vadd.xlane.f32.xlu0 %v6549
        %v6551 = vpop.xlane.xlu0 %6550
        %v6552 = vsel %vm6266, %v6458, 0.0
        %6553 = vadd.xlane.f32.xlu0 %v6552
        %v6554 = vpop.xlane.xlu0 %6553
        %v6555 = vrcp.pop %v6461
        %v6556 = vrcp.pop %v6464
        %v6557 = vrcp.pop %v6467
        %v6558 = vrcp.pop %v6470
        %v6559 = vrcp.pop %v6473
        %v6560 = vrcp.pop %v6476
        %v6561 = vrcp.pop %v6479
        %v6562 = vrcp.pop %v6482
        %v6563 = vrcp.pop %v6485
        %v6564 = vrcp.pop %v6488
        %v6565 = vrcp.pop %v6491
        %v6566 = vrcp.pop %v6494
        %v6567 = vrcp.pop %v6497
        %v6568 = vrcp.pop %v6500
        %v6569 = vrcp.pop %v6503
        %v6570 = vrcp.pop %v6506
        %v6571 = vrcp.pop %v6509
        %v6572 = vrcp.pop %v6512
        %v6573 = vrcp.pop %v6515
        %v6574 = vrcp.pop %v6518
        %v6575 = vrcp.pop %v6521
        %v6576 = vrcp.pop %v6524
        %v6577 = vrcp.pop %v6527
        %v6578 = vrcp.pop %v6530
        %v6579 = vrcp.pop %v6533
        %v6580 = vrcp.pop %v6536
        %v6581 = vrcp.pop %v6539
        %v6582 = vrcp.pop %v6542
        %v6583 = vrcp.pop %v6545
        %v6584 = vrcp.pop %v6548
        %v6585 = vrcp.pop %v6551
        %v6586 = vrcp.pop %v6554
        %v6587 = vmul.f32 %v6396, %v6555
        %v6588 = vmul.f32 %v6398, %v6556
        %v6589 = vmul.f32 %v6400, %v6557
        %v6590 = vmul.f32 %v6402, %v6558
        %v6591 = vmul.f32 %v6404, %v6559
        %v6592 = vmul.f32 %v6406, %v6560
        %v6593 = vmul.f32 %v6408, %v6561
        %v6594 = vmul.f32 %v6410, %v6562
        %v6595 = vmul.f32 %v6412, %v6563
        %v6596 = vmul.f32 %v6414, %v6564
        %v6597 = vmul.f32 %v6416, %v6565
        %v6598 = vmul.f32 %v6418, %v6566
        %v6599 = vmul.f32 %v6420, %v6567
        %v6600 = vmul.f32 %v6422, %v6568
        %v6601 = vmul.f32 %v6424, %v6569
        %v6602 = vmul.f32 %v6426, %v6570
        %v6603 = vmul.f32 %v6428, %v6571
        %v6604 = vmul.f32 %v6430, %v6572
        %v6605 = vmul.f32 %v6432, %v6573
        %v6606 = vmul.f32 %v6434, %v6574
        %v6607 = vmul.f32 %v6436, %v6575
        %v6608 = vmul.f32 %v6438, %v6576
        %v6609 = vmul.f32 %v6440, %v6577
        %v6610 = vmul.f32 %v6442, %v6578
        %v6611 = vmul.f32 %v6444, %v6579
        %v6612 = vmul.f32 %v6446, %v6580
        %v6613 = vmul.f32 %v6448, %v6581
        %v6614 = vmul.f32 %v6450, %v6582
        %v6615 = vmul.f32 %v6452, %v6583
        %v6616 = vmul.f32 %v6454, %v6584
        %v6617 = vmul.f32 %v6456, %v6585
        %v6618 = vmul.f32 %v6458, %v6586
        %v6619 = vpack.c.bf16 %v6588, %v6587
        %v6620 = vpack.c.bf16 %v6590, %v6589
        %v6621 = vpack.c.bf16 %v6592, %v6591
        %v6622 = vpack.c.bf16 %v6594, %v6593
        %v6623 = vpack.c.bf16 %v6596, %v6595
        %v6624 = vpack.c.bf16 %v6598, %v6597
        %v6625 = vpack.c.bf16 %v6600, %v6599
        %v6626 = vpack.c.bf16 %v6602, %v6601
        %v6627 = vpack.c.bf16 %v6604, %v6603
        %v6628 = vpack.c.bf16 %v6606, %v6605
        %v6629 = vpack.c.bf16 %v6608, %v6607
        %v6630 = vpack.c.bf16 %v6610, %v6609
        %v6631 = vpack.c.bf16 %v6612, %v6611
        %v6632 = vpack.c.bf16 %v6614, %v6613
        %v6633 = vpack.c.bf16 %v6616, %v6615
        %v6634 = vpack.c.bf16 %v6618, %v6617
        %v6636 = vsel %vm6266, %v6619, 0
        %6638 = vmatprep.subr.bf16.mxu0 0
        %6639 = vmatpush1.bf16.msra.mxu0 %v5546
        %6640 = vmatprep.subr.bf16.mxu0 0
        %6641 = vmatpush1.bf16.msra.mxu0 %v5547
        %6642 = vmatprep.subr.bf16.mxu0 0
        %6643 = vmatpush1.bf16.msra.mxu0 %v5548
        %6644 = vmatprep.subr.bf16.mxu0 0
        %6645 = vmatpush1.bf16.msra.mxu0 %v5549
        %6646 = vmatprep.subr.bf16.mxu0 0
        %6647 = vmatpush1.bf16.msra.mxu0 0
        %6648 = vmatprep.subr.bf16.mxu0 0
        %6649 = vmatpush1.bf16.msra.mxu0 0
        %6650 = vmatprep.subr.bf16.mxu0 0
        %6651 = vmatpush1.bf16.msra.mxu0 0
        %6652 = vmatprep.subr.bf16.mxu0 0
        %6653 = vmatpush1.bf16.msra.mxu0 0
        %6654 = vmatprep.subr.bf16.mxu0 0
        %6655 = vmatpush1.bf16.msra.mxu0 0
        %6656 = vmatprep.subr.bf16.mxu0 0
        %6657 = vmatpush1.bf16.msra.mxu0 0
        %6658 = vmatprep.subr.bf16.mxu0 0
        %6659 = vmatpush1.bf16.msra.mxu0 0
        %6660 = vmatprep.subr.bf16.mxu0 0
        %6661 = vmatpush1.bf16.msra.mxu0 0
        %6662 = vmatprep.subr.bf16.mxu0 0
        %6663 = vmatpush1.bf16.msra.mxu0 0
        %6664 = vmatprep.subr.bf16.mxu0 0
        %6665 = vmatpush1.bf16.msra.mxu0 0
        %6666 = vmatprep.subr.bf16.mxu0 0
        %6667 = vmatpush1.bf16.msra.mxu0 0
        %6668 = vmatprep.subr.bf16.mxu0 0
        %6669 = vmatpush1.bf16.msra.mxu0 0
        %6670 = vmatprep.mubr.bf16.mxu0 0
        %6671 = vmatmul.mubr.bf16.gmra.mrb[0].mxu0 %v6636
        %v6672 = vpop.f32.mrb[0].mxu0
        %v6673 = vadd.f32 0.0, %v6672
        %v6674 = vpop.f32.mrb[0].mxu0
        %v6675 = vpop.f32.mrb[0].mxu0
        %v6676 = vadd.f32 0.0, %v6675
        %v6677 = vpop.f32.mrb[0].mxu0
        %6678 = vdwg.mxu0
        %v6680 = vsel %vm6266, %v6620, 0
        %6682 = vmatprep.subr.bf16.mxu0 0
        %6683 = vmatpush1.bf16.msra.mxu0 %v5550
        %6684 = vmatprep.subr.bf16.mxu0 0
        %6685 = vmatpush1.bf16.msra.mxu0 %v5551
        %6686 = vmatprep.subr.bf16.mxu0 0
        %6687 = vmatpush1.bf16.msra.mxu0 %v5552
        %6688 = vmatprep.subr.bf16.mxu0 0
        %6689 = vmatpush1.bf16.msra.mxu0 %v5553
        %6690 = vmatprep.subr.bf16.mxu0 0
        %6691 = vmatpush1.bf16.msra.mxu0 0
        %6692 = vmatprep.subr.bf16.mxu0 0
        %6693 = vmatpush1.bf16.msra.mxu0 0
        %6694 = vmatprep.subr.bf16.mxu0 0
        %6695 = vmatpush1.bf16.msra.mxu0 0
        %6696 = vmatprep.subr.bf16.mxu0 0
        %6697 = vmatpush1.bf16.msra.mxu0 0
        %6698 = vmatprep.subr.bf16.mxu0 0
        %6699 = vmatpush1.bf16.msra.mxu0 0
        %6700 = vmatprep.subr.bf16.mxu0 0
        %6701 = vmatpush1.bf16.msra.mxu0 0
        %6702 = vmatprep.subr.bf16.mxu0 0
        %6703 = vmatpush1.bf16.msra.mxu0 0
        %6704 = vmatprep.subr.bf16.mxu0 0
        %6705 = vmatpush1.bf16.msra.mxu0 0
        %6706 = vmatprep.subr.bf16.mxu0 0
        %6707 = vmatpush1.bf16.msra.mxu0 0
        %6708 = vmatprep.subr.bf16.mxu0 0
        %6709 = vmatpush1.bf16.msra.mxu0 0
        %6710 = vmatprep.subr.bf16.mxu0 0
        %6711 = vmatpush1.bf16.msra.mxu0 0
        %6712 = vmatprep.subr.bf16.mxu0 0
        %6713 = vmatpush1.bf16.msra.mxu0 0
        %6714 = vmatprep.mubr.bf16.mxu0 0
        %6715 = vmatmul.mubr.bf16.gmra.mrb[0].mxu0 %v6680
        %v6716 = vpop.f32.mrb[0].mxu0
        %v6717 = vadd.f32 0.0, %v6716
        %v6718 = vpop.f32.mrb[0].mxu0
        %v6719 = vpop.f32.mrb[0].mxu0
        %v6720 = vadd.f32 0.0, %v6719
        %v6721 = vpop.f32.mrb[0].mxu0
        %6722 = vdwg.mxu0
        %v6724 = vsel %vm6266, %v6621, 0
        %6726 = vmatprep.subr.bf16.mxu0 0
        %6727 = vmatpush1.bf16.msra.mxu0 %v5554
        %6728 = vmatprep.subr.bf16.mxu0 0
        %6729 = vmatpush1.bf16.msra.mxu0 %v5555
        %6730 = vmatprep.subr.bf16.mxu0 0
        %6731 = vmatpush1.bf16.msra.mxu0 %v5556
        %6732 = vmatprep.subr.bf16.mxu0 0
        %6733 = vmatpush1.bf16.msra.mxu0 %v5557
        %6734 = vmatprep.subr.bf16.mxu0 0
        %6735 = vmatpush1.bf16.msra.mxu0 0
        %6736 = vmatprep.subr.bf16.mxu0 0
        %6737 = vmatpush1.bf16.msra.mxu0 0
        %6738 = vmatprep.subr.bf16.mxu0 0
        %6739 = vmatpush1.bf16.msra.mxu0 0
        %6740 = vmatprep.subr.bf16.mxu0 0
        %6741 = vmatpush1.bf16.msra.mxu0 0
        %6742 = vmatprep.subr.bf16.mxu0 0
        %6743 = vmatpush1.bf16.msra.mxu0 0
        %6744 = vmatprep.subr.bf16.mxu0 0
        %6745 = vmatpush1.bf16.msra.mxu0 0
        %6746 = vmatprep.subr.bf16.mxu0 0
        %6747 = vmatpush1.bf16.msra.mxu0 0
        %6748 = vmatprep.subr.bf16.mxu0 0
        %6749 = vmatpush1.bf16.msra.mxu0 0
        %6750 = vmatprep.subr.bf16.mxu0 0
        %6751 = vmatpush1.bf16.msra.mxu0 0
        %6752 = vmatprep.subr.bf16.mxu0 0
        %6753 = vmatpush1.bf16.msra.mxu0 0
        %6754 = vmatprep.subr.bf16.mxu0 0
        %6755 = vmatpush1.bf16.msra.mxu0 0
        %6756 = vmatprep.subr.bf16.mxu0 0
        %6757 = vmatpush1.bf16.msra.mxu0 0
        %6758 = vmatprep.mubr.bf16.mxu0 0
        %6759 = vmatmul.mubr.bf16.gmra.mrb[0].mxu0 %v6724
        %v6760 = vpop.f32.mrb[0].mxu0
        %v6761 = vadd.f32 0.0, %v6760
        %v6762 = vpop.f32.mrb[0].mxu0
        %v6763 = vpop.f32.mrb[0].mxu0
        %v6764 = vadd.f32 0.0, %v6763
        %v6765 = vpop.f32.mrb[0].mxu0
        %6766 = vdwg.mxu0
        %v6768 = vsel %vm6266, %v6622, 0
        %6770 = vmatprep.subr.bf16.mxu0 0
        %6771 = vmatpush1.bf16.msra.mxu0 %v5558
        %6772 = vmatprep.subr.bf16.mxu0 0
        %6773 = vmatpush1.bf16.msra.mxu0 %v5559
        %6774 = vmatprep.subr.bf16.mxu0 0
        %6775 = vmatpush1.bf16.msra.mxu0 %v5560
        %6776 = vmatprep.subr.bf16.mxu0 0
        %6777 = vmatpush1.bf16.msra.mxu0 %v5561
        %6778 = vmatprep.subr.bf16.mxu0 0
        %6779 = vmatpush1.bf16.msra.mxu0 0
        %6780 = vmatprep.subr.bf16.mxu0 0
        %6781 = vmatpush1.bf16.msra.mxu0 0
        %6782 = vmatprep.subr.bf16.mxu0 0
        %6783 = vmatpush1.bf16.msra.mxu0 0
        %6784 = vmatprep.subr.bf16.mxu0 0
        %6785 = vmatpush1.bf16.msra.mxu0 0
        %6786 = vmatprep.subr.bf16.mxu0 0
        %6787 = vmatpush1.bf16.msra.mxu0 0
        %6788 = vmatprep.subr.bf16.mxu0 0
        %6789 = vmatpush1.bf16.msra.mxu0 0
        %6790 = vmatprep.subr.bf16.mxu0 0
        %6791 = vmatpush1.bf16.msra.mxu0 0
        %6792 = vmatprep.subr.bf16.mxu0 0
        %6793 = vmatpush1.bf16.msra.mxu0 0
        %6794 = vmatprep.subr.bf16.mxu0 0
        %6795 = vmatpush1.bf16.msra.mxu0 0
        %6796 = vmatprep.subr.bf16.mxu0 0
        %6797 = vmatpush1.bf16.msra.mxu0 0
        %6798 = vmatprep.subr.bf16.mxu0 0
        %6799 = vmatpush1.bf16.msra.mxu0 0
        %6800 = vmatprep.subr.bf16.mxu0 0
        %6801 = vmatpush1.bf16.msra.mxu0 0
        %6802 = vmatprep.mubr.bf16.mxu0 0
        %6803 = vmatmul.mubr.bf16.gmra.mrb[0].mxu0 %v6768
        %v6804 = vpop.f32.mrb[0].mxu0
        %v6805 = vadd.f32 0.0, %v6804
        %v6806 = vpop.f32.mrb[0].mxu0
        %v6807 = vpop.f32.mrb[0].mxu0
        %v6808 = vadd.f32 0.0, %v6807
        %v6809 = vpop.f32.mrb[0].mxu0
        %6810 = vdwg.mxu0
        %v6812 = vsel %vm6266, %v6623, 0
        %6814 = vmatprep.subr.bf16.mxu0 0
        %6815 = vmatpush1.bf16.msra.mxu0 %v5562
        %6816 = vmatprep.subr.bf16.mxu0 0
        %6817 = vmatpush1.bf16.msra.mxu0 %v5563
        %6818 = vmatprep.subr.bf16.mxu0 0
        %6819 = vmatpush1.bf16.msra.mxu0 %v5564
        %6820 = vmatprep.subr.bf16.mxu0 0
        %6821 = vmatpush1.bf16.msra.mxu0 %v5565
        %6822 = vmatprep.subr.bf16.mxu0 0
        %6823 = vmatpush1.bf16.msra.mxu0 0
        %6824 = vmatprep.subr.bf16.mxu0 0
        %6825 = vmatpush1.bf16.msra.mxu0 0
        %6826 = vmatprep.subr.bf16.mxu0 0
        %6827 = vmatpush1.bf16.msra.mxu0 0
        %6828 = vmatprep.subr.bf16.mxu0 0
        %6829 = vmatpush1.bf16.msra.mxu0 0
        %6830 = vmatprep.subr.bf16.mxu0 0
        %6831 = vmatpush1.bf16.msra.mxu0 0
        %6832 = vmatprep.subr.bf16.mxu0 0
        %6833 = vmatpush1.bf16.msra.mxu0 0
        %6834 = vmatprep.subr.bf16.mxu0 0
        %6835 = vmatpush1.bf16.msra.mxu0 0
        %6836 = vmatprep.subr.bf16.mxu0 0
        %6837 = vmatpush1.bf16.msra.mxu0 0
        %6838 = vmatprep.subr.bf16.mxu0 0
        %6839 = vmatpush1.bf16.msra.mxu0 0
        %6840 = vmatprep.subr.bf16.mxu0 0
        %6841 = vmatpush1.bf16.msra.mxu0 0
        %6842 = vmatprep.subr.bf16.mxu0 0
        %6843 = vmatpush1.bf16.msra.mxu0 0
        %6844 = vmatprep.subr.bf16.mxu0 0
        %6845 = vmatpush1.bf16.msra.mxu0 0
        %6846 = vmatprep.mubr.bf16.mxu0 0
        %6847 = vmatmul.mubr.bf16.gmra.mrb[0].mxu0 %v6812
        %v6848 = vpop.f32.mrb[0].mxu0
        %v6849 = vadd.f32 0.0, %v6848
        %v6850 = vpop.f32.mrb[0].mxu0
        %v6851 = vpop.f32.mrb[0].mxu0
        %v6852 = vadd.f32 0.0, %v6851
        %v6853 = vpop.f32.mrb[0].mxu0
        %6854 = vdwg.mxu0
        %v6856 = vsel %vm6266, %v6624, 0
        %6858 = vmatprep.subr.bf16.mxu0 0
        %6859 = vmatpush1.bf16.msra.mxu0 %v5566
        %6860 = vmatprep.subr.bf16.mxu0 0
        %6861 = vmatpush1.bf16.msra.mxu0 %v5567
        %6862 = vmatprep.subr.bf16.mxu0 0
        %6863 = vmatpush1.bf16.msra.mxu0 %v5568
        %6864 = vmatprep.subr.bf16.mxu0 0
        %6865 = vmatpush1.bf16.msra.mxu0 %v5569
        %6866 = vmatprep.subr.bf16.mxu0 0
        %6867 = vmatpush1.bf16.msra.mxu0 0
        %6868 = vmatprep.subr.bf16.mxu0 0
        %6869 = vmatpush1.bf16.msra.mxu0 0
        %6870 = vmatprep.subr.bf16.mxu0 0
        %6871 = vmatpush1.bf16.msra.mxu0 0
        %6872 = vmatprep.subr.bf16.mxu0 0
        %6873 = vmatpush1.bf16.msra.mxu0 0
        %6874 = vmatprep.subr.bf16.mxu0 0
        %6875 = vmatpush1.bf16.msra.mxu0 0
        %6876 = vmatprep.subr.bf16.mxu0 0
        %6877 = vmatpush1.bf16.msra.mxu0 0
        %6878 = vmatprep.subr.bf16.mxu0 0
        %6879 = vmatpush1.bf16.msra.mxu0 0
        %6880 = vmatprep.subr.bf16.mxu0 0
        %6881 = vmatpush1.bf16.msra.mxu0 0
        %6882 = vmatprep.subr.bf16.mxu0 0
        %6883 = vmatpush1.bf16.msra.mxu0 0
        %6884 = vmatprep.subr.bf16.mxu0 0
        %6885 = vmatpush1.bf16.msra.mxu0 0
        %6886 = vmatprep.subr.bf16.mxu0 0
        %6887 = vmatpush1.bf16.msra.mxu0 0
        %6888 = vmatprep.subr.bf16.mxu0 0
        %6889 = vmatpush1.bf16.msra.mxu0 0
        %6890 = vmatprep.mubr.bf16.mxu0 0
        %6891 = vmatmul.mubr.bf16.gmra.mrb[0].mxu0 %v6856
        %v6892 = vpop.f32.mrb[0].mxu0
        %v6893 = vadd.f32 0.0, %v6892
        %v6894 = vpop.f32.mrb[0].mxu0
        %v6895 = vpop.f32.mrb[0].mxu0
        %v6896 = vadd.f32 0.0, %v6895
        %v6897 = vpop.f32.mrb[0].mxu0
        %6898 = vdwg.mxu0
        %v6900 = vsel %vm6266, %v6625, 0
        %6902 = vmatprep.subr.bf16.mxu0 0
        %6903 = vmatpush1.bf16.msra.mxu0 %v5570
        %6904 = vmatprep.subr.bf16.mxu0 0
        %6905 = vmatpush1.bf16.msra.mxu0 %v5571
        %6906 = vmatprep.subr.bf16.mxu0 0
        %6907 = vmatpush1.bf16.msra.mxu0 %v5572
        %6908 = vmatprep.subr.bf16.mxu0 0
        %6909 = vmatpush1.bf16.msra.mxu0 %v5573
        %6910 = vmatprep.subr.bf16.mxu0 0
        %6911 = vmatpush1.bf16.msra.mxu0 0
        %6912 = vmatprep.subr.bf16.mxu0 0
        %6913 = vmatpush1.bf16.msra.mxu0 0
        %6914 = vmatprep.subr.bf16.mxu0 0
        %6915 = vmatpush1.bf16.msra.mxu0 0
        %6916 = vmatprep.subr.bf16.mxu0 0
        %6917 = vmatpush1.bf16.msra.mxu0 0
        %6918 = vmatprep.subr.bf16.mxu0 0
        %6919 = vmatpush1.bf16.msra.mxu0 0
        %6920 = vmatprep.subr.bf16.mxu0 0
        %6921 = vmatpush1.bf16.msra.mxu0 0
        %6922 = vmatprep.subr.bf16.mxu0 0
        %6923 = vmatpush1.bf16.msra.mxu0 0
        %6924 = vmatprep.subr.bf16.mxu0 0
        %6925 = vmatpush1.bf16.msra.mxu0 0
        %6926 = vmatprep.subr.bf16.mxu0 0
        %6927 = vmatpush1.bf16.msra.mxu0 0
        %6928 = vmatprep.subr.bf16.mxu0 0
        %6929 = vmatpush1.bf16.msra.mxu0 0
        %6930 = vmatprep.subr.bf16.mxu0 0
        %6931 = vmatpush1.bf16.msra.mxu0 0
        %6932 = vmatprep.subr.bf16.mxu0 0
        %6933 = vmatpush1.bf16.msra.mxu0 0
        %6934 = vmatprep.mubr.bf16.mxu0 0
        %6935 = vmatmul.mubr.bf16.gmra.mrb[0].mxu0 %v6900
        %v6936 = vpop.f32.mrb[0].mxu0
        %v6937 = vadd.f32 0.0, %v6936
        %v6938 = vpop.f32.mrb[0].mxu0
        %v6939 = vpop.f32.mrb[0].mxu0
        %v6940 = vadd.f32 0.0, %v6939
        %v6941 = vpop.f32.mrb[0].mxu0
        %6942 = vdwg.mxu0
        %v6944 = vsel %vm6266, %v6626, 0
        %6946 = vmatprep.subr.bf16.mxu0 0
        %6947 = vmatpush1.bf16.msra.mxu0 %v5574
        %6948 = vmatprep.subr.bf16.mxu0 0
        %6949 = vmatpush1.bf16.msra.mxu0 %v5575
        %6950 = vmatprep.subr.bf16.mxu0 0
        %6951 = vmatpush1.bf16.msra.mxu0 %v5576
        %6952 = vmatprep.subr.bf16.mxu0 0
        %6953 = vmatpush1.bf16.msra.mxu0 %v5577
        %6954 = vmatprep.subr.bf16.mxu0 0
        %6955 = vmatpush1.bf16.msra.mxu0 0
        %6956 = vmatprep.subr.bf16.mxu0 0
        %6957 = vmatpush1.bf16.msra.mxu0 0
        %6958 = vmatprep.subr.bf16.mxu0 0
        %6959 = vmatpush1.bf16.msra.mxu0 0
        %6960 = vmatprep.subr.bf16.mxu0 0
        %6961 = vmatpush1.bf16.msra.mxu0 0
        %6962 = vmatprep.subr.bf16.mxu0 0
        %6963 = vmatpush1.bf16.msra.mxu0 0
        %6964 = vmatprep.subr.bf16.mxu0 0
        %6965 = vmatpush1.bf16.msra.mxu0 0
        %6966 = vmatprep.subr.bf16.mxu0 0
        %6967 = vmatpush1.bf16.msra.mxu0 0
        %6968 = vmatprep.subr.bf16.mxu0 0
        %6969 = vmatpush1.bf16.msra.mxu0 0
        %6970 = vmatprep.subr.bf16.mxu0 0
        %6971 = vmatpush1.bf16.msra.mxu0 0
        %6972 = vmatprep.subr.bf16.mxu0 0
        %6973 = vmatpush1.bf16.msra.mxu0 0
        %6974 = vmatprep.subr.bf16.mxu0 0
        %6975 = vmatpush1.bf16.msra.mxu0 0
        %6976 = vmatprep.subr.bf16.mxu0 0
        %6977 = vmatpush1.bf16.msra.mxu0 0
        %6978 = vmatprep.mubr.bf16.mxu0 0
        %6979 = vmatmul.mubr.bf16.gmra.mrb[0].mxu0 %v6944
        %v6980 = vpop.f32.mrb[0].mxu0
        %v6981 = vadd.f32 0.0, %v6980
        %v6982 = vpop.f32.mrb[0].mxu0
        %v6983 = vpop.f32.mrb[0].mxu0
        %v6984 = vadd.f32 0.0, %v6983
        %v6985 = vpop.f32.mrb[0].mxu0
        %6986 = vdwg.mxu0
        %v6988 = vsel %vm6266, %v6627, 0
        %6990 = vmatprep.subr.bf16.mxu0 0
        %6991 = vmatpush1.bf16.msra.mxu0 %v5578
        %6992 = vmatprep.subr.bf16.mxu0 0
        %6993 = vmatpush1.bf16.msra.mxu0 %v5579
        %6994 = vmatprep.subr.bf16.mxu0 0
        %6995 = vmatpush1.bf16.msra.mxu0 %v5580
        %6996 = vmatprep.subr.bf16.mxu0 0
        %6997 = vmatpush1.bf16.msra.mxu0 %v5581
        %6998 = vmatprep.subr.bf16.mxu0 0
        %6999 = vmatpush1.bf16.msra.mxu0 0
        %7000 = vmatprep.subr.bf16.mxu0 0
        %7001 = vmatpush1.bf16.msra.mxu0 0
        %7002 = vmatprep.subr.bf16.mxu0 0
        %7003 = vmatpush1.bf16.msra.mxu0 0
        %7004 = vmatprep.subr.bf16.mxu0 0
        %7005 = vmatpush1.bf16.msra.mxu0 0
        %7006 = vmatprep.subr.bf16.mxu0 0
        %7007 = vmatpush1.bf16.msra.mxu0 0
        %7008 = vmatprep.subr.bf16.mxu0 0
        %7009 = vmatpush1.bf16.msra.mxu0 0
        %7010 = vmatprep.subr.bf16.mxu0 0
        %7011 = vmatpush1.bf16.msra.mxu0 0
        %7012 = vmatprep.subr.bf16.mxu0 0
        %7013 = vmatpush1.bf16.msra.mxu0 0
        %7014 = vmatprep.subr.bf16.mxu0 0
        %7015 = vmatpush1.bf16.msra.mxu0 0
        %7016 = vmatprep.subr.bf16.mxu0 0
        %7017 = vmatpush1.bf16.msra.mxu0 0
        %7018 = vmatprep.subr.bf16.mxu0 0
        %7019 = vmatpush1.bf16.msra.mxu0 0
        %7020 = vmatprep.subr.bf16.mxu0 0
        %7021 = vmatpush1.bf16.msra.mxu0 0
        %7022 = vmatprep.mubr.bf16.mxu0 0
        %7023 = vmatmul.mubr.bf16.gmra.mrb[0].mxu0 %v6988
        %v7024 = vpop.f32.mrb[0].mxu0
        %v7025 = vadd.f32 0.0, %v7024
        %v7026 = vpop.f32.mrb[0].mxu0
        %v7027 = vpop.f32.mrb[0].mxu0
        %v7028 = vadd.f32 0.0, %v7027
        %v7029 = vpop.f32.mrb[0].mxu0
        %7030 = vdwg.mxu0
        %v7032 = vsel %vm6266, %v6628, 0
        %7034 = vmatprep.subr.bf16.mxu0 0
        %7035 = vmatpush1.bf16.msra.mxu0 %v5582
        %7036 = vmatprep.subr.bf16.mxu0 0
        %7037 = vmatpush1.bf16.msra.mxu0 %v5583
        %7038 = vmatprep.subr.bf16.mxu0 0
        %7039 = vmatpush1.bf16.msra.mxu0 %v5584
        %7040 = vmatprep.subr.bf16.mxu0 0
        %7041 = vmatpush1.bf16.msra.mxu0 %v5585
        %7042 = vmatprep.subr.bf16.mxu0 0
        %7043 = vmatpush1.bf16.msra.mxu0 0
        %7044 = vmatprep.subr.bf16.mxu0 0
        %7045 = vmatpush1.bf16.msra.mxu0 0
        %7046 = vmatprep.subr.bf16.mxu0 0
        %7047 = vmatpush1.bf16.msra.mxu0 0
        %7048 = vmatprep.subr.bf16.mxu0 0
        %7049 = vmatpush1.bf16.msra.mxu0 0
        %7050 = vmatprep.subr.bf16.mxu0 0
        %7051 = vmatpush1.bf16.msra.mxu0 0
        %7052 = vmatprep.subr.bf16.mxu0 0
        %7053 = vmatpush1.bf16.msra.mxu0 0
        %7054 = vmatprep.subr.bf16.mxu0 0
        %7055 = vmatpush1.bf16.msra.mxu0 0
        %7056 = vmatprep.subr.bf16.mxu0 0
        %7057 = vmatpush1.bf16.msra.mxu0 0
        %7058 = vmatprep.subr.bf16.mxu0 0
        %7059 = vmatpush1.bf16.msra.mxu0 0
        %7060 = vmatprep.subr.bf16.mxu0 0
        %7061 = vmatpush1.bf16.msra.mxu0 0
        %7062 = vmatprep.subr.bf16.mxu0 0
        %7063 = vmatpush1.bf16.msra.mxu0 0
        %7064 = vmatprep.subr.bf16.mxu0 0
        %7065 = vmatpush1.bf16.msra.mxu0 0
        %7066 = vmatprep.mubr.bf16.mxu0 0
        %7067 = vmatmul.mubr.bf16.gmra.mrb[0].mxu0 %v7032
        %v7068 = vpop.f32.mrb[0].mxu0
        %v7069 = vadd.f32 0.0, %v7068
        %v7070 = vpop.f32.mrb[0].mxu0
        %v7071 = vpop.f32.mrb[0].mxu0
        %v7072 = vadd.f32 0.0, %v7071
        %v7073 = vpop.f32.mrb[0].mxu0
        %7074 = vdwg.mxu0
        %v7076 = vsel %vm6266, %v6629, 0
        %7078 = vmatprep.subr.bf16.mxu0 0
        %7079 = vmatpush1.bf16.msra.mxu0 %v5586
        %7080 = vmatprep.subr.bf16.mxu0 0
        %7081 = vmatpush1.bf16.msra.mxu0 %v5587
        %7082 = vmatprep.subr.bf16.mxu0 0
        %7083 = vmatpush1.bf16.msra.mxu0 %v5588
        %7084 = vmatprep.subr.bf16.mxu0 0
        %7085 = vmatpush1.bf16.msra.mxu0 %v5589
        %7086 = vmatprep.subr.bf16.mxu0 0
        %7087 = vmatpush1.bf16.msra.mxu0 0
        %7088 = vmatprep.subr.bf16.mxu0 0
        %7089 = vmatpush1.bf16.msra.mxu0 0
        %7090 = vmatprep.subr.bf16.mxu0 0
        %7091 = vmatpush1.bf16.msra.mxu0 0
        %7092 = vmatprep.subr.bf16.mxu0 0
        %7093 = vmatpush1.bf16.msra.mxu0 0
        %7094 = vmatprep.subr.bf16.mxu0 0
        %7095 = vmatpush1.bf16.msra.mxu0 0
        %7096 = vmatprep.subr.bf16.mxu0 0
        %7097 = vmatpush1.bf16.msra.mxu0 0
        %7098 = vmatprep.subr.bf16.mxu0 0
        %7099 = vmatpush1.bf16.msra.mxu0 0
        %7100 = vmatprep.subr.bf16.mxu0 0
        %7101 = vmatpush1.bf16.msra.mxu0 0
        %7102 = vmatprep.subr.bf16.mxu0 0
        %7103 = vmatpush1.bf16.msra.mxu0 0
        %7104 = vmatprep.subr.bf16.mxu0 0
        %7105 = vmatpush1.bf16.msra.mxu0 0
        %7106 = vmatprep.subr.bf16.mxu0 0
        %7107 = vmatpush1.bf16.msra.mxu0 0
        %7108 = vmatprep.subr.bf16.mxu0 0
        %7109 = vmatpush1.bf16.msra.mxu0 0
        %7110 = vmatprep.mubr.bf16.mxu0 0
        %7111 = vmatmul.mubr.bf16.gmra.mrb[0].mxu0 %v7076
        %v7112 = vpop.f32.mrb[0].mxu0
        %v7113 = vadd.f32 0.0, %v7112
        %v7114 = vpop.f32.mrb[0].mxu0
        %v7115 = vpop.f32.mrb[0].mxu0
        %v7116 = vadd.f32 0.0, %v7115
        %v7117 = vpop.f32.mrb[0].mxu0
        %7118 = vdwg.mxu0
        %v7120 = vsel %vm6266, %v6630, 0
        %7122 = vmatprep.subr.bf16.mxu0 0
        %7123 = vmatpush1.bf16.msra.mxu0 %v5590
        %7124 = vmatprep.subr.bf16.mxu0 0
        %7125 = vmatpush1.bf16.msra.mxu0 %v5591
        %7126 = vmatprep.subr.bf16.mxu0 0
        %7127 = vmatpush1.bf16.msra.mxu0 %v5592
        %7128 = vmatprep.subr.bf16.mxu0 0
        %7129 = vmatpush1.bf16.msra.mxu0 %v5593
        %7130 = vmatprep.subr.bf16.mxu0 0
        %7131 = vmatpush1.bf16.msra.mxu0 0
        %7132 = vmatprep.subr.bf16.mxu0 0
        %7133 = vmatpush1.bf16.msra.mxu0 0
        %7134 = vmatprep.subr.bf16.mxu0 0
        %7135 = vmatpush1.bf16.msra.mxu0 0
        %7136 = vmatprep.subr.bf16.mxu0 0
        %7137 = vmatpush1.bf16.msra.mxu0 0
        %7138 = vmatprep.subr.bf16.mxu0 0
        %7139 = vmatpush1.bf16.msra.mxu0 0
        %7140 = vmatprep.subr.bf16.mxu0 0
        %7141 = vmatpush1.bf16.msra.mxu0 0
        %7142 = vmatprep.subr.bf16.mxu0 0
        %7143 = vmatpush1.bf16.msra.mxu0 0
        %7144 = vmatprep.subr.bf16.mxu0 0
        %7145 = vmatpush1.bf16.msra.mxu0 0
        %7146 = vmatprep.subr.bf16.mxu0 0
        %7147 = vmatpush1.bf16.msra.mxu0 0
        %7148 = vmatprep.subr.bf16.mxu0 0
        %7149 = vmatpush1.bf16.msra.mxu0 0
        %7150 = vmatprep.subr.bf16.mxu0 0
        %7151 = vmatpush1.bf16.msra.mxu0 0
        %7152 = vmatprep.subr.bf16.mxu0 0
        %7153 = vmatpush1.bf16.msra.mxu0 0
        %7154 = vmatprep.mubr.bf16.mxu0 0
        %7155 = vmatmul.mubr.bf16.gmra.mrb[0].mxu0 %v7120
        %v7156 = vpop.f32.mrb[0].mxu0
        %v7157 = vadd.f32 0.0, %v7156
        %v7158 = vpop.f32.mrb[0].mxu0
        %v7159 = vpop.f32.mrb[0].mxu0
        %v7160 = vadd.f32 0.0, %v7159
        %v7161 = vpop.f32.mrb[0].mxu0
        %7162 = vdwg.mxu0
        %v7164 = vsel %vm6266, %v6631, 0
        %7166 = vmatprep.subr.bf16.mxu0 0
        %7167 = vmatpush1.bf16.msra.mxu0 %v5594
        %7168 = vmatprep.subr.bf16.mxu0 0
        %7169 = vmatpush1.bf16.msra.mxu0 %v5595
        %7170 = vmatprep.subr.bf16.mxu0 0
        %7171 = vmatpush1.bf16.msra.mxu0 %v5596
        %7172 = vmatprep.subr.bf16.mxu0 0
        %7173 = vmatpush1.bf16.msra.mxu0 %v5597
        %7174 = vmatprep.subr.bf16.mxu0 0
        %7175 = vmatpush1.bf16.msra.mxu0 0
        %7176 = vmatprep.subr.bf16.mxu0 0
        %7177 = vmatpush1.bf16.msra.mxu0 0
        %7178 = vmatprep.subr.bf16.mxu0 0
        %7179 = vmatpush1.bf16.msra.mxu0 0
        %7180 = vmatprep.subr.bf16.mxu0 0
        %7181 = vmatpush1.bf16.msra.mxu0 0
        %7182 = vmatprep.subr.bf16.mxu0 0
        %7183 = vmatpush1.bf16.msra.mxu0 0
        %7184 = vmatprep.subr.bf16.mxu0 0
        %7185 = vmatpush1.bf16.msra.mxu0 0
        %7186 = vmatprep.subr.bf16.mxu0 0
        %7187 = vmatpush1.bf16.msra.mxu0 0
        %7188 = vmatprep.subr.bf16.mxu0 0
        %7189 = vmatpush1.bf16.msra.mxu0 0
        %7190 = vmatprep.subr.bf16.mxu0 0
        %7191 = vmatpush1.bf16.msra.mxu0 0
        %7192 = vmatprep.subr.bf16.mxu0 0
        %7193 = vmatpush1.bf16.msra.mxu0 0
        %7194 = vmatprep.subr.bf16.mxu0 0
        %7195 = vmatpush1.bf16.msra.mxu0 0
        %7196 = vmatprep.subr.bf16.mxu0 0
        %7197 = vmatpush1.bf16.msra.mxu0 0
        %7198 = vmatprep.mubr.bf16.mxu0 0
        %7199 = vmatmul.mubr.bf16.gmra.mrb[0].mxu0 %v7164
        %v7200 = vpop.f32.mrb[0].mxu0
        %v7201 = vadd.f32 0.0, %v7200
        %v7202 = vpop.f32.mrb[0].mxu0
        %v7203 = vpop.f32.mrb[0].mxu0
        %v7204 = vadd.f32 0.0, %v7203
        %v7205 = vpop.f32.mrb[0].mxu0
        %7206 = vdwg.mxu0
        %v7208 = vsel %vm6266, %v6632, 0
        %7210 = vmatprep.subr.bf16.mxu0 0
        %7211 = vmatpush1.bf16.msra.mxu0 %v5598
        %7212 = vmatprep.subr.bf16.mxu0 0
        %7213 = vmatpush1.bf16.msra.mxu0 %v5599
        %7214 = vmatprep.subr.bf16.mxu0 0
        %7215 = vmatpush1.bf16.msra.mxu0 %v5600
        %7216 = vmatprep.subr.bf16.mxu0 0
        %7217 = vmatpush1.bf16.msra.mxu0 %v5601
        %7218 = vmatprep.subr.bf16.mxu0 0
        %7219 = vmatpush1.bf16.msra.mxu0 0
        %7220 = vmatprep.subr.bf16.mxu0 0
        %7221 = vmatpush1.bf16.msra.mxu0 0
        %7222 = vmatprep.subr.bf16.mxu0 0
        %7223 = vmatpush1.bf16.msra.mxu0 0
        %7224 = vmatprep.subr.bf16.mxu0 0
        %7225 = vmatpush1.bf16.msra.mxu0 0
        %7226 = vmatprep.subr.bf16.mxu0 0
        %7227 = vmatpush1.bf16.msra.mxu0 0
        %7228 = vmatprep.subr.bf16.mxu0 0
        %7229 = vmatpush1.bf16.msra.mxu0 0
        %7230 = vmatprep.subr.bf16.mxu0 0
        %7231 = vmatpush1.bf16.msra.mxu0 0
        %7232 = vmatprep.subr.bf16.mxu0 0
        %7233 = vmatpush1.bf16.msra.mxu0 0
        %7234 = vmatprep.subr.bf16.mxu0 0
        %7235 = vmatpush1.bf16.msra.mxu0 0
        %7236 = vmatprep.subr.bf16.mxu0 0
        %7237 = vmatpush1.bf16.msra.mxu0 0
        %7238 = vmatprep.subr.bf16.mxu0 0
        %7239 = vmatpush1.bf16.msra.mxu0 0
        %7240 = vmatprep.subr.bf16.mxu0 0
        %7241 = vmatpush1.bf16.msra.mxu0 0
        %7242 = vmatprep.mubr.bf16.mxu0 0
        %7243 = vmatmul.mubr.bf16.gmra.mrb[0].mxu0 %v7208
        %v7244 = vpop.f32.mrb[0].mxu0
        %v7245 = vadd.f32 0.0, %v7244
        %v7246 = vpop.f32.mrb[0].mxu0
        %v7247 = vpop.f32.mrb[0].mxu0
        %v7248 = vadd.f32 0.0, %v7247
        %v7249 = vpop.f32.mrb[0].mxu0
        %7250 = vdwg.mxu0
        %v7252 = vsel %vm6266, %v6633, 0
        %7254 = vmatprep.subr.bf16.mxu0 0
        %7255 = vmatpush1.bf16.msra.mxu0 %v5602
        %7256 = vmatprep.subr.bf16.mxu0 0
        %7257 = vmatpush1.bf16.msra.mxu0 %v5603
        %7258 = vmatprep.subr.bf16.mxu0 0
        %7259 = vmatpush1.bf16.msra.mxu0 %v5604
        %7260 = vmatprep.subr.bf16.mxu0 0
        %7261 = vmatpush1.bf16.msra.mxu0 %v5605
        %7262 = vmatprep.subr.bf16.mxu0 0
        %7263 = vmatpush1.bf16.msra.mxu0 0
        %7264 = vmatprep.subr.bf16.mxu0 0
        %7265 = vmatpush1.bf16.msra.mxu0 0
        %7266 = vmatprep.subr.bf16.mxu0 0
        %7267 = vmatpush1.bf16.msra.mxu0 0
        %7268 = vmatprep.subr.bf16.mxu0 0
        %7269 = vmatpush1.bf16.msra.mxu0 0
        %7270 = vmatprep.subr.bf16.mxu0 0
        %7271 = vmatpush1.bf16.msra.mxu0 0
        %7272 = vmatprep.subr.bf16.mxu0 0
        %7273 = vmatpush1.bf16.msra.mxu0 0
        %7274 = vmatprep.subr.bf16.mxu0 0
        %7275 = vmatpush1.bf16.msra.mxu0 0
        %7276 = vmatprep.subr.bf16.mxu0 0
        %7277 = vmatpush1.bf16.msra.mxu0 0
        %7278 = vmatprep.subr.bf16.mxu0 0
        %7279 = vmatpush1.bf16.msra.mxu0 0
        %7280 = vmatprep.subr.bf16.mxu0 0
        %7281 = vmatpush1.bf16.msra.mxu0 0
        %7282 = vmatprep.subr.bf16.mxu0 0
        %7283 = vmatpush1.bf16.msra.mxu0 0
        %7284 = vmatprep.subr.bf16.mxu0 0
        %7285 = vmatpush1.bf16.msra.mxu0 0
        %7286 = vmatprep.mubr.bf16.mxu0 0
        %7287 = vmatmul.mubr.bf16.gmra.mrb[0].mxu0 %v7252
        %v7288 = vpop.f32.mrb[0].mxu0
        %v7289 = vadd.f32 0.0, %v7288
        %v7290 = vpop.f32.mrb[0].mxu0
        %v7291 = vpop.f32.mrb[0].mxu0
        %v7292 = vadd.f32 0.0, %v7291
        %v7293 = vpop.f32.mrb[0].mxu0
        %7294 = vdwg.mxu0
        %v7296 = vsel %vm6266, %v6634, 0
        %7298 = vmatprep.subr.bf16.mxu0 0
        %7299 = vmatpush1.bf16.msra.mxu0 %v5606
        %7300 = vmatprep.subr.bf16.mxu0 0
        %7301 = vmatpush1.bf16.msra.mxu0 %v5607
        %7302 = vmatprep.subr.bf16.mxu0 0
        %7303 = vmatpush1.bf16.msra.mxu0 %v5608
        %7304 = vmatprep.subr.bf16.mxu0 0
        %7305 = vmatpush1.bf16.msra.mxu0 %v5609
        %7306 = vmatprep.subr.bf16.mxu0 0
        %7307 = vmatpush1.bf16.msra.mxu0 0
        %7308 = vmatprep.subr.bf16.mxu0 0
        %7309 = vmatpush1.bf16.msra.mxu0 0
        %7310 = vmatprep.subr.bf16.mxu0 0
        %7311 = vmatpush1.bf16.msra.mxu0 0
        %7312 = vmatprep.subr.bf16.mxu0 0
        %7313 = vmatpush1.bf16.msra.mxu0 0
        %7314 = vmatprep.subr.bf16.mxu0 0
        %7315 = vmatpush1.bf16.msra.mxu0 0
        %7316 = vmatprep.subr.bf16.mxu0 0
        %7317 = vmatpush1.bf16.msra.mxu0 0
        %7318 = vmatprep.subr.bf16.mxu0 0
        %7319 = vmatpush1.bf16.msra.mxu0 0
        %7320 = vmatprep.subr.bf16.mxu0 0
        %7321 = vmatpush1.bf16.msra.mxu0 0
        %7322 = vmatprep.subr.bf16.mxu0 0
        %7323 = vmatpush1.bf16.msra.mxu0 0
        %7324 = vmatprep.subr.bf16.mxu0 0
        %7325 = vmatpush1.bf16.msra.mxu0 0
        %7326 = vmatprep.subr.bf16.mxu0 0
        %7327 = vmatpush1.bf16.msra.mxu0 0
        %7328 = vmatprep.subr.bf16.mxu0 0
        %7329 = vmatpush1.bf16.msra.mxu0 0
        %7330 = vmatprep.mubr.bf16.mxu0 0
        %7331 = vmatmul.mubr.bf16.gmra.mrb[0].mxu0 %v7296
        %v7332 = vpop.f32.mrb[0].mxu0
        %v7333 = vadd.f32 0.0, %v7332
        %v7334 = vpop.f32.mrb[0].mxu0
        %v7335 = vpop.f32.mrb[0].mxu0
        %v7336 = vadd.f32 0.0, %v7335
        %v7337 = vpop.f32.mrb[0].mxu0
        %7338 = vdwg.mxu0
        %v7339 = vadd.f32 %v6673, %v6717
        %v7340 = vadd.f32 %v7339, %v6761
        %v7341 = vadd.f32 %v7340, %v6805
        %v7342 = vadd.f32 %v7341, %v6849
        %v7343 = vadd.f32 %v7342, %v6893
        %v7344 = vadd.f32 %v7343, %v6937
        %v7345 = vadd.f32 %v7344, %v6981
        %v7346 = vadd.f32 %v7345, %v7025
        %v7347 = vadd.f32 %v7346, %v7069
        %v7348 = vadd.f32 %v7347, %v7113
        %v7349 = vadd.f32 %v7348, %v7157
        %v7350 = vadd.f32 %v7349, %v7201
        %v7351 = vadd.f32 %v7350, %v7245
        %v7352 = vadd.f32 %v7351, %v7289
        %v7353 = vadd.f32 %v7352, %v7333
        %v7354 = vadd.f32 %v6676, %v6720
        %v7355 = vadd.f32 %v7354, %v6764
        %v7356 = vadd.f32 %v7355, %v6808
        %v7357 = vadd.f32 %v7356, %v6852
        %v7358 = vadd.f32 %v7357, %v6896
        %v7359 = vadd.f32 %v7358, %v6940
        %v7360 = vadd.f32 %v7359, %v6984
        %v7361 = vadd.f32 %v7360, %v7028
        %v7362 = vadd.f32 %v7361, %v7072
        %v7363 = vadd.f32 %v7362, %v7116
        %v7364 = vadd.f32 %v7363, %v7160
        %v7365 = vadd.f32 %v7364, %v7204
        %v7366 = vadd.f32 %v7365, %v7248
        %v7367 = vadd.f32 %v7366, %v7292
        %v7368 = vadd.f32 %v7367, %v7336
        %v7369 = vpack.c.bf16 %v7368, %v7353
        %v7370 = vld [vmem:[#allocation11] sm:$0xf]
        %v7371 = vld [vmem:[#allocation11 + $0x4] sm:$0xf]
        %v7372 = vld [vmem:[#allocation11 + $0x8] sm:$0xf]
        %v7373 = vld [vmem:[#allocation11 + $0xc] sm:$0xf]
        %v7374 = vld [vmem:[#allocation11 + $0x10] sm:$0xf]
        %v7375 = vld [vmem:[#allocation11 + $0x14] sm:$0xf]
        %v7376 = vld [vmem:[#allocation11 + $0x18] sm:$0xf]
        %v7377 = vld [vmem:[#allocation11 + $0x1c] sm:$0xf]
        %v7378 = vld [vmem:[#allocation11 + $0x20] sm:$0xf]
        %v7379 = vld [vmem:[#allocation11 + $0x24] sm:$0xf]
        %v7380 = vld [vmem:[#allocation11 + $0x28] sm:$0xf]
        %v7381 = vld [vmem:[#allocation11 + $0x2c] sm:$0xf]
        %v7382 = vld [vmem:[#allocation11 + $0x30] sm:$0xf]
        %v7383 = vld [vmem:[#allocation11 + $0x34] sm:$0xf]
        %v7384 = vld [vmem:[#allocation11 + $0x38] sm:$0xf]
        %v7385 = vld [vmem:[#allocation11 + $0x3c] sm:$0xf]
        %v7386 = vld [vmem:[%s6] sm:$0x1]
        %v7388 = vlaneseq
        %v7389 = vshrl.u32 %v7388, 7
        %v7390 = vsub.s32 0, %v7389
        %v7391 = vrot.slane %v7386, %v7390
        %v7409 = vunpack.c.l.b16 %v7370
        %v7410 = vunpack.c.l.b16 %v7371
        %v7411 = vunpack.c.l.b16 %v7372
        %v7412 = vunpack.c.l.b16 %v7373
        %v7413 = vunpack.c.l.b16 %v7374
        %v7414 = vunpack.c.l.b16 %v7375
        %v7415 = vunpack.c.l.b16 %v7376
        %v7416 = vunpack.c.l.b16 %v7377
        %v7417 = vunpack.c.l.b16 %v7378
        %v7418 = vunpack.c.l.b16 %v7379
        %v7419 = vunpack.c.l.b16 %v7380
        %v7420 = vunpack.c.l.b16 %v7381
        %v7421 = vunpack.c.l.b16 %v7382
        %v7422 = vunpack.c.l.b16 %v7383
        %v7423 = vunpack.c.l.b16 %v7384
        %v7424 = vunpack.c.l.b16 %v7385
        %v7425 = vpack.c.b16 %v7410, %v7409
        %v7426 = vpack.c.b16 %v7412, %v7411
        %v7427 = vpack.c.b16 %v7414, %v7413
        %v7428 = vpack.c.b16 %v7416, %v7415
        %v7429 = vpack.c.b16 %v7418, %v7417
        %v7430 = vpack.c.b16 %v7420, %v7419
        %v7431 = vpack.c.b16 %v7422, %v7421
        %v7432 = vpack.c.b16 %v7424, %v7423
        %7441 = vmatprep.subr.bf16.mxu0 0
        %7442 = vmatpush1.bf16.msra.mxu0 %v7425
        %7443 = vmatprep.subr.bf16.mxu0 0
        %7444 = vmatpush1.bf16.msra.mxu0 %v7426
        %7445 = vmatprep.subr.bf16.mxu0 0
        %7446 = vmatpush1.bf16.msra.mxu0 %v7427
        %7447 = vmatprep.subr.bf16.mxu0 0
        %7448 = vmatpush1.bf16.msra.mxu0 %v7428
        %7449 = vmatprep.subr.bf16.mxu0 0
        %7450 = vmatpush1.bf16.msra.mxu0 %v7429
        %7451 = vmatprep.subr.bf16.mxu0 0
        %7452 = vmatpush1.bf16.msra.mxu0 %v7430
        %7453 = vmatprep.subr.bf16.mxu0 0
        %7454 = vmatpush1.bf16.msra.mxu0 %v7431
        %7455 = vmatprep.subr.bf16.mxu0 0
        %7456 = vmatpush1.bf16.msra.mxu0 %v7432
        %7457 = vmatprep.subr.bf16.mxu0 0
        %7458 = vmatpush1.bf16.msra.mxu0 0
        %7459 = vmatprep.subr.bf16.mxu0 0
        %7460 = vmatpush1.bf16.msra.mxu0 0
        %7461 = vmatprep.subr.bf16.mxu0 0
        %7462 = vmatpush1.bf16.msra.mxu0 0
        %7463 = vmatprep.subr.bf16.mxu0 0
        %7464 = vmatpush1.bf16.msra.mxu0 0
        %7465 = vmatprep.subr.bf16.mxu0 0
        %7466 = vmatpush1.bf16.msra.mxu0 0
        %7467 = vmatprep.subr.bf16.mxu0 0
        %7468 = vmatpush1.bf16.msra.mxu0 0
        %7469 = vmatprep.subr.bf16.mxu0 0
        %7470 = vmatpush1.bf16.msra.mxu0 0
        %7471 = vmatprep.subr.bf16.mxu0 0
        %7472 = vmatpush1.bf16.msra.mxu0 0
        %7473 = vmatprep.mubr.bf16.mxu0 0
        %7474 = vmatmul.mubr.bf16.gmra.mrb[0].mxu0 %v7369
        %v7475 = vpop.f32.mrb[0].mxu0
        %v7476 = vadd.f32 %v7391, %v7475
        %v7477 = vpop.f32.mrb[0].mxu0
        %v7478 = vpop.f32.mrb[0].mxu0
        %v7479 = vadd.f32 %v7391, %v7478
        %v7480 = vpop.f32.mrb[0].mxu0
        %7481 = vdwg.mxu0
        %7482 = vst [vmem:[%s369] sm:$0xff] %v7476
        %7483 = vst [vmem:[%s369 + $0x8] sm:$0xff] %v7479
        %s7484 = sand.u32 %s187, 1
        %s7485 = scalar_lea.sflag [#allocation4], %s7484
        %s7486 = sand.u32 %s187, 1
        %s7487 = smul.addr %s7486, 16
        %s7488 = scalar_lea.vmem [#allocation13], %s7487
        // Predicated region
        $region73: #{tpu_custom_call.1} parent=47 // pred_check
          %p7489 = pneg %p197
        $region74: #{tpu_custom_call.1} parent=47 // pred_check_branch
          %7491 = sbr.rel (%p7489) target = $region76
        $region75: #{tpu_custom_call.1} parent=47 // pred_region
          %s7493 = ssub.s32 256, 256
          %7494 = vsyncadd %s7485, %s7493
          %s7495 = smul.addr %s27, 2
          %s7496 = smul.addr %s7495, 128
          %s7497 = scalar_lea.hbm %s7, %s7496
          %s7498 = sshll.u32 %s7488, 4
          %s7499 = int_to_ptr.vmem [resolvable:$true] %s7498
          %7504 = dma.vmem_to_hbm [thread:$0]  %s7499, 256, %s7497, %s7485, 128, 128, 8
        $region76: #{tpu_custom_call.1} parent=47 // pred_fallthru
          _
      $region48: #{tpu_custom_call.1} parent=5 // pred_fallthru
        _
      %p7505 = scmp.le.s32.totalorder 2, %s22
      // Predicated region
      $region77: #{tpu_custom_call.1} parent=5 // pred_check
        %p7506 = pneg %p7505
      $region78: #{tpu_custom_call.1} parent=5 // pred_check_branch
        %7508 = sbr.rel (%p7506) target = $region80
      $region79: #{tpu_custom_call.1} parent=5 // pred_region
        %s7509 = ssub.s32 %s22, 2
        // Predicated region
        $region81: #{tpu_custom_call.1} parent=79 // pred_check
          %p7510 = pneg %p203
        $region82: #{tpu_custom_call.1} parent=79 // pred_check_branch
          %7512 = sbr.rel (%p7510) target = $region84
        $region83: #{tpu_custom_call.1} parent=79 // pred_region
          %s7513 = sand.u32 %s188, 1
          %s7514 = scalar_lea.sflag [#allocation4], %s7513
          %s7515 = sand.u32 %s188, 1
          %s7516 = smul.addr %s7515, 16
          %s7517 = scalar_lea.vmem [#allocation13], %s7516
          %7518 = dma.done %s7514, 256
        $region84: #{tpu_custom_call.1} parent=79 // pred_fallthru
          _
      $region80: #{tpu_custom_call.1} parent=5 // pred_fallthru
        _
    $region6: #{tpu_custom_call.1} parent=1 // loop_footer
      %s26 = sadd.s32 1, %s22
    $region7: #{tpu_custom_call.1} parent=1 // loop_footer_branch
      %21 = sbr.rel target = $region3
    $region8: #{tpu_custom_call.1} parent=1 // loop_exit
      _
    %7519 = vsyncpa [#allocation3], 1
    %s7520 = scalar_lea.sflag [#allocation3], 1
    %7521 = vsyncpa %s7520, 1
    %7522 = vsyncpa [#allocation6], 1
    %7523 = vsyncpa [#allocation9], 1
    %7524 = vsyncpa [#allocation12], 1
    %7525 = vsyncpa [#allocation4], 1
    %s7526 = scalar_lea.sflag [#allocation4], 1
    %7527 = vsyncpa %s7526, 1

</llo_original>
